<compile_context>
chip_gen: v7x
topology: tpu7x:2x2x1
jax: 0.10.0
libtpu: 0.0.40
codegen_flags: <defaults>
</compile_context>

<pallas_src>
import functools

import jax
import jax.numpy as jnp
from jax import lax
from jax.experimental import pallas as pl
from jax.experimental.pallas import tpu as pltpu


# ---------------------------------------------------------------------------
# Fused conv(3x3, stride 1) + bias + ReLU + maxpool(2,2) kernel
# ---------------------------------------------------------------------------
def _conv_relu_pool_kernel(xe_ref, xo_ref, w_ref, b_ref, o_ref,
                           *, K, Ho2, Wo2, Cin, Cout):
    """One image per grid step.

    xe_ref / xo_ref: (1, Hp, ~Wp/2, Cin) even / odd columns of the padded input.
    w_ref: (K*K, Cin, Cout) conv taps, kh-major / kw-minor.
    b_ref: (1, Cout) f32 bias.
    o_ref: (1, Ho2, Wo2, Cout) pooled + ReLU'd output.
    """
    halves = (xe_ref, xo_ref)

    def half_row(i, par):
        # Conv output row `i`, restricted to output columns of parity `par`
        # (static python int).  f32 accumulation, shape (Wo2, Cout).
        acc = jnp.zeros((Wo2, Cout), jnp.float32)
        for kh in range(K):
            for kw in range(K):
                src = halves[(par + kw) % 2]          # input column parity
                off = (par + kw) // 2                 # offset inside that half
                xs = src[0, i + kh, off:off + Wo2, :]  # (Wo2, Cin), contiguous
                w = w_ref[kh * K + kw]                 # (Cin, Cout)
                if Cin == 1:
                    # Degenerate contraction: VPU broadcast-multiply, not a
                    # K=1 MXU matmul (review item: avoid the worst GEMM).
                    acc = acc + xs.astype(jnp.float32) * w.astype(jnp.float32)
                else:
                    acc = acc + jnp.dot(xs, w, preferred_element_type=jnp.float32)
        return acc

    def body(p, carry):
        # 2x2 max pool = max over row pair (2p, 2p+1) x column parities (0, 1).
        top = jnp.maximum(half_row(2 * p, 0), half_row(2 * p, 1))
        bot = jnp.maximum(half_row(2 * p + 1, 0), half_row(2 * p + 1, 1))
        pooled = jnp.maximum(top, bot)                       # (Wo2, Cout) f32
        act = jnp.maximum(pooled + b_ref[...], 0.0)          # bias+ReLU (commute with max)
        o_ref[0, p] = act.astype(o_ref.dtype)
        return carry

    lax.fori_loop(0, Ho2, body, 0)


def conv_relu_pool(x_nhwc, w_taps, b, *, pad, out_dtype):
    """Fused Conv2d(3x3, stride 1, padding=pad) + ReLU + MaxPool2d(2, 2).

    x_nhwc: (N, H, W, Cin); w_taps: (K*K, Cin, Cout); b: (Cout,).
    Returns pooled NHWC activations (N, Ho//2, Wo//2, Cout) in out_dtype.
    """
    N, H, W, Cin = x_nhwc.shape
    KK, Cin_w, Cout = w_taps.shape
    K = int(round(KK ** 0.5))
    assert K * K == KK and Cin_w == Cin
    xp = jnp.pad(x_nhwc, ((0, 0), (pad, pad), (pad, pad), (0, 0)))
    Hp, Wp = H + 2 * pad, W + 2 * pad
    Ho, Wo = Hp - K + 1, Wp - K + 1
    Ho2, Wo2 = Ho // 2, Wo // 2
    # Even / odd input columns (two small XLA slices of the *input*; the large
    # conv outputs never round-trip HBM anymore).  This keeps every in-kernel
    # access a contiguous static slice and makes W-direction pooling free.
    xe = xp[:, :, 0::2, :]
    xo = xp[:, :, 1::2, :]
    We, Wodd = xe.shape[2], xo.shape[2]
    b2 = b.reshape(1, Cout).astype(jnp.float32)

    kernel = functools.partial(
        _conv_relu_pool_kernel, K=K, Ho2=Ho2, Wo2=Wo2, Cin=Cin, Cout=Cout)
    return pl.pallas_call(
        kernel,
        out_shape=jax.ShapeDtypeStruct((N, Ho2, Wo2, Cout), out_dtype),
        grid=(N,),
        in_specs=[
            pl.BlockSpec((1, Hp, We, Cin), lambda n: (n, 0, 0, 0)),
            pl.BlockSpec((1, Hp, Wodd, Cin), lambda n: (n, 0, 0, 0)),
            pl.BlockSpec((KK, Cin, Cout), lambda n: (0, 0, 0)),
            pl.BlockSpec((1, Cout), lambda n: (0, 0)),
        ],
        out_specs=pl.BlockSpec((1, Ho2, Wo2, Cout), lambda n: (n, 0, 0, 0)),
        compiler_params=pltpu.CompilerParams(
            dimension_semantics=("parallel",)),   # batch -> megacore on v7x
    )(xe, xo, w_taps, b2)


# ---------------------------------------------------------------------------
# Fused fc1(+ReLU) -> fc2 kernel (lane-dense, padded-to-128 output)
# ---------------------------------------------------------------------------
def _mlp_kernel(x_ref, w1_ref, b1_ref, w2_ref, b2_ref, o_ref):
    h = jnp.dot(x_ref[...], w1_ref[...], preferred_element_type=jnp.float32)
    h = jnp.maximum(h + b1_ref[...], 0.0)                     # f32 bias + ReLU
    y = jnp.dot(h.astype(w2_ref.dtype), w2_ref[...],
                preferred_element_type=jnp.float32)
    o_ref[...] = (y + b2_ref[...]).astype(o_ref.dtype)


def _pick_tile_m(m):
    for t in (512, 256, 128, 64, 32, 16, 8):
        if m % t == 0:
            return t
    return m


def mlp_head(x, w1, b1, w2, b2):
    """y = (relu(x @ w1 + b1)) @ w2 + b2, tiled over rows of x."""
    M, K = x.shape
    K1, H = w1.shape
    H2, NO = w2.shape
    assert K1 == K and H2 == H
    tm = _pick_tile_m(M)   # <=512-row tiles: ~8.5 MiB VMEM incl. double-buffering
    return pl.pallas_call(
        _mlp_kernel,
        out_shape=jax.ShapeDtypeStruct((M, NO), jnp.float32),
        grid=(M // tm,),
        in_specs=[
            pl.BlockSpec((tm, K), lambda i: (i, 0)),
            pl.BlockSpec((K, H), lambda i: (0, 0)),
            pl.BlockSpec((1, H), lambda i: (0, 0)),
            pl.BlockSpec((H, NO), lambda i: (0, 0)),
            pl.BlockSpec((1, NO), lambda i: (0, 0)),
        ],
        out_specs=pl.BlockSpec((tm, NO), lambda i: (i, 0)),
        compiler_params=pltpu.CompilerParams(
            dimension_semantics=("parallel",)),
    )(x, w1, b1.reshape(1, H).astype(jnp.float32),
      w2, b2.reshape(1, NO).astype(jnp.float32))


# ---------------------------------------------------------------------------
# Parameter preparation (one-time, torch layout -> kernel layout)
# ---------------------------------------------------------------------------
def prepare_params(tp):
    """Convert PyTorch-layout parameters into kernel-friendly layouts.

    * conv weights (Cout,Cin,kh,kw) -> taps (kh*kw, Cin, Cout)
    * fc1 rows permuted from NCHW-flatten (C,H,W) to NHWC-flatten (H,W,C) order
      so the activation needs no transpose before fc1
    * fc2 zero-padded 10 -> 128 output columns (lane-dense final store)
    * matmul operands cast to bf16 (f32 accumulation stays in-kernel)
    """
    def conv_taps(w, dtype):
        cout, cin, kh, kw = w.shape
        return (jnp.transpose(w, (2, 3, 1, 0))
                .reshape(kh * kw, cin, cout).astype(dtype))

    c, h, w = 64, 7, 7
    nout = tp["fc1_w"].shape[0]
    wfc1 = (tp["fc1_w"].reshape(nout, c, h, w)
            .transpose(0, 2, 3, 1).reshape(nout, c * h * w).T)

    n2, hdim = tp["fc2_w"].shape
    wfc2 = jnp.zeros((hdim, 128), jnp.float32).at[:, :n2].set(tp["fc2_w"].T)
    bfc2 = jnp.zeros((128,), jnp.float32).at[:n2].set(tp["fc2_b"])

    return {
        "w1": conv_taps(tp["conv1_w"], jnp.float32),   # Cin=1 -> VPU path, f32
        "b1": tp["conv1_b"].astype(jnp.float32),
        "w2": conv_taps(tp["conv2_w"], jnp.bfloat16),  # MXU path, bf16
        "b2": tp["conv2_b"].astype(jnp.float32),
        "wfc1": wfc1.astype(jnp.bfloat16),
        "bfc1": tp["fc1_b"].astype(jnp.float32),
        "wfc2": wfc2.astype(jnp.bfloat16),
        "bfc2": bfc2,
    }


# ---------------------------------------------------------------------------
# Full forward
# ---------------------------------------------------------------------------
def cnn_forward(x_nchw, p):
    x = jnp.transpose(x_nchw, (0, 2, 3, 1))                       # NCHW -> NHWC
    x = conv_relu_pool(x, p["w1"], p["b1"], pad=2,
                       out_dtype=jnp.bfloat16)                    # (N,15,15,32)
    x = conv_relu_pool(x, p["w2"], p["b2"], pad=1,
                       out_dtype=jnp.bfloat16)                    # (N,7,7,64)
    n = x.shape[0]
    x = x.reshape(n, -1)        # NHWC flatten; fc1 rows pre-permuted to match
    y = mlp_head(x, p["wfc1"], p["bfc1"], p["wfc2"], p["bfc2"])   # (N,128) f32
    return y[:, :10]            # drop the lane-padding columns


# ---------------------------------------------------------------------------
# Deterministic example parameters (PyTorch layouts) + plain-XLA reference
# ---------------------------------------------------------------------------
def init_torch_params(key):
    ks = jax.random.split(key, 8)
    s = 0.05
    return {
        "conv1_w": s * jax.random.normal(ks[0], (32, 1, 3, 3), jnp.float32),
        "conv1_b": s * jax.random.normal(ks[1], (32,), jnp.float32),
        "conv2_w": s * jax.random.normal(ks[2], (64, 32, 3, 3), jnp.float32),
        "conv2_b": s * jax.random.normal(ks[3], (64,), jnp.float32),
        "fc1_w": s * jax.random.normal(ks[4], (128, 64 * 7 * 7), jnp.float32),
        "fc1_b": s * jax.random.normal(ks[5], (128,), jnp.float32),
        "fc2_w": s * jax.random.normal(ks[6], (10, 128), jnp.float32),
        "fc2_b": s * jax.random.normal(ks[7], (10,), jnp.float32),
    }


def reference_forward(x_nchw, tp):
    dn = ("NCHW", "OIHW", "NCHW")
    x = lax.conv_general_dilated(x_nchw, tp["conv1_w"], (1, 1),
                                 [(2, 2), (2, 2)], dimension_numbers=dn)
    x = jnp.maximum(x + tp["conv1_b"][None, :, None, None], 0.0)
    x = lax.reduce_window(x, -jnp.inf, lax.max, (1, 1, 2, 2), (1, 1, 2, 2), "VALID")
    x = lax.conv_general_dilated(x, tp["conv2_w"], (1, 1),
                                 [(1, 1), (1, 1)], dimension_numbers=dn)
    x = jnp.maximum(x + tp["conv2_b"][None, :, None, None], 0.0)
    x = lax.reduce_window(x, -jnp.inf, lax.max, (1, 1, 2, 2), (1, 1, 2, 2), "VALID")
    x = x.reshape(x.shape[0], -1)
    x = jnp.maximum(x @ tp["fc1_w"].T + tp["fc1_b"], 0.0)
    return x @ tp["fc2_w"].T + tp["fc2_b"]


if __name__ == "__main__":
    key = jax.random.PRNGKey(0)
    k_x, k_p = jax.random.split(key)
    # Spatial size is fixed at 28x28 by fc1 = Linear(64*7*7, 128); small batch.
    x = jax.random.normal(k_x, (2, 1, 28, 28), jnp.float32)
    torch_params = init_torch_params(k_p)
    params = prepare_params(torch_params)

    fwd = jax.jit(cnn_forward)
    out = jax.block_until_ready(fwd(x, params))
    assert out.shape == (2, 10), out.shape
    assert out.dtype == jnp.float32

    # Numerical sanity check vs a plain-XLA f32 reference (loose tolerance:
    # kernels use bf16 matmul operands with f32 accumulation).
    with jax.default_matmul_precision("highest"):
        ref = jax.jit(reference_forward)(x, torch_params)
    err = float(jnp.max(jnp.abs(out - ref)))
    assert err < 5e-2, f"max abs err vs reference: {err}"

    print("KERNEL_OK")
</pallas_src>

<mosaic_0001>
module attributes {stable_mosaic.version = 11 : i64} {
  func.func @_conv_relu_pool_kernel(%arg0: i32, %arg1: memref<1x32x16x1xf32, #tpu.memory_space<vmem>>, %arg2: memref<1x32x16x1xf32, #tpu.memory_space<vmem>>, %arg3: memref<9x1x32xf32, #tpu.memory_space<vmem>>, %arg4: memref<1x32xf32, #tpu.memory_space<vmem>>, %arg5: memref<1x15x15x32xbf16, #tpu.memory_space<vmem>>) attributes {dimension_semantics = [#tpu.dimension_semantics<parallel>], iteration_bounds = array<i64: 2>, scalar_prefetch = 0 : i64, scratch_operands = 0 : i64, tpu.core_type = #tpu.core_type<tc>, window_params = [{transform_indices = @transform_0, window_bounds = array<i64: 1, 32, 16, 1>}, {transform_indices = @transform_1, window_bounds = array<i64: 1, 32, 16, 1>}, {pipeline_mode = #tpu.pipeline_mode<synchronous>, transform_indices = @transform_2, window_bounds = array<i64: 9, 1, 32>}, {pipeline_mode = #tpu.pipeline_mode<synchronous>, transform_indices = @transform_3, window_bounds = array<i64: 1, 32>}, {transform_indices = @transform_4, window_bounds = array<i64: 1, 15, 15, 32>}]} {
    %c0_i32 = arith.constant 0 : i32
    %c15_i32 = arith.constant 15 : i32
    %0 = arith.addi %c0_i32, %c15_i32 : i32
    %c1_i32 = arith.constant 1 : i32
    scf.for %arg6 = %c0_i32 to %0 step %c1_i32  : i32 {
      %c2_i32 = arith.constant 2 : i32
      %1 = arith.muli %c2_i32, %arg6 : i32
      %cst = arith.constant 0.000000e+00 : f32
      %2 = vector.broadcast %cst : f32 to vector<15x32xf32>
      %c0_i32_1 = arith.constant 0 : i32
      %3 = arith.addi %1, %c0_i32_1 : i32
      %c0 = arith.constant 0 : index
      %4 = arith.index_cast %3 : i32 to index
      %c0_2 = arith.constant 0 : index
      %c0_3 = arith.constant 0 : index
      %5 = vector.load %arg1[%c0, %4, %c0_2, %c0_3] : memref<1x32x16x1xf32, #tpu.memory_space<vmem>>, vector<1x1x15x1xf32>
      %6 = vector.shape_cast %5 : vector<1x1x15x1xf32> to vector<15x1xf32>
      %c0_4 = arith.constant 0 : index
      %c0_5 = arith.constant 0 : index
      %c0_6 = arith.constant 0 : index
      %7 = vector.load %arg3[%c0_4, %c0_5, %c0_6] : memref<9x1x32xf32, #tpu.memory_space<vmem>>, vector<1x1x32xf32>
      %8 = vector.shape_cast %7 : vector<1x1x32xf32> to vector<1x32xf32>
      %9 = vector.broadcast %6 : vector<15x1xf32> to vector<15x32xf32>
      %10 = vector.broadcast %8 : vector<1x32xf32> to vector<15x32xf32>
      %11 = arith.mulf %9, %10 : vector<15x32xf32>
      %12 = arith.addf %2, %11 : vector<15x32xf32>
      %c0_i32_7 = arith.constant 0 : i32
      %13 = arith.addi %1, %c0_i32_7 : i32
      %c0_8 = arith.constant 0 : index
      %14 = arith.index_cast %13 : i32 to index
      %c0_9 = arith.constant 0 : index
      %c0_10 = arith.constant 0 : index
      %15 = vector.load %arg2[%c0_8, %14, %c0_9, %c0_10] : memref<1x32x16x1xf32, #tpu.memory_space<vmem>>, vector<1x1x15x1xf32>
      %16 = vector.shape_cast %15 : vector<1x1x15x1xf32> to vector<15x1xf32>
      %c1 = arith.constant 1 : index
      %c0_11 = arith.constant 0 : index
      %c0_12 = arith.constant 0 : index
      %17 = vector.load %arg3[%c1, %c0_11, %c0_12] : memref<9x1x32xf32, #tpu.memory_space<vmem>>, vector<1x1x32xf32>
      %18 = vector.shape_cast %17 : vector<1x1x32xf32> to vector<1x32xf32>
      %19 = vector.broadcast %16 : vector<15x1xf32> to vector<15x32xf32>
      %20 = vector.broadcast %18 : vector<1x32xf32> to vector<15x32xf32>
      %21 = arith.mulf %19, %20 : vector<15x32xf32>
      %22 = arith.addf %12, %21 : vector<15x32xf32>
      %c0_i32_13 = arith.constant 0 : i32
      %23 = arith.addi %1, %c0_i32_13 : i32
      %c0_14 = arith.constant 0 : index
      %24 = arith.index_cast %23 : i32 to index
      %c1_15 = arith.constant 1 : index
      %c0_16 = arith.constant 0 : index
      %25 = vector.load %arg1[%c0_14, %24, %c1_15, %c0_16] : memref<1x32x16x1xf32, #tpu.memory_space<vmem>>, vector<1x1x15x1xf32>
      %26 = vector.shape_cast %25 : vector<1x1x15x1xf32> to vector<15x1xf32>
      %c2 = arith.constant 2 : index
      %c0_17 = arith.constant 0 : index
      %c0_18 = arith.constant 0 : index
      %27 = vector.load %arg3[%c2, %c0_17, %c0_18] : memref<9x1x32xf32, #tpu.memory_space<vmem>>, vector<1x1x32xf32>
      %28 = vector.shape_cast %27 : vector<1x1x32xf32> to vector<1x32xf32>
      %29 = vector.broadcast %26 : vector<15x1xf32> to vector<15x32xf32>
      %30 = vector.broadcast %28 : vector<1x32xf32> to vector<15x32xf32>
      %31 = arith.mulf %29, %30 : vector<15x32xf32>
      %32 = arith.addf %22, %31 : vector<15x32xf32>
      %c1_i32_19 = arith.constant 1 : i32
      %33 = arith.addi %1, %c1_i32_19 : i32
      %c0_20 = arith.constant 0 : index
      %34 = arith.index_cast %33 : i32 to index
      %c0_21 = arith.constant 0 : index
      %c0_22 = arith.constant 0 : index
      %35 = vector.load %arg1[%c0_20, %34, %c0_21, %c0_22] : memref<1x32x16x1xf32, #tpu.memory_space<vmem>>, vector<1x1x15x1xf32>
      %36 = vector.shape_cast %35 : vector<1x1x15x1xf32> to vector<15x1xf32>
      %c3 = arith.constant 3 : index
      %c0_23 = arith.constant 0 : index
      %c0_24 = arith.constant 0 : index
      %37 = vector.load %arg3[%c3, %c0_23, %c0_24] : memref<9x1x32xf32, #tpu.memory_space<vmem>>, vector<1x1x32xf32>
      %38 = vector.shape_cast %37 : vector<1x1x32xf32> to vector<1x32xf32>
      %39 = vector.broadcast %36 : vector<15x1xf32> to vector<15x32xf32>
      %40 = vector.broadcast %38 : vector<1x32xf32> to vector<15x32xf32>
      %41 = arith.mulf %39, %40 : vector<15x32xf32>
      %42 = arith.addf %32, %41 : vector<15x32xf32>
      %c1_i32_25 = arith.constant 1 : i32
      %43 = arith.addi %1, %c1_i32_25 : i32
      %c0_26 = arith.constant 0 : index
      %44 = arith.index_cast %43 : i32 to index
      %c0_27 = arith.constant 0 : index
      %c0_28 = arith.constant 0 : index
      %45 = vector.load %arg2[%c0_26, %44, %c0_27, %c0_28] : memref<1x32x16x1xf32, #tpu.memory_space<vmem>>, vector<1x1x15x1xf32>
      %46 = vector.shape_cast %45 : vector<1x1x15x1xf32> to vector<15x1xf32>
      %c4 = arith.constant 4 : index
      %c0_29 = arith.constant 0 : index
      %c0_30 = arith.constant 0 : index
      %47 = vector.load %arg3[%c4, %c0_29, %c0_30] : memref<9x1x32xf32, #tpu.memory_space<vmem>>, vector<1x1x32xf32>
      %48 = vector.shape_cast %47 : vector<1x1x32xf32> to vector<1x32xf32>
      %49 = vector.broadcast %46 : vector<15x1xf32> to vector<15x32xf32>
      %50 = vector.broadcast %48 : vector<1x32xf32> to vector<15x32xf32>
      %51 = arith.mulf %49, %50 : vector<15x32xf32>
      %52 = arith.addf %42, %51 : vector<15x32xf32>
      %c1_i32_31 = arith.constant 1 : i32
      %53 = arith.addi %1, %c1_i32_31 : i32
      %c0_32 = arith.constant 0 : index
      %54 = arith.index_cast %53 : i32 to index
      %c1_33 = arith.constant 1 : index
      %c0_34 = arith.constant 0 : index
      %55 = vector.load %arg1[%c0_32, %54, %c1_33, %c0_34] : memref<1x32x16x1xf32, #tpu.memory_space<vmem>>, vector<1x1x15x1xf32>
      %56 = vector.shape_cast %55 : vector<1x1x15x1xf32> to vector<15x1xf32>
      %c5 = arith.constant 5 : index
      %c0_35 = arith.constant 0 : index
      %c0_36 = arith.constant 0 : index
      %57 = vector.load %arg3[%c5, %c0_35, %c0_36] : memref<9x1x32xf32, #tpu.memory_space<vmem>>, vector<1x1x32xf32>
      %58 = vector.shape_cast %57 : vector<1x1x32xf32> to vector<1x32xf32>
      %59 = vector.broadcast %56 : vector<15x1xf32> to vector<15x32xf32>
      %60 = vector.broadcast %58 : vector<1x32xf32> to vector<15x32xf32>
      %61 = arith.mulf %59, %60 : vector<15x32xf32>
      %62 = arith.addf %52, %61 : vector<15x32xf32>
      %c2_i32_37 = arith.constant 2 : i32
      %63 = arith.addi %1, %c2_i32_37 : i32
      %c0_38 = arith.constant 0 : index
      %64 = arith.index_cast %63 : i32 to index
      %c0_39 = arith.constant 0 : index
      %c0_40 = arith.constant 0 : index
      %65 = vector.load %arg1[%c0_38, %64, %c0_39, %c0_40] : memref<1x32x16x1xf32, #tpu.memory_space<vmem>>, vector<1x1x15x1xf32>
      %66 = vector.shape_cast %65 : vector<1x1x15x1xf32> to vector<15x1xf32>
      %c6 = arith.constant 6 : index
      %c0_41 = arith.constant 0 : index
      %c0_42 = arith.constant 0 : index
      %67 = vector.load %arg3[%c6, %c0_41, %c0_42] : memref<9x1x32xf32, #tpu.memory_space<vmem>>, vector<1x1x32xf32>
      %68 = vector.shape_cast %67 : vector<1x1x32xf32> to vector<1x32xf32>
      %69 = vector.broadcast %66 : vector<15x1xf32> to vector<15x32xf32>
      %70 = vector.broadcast %68 : vector<1x32xf32> to vector<15x32xf32>
      %71 = arith.mulf %69, %70 : vector<15x32xf32>
      %72 = arith.addf %62, %71 : vector<15x32xf32>
      %c2_i32_43 = arith.constant 2 : i32
      %73 = arith.addi %1, %c2_i32_43 : i32
      %c0_44 = arith.constant 0 : index
      %74 = arith.index_cast %73 : i32 to index
      %c0_45 = arith.constant 0 : index
      %c0_46 = arith.constant 0 : index
      %75 = vector.load %arg2[%c0_44, %74, %c0_45, %c0_46] : memref<1x32x16x1xf32, #tpu.memory_space<vmem>>, vector<1x1x15x1xf32>
      %76 = vector.shape_cast %75 : vector<1x1x15x1xf32> to vector<15x1xf32>
      %c7 = arith.constant 7 : index
      %c0_47 = arith.constant 0 : index
      %c0_48 = arith.constant 0 : index
      %77 = vector.load %arg3[%c7, %c0_47, %c0_48] : memref<9x1x32xf32, #tpu.memory_space<vmem>>, vector<1x1x32xf32>
      %78 = vector.shape_cast %77 : vector<1x1x32xf32> to vector<1x32xf32>
      %79 = vector.broadcast %76 : vector<15x1xf32> to vector<15x32xf32>
      %80 = vector.broadcast %78 : vector<1x32xf32> to vector<15x32xf32>
      %81 = arith.mulf %79, %80 : vector<15x32xf32>
      %82 = arith.addf %72, %81 : vector<15x32xf32>
      %c2_i32_49 = arith.constant 2 : i32
      %83 = arith.addi %1, %c2_i32_49 : i32
      %c0_50 = arith.constant 0 : index
      %84 = arith.index_cast %83 : i32 to index
      %c1_51 = arith.constant 1 : index
      %c0_52 = arith.constant 0 : index
      %85 = vector.load %arg1[%c0_50, %84, %c1_51, %c0_52] : memref<1x32x16x1xf32, #tpu.memory_space<vmem>>, vector<1x1x15x1xf32>
      %86 = vector.shape_cast %85 : vector<1x1x15x1xf32> to vector<15x1xf32>
      %c8 = arith.constant 8 : index
      %c0_53 = arith.constant 0 : index
      %c0_54 = arith.constant 0 : index
      %87 = vector.load %arg3[%c8, %c0_53, %c0_54] : memref<9x1x32xf32, #tpu.memory_space<vmem>>, vector<1x1x32xf32>
      %88 = vector.shape_cast %87 : vector<1x1x32xf32> to vector<1x32xf32>
      %89 = vector.broadcast %86 : vector<15x1xf32> to vector<15x32xf32>
      %90 = vector.broadcast %88 : vector<1x32xf32> to vector<15x32xf32>
      %91 = arith.mulf %89, %90 : vector<15x32xf32>
      %92 = arith.addf %82, %91 : vector<15x32xf32>
      %c2_i32_55 = arith.constant 2 : i32
      %93 = arith.muli %c2_i32_55, %arg6 : i32
      %cst_56 = arith.constant 0.000000e+00 : f32
      %94 = vector.broadcast %cst_56 : f32 to vector<15x32xf32>
      %c0_i32_57 = arith.constant 0 : i32
      %95 = arith.addi %93, %c0_i32_57 : i32
      %c0_58 = arith.constant 0 : index
      %96 = arith.index_cast %95 : i32 to index
      %c0_59 = arith.constant 0 : index
      %c0_60 = arith.constant 0 : index
      %97 = vector.load %arg2[%c0_58, %96, %c0_59, %c0_60] : memref<1x32x16x1xf32, #tpu.memory_space<vmem>>, vector<1x1x15x1xf32>
      %98 = vector.shape_cast %97 : vector<1x1x15x1xf32> to vector<15x1xf32>
      %c0_61 = arith.constant 0 : index
      %c0_62 = arith.constant 0 : index
      %c0_63 = arith.constant 0 : index
      %99 = vector.load %arg3[%c0_61, %c0_62, %c0_63] : memref<9x1x32xf32, #tpu.memory_space<vmem>>, vector<1x1x32xf32>
      %100 = vector.shape_cast %99 : vector<1x1x32xf32> to vector<1x32xf32>
      %101 = vector.broadcast %98 : vector<15x1xf32> to vector<15x32xf32>
      %102 = vector.broadcast %100 : vector<1x32xf32> to vector<15x32xf32>
      %103 = arith.mulf %101, %102 : vector<15x32xf32>
      %104 = arith.addf %94, %103 : vector<15x32xf32>
      %c0_i32_64 = arith.constant 0 : i32
      %105 = arith.addi %93, %c0_i32_64 : i32
      %c0_65 = arith.constant 0 : index
      %106 = arith.index_cast %105 : i32 to index
      %c1_66 = arith.constant 1 : index
      %c0_67 = arith.constant 0 : index
      %107 = vector.load %arg1[%c0_65, %106, %c1_66, %c0_67] : memref<1x32x16x1xf32, #tpu.memory_space<vmem>>, vector<1x1x15x1xf32>
      %108 = vector.shape_cast %107 : vector<1x1x15x1xf32> to vector<15x1xf32>
      %c1_68 = arith.constant 1 : index
      %c0_69 = arith.constant 0 : index
      %c0_70 = arith.constant 0 : index
      %109 = vector.load %arg3[%c1_68, %c0_69, %c0_70] : memref<9x1x32xf32, #tpu.memory_space<vmem>>, vector<1x1x32xf32>
      %110 = vector.shape_cast %109 : vector<1x1x32xf32> to vector<1x32xf32>
      %111 = vector.broadcast %108 : vector<15x1xf32> to vector<15x32xf32>
      %112 = vector.broadcast %110 : vector<1x32xf32> to vector<15x32xf32>
      %113 = arith.mulf %111, %112 : vector<15x32xf32>
      %114 = arith.addf %104, %113 : vector<15x32xf32>
      %c0_i32_71 = arith.constant 0 : i32
      %115 = arith.addi %93, %c0_i32_71 : i32
      %c0_72 = arith.constant 0 : index
      %116 = arith.index_cast %115 : i32 to index
      %c1_73 = arith.constant 1 : index
      %c0_74 = arith.constant 0 : index
      %117 = vector.load %arg2[%c0_72, %116, %c1_73, %c0_74] : memref<1x32x16x1xf32, #tpu.memory_space<vmem>>, vector<1x1x15x1xf32>
      %118 = vector.shape_cast %117 : vector<1x1x15x1xf32> to vector<15x1xf32>
      %c2_75 = arith.constant 2 : index
      %c0_76 = arith.constant 0 : index
      %c0_77 = arith.constant 0 : index
      %119 = vector.load %arg3[%c2_75, %c0_76, %c0_77] : memref<9x1x32xf32, #tpu.memory_space<vmem>>, vector<1x1x32xf32>
      %120 = vector.shape_cast %119 : vector<1x1x32xf32> to vector<1x32xf32>
      %121 = vector.broadcast %118 : vector<15x1xf32> to vector<15x32xf32>
      %122 = vector.broadcast %120 : vector<1x32xf32> to vector<15x32xf32>
      %123 = arith.mulf %121, %122 : vector<15x32xf32>
      %124 = arith.addf %114, %123 : vector<15x32xf32>
      %c1_i32_78 = arith.constant 1 : i32
      %125 = arith.addi %93, %c1_i32_78 : i32
      %c0_79 = arith.constant 0 : index
      %126 = arith.index_cast %125 : i32 to index
      %c0_80 = arith.constant 0 : index
      %c0_81 = arith.constant 0 : index
      %127 = vector.load %arg2[%c0_79, %126, %c0_80, %c0_81] : memref<1x32x16x1xf32, #tpu.memory_space<vmem>>, vector<1x1x15x1xf32>
      %128 = vector.shape_cast %127 : vector<1x1x15x1xf32> to vector<15x1xf32>
      %c3_82 = arith.constant 3 : index
      %c0_83 = arith.constant 0 : index
      %c0_84 = arith.constant 0 : index
      %129 = vector.load %arg3[%c3_82, %c0_83, %c0_84] : memref<9x1x32xf32, #tpu.memory_space<vmem>>, vector<1x1x32xf32>
      %130 = vector.shape_cast %129 : vector<1x1x32xf32> to vector<1x32xf32>
      %131 = vector.broadcast %128 : vector<15x1xf32> to vector<15x32xf32>
      %132 = vector.broadcast %130 : vector<1x32xf32> to vector<15x32xf32>
      %133 = arith.mulf %131, %132 : vector<15x32xf32>
      %134 = arith.addf %124, %133 : vector<15x32xf32>
      %c1_i32_85 = arith.constant 1 : i32
      %135 = arith.addi %93, %c1_i32_85 : i32
      %c0_86 = arith.constant 0 : index
      %136 = arith.index_cast %135 : i32 to index
      %c1_87 = arith.constant 1 : index
      %c0_88 = arith.constant 0 : index
      %137 = vector.load %arg1[%c0_86, %136, %c1_87, %c0_88] : memref<1x32x16x1xf32, #tpu.memory_space<vmem>>, vector<1x1x15x1xf32>
      %138 = vector.shape_cast %137 : vector<1x1x15x1xf32> to vector<15x1xf32>
      %c4_89 = arith.constant 4 : index
      %c0_90 = arith.constant 0 : index
      %c0_91 = arith.constant 0 : index
      %139 = vector.load %arg3[%c4_89, %c0_90, %c0_91] : memref<9x1x32xf32, #tpu.memory_space<vmem>>, vector<1x1x32xf32>
      %140 = vector.shape_cast %139 : vector<1x1x32xf32> to vector<1x32xf32>
      %141 = vector.broadcast %138 : vector<15x1xf32> to vector<15x32xf32>
      %142 = vector.broadcast %140 : vector<1x32xf32> to vector<15x32xf32>
      %143 = arith.mulf %141, %142 : vector<15x32xf32>
      %144 = arith.addf %134, %143 : vector<15x32xf32>
      %c1_i32_92 = arith.constant 1 : i32
      %145 = arith.addi %93, %c1_i32_92 : i32
      %c0_93 = arith.constant 0 : index
      %146 = arith.index_cast %145 : i32 to index
      %c1_94 = arith.constant 1 : index
      %c0_95 = arith.constant 0 : index
      %147 = vector.load %arg2[%c0_93, %146, %c1_94, %c0_95] : memref<1x32x16x1xf32, #tpu.memory_space<vmem>>, vector<1x1x15x1xf32>
      %148 = vector.shape_cast %147 : vector<1x1x15x1xf32> to vector<15x1xf32>
      %c5_96 = arith.constant 5 : index
      %c0_97 = arith.constant 0 : index
      %c0_98 = arith.constant 0 : index
      %149 = vector.load %arg3[%c5_96, %c0_97, %c0_98] : memref<9x1x32xf32, #tpu.memory_space<vmem>>, vector<1x1x32xf32>
      %150 = vector.shape_cast %149 : vector<1x1x32xf32> to vector<1x32xf32>
      %151 = vector.broadcast %148 : vector<15x1xf32> to vector<15x32xf32>
      %152 = vector.broadcast %150 : vector<1x32xf32> to vector<15x32xf32>
      %153 = arith.mulf %151, %152 : vector<15x32xf32>
      %154 = arith.addf %144, %153 : vector<15x32xf32>
      %c2_i32_99 = arith.constant 2 : i32
      %155 = arith.addi %93, %c2_i32_99 : i32
      %c0_100 = arith.constant 0 : index
      %156 = arith.index_cast %155 : i32 to index
      %c0_101 = arith.constant 0 : index
      %c0_102 = arith.constant 0 : index
      %157 = vector.load %arg2[%c0_100, %156, %c0_101, %c0_102] : memref<1x32x16x1xf32, #tpu.memory_space<vmem>>, vector<1x1x15x1xf32>
      %158 = vector.shape_cast %157 : vector<1x1x15x1xf32> to vector<15x1xf32>
      %c6_103 = arith.constant 6 : index
      %c0_104 = arith.constant 0 : index
      %c0_105 = arith.constant 0 : index
      %159 = vector.load %arg3[%c6_103, %c0_104, %c0_105] : memref<9x1x32xf32, #tpu.memory_space<vmem>>, vector<1x1x32xf32>
      %160 = vector.shape_cast %159 : vector<1x1x32xf32> to vector<1x32xf32>
      %161 = vector.broadcast %158 : vector<15x1xf32> to vector<15x32xf32>
      %162 = vector.broadcast %160 : vector<1x32xf32> to vector<15x32xf32>
      %163 = arith.mulf %161, %162 : vector<15x32xf32>
      %164 = arith.addf %154, %163 : vector<15x32xf32>
      %c2_i32_106 = arith.constant 2 : i32
      %165 = arith.addi %93, %c2_i32_106 : i32
      %c0_107 = arith.constant 0 : index
      %166 = arith.index_cast %165 : i32 to index
      %c1_108 = arith.constant 1 : index
      %c0_109 = arith.constant 0 : index
      %167 = vector.load %arg1[%c0_107, %166, %c1_108, %c0_109] : memref<1x32x16x1xf32, #tpu.memory_space<vmem>>, vector<1x1x15x1xf32>
      %168 = vector.shape_cast %167 : vector<1x1x15x1xf32> to vector<15x1xf32>
      %c7_110 = arith.constant 7 : index
      %c0_111 = arith.constant 0 : index
      %c0_112 = arith.constant 0 : index
      %169 = vector.load %arg3[%c7_110, %c0_111, %c0_112] : memref<9x1x32xf32, #tpu.memory_space<vmem>>, vector<1x1x32xf32>
      %170 = vector.shape_cast %169 : vector<1x1x32xf32> to vector<1x32xf32>
      %171 = vector.broadcast %168 : vector<15x1xf32> to vector<15x32xf32>
      %172 = vector.broadcast %170 : vector<1x32xf32> to vector<15x32xf32>
      %173 = arith.mulf %171, %172 : vector<15x32xf32>
      %174 = arith.addf %164, %173 : vector<15x32xf32>
      %c2_i32_113 = arith.constant 2 : i32
      %175 = arith.addi %93, %c2_i32_113 : i32
      %c0_114 = arith.constant 0 : index
      %176 = arith.index_cast %175 : i32 to index
      %c1_115 = arith.constant 1 : index
      %c0_116 = arith.constant 0 : index
      %177 = vector.load %arg2[%c0_114, %176, %c1_115, %c0_116] : memref<1x32x16x1xf32, #tpu.memory_space<vmem>>, vector<1x1x15x1xf32>
      %178 = vector.shape_cast %177 : vector<1x1x15x1xf32> to vector<15x1xf32>
      %c8_117 = arith.constant 8 : index
      %c0_118 = arith.constant 0 : index
      %c0_119 = arith.constant 0 : index
      %179 = vector.load %arg3[%c8_117, %c0_118, %c0_119] : memref<9x1x32xf32, #tpu.memory_space<vmem>>, vector<1x1x32xf32>
      %180 = vector.shape_cast %179 : vector<1x1x32xf32> to vector<1x32xf32>
      %181 = vector.broadcast %178 : vector<15x1xf32> to vector<15x32xf32>
      %182 = vector.broadcast %180 : vector<1x32xf32> to vector<15x32xf32>
      %183 = arith.mulf %181, %182 : vector<15x32xf32>
      %184 = arith.addf %174, %183 : vector<15x32xf32>
      %185 = arith.maximumf %92, %184 : vector<15x32xf32>
      %c2_i32_120 = arith.constant 2 : i32
      %186 = arith.muli %c2_i32_120, %arg6 : i32
      %c1_i32_121 = arith.constant 1 : i32
      %187 = arith.addi %186, %c1_i32_121 : i32
      %cst_122 = arith.constant 0.000000e+00 : f32
      %188 = vector.broadcast %cst_122 : f32 to vector<15x32xf32>
      %c0_i32_123 = arith.constant 0 : i32
      %189 = arith.addi %187, %c0_i32_123 : i32
      %c0_124 = arith.constant 0 : index
      %190 = arith.index_cast %189 : i32 to index
      %c0_125 = arith.constant 0 : index
      %c0_126 = arith.constant 0 : index
      %191 = vector.load %arg1[%c0_124, %190, %c0_125, %c0_126] : memref<1x32x16x1xf32, #tpu.memory_space<vmem>>, vector<1x1x15x1xf32>
      %192 = vector.shape_cast %191 : vector<1x1x15x1xf32> to vector<15x1xf32>
      %c0_127 = arith.constant 0 : index
      %c0_128 = arith.constant 0 : index
      %c0_129 = arith.constant 0 : index
      %193 = vector.load %arg3[%c0_127, %c0_128, %c0_129] : memref<9x1x32xf32, #tpu.memory_space<vmem>>, vector<1x1x32xf32>
      %194 = vector.shape_cast %193 : vector<1x1x32xf32> to vector<1x32xf32>
      %195 = vector.broadcast %192 : vector<15x1xf32> to vector<15x32xf32>
      %196 = vector.broadcast %194 : vector<1x32xf32> to vector<15x32xf32>
      %197 = arith.mulf %195, %196 : vector<15x32xf32>
      %198 = arith.addf %188, %197 : vector<15x32xf32>
      %c0_i32_130 = arith.constant 0 : i32
      %199 = arith.addi %187, %c0_i32_130 : i32
      %c0_131 = arith.constant 0 : index
      %200 = arith.index_cast %199 : i32 to index
      %c0_132 = arith.constant 0 : index
      %c0_133 = arith.constant 0 : index
      %201 = vector.load %arg2[%c0_131, %200, %c0_132, %c0_133] : memref<1x32x16x1xf32, #tpu.memory_space<vmem>>, vector<1x1x15x1xf32>
      %202 = vector.shape_cast %201 : vector<1x1x15x1xf32> to vector<15x1xf32>
      %c1_134 = arith.constant 1 : index
      %c0_135 = arith.constant 0 : index
      %c0_136 = arith.constant 0 : index
      %203 = vector.load %arg3[%c1_134, %c0_135, %c0_136] : memref<9x1x32xf32, #tpu.memory_space<vmem>>, vector<1x1x32xf32>
      %204 = vector.shape_cast %203 : vector<1x1x32xf32> to vector<1x32xf32>
      %205 = vector.broadcast %202 : vector<15x1xf32> to vector<15x32xf32>
      %206 = vector.broadcast %204 : vector<1x32xf32> to vector<15x32xf32>
      %207 = arith.mulf %205, %206 : vector<15x32xf32>
      %208 = arith.addf %198, %207 : vector<15x32xf32>
      %c0_i32_137 = arith.constant 0 : i32
      %209 = arith.addi %187, %c0_i32_137 : i32
      %c0_138 = arith.constant 0 : index
      %210 = arith.index_cast %209 : i32 to index
      %c1_139 = arith.constant 1 : index
      %c0_140 = arith.constant 0 : index
      %211 = vector.load %arg1[%c0_138, %210, %c1_139, %c0_140] : memref<1x32x16x1xf32, #tpu.memory_space<vmem>>, vector<1x1x15x1xf32>
      %212 = vector.shape_cast %211 : vector<1x1x15x1xf32> to vector<15x1xf32>
      %c2_141 = arith.constant 2 : index
      %c0_142 = arith.constant 0 : index
      %c0_143 = arith.constant 0 : index
      %213 = vector.load %arg3[%c2_141, %c0_142, %c0_143] : memref<9x1x32xf32, #tpu.memory_space<vmem>>, vector<1x1x32xf32>
      %214 = vector.shape_cast %213 : vector<1x1x32xf32> to vector<1x32xf32>
      %215 = vector.broadcast %212 : vector<15x1xf32> to vector<15x32xf32>
      %216 = vector.broadcast %214 : vector<1x32xf32> to vector<15x32xf32>
      %217 = arith.mulf %215, %216 : vector<15x32xf32>
      %218 = arith.addf %208, %217 : vector<15x32xf32>
      %c1_i32_144 = arith.constant 1 : i32
      %219 = arith.addi %187, %c1_i32_144 : i32
      %c0_145 = arith.constant 0 : index
      %220 = arith.index_cast %219 : i32 to index
      %c0_146 = arith.constant 0 : index
      %c0_147 = arith.constant 0 : index
      %221 = vector.load %arg1[%c0_145, %220, %c0_146, %c0_147] : memref<1x32x16x1xf32, #tpu.memory_space<vmem>>, vector<1x1x15x1xf32>
      %222 = vector.shape_cast %221 : vector<1x1x15x1xf32> to vector<15x1xf32>
      %c3_148 = arith.constant 3 : index
      %c0_149 = arith.constant 0 : index
      %c0_150 = arith.constant 0 : index
      %223 = vector.load %arg3[%c3_148, %c0_149, %c0_150] : memref<9x1x32xf32, #tpu.memory_space<vmem>>, vector<1x1x32xf32>
      %224 = vector.shape_cast %223 : vector<1x1x32xf32> to vector<1x32xf32>
      %225 = vector.broadcast %222 : vector<15x1xf32> to vector<15x32xf32>
      %226 = vector.broadcast %224 : vector<1x32xf32> to vector<15x32xf32>
      %227 = arith.mulf %225, %226 : vector<15x32xf32>
      %228 = arith.addf %218, %227 : vector<15x32xf32>
      %c1_i32_151 = arith.constant 1 : i32
      %229 = arith.addi %187, %c1_i32_151 : i32
      %c0_152 = arith.constant 0 : index
      %230 = arith.index_cast %229 : i32 to index
      %c0_153 = arith.constant 0 : index
      %c0_154 = arith.constant 0 : index
      %231 = vector.load %arg2[%c0_152, %230, %c0_153, %c0_154] : memref<1x32x16x1xf32, #tpu.memory_space<vmem>>, vector<1x1x15x1xf32>
      %232 = vector.shape_cast %231 : vector<1x1x15x1xf32> to vector<15x1xf32>
      %c4_155 = arith.constant 4 : index
      %c0_156 = arith.constant 0 : index
      %c0_157 = arith.constant 0 : index
      %233 = vector.load %arg3[%c4_155, %c0_156, %c0_157] : memref<9x1x32xf32, #tpu.memory_space<vmem>>, vector<1x1x32xf32>
      %234 = vector.shape_cast %233 : vector<1x1x32xf32> to vector<1x32xf32>
      %235 = vector.broadcast %232 : vector<15x1xf32> to vector<15x32xf32>
      %236 = vector.broadcast %234 : vector<1x32xf32> to vector<15x32xf32>
      %237 = arith.mulf %235, %236 : vector<15x32xf32>
      %238 = arith.addf %228, %237 : vector<15x32xf32>
      %c1_i32_158 = arith.constant 1 : i32
      %239 = arith.addi %187, %c1_i32_158 : i32
      %c0_159 = arith.constant 0 : index
      %240 = arith.index_cast %239 : i32 to index
      %c1_160 = arith.constant 1 : index
      %c0_161 = arith.constant 0 : index
      %241 = vector.load %arg1[%c0_159, %240, %c1_160, %c0_161] : memref<1x32x16x1xf32, #tpu.memory_space<vmem>>, vector<1x1x15x1xf32>
      %242 = vector.shape_cast %241 : vector<1x1x15x1xf32> to vector<15x1xf32>
      %c5_162 = arith.constant 5 : index
      %c0_163 = arith.constant 0 : index
      %c0_164 = arith.constant 0 : index
      %243 = vector.load %arg3[%c5_162, %c0_163, %c0_164] : memref<9x1x32xf32, #tpu.memory_space<vmem>>, vector<1x1x32xf32>
      %244 = vector.shape_cast %243 : vector<1x1x32xf32> to vector<1x32xf32>
      %245 = vector.broadcast %242 : vector<15x1xf32> to vector<15x32xf32>
      %246 = vector.broadcast %244 : vector<1x32xf32> to vector<15x32xf32>
      %247 = arith.mulf %245, %246 : vector<15x32xf32>
      %248 = arith.addf %238, %247 : vector<15x32xf32>
      %c2_i32_165 = arith.constant 2 : i32
      %249 = arith.addi %187, %c2_i32_165 : i32
      %c0_166 = arith.constant 0 : index
      %250 = arith.index_cast %249 : i32 to index
      %c0_167 = arith.constant 0 : index
      %c0_168 = arith.constant 0 : index
      %251 = vector.load %arg1[%c0_166, %250, %c0_167, %c0_168] : memref<1x32x16x1xf32, #tpu.memory_space<vmem>>, vector<1x1x15x1xf32>
      %252 = vector.shape_cast %251 : vector<1x1x15x1xf32> to vector<15x1xf32>
      %c6_169 = arith.constant 6 : index
      %c0_170 = arith.constant 0 : index
      %c0_171 = arith.constant 0 : index
      %253 = vector.load %arg3[%c6_169, %c0_170, %c0_171] : memref<9x1x32xf32, #tpu.memory_space<vmem>>, vector<1x1x32xf32>
      %254 = vector.shape_cast %253 : vector<1x1x32xf32> to vector<1x32xf32>
      %255 = vector.broadcast %252 : vector<15x1xf32> to vector<15x32xf32>
      %256 = vector.broadcast %254 : vector<1x32xf32> to vector<15x32xf32>
      %257 = arith.mulf %255, %256 : vector<15x32xf32>
      %258 = arith.addf %248, %257 : vector<15x32xf32>
      %c2_i32_172 = arith.constant 2 : i32
      %259 = arith.addi %187, %c2_i32_172 : i32
      %c0_173 = arith.constant 0 : index
      %260 = arith.index_cast %259 : i32 to index
      %c0_174 = arith.constant 0 : index
      %c0_175 = arith.constant 0 : index
      %261 = vector.load %arg2[%c0_173, %260, %c0_174, %c0_175] : memref<1x32x16x1xf32, #tpu.memory_space<vmem>>, vector<1x1x15x1xf32>
      %262 = vector.shape_cast %261 : vector<1x1x15x1xf32> to vector<15x1xf32>
      %c7_176 = arith.constant 7 : index
      %c0_177 = arith.constant 0 : index
      %c0_178 = arith.constant 0 : index
      %263 = vector.load %arg3[%c7_176, %c0_177, %c0_178] : memref<9x1x32xf32, #tpu.memory_space<vmem>>, vector<1x1x32xf32>
      %264 = vector.shape_cast %263 : vector<1x1x32xf32> to vector<1x32xf32>
      %265 = vector.broadcast %262 : vector<15x1xf32> to vector<15x32xf32>
      %266 = vector.broadcast %264 : vector<1x32xf32> to vector<15x32xf32>
      %267 = arith.mulf %265, %266 : vector<15x32xf32>
      %268 = arith.addf %258, %267 : vector<15x32xf32>
      %c2_i32_179 = arith.constant 2 : i32
      %269 = arith.addi %187, %c2_i32_179 : i32
      %c0_180 = arith.constant 0 : index
      %270 = arith.index_cast %269 : i32 to index
      %c1_181 = arith.constant 1 : index
      %c0_182 = arith.constant 0 : index
      %271 = vector.load %arg1[%c0_180, %270, %c1_181, %c0_182] : memref<1x32x16x1xf32, #tpu.memory_space<vmem>>, vector<1x1x15x1xf32>
      %272 = vector.shape_cast %271 : vector<1x1x15x1xf32> to vector<15x1xf32>
      %c8_183 = arith.constant 8 : index
      %c0_184 = arith.constant 0 : index
      %c0_185 = arith.constant 0 : index
      %273 = vector.load %arg3[%c8_183, %c0_184, %c0_185] : memref<9x1x32xf32, #tpu.memory_space<vmem>>, vector<1x1x32xf32>
      %274 = vector.shape_cast %273 : vector<1x1x32xf32> to vector<1x32xf32>
      %275 = vector.broadcast %272 : vector<15x1xf32> to vector<15x32xf32>
      %276 = vector.broadcast %274 : vector<1x32xf32> to vector<15x32xf32>
      %277 = arith.mulf %275, %276 : vector<15x32xf32>
      %278 = arith.addf %268, %277 : vector<15x32xf32>
      %c2_i32_186 = arith.constant 2 : i32
      %279 = arith.muli %c2_i32_186, %arg6 : i32
      %c1_i32_187 = arith.constant 1 : i32
      %280 = arith.addi %279, %c1_i32_187 : i32
      %cst_188 = arith.constant 0.000000e+00 : f32
      %281 = vector.broadcast %cst_188 : f32 to vector<15x32xf32>
      %c0_i32_189 = arith.constant 0 : i32
      %282 = arith.addi %280, %c0_i32_189 : i32
      %c0_190 = arith.constant 0 : index
      %283 = arith.index_cast %282 : i32 to index
      %c0_191 = arith.constant 0 : index
      %c0_192 = arith.constant 0 : index
      %284 = vector.load %arg2[%c0_190, %283, %c0_191, %c0_192] : memref<1x32x16x1xf32, #tpu.memory_space<vmem>>, vector<1x1x15x1xf32>
      %285 = vector.shape_cast %284 : vector<1x1x15x1xf32> to vector<15x1xf32>
      %c0_193 = arith.constant 0 : index
      %c0_194 = arith.constant 0 : index
      %c0_195 = arith.constant 0 : index
      %286 = vector.load %arg3[%c0_193, %c0_194, %c0_195] : memref<9x1x32xf32, #tpu.memory_space<vmem>>, vector<1x1x32xf32>
      %287 = vector.shape_cast %286 : vector<1x1x32xf32> to vector<1x32xf32>
      %288 = vector.broadcast %285 : vector<15x1xf32> to vector<15x32xf32>
      %289 = vector.broadcast %287 : vector<1x32xf32> to vector<15x32xf32>
      %290 = arith.mulf %288, %289 : vector<15x32xf32>
      %291 = arith.addf %281, %290 : vector<15x32xf32>
      %c0_i32_196 = arith.constant 0 : i32
      %292 = arith.addi %280, %c0_i32_196 : i32
      %c0_197 = arith.constant 0 : index
      %293 = arith.index_cast %292 : i32 to index
      %c1_198 = arith.constant 1 : index
      %c0_199 = arith.constant 0 : index
      %294 = vector.load %arg1[%c0_197, %293, %c1_198, %c0_199] : memref<1x32x16x1xf32, #tpu.memory_space<vmem>>, vector<1x1x15x1xf32>
      %295 = vector.shape_cast %294 : vector<1x1x15x1xf32> to vector<15x1xf32>
      %c1_200 = arith.constant 1 : index
      %c0_201 = arith.constant 0 : index
      %c0_202 = arith.constant 0 : index
      %296 = vector.load %arg3[%c1_200, %c0_201, %c0_202] : memref<9x1x32xf32, #tpu.memory_space<vmem>>, vector<1x1x32xf32>
      %297 = vector.shape_cast %296 : vector<1x1x32xf32> to vector<1x32xf32>
      %298 = vector.broadcast %295 : vector<15x1xf32> to vector<15x32xf32>
      %299 = vector.broadcast %297 : vector<1x32xf32> to vector<15x32xf32>
      %300 = arith.mulf %298, %299 : vector<15x32xf32>
      %301 = arith.addf %291, %300 : vector<15x32xf32>
      %c0_i32_203 = arith.constant 0 : i32
      %302 = arith.addi %280, %c0_i32_203 : i32
      %c0_204 = arith.constant 0 : index
      %303 = arith.index_cast %302 : i32 to index
      %c1_205 = arith.constant 1 : index
      %c0_206 = arith.constant 0 : index
      %304 = vector.load %arg2[%c0_204, %303, %c1_205, %c0_206] : memref<1x32x16x1xf32, #tpu.memory_space<vmem>>, vector<1x1x15x1xf32>
      %305 = vector.shape_cast %304 : vector<1x1x15x1xf32> to vector<15x1xf32>
      %c2_207 = arith.constant 2 : index
      %c0_208 = arith.constant 0 : index
      %c0_209 = arith.constant 0 : index
      %306 = vector.load %arg3[%c2_207, %c0_208, %c0_209] : memref<9x1x32xf32, #tpu.memory_space<vmem>>, vector<1x1x32xf32>
      %307 = vector.shape_cast %306 : vector<1x1x32xf32> to vector<1x32xf32>
      %308 = vector.broadcast %305 : vector<15x1xf32> to vector<15x32xf32>
      %309 = vector.broadcast %307 : vector<1x32xf32> to vector<15x32xf32>
      %310 = arith.mulf %308, %309 : vector<15x32xf32>
      %311 = arith.addf %301, %310 : vector<15x32xf32>
      %c1_i32_210 = arith.constant 1 : i32
      %312 = arith.addi %280, %c1_i32_210 : i32
      %c0_211 = arith.constant 0 : index
      %313 = arith.index_cast %312 : i32 to index
      %c0_212 = arith.constant 0 : index
      %c0_213 = arith.constant 0 : index
      %314 = vector.load %arg2[%c0_211, %313, %c0_212, %c0_213] : memref<1x32x16x1xf32, #tpu.memory_space<vmem>>, vector<1x1x15x1xf32>
      %315 = vector.shape_cast %314 : vector<1x1x15x1xf32> to vector<15x1xf32>
      %c3_214 = arith.constant 3 : index
      %c0_215 = arith.constant 0 : index
      %c0_216 = arith.constant 0 : index
      %316 = vector.load %arg3[%c3_214, %c0_215, %c0_216] : memref<9x1x32xf32, #tpu.memory_space<vmem>>, vector<1x1x32xf32>
      %317 = vector.shape_cast %316 : vector<1x1x32xf32> to vector<1x32xf32>
      %318 = vector.broadcast %315 : vector<15x1xf32> to vector<15x32xf32>
      %319 = vector.broadcast %317 : vector<1x32xf32> to vector<15x32xf32>
      %320 = arith.mulf %318, %319 : vector<15x32xf32>
      %321 = arith.addf %311, %320 : vector<15x32xf32>
      %c1_i32_217 = arith.constant 1 : i32
      %322 = arith.addi %280, %c1_i32_217 : i32
      %c0_218 = arith.constant 0 : index
      %323 = arith.index_cast %322 : i32 to index
      %c1_219 = arith.constant 1 : index
      %c0_220 = arith.constant 0 : index
      %324 = vector.load %arg1[%c0_218, %323, %c1_219, %c0_220] : memref<1x32x16x1xf32, #tpu.memory_space<vmem>>, vector<1x1x15x1xf32>
      %325 = vector.shape_cast %324 : vector<1x1x15x1xf32> to vector<15x1xf32>
      %c4_221 = arith.constant 4 : index
      %c0_222 = arith.constant 0 : index
      %c0_223 = arith.constant 0 : index
      %326 = vector.load %arg3[%c4_221, %c0_222, %c0_223] : memref<9x1x32xf32, #tpu.memory_space<vmem>>, vector<1x1x32xf32>
      %327 = vector.shape_cast %326 : vector<1x1x32xf32> to vector<1x32xf32>
      %328 = vector.broadcast %325 : vector<15x1xf32> to vector<15x32xf32>
      %329 = vector.broadcast %327 : vector<1x32xf32> to vector<15x32xf32>
      %330 = arith.mulf %328, %329 : vector<15x32xf32>
      %331 = arith.addf %321, %330 : vector<15x32xf32>
      %c1_i32_224 = arith.constant 1 : i32
      %332 = arith.addi %280, %c1_i32_224 : i32
      %c0_225 = arith.constant 0 : index
      %333 = arith.index_cast %332 : i32 to index
      %c1_226 = arith.constant 1 : index
      %c0_227 = arith.constant 0 : index
      %334 = vector.load %arg2[%c0_225, %333, %c1_226, %c0_227] : memref<1x32x16x1xf32, #tpu.memory_space<vmem>>, vector<1x1x15x1xf32>
      %335 = vector.shape_cast %334 : vector<1x1x15x1xf32> to vector<15x1xf32>
      %c5_228 = arith.constant 5 : index
      %c0_229 = arith.constant 0 : index
      %c0_230 = arith.constant 0 : index
      %336 = vector.load %arg3[%c5_228, %c0_229, %c0_230] : memref<9x1x32xf32, #tpu.memory_space<vmem>>, vector<1x1x32xf32>
      %337 = vector.shape_cast %336 : vector<1x1x32xf32> to vector<1x32xf32>
      %338 = vector.broadcast %335 : vector<15x1xf32> to vector<15x32xf32>
      %339 = vector.broadcast %337 : vector<1x32xf32> to vector<15x32xf32>
      %340 = arith.mulf %338, %339 : vector<15x32xf32>
      %341 = arith.addf %331, %340 : vector<15x32xf32>
      %c2_i32_231 = arith.constant 2 : i32
      %342 = arith.addi %280, %c2_i32_231 : i32
      %c0_232 = arith.constant 0 : index
      %343 = arith.index_cast %342 : i32 to index
      %c0_233 = arith.constant 0 : index
      %c0_234 = arith.constant 0 : index
      %344 = vector.load %arg2[%c0_232, %343, %c0_233, %c0_234] : memref<1x32x16x1xf32, #tpu.memory_space<vmem>>, vector<1x1x15x1xf32>
      %345 = vector.shape_cast %344 : vector<1x1x15x1xf32> to vector<15x1xf32>
      %c6_235 = arith.constant 6 : index
      %c0_236 = arith.constant 0 : index
      %c0_237 = arith.constant 0 : index
      %346 = vector.load %arg3[%c6_235, %c0_236, %c0_237] : memref<9x1x32xf32, #tpu.memory_space<vmem>>, vector<1x1x32xf32>
      %347 = vector.shape_cast %346 : vector<1x1x32xf32> to vector<1x32xf32>
      %348 = vector.broadcast %345 : vector<15x1xf32> to vector<15x32xf32>
      %349 = vector.broadcast %347 : vector<1x32xf32> to vector<15x32xf32>
      %350 = arith.mulf %348, %349 : vector<15x32xf32>
      %351 = arith.addf %341, %350 : vector<15x32xf32>
      %c2_i32_238 = arith.constant 2 : i32
      %352 = arith.addi %280, %c2_i32_238 : i32
      %c0_239 = arith.constant 0 : index
      %353 = arith.index_cast %352 : i32 to index
      %c1_240 = arith.constant 1 : index
      %c0_241 = arith.constant 0 : index
      %354 = vector.load %arg1[%c0_239, %353, %c1_240, %c0_241] : memref<1x32x16x1xf32, #tpu.memory_space<vmem>>, vector<1x1x15x1xf32>
      %355 = vector.shape_cast %354 : vector<1x1x15x1xf32> to vector<15x1xf32>
      %c7_242 = arith.constant 7 : index
      %c0_243 = arith.constant 0 : index
      %c0_244 = arith.constant 0 : index
      %356 = vector.load %arg3[%c7_242, %c0_243, %c0_244] : memref<9x1x32xf32, #tpu.memory_space<vmem>>, vector<1x1x32xf32>
      %357 = vector.shape_cast %356 : vector<1x1x32xf32> to vector<1x32xf32>
      %358 = vector.broadcast %355 : vector<15x1xf32> to vector<15x32xf32>
      %359 = vector.broadcast %357 : vector<1x32xf32> to vector<15x32xf32>
      %360 = arith.mulf %358, %359 : vector<15x32xf32>
      %361 = arith.addf %351, %360 : vector<15x32xf32>
      %c2_i32_245 = arith.constant 2 : i32
      %362 = arith.addi %280, %c2_i32_245 : i32
      %c0_246 = arith.constant 0 : index
      %363 = arith.index_cast %362 : i32 to index
      %c1_247 = arith.constant 1 : index
      %c0_248 = arith.constant 0 : index
      %364 = vector.load %arg2[%c0_246, %363, %c1_247, %c0_248] : memref<1x32x16x1xf32, #tpu.memory_space<vmem>>, vector<1x1x15x1xf32>
      %365 = vector.shape_cast %364 : vector<1x1x15x1xf32> to vector<15x1xf32>
      %c8_249 = arith.constant 8 : index
      %c0_250 = arith.constant 0 : index
      %c0_251 = arith.constant 0 : index
      %366 = vector.load %arg3[%c8_249, %c0_250, %c0_251] : memref<9x1x32xf32, #tpu.memory_space<vmem>>, vector<1x1x32xf32>
      %367 = vector.shape_cast %366 : vector<1x1x32xf32> to vector<1x32xf32>
      %368 = vector.broadcast %365 : vector<15x1xf32> to vector<15x32xf32>
      %369 = vector.broadcast %367 : vector<1x32xf32> to vector<15x32xf32>
      %370 = arith.mulf %368, %369 : vector<15x32xf32>
      %371 = arith.addf %361, %370 : vector<15x32xf32>
      %372 = arith.maximumf %278, %371 : vector<15x32xf32>
      %373 = arith.maximumf %185, %372 : vector<15x32xf32>
      %c0_252 = arith.constant 0 : index
      %c0_253 = arith.constant 0 : index
      %374 = vector.load %arg4[%c0_252, %c0_253] : memref<1x32xf32, #tpu.memory_space<vmem>>, vector<1x32xf32>
      %375 = vector.broadcast %374 : vector<1x32xf32> to vector<15x32xf32>
      %376 = arith.addf %373, %375 : vector<15x32xf32>
      %cst_254 = arith.constant 0.000000e+00 : f32
      %377 = vector.broadcast %cst_254 : f32 to vector<15x32xf32>
      %378 = arith.maximumf %376, %377 : vector<15x32xf32>
      %379 = arith.truncf %378 : vector<15x32xf32> to vector<15x32xbf16>
      %c0_255 = arith.constant 0 : index
      %380 = arith.index_cast %arg6 : i32 to index
      %c0_256 = arith.constant 0 : index
      %c0_257 = arith.constant 0 : index
      %381 = vector.load %arg5[%c0_255, %380, %c0_256, %c0_257] : memref<1x15x15x32xbf16, #tpu.memory_space<vmem>>, vector<1x1x15x32xbf16>
      %382 = vector.shape_cast %381 : vector<1x1x15x32xbf16> to vector<15x32xbf16>
      %383 = vector.shape_cast %379 : vector<15x32xbf16> to vector<1x1x15x32xbf16>
      tpu.vector_store %arg5[%c0_255, %380, %c0_256, %c0_257], %383 {strides = array<i32>} : memref<1x15x15x32xbf16, #tpu.memory_space<vmem>>, vector<1x1x15x32xbf16>,
    }
    %c15_i32_0 = arith.constant 15 : i32
    return
  }
  func.func @transform_0(%arg0: i32) -> (i32, i32, i32, i32) {
    %c0_i32 = arith.constant 0 : i32
    %c0_i32_0 = arith.constant 0 : i32
    %c0_i32_1 = arith.constant 0 : i32
    %c0_i32_2 = arith.constant 0 : i32
    return %arg0, %c0_i32, %c0_i32_0, %c0_i32_1 : i32, i32, i32, i32
  }
  func.func @transform_1(%arg0: i32) -> (i32, i32, i32, i32) {
    %c0_i32 = arith.constant 0 : i32
    %c0_i32_0 = arith.constant 0 : i32
    %c0_i32_1 = arith.constant 0 : i32
    %c0_i32_2 = arith.constant 0 : i32
    return %arg0, %c0_i32, %c0_i32_0, %c0_i32_1 : i32, i32, i32, i32
  }
  func.func @transform_2(%arg0: i32) -> (i32, i32, i32) {
    %c0_i32 = arith.constant 0 : i32
    %c0_i32_0 = arith.constant 0 : i32
    %c0_i32_1 = arith.constant 0 : i32
    %c0_i32_2 = arith.constant 0 : i32
    return %c0_i32, %c0_i32_0, %c0_i32_1 : i32, i32, i32
  }
  func.func @transform_3(%arg0: i32) -> (i32, i32) {
    %c0_i32 = arith.constant 0 : i32
    %c0_i32_0 = arith.constant 0 : i32
    %c0_i32_1 = arith.constant 0 : i32
    return %c0_i32, %c0_i32_0 : i32, i32
  }
  func.func @transform_4(%arg0: i32) -> (i32, i32, i32, i32) {
    %c0_i32 = arith.constant 0 : i32
    %c0_i32_0 = arith.constant 0 : i32
    %c0_i32_1 = arith.constant 0 : i32
    %c0_i32_2 = arith.constant 0 : i32
    return %arg0, %c0_i32, %c0_i32_0, %c0_i32_1 : i32, i32, i32, i32
  }
}

module attributes {stable_mosaic.version = 11 : i64} {
  func.func @_conv_relu_pool_kernel(%arg0: i32, %arg1: memref<1x17x9x32xbf16, #tpu.memory_space<vmem>>, %arg2: memref<1x17x8x32xbf16, #tpu.memory_space<vmem>>, %arg3: memref<9x32x64xbf16, #tpu.memory_space<vmem>>, %arg4: memref<1x64xf32, #tpu.memory_space<vmem>>, %arg5: memref<1x7x7x64xbf16, #tpu.memory_space<vmem>>) attributes {dimension_semantics = [#tpu.dimension_semantics<parallel>], iteration_bounds = array<i64: 2>, scalar_prefetch = 0 : i64, scratch_operands = 0 : i64, tpu.core_type = #tpu.core_type<tc>, window_params = [{transform_indices = @transform_0, window_bounds = array<i64: 1, 17, 9, 32>}, {transform_indices = @transform_1, window_bounds = array<i64: 1, 17, 8, 32>}, {pipeline_mode = #tpu.pipeline_mode<synchronous>, transform_indices = @transform_2, window_bounds = array<i64: 9, 32, 64>}, {pipeline_mode = #tpu.pipeline_mode<synchronous>, transform_indices = @transform_3, window_bounds = array<i64: 1, 64>}, {transform_indices = @transform_4, window_bounds = array<i64: 1, 7, 7, 64>}]} {
    %c0_i32 = arith.constant 0 : i32
    %c7_i32 = arith.constant 7 : i32
    %0 = arith.addi %c0_i32, %c7_i32 : i32
    %c1_i32 = arith.constant 1 : i32
    scf.for %arg6 = %c0_i32 to %0 step %c1_i32  : i32 {
      %c2_i32 = arith.constant 2 : i32
      %1 = arith.muli %c2_i32, %arg6 : i32
      %cst = arith.constant 0.000000e+00 : f32
      %2 = vector.broadcast %cst : f32 to vector<7x64xf32>
      %c0_i32_1 = arith.constant 0 : i32
      %3 = arith.addi %1, %c0_i32_1 : i32
      %c0 = arith.constant 0 : index
      %4 = arith.index_cast %3 : i32 to index
      %c0_2 = arith.constant 0 : index
      %c0_3 = arith.constant 0 : index
      %5 = vector.load %arg1[%c0, %4, %c0_2, %c0_3] : memref<1x17x9x32xbf16, #tpu.memory_space<vmem>>, vector<1x1x7x32xbf16>
      %6 = vector.shape_cast %5 : vector<1x1x7x32xbf16> to vector<7x32xbf16>
      %c0_4 = arith.constant 0 : index
      %c0_5 = arith.constant 0 : index
      %c0_6 = arith.constant 0 : index
      %7 = vector.load %arg3[%c0_4, %c0_5, %c0_6] : memref<9x32x64xbf16, #tpu.memory_space<vmem>>, vector<1x32x64xbf16>
      %8 = vector.shape_cast %7 : vector<1x32x64xbf16> to vector<32x64xbf16>
      %cst_7 = arith.constant dense<0.000000e+00> : vector<7x64xf32>
      %9 = tpu.matmul %6, %8, %cst_7 {dimension_numbers = #tpu.dot_dimension_numbers<[1], [0], [0], [1], [0, 0, 1, 1], [], []>} : vector<7x32xbf16>, vector<32x64xbf16>, vector<7x64xf32> -> vector<7x64xf32>
      %10 = arith.addf %2, %9 : vector<7x64xf32>
      %c0_i32_8 = arith.constant 0 : i32
      %11 = arith.addi %1, %c0_i32_8 : i32
      %c0_9 = arith.constant 0 : index
      %12 = arith.index_cast %11 : i32 to index
      %c0_10 = arith.constant 0 : index
      %c0_11 = arith.constant 0 : index
      %13 = vector.load %arg2[%c0_9, %12, %c0_10, %c0_11] : memref<1x17x8x32xbf16, #tpu.memory_space<vmem>>, vector<1x1x7x32xbf16>
      %14 = vector.shape_cast %13 : vector<1x1x7x32xbf16> to vector<7x32xbf16>
      %c1 = arith.constant 1 : index
      %c0_12 = arith.constant 0 : index
      %c0_13 = arith.constant 0 : index
      %15 = vector.load %arg3[%c1, %c0_12, %c0_13] : memref<9x32x64xbf16, #tpu.memory_space<vmem>>, vector<1x32x64xbf16>
      %16 = vector.shape_cast %15 : vector<1x32x64xbf16> to vector<32x64xbf16>
      %cst_14 = arith.constant dense<0.000000e+00> : vector<7x64xf32>
      %17 = tpu.matmul %14, %16, %cst_14 {dimension_numbers = #tpu.dot_dimension_numbers<[1], [0], [0], [1], [0, 0, 1, 1], [], []>} : vector<7x32xbf16>, vector<32x64xbf16>, vector<7x64xf32> -> vector<7x64xf32>
      %18 = arith.addf %10, %17 : vector<7x64xf32>
      %c0_i32_15 = arith.constant 0 : i32
      %19 = arith.addi %1, %c0_i32_15 : i32
      %c0_16 = arith.constant 0 : index
      %20 = arith.index_cast %19 : i32 to index
      %c1_17 = arith.constant 1 : index
      %c0_18 = arith.constant 0 : index
      %21 = vector.load %arg1[%c0_16, %20, %c1_17, %c0_18] : memref<1x17x9x32xbf16, #tpu.memory_space<vmem>>, vector<1x1x7x32xbf16>
      %22 = vector.shape_cast %21 : vector<1x1x7x32xbf16> to vector<7x32xbf16>
      %c2 = arith.constant 2 : index
      %c0_19 = arith.constant 0 : index
      %c0_20 = arith.constant 0 : index
      %23 = vector.load %arg3[%c2, %c0_19, %c0_20] : memref<9x32x64xbf16, #tpu.memory_space<vmem>>, vector<1x32x64xbf16>
      %24 = vector.shape_cast %23 : vector<1x32x64xbf16> to vector<32x64xbf16>
      %cst_21 = arith.constant dense<0.000000e+00> : vector<7x64xf32>
      %25 = tpu.matmul %22, %24, %cst_21 {dimension_numbers = #tpu.dot_dimension_numbers<[1], [0], [0], [1], [0, 0, 1, 1], [], []>} : vector<7x32xbf16>, vector<32x64xbf16>, vector<7x64xf32> -> vector<7x64xf32>
      %26 = arith.addf %18, %25 : vector<7x64xf32>
      %c1_i32_22 = arith.constant 1 : i32
      %27 = arith.addi %1, %c1_i32_22 : i32
      %c0_23 = arith.constant 0 : index
      %28 = arith.index_cast %27 : i32 to index
      %c0_24 = arith.constant 0 : index
      %c0_25 = arith.constant 0 : index
      %29 = vector.load %arg1[%c0_23, %28, %c0_24, %c0_25] : memref<1x17x9x32xbf16, #tpu.memory_space<vmem>>, vector<1x1x7x32xbf16>
      %30 = vector.shape_cast %29 : vector<1x1x7x32xbf16> to vector<7x32xbf16>
      %c3 = arith.constant 3 : index
      %c0_26 = arith.constant 0 : index
      %c0_27 = arith.constant 0 : index
      %31 = vector.load %arg3[%c3, %c0_26, %c0_27] : memref<9x32x64xbf16, #tpu.memory_space<vmem>>, vector<1x32x64xbf16>
      %32 = vector.shape_cast %31 : vector<1x32x64xbf16> to vector<32x64xbf16>
      %cst_28 = arith.constant dense<0.000000e+00> : vector<7x64xf32>
      %33 = tpu.matmul %30, %32, %cst_28 {dimension_numbers = #tpu.dot_dimension_numbers<[1], [0], [0], [1], [0, 0, 1, 1], [], []>} : vector<7x32xbf16>, vector<32x64xbf16>, vector<7x64xf32> -> vector<7x64xf32>
      %34 = arith.addf %26, %33 : vector<7x64xf32>
      %c1_i32_29 = arith.constant 1 : i32
      %35 = arith.addi %1, %c1_i32_29 : i32
      %c0_30 = arith.constant 0 : index
      %36 = arith.index_cast %35 : i32 to index
      %c0_31 = arith.constant 0 : index
      %c0_32 = arith.constant 0 : index
      %37 = vector.load %arg2[%c0_30, %36, %c0_31, %c0_32] : memref<1x17x8x32xbf16, #tpu.memory_space<vmem>>, vector<1x1x7x32xbf16>
      %38 = vector.shape_cast %37 : vector<1x1x7x32xbf16> to vector<7x32xbf16>
      %c4 = arith.constant 4 : index
      %c0_33 = arith.constant 0 : index
      %c0_34 = arith.constant 0 : index
      %39 = vector.load %arg3[%c4, %c0_33, %c0_34] : memref<9x32x64xbf16, #tpu.memory_space<vmem>>, vector<1x32x64xbf16>
      %40 = vector.shape_cast %39 : vector<1x32x64xbf16> to vector<32x64xbf16>
      %cst_35 = arith.constant dense<0.000000e+00> : vector<7x64xf32>
      %41 = tpu.matmul %38, %40, %cst_35 {dimension_numbers = #tpu.dot_dimension_numbers<[1], [0], [0], [1], [0, 0, 1, 1], [], []>} : vector<7x32xbf16>, vector<32x64xbf16>, vector<7x64xf32> -> vector<7x64xf32>
      %42 = arith.addf %34, %41 : vector<7x64xf32>
      %c1_i32_36 = arith.constant 1 : i32
      %43 = arith.addi %1, %c1_i32_36 : i32
      %c0_37 = arith.constant 0 : index
      %44 = arith.index_cast %43 : i32 to index
      %c1_38 = arith.constant 1 : index
      %c0_39 = arith.constant 0 : index
      %45 = vector.load %arg1[%c0_37, %44, %c1_38, %c0_39] : memref<1x17x9x32xbf16, #tpu.memory_space<vmem>>, vector<1x1x7x32xbf16>
      %46 = vector.shape_cast %45 : vector<1x1x7x32xbf16> to vector<7x32xbf16>
      %c5 = arith.constant 5 : index
      %c0_40 = arith.constant 0 : index
      %c0_41 = arith.constant 0 : index
      %47 = vector.load %arg3[%c5, %c0_40, %c0_41] : memref<9x32x64xbf16, #tpu.memory_space<vmem>>, vector<1x32x64xbf16>
      %48 = vector.shape_cast %47 : vector<1x32x64xbf16> to vector<32x64xbf16>
      %cst_42 = arith.constant dense<0.000000e+00> : vector<7x64xf32>
      %49 = tpu.matmul %46, %48, %cst_42 {dimension_numbers = #tpu.dot_dimension_numbers<[1], [0], [0], [1], [0, 0, 1, 1], [], []>} : vector<7x32xbf16>, vector<32x64xbf16>, vector<7x64xf32> -> vector<7x64xf32>
      %50 = arith.addf %42, %49 : vector<7x64xf32>
      %c2_i32_43 = arith.constant 2 : i32
      %51 = arith.addi %1, %c2_i32_43 : i32
      %c0_44 = arith.constant 0 : index
      %52 = arith.index_cast %51 : i32 to index
      %c0_45 = arith.constant 0 : index
      %c0_46 = arith.constant 0 : index
      %53 = vector.load %arg1[%c0_44, %52, %c0_45, %c0_46] : memref<1x17x9x32xbf16, #tpu.memory_space<vmem>>, vector<1x1x7x32xbf16>
      %54 = vector.shape_cast %53 : vector<1x1x7x32xbf16> to vector<7x32xbf16>
      %c6 = arith.constant 6 : index
      %c0_47 = arith.constant 0 : index
      %c0_48 = arith.constant 0 : index
      %55 = vector.load %arg3[%c6, %c0_47, %c0_48] : memref<9x32x64xbf16, #tpu.memory_space<vmem>>, vector<1x32x64xbf16>
      %56 = vector.shape_cast %55 : vector<1x32x64xbf16> to vector<32x64xbf16>
      %cst_49 = arith.constant dense<0.000000e+00> : vector<7x64xf32>
      %57 = tpu.matmul %54, %56, %cst_49 {dimension_numbers = #tpu.dot_dimension_numbers<[1], [0], [0], [1], [0, 0, 1, 1], [], []>} : vector<7x32xbf16>, vector<32x64xbf16>, vector<7x64xf32> -> vector<7x64xf32>
      %58 = arith.addf %50, %57 : vector<7x64xf32>
      %c2_i32_50 = arith.constant 2 : i32
      %59 = arith.addi %1, %c2_i32_50 : i32
      %c0_51 = arith.constant 0 : index
      %60 = arith.index_cast %59 : i32 to index
      %c0_52 = arith.constant 0 : index
      %c0_53 = arith.constant 0 : index
      %61 = vector.load %arg2[%c0_51, %60, %c0_52, %c0_53] : memref<1x17x8x32xbf16, #tpu.memory_space<vmem>>, vector<1x1x7x32xbf16>
      %62 = vector.shape_cast %61 : vector<1x1x7x32xbf16> to vector<7x32xbf16>
      %c7 = arith.constant 7 : index
      %c0_54 = arith.constant 0 : index
      %c0_55 = arith.constant 0 : index
      %63 = vector.load %arg3[%c7, %c0_54, %c0_55] : memref<9x32x64xbf16, #tpu.memory_space<vmem>>, vector<1x32x64xbf16>
      %64 = vector.shape_cast %63 : vector<1x32x64xbf16> to vector<32x64xbf16>
      %cst_56 = arith.constant dense<0.000000e+00> : vector<7x64xf32>
      %65 = tpu.matmul %62, %64, %cst_56 {dimension_numbers = #tpu.dot_dimension_numbers<[1], [0], [0], [1], [0, 0, 1, 1], [], []>} : vector<7x32xbf16>, vector<32x64xbf16>, vector<7x64xf32> -> vector<7x64xf32>
      %66 = arith.addf %58, %65 : vector<7x64xf32>
      %c2_i32_57 = arith.constant 2 : i32
      %67 = arith.addi %1, %c2_i32_57 : i32
      %c0_58 = arith.constant 0 : index
      %68 = arith.index_cast %67 : i32 to index
      %c1_59 = arith.constant 1 : index
      %c0_60 = arith.constant 0 : index
      %69 = vector.load %arg1[%c0_58, %68, %c1_59, %c0_60] : memref<1x17x9x32xbf16, #tpu.memory_space<vmem>>, vector<1x1x7x32xbf16>
      %70 = vector.shape_cast %69 : vector<1x1x7x32xbf16> to vector<7x32xbf16>
      %c8 = arith.constant 8 : index
      %c0_61 = arith.constant 0 : index
      %c0_62 = arith.constant 0 : index
      %71 = vector.load %arg3[%c8, %c0_61, %c0_62] : memref<9x32x64xbf16, #tpu.memory_space<vmem>>, vector<1x32x64xbf16>
      %72 = vector.shape_cast %71 : vector<1x32x64xbf16> to vector<32x64xbf16>
      %cst_63 = arith.constant dense<0.000000e+00> : vector<7x64xf32>
      %73 = tpu.matmul %70, %72, %cst_63 {dimension_numbers = #tpu.dot_dimension_numbers<[1], [0], [0], [1], [0, 0, 1, 1], [], []>} : vector<7x32xbf16>, vector<32x64xbf16>, vector<7x64xf32> -> vector<7x64xf32>
      %74 = arith.addf %66, %73 : vector<7x64xf32>
      %c2_i32_64 = arith.constant 2 : i32
      %75 = arith.muli %c2_i32_64, %arg6 : i32
      %cst_65 = arith.constant 0.000000e+00 : f32
      %76 = vector.broadcast %cst_65 : f32 to vector<7x64xf32>
      %c0_i32_66 = arith.constant 0 : i32
      %77 = arith.addi %75, %c0_i32_66 : i32
      %c0_67 = arith.constant 0 : index
      %78 = arith.index_cast %77 : i32 to index
      %c0_68 = arith.constant 0 : index
      %c0_69 = arith.constant 0 : index
      %79 = vector.load %arg2[%c0_67, %78, %c0_68, %c0_69] : memref<1x17x8x32xbf16, #tpu.memory_space<vmem>>, vector<1x1x7x32xbf16>
      %80 = vector.shape_cast %79 : vector<1x1x7x32xbf16> to vector<7x32xbf16>
      %c0_70 = arith.constant 0 : index
      %c0_71 = arith.constant 0 : index
      %c0_72 = arith.constant 0 : index
      %81 = vector.load %arg3[%c0_70, %c0_71, %c0_72] : memref<9x32x64xbf16, #tpu.memory_space<vmem>>, vector<1x32x64xbf16>
      %82 = vector.shape_cast %81 : vector<1x32x64xbf16> to vector<32x64xbf16>
      %cst_73 = arith.constant dense<0.000000e+00> : vector<7x64xf32>
      %83 = tpu.matmul %80, %82, %cst_73 {dimension_numbers = #tpu.dot_dimension_numbers<[1], [0], [0], [1], [0, 0, 1, 1], [], []>} : vector<7x32xbf16>, vector<32x64xbf16>, vector<7x64xf32> -> vector<7x64xf32>
      %84 = arith.addf %76, %83 : vector<7x64xf32>
      %c0_i32_74 = arith.constant 0 : i32
      %85 = arith.addi %75, %c0_i32_74 : i32
      %c0_75 = arith.constant 0 : index
      %86 = arith.index_cast %85 : i32 to index
      %c1_76 = arith.constant 1 : index
      %c0_77 = arith.constant 0 : index
      %87 = vector.load %arg1[%c0_75, %86, %c1_76, %c0_77] : memref<1x17x9x32xbf16, #tpu.memory_space<vmem>>, vector<1x1x7x32xbf16>
      %88 = vector.shape_cast %87 : vector<1x1x7x32xbf16> to vector<7x32xbf16>
      %c1_78 = arith.constant 1 : index
      %c0_79 = arith.constant 0 : index
      %c0_80 = arith.constant 0 : index
      %89 = vector.load %arg3[%c1_78, %c0_79, %c0_80] : memref<9x32x64xbf16, #tpu.memory_space<vmem>>, vector<1x32x64xbf16>
      %90 = vector.shape_cast %89 : vector<1x32x64xbf16> to vector<32x64xbf16>
      %cst_81 = arith.constant dense<0.000000e+00> : vector<7x64xf32>
      %91 = tpu.matmul %88, %90, %cst_81 {dimension_numbers = #tpu.dot_dimension_numbers<[1], [0], [0], [1], [0, 0, 1, 1], [], []>} : vector<7x32xbf16>, vector<32x64xbf16>, vector<7x64xf32> -> vector<7x64xf32>
      %92 = arith.addf %84, %91 : vector<7x64xf32>
      %c0_i32_82 = arith.constant 0 : i32
      %93 = arith.addi %75, %c0_i32_82 : i32
      %c0_83 = arith.constant 0 : index
      %94 = arith.index_cast %93 : i32 to index
      %c1_84 = arith.constant 1 : index
      %c0_85 = arith.constant 0 : index
      %95 = vector.load %arg2[%c0_83, %94, %c1_84, %c0_85] : memref<1x17x8x32xbf16, #tpu.memory_space<vmem>>, vector<1x1x7x32xbf16>
      %96 = vector.shape_cast %95 : vector<1x1x7x32xbf16> to vector<7x32xbf16>
      %c2_86 = arith.constant 2 : index
      %c0_87 = arith.constant 0 : index
      %c0_88 = arith.constant 0 : index
      %97 = vector.load %arg3[%c2_86, %c0_87, %c0_88] : memref<9x32x64xbf16, #tpu.memory_space<vmem>>, vector<1x32x64xbf16>
      %98 = vector.shape_cast %97 : vector<1x32x64xbf16> to vector<32x64xbf16>
      %cst_89 = arith.constant dense<0.000000e+00> : vector<7x64xf32>
      %99 = tpu.matmul %96, %98, %cst_89 {dimension_numbers = #tpu.dot_dimension_numbers<[1], [0], [0], [1], [0, 0, 1, 1], [], []>} : vector<7x32xbf16>, vector<32x64xbf16>, vector<7x64xf32> -> vector<7x64xf32>
      %100 = arith.addf %92, %99 : vector<7x64xf32>
      %c1_i32_90 = arith.constant 1 : i32
      %101 = arith.addi %75, %c1_i32_90 : i32
      %c0_91 = arith.constant 0 : index
      %102 = arith.index_cast %101 : i32 to index
      %c0_92 = arith.constant 0 : index
      %c0_93 = arith.constant 0 : index
      %103 = vector.load %arg2[%c0_91, %102, %c0_92, %c0_93] : memref<1x17x8x32xbf16, #tpu.memory_space<vmem>>, vector<1x1x7x32xbf16>
      %104 = vector.shape_cast %103 : vector<1x1x7x32xbf16> to vector<7x32xbf16>
      %c3_94 = arith.constant 3 : index
      %c0_95 = arith.constant 0 : index
      %c0_96 = arith.constant 0 : index
      %105 = vector.load %arg3[%c3_94, %c0_95, %c0_96] : memref<9x32x64xbf16, #tpu.memory_space<vmem>>, vector<1x32x64xbf16>
      %106 = vector.shape_cast %105 : vector<1x32x64xbf16> to vector<32x64xbf16>
      %cst_97 = arith.constant dense<0.000000e+00> : vector<7x64xf32>
      %107 = tpu.matmul %104, %106, %cst_97 {dimension_numbers = #tpu.dot_dimension_numbers<[1], [0], [0], [1], [0, 0, 1, 1], [], []>} : vector<7x32xbf16>, vector<32x64xbf16>, vector<7x64xf32> -> vector<7x64xf32>
      %108 = arith.addf %100, %107 : vector<7x64xf32>
      %c1_i32_98 = arith.constant 1 : i32
      %109 = arith.addi %75, %c1_i32_98 : i32
      %c0_99 = arith.constant 0 : index
      %110 = arith.index_cast %109 : i32 to index
      %c1_100 = arith.constant 1 : index
      %c0_101 = arith.constant 0 : index
      %111 = vector.load %arg1[%c0_99, %110, %c1_100, %c0_101] : memref<1x17x9x32xbf16, #tpu.memory_space<vmem>>, vector<1x1x7x32xbf16>
      %112 = vector.shape_cast %111 : vector<1x1x7x32xbf16> to vector<7x32xbf16>
      %c4_102 = arith.constant 4 : index
      %c0_103 = arith.constant 0 : index
      %c0_104 = arith.constant 0 : index
      %113 = vector.load %arg3[%c4_102, %c0_103, %c0_104] : memref<9x32x64xbf16, #tpu.memory_space<vmem>>, vector<1x32x64xbf16>
      %114 = vector.shape_cast %113 : vector<1x32x64xbf16> to vector<32x64xbf16>
      %cst_105 = arith.constant dense<0.000000e+00> : vector<7x64xf32>
      %115 = tpu.matmul %112, %114, %cst_105 {dimension_numbers = #tpu.dot_dimension_numbers<[1], [0], [0], [1], [0, 0, 1, 1], [], []>} : vector<7x32xbf16>, vector<32x64xbf16>, vector<7x64xf32> -> vector<7x64xf32>
      %116 = arith.addf %108, %115 : vector<7x64xf32>
      %c1_i32_106 = arith.constant 1 : i32
      %117 = arith.addi %75, %c1_i32_106 : i32
      %c0_107 = arith.constant 0 : index
      %118 = arith.index_cast %117 : i32 to index
      %c1_108 = arith.constant 1 : index
      %c0_109 = arith.constant 0 : index
      %119 = vector.load %arg2[%c0_107, %118, %c1_108, %c0_109] : memref<1x17x8x32xbf16, #tpu.memory_space<vmem>>, vector<1x1x7x32xbf16>
      %120 = vector.shape_cast %119 : vector<1x1x7x32xbf16> to vector<7x32xbf16>
      %c5_110 = arith.constant 5 : index
      %c0_111 = arith.constant 0 : index
      %c0_112 = arith.constant 0 : index
      %121 = vector.load %arg3[%c5_110, %c0_111, %c0_112] : memref<9x32x64xbf16, #tpu.memory_space<vmem>>, vector<1x32x64xbf16>
      %122 = vector.shape_cast %121 : vector<1x32x64xbf16> to vector<32x64xbf16>
      %cst_113 = arith.constant dense<0.000000e+00> : vector<7x64xf32>
      %123 = tpu.matmul %120, %122, %cst_113 {dimension_numbers = #tpu.dot_dimension_numbers<[1], [0], [0], [1], [0, 0, 1, 1], [], []>} : vector<7x32xbf16>, vector<32x64xbf16>, vector<7x64xf32> -> vector<7x64xf32>
      %124 = arith.addf %116, %123 : vector<7x64xf32>
      %c2_i32_114 = arith.constant 2 : i32
      %125 = arith.addi %75, %c2_i32_114 : i32
      %c0_115 = arith.constant 0 : index
      %126 = arith.index_cast %125 : i32 to index
      %c0_116 = arith.constant 0 : index
      %c0_117 = arith.constant 0 : index
      %127 = vector.load %arg2[%c0_115, %126, %c0_116, %c0_117] : memref<1x17x8x32xbf16, #tpu.memory_space<vmem>>, vector<1x1x7x32xbf16>
      %128 = vector.shape_cast %127 : vector<1x1x7x32xbf16> to vector<7x32xbf16>
      %c6_118 = arith.constant 6 : index
      %c0_119 = arith.constant 0 : index
      %c0_120 = arith.constant 0 : index
      %129 = vector.load %arg3[%c6_118, %c0_119, %c0_120] : memref<9x32x64xbf16, #tpu.memory_space<vmem>>, vector<1x32x64xbf16>
      %130 = vector.shape_cast %129 : vector<1x32x64xbf16> to vector<32x64xbf16>
      %cst_121 = arith.constant dense<0.000000e+00> : vector<7x64xf32>
      %131 = tpu.matmul %128, %130, %cst_121 {dimension_numbers = #tpu.dot_dimension_numbers<[1], [0], [0], [1], [0, 0, 1, 1], [], []>} : vector<7x32xbf16>, vector<32x64xbf16>, vector<7x64xf32> -> vector<7x64xf32>
      %132 = arith.addf %124, %131 : vector<7x64xf32>
      %c2_i32_122 = arith.constant 2 : i32
      %133 = arith.addi %75, %c2_i32_122 : i32
      %c0_123 = arith.constant 0 : index
      %134 = arith.index_cast %133 : i32 to index
      %c1_124 = arith.constant 1 : index
      %c0_125 = arith.constant 0 : index
      %135 = vector.load %arg1[%c0_123, %134, %c1_124, %c0_125] : memref<1x17x9x32xbf16, #tpu.memory_space<vmem>>, vector<1x1x7x32xbf16>
      %136 = vector.shape_cast %135 : vector<1x1x7x32xbf16> to vector<7x32xbf16>
      %c7_126 = arith.constant 7 : index
      %c0_127 = arith.constant 0 : index
      %c0_128 = arith.constant 0 : index
      %137 = vector.load %arg3[%c7_126, %c0_127, %c0_128] : memref<9x32x64xbf16, #tpu.memory_space<vmem>>, vector<1x32x64xbf16>
      %138 = vector.shape_cast %137 : vector<1x32x64xbf16> to vector<32x64xbf16>
      %cst_129 = arith.constant dense<0.000000e+00> : vector<7x64xf32>
      %139 = tpu.matmul %136, %138, %cst_129 {dimension_numbers = #tpu.dot_dimension_numbers<[1], [0], [0], [1], [0, 0, 1, 1], [], []>} : vector<7x32xbf16>, vector<32x64xbf16>, vector<7x64xf32> -> vector<7x64xf32>
      %140 = arith.addf %132, %139 : vector<7x64xf32>
      %c2_i32_130 = arith.constant 2 : i32
      %141 = arith.addi %75, %c2_i32_130 : i32
      %c0_131 = arith.constant 0 : index
      %142 = arith.index_cast %141 : i32 to index
      %c1_132 = arith.constant 1 : index
      %c0_133 = arith.constant 0 : index
      %143 = vector.load %arg2[%c0_131, %142, %c1_132, %c0_133] : memref<1x17x8x32xbf16, #tpu.memory_space<vmem>>, vector<1x1x7x32xbf16>
      %144 = vector.shape_cast %143 : vector<1x1x7x32xbf16> to vector<7x32xbf16>
      %c8_134 = arith.constant 8 : index
      %c0_135 = arith.constant 0 : index
      %c0_136 = arith.constant 0 : index
      %145 = vector.load %arg3[%c8_134, %c0_135, %c0_136] : memref<9x32x64xbf16, #tpu.memory_space<vmem>>, vector<1x32x64xbf16>
      %146 = vector.shape_cast %145 : vector<1x32x64xbf16> to vector<32x64xbf16>
      %cst_137 = arith.constant dense<0.000000e+00> : vector<7x64xf32>
      %147 = tpu.matmul %144, %146, %cst_137 {dimension_numbers = #tpu.dot_dimension_numbers<[1], [0], [0], [1], [0, 0, 1, 1], [], []>} : vector<7x32xbf16>, vector<32x64xbf16>, vector<7x64xf32> -> vector<7x64xf32>
      %148 = arith.addf %140, %147 : vector<7x64xf32>
      %149 = arith.maximumf %74, %148 : vector<7x64xf32>
      %c2_i32_138 = arith.constant 2 : i32
      %150 = arith.muli %c2_i32_138, %arg6 : i32
      %c1_i32_139 = arith.constant 1 : i32
      %151 = arith.addi %150, %c1_i32_139 : i32
      %cst_140 = arith.constant 0.000000e+00 : f32
      %152 = vector.broadcast %cst_140 : f32 to vector<7x64xf32>
      %c0_i32_141 = arith.constant 0 : i32
      %153 = arith.addi %151, %c0_i32_141 : i32
      %c0_142 = arith.constant 0 : index
      %154 = arith.index_cast %153 : i32 to index
      %c0_143 = arith.constant 0 : index
      %c0_144 = arith.constant 0 : index
      %155 = vector.load %arg1[%c0_142, %154, %c0_143, %c0_144] : memref<1x17x9x32xbf16, #tpu.memory_space<vmem>>, vector<1x1x7x32xbf16>
      %156 = vector.shape_cast %155 : vector<1x1x7x32xbf16> to vector<7x32xbf16>
      %c0_145 = arith.constant 0 : index
      %c0_146 = arith.constant 0 : index
      %c0_147 = arith.constant 0 : index
      %157 = vector.load %arg3[%c0_145, %c0_146, %c0_147] : memref<9x32x64xbf16, #tpu.memory_space<vmem>>, vector<1x32x64xbf16>
      %158 = vector.shape_cast %157 : vector<1x32x64xbf16> to vector<32x64xbf16>
      %cst_148 = arith.constant dense<0.000000e+00> : vector<7x64xf32>
      %159 = tpu.matmul %156, %158, %cst_148 {dimension_numbers = #tpu.dot_dimension_numbers<[1], [0], [0], [1], [0, 0, 1, 1], [], []>} : vector<7x32xbf16>, vector<32x64xbf16>, vector<7x64xf32> -> vector<7x64xf32>
      %160 = arith.addf %152, %159 : vector<7x64xf32>
      %c0_i32_149 = arith.constant 0 : i32
      %161 = arith.addi %151, %c0_i32_149 : i32
      %c0_150 = arith.constant 0 : index
      %162 = arith.index_cast %161 : i32 to index
      %c0_151 = arith.constant 0 : index
      %c0_152 = arith.constant 0 : index
      %163 = vector.load %arg2[%c0_150, %162, %c0_151, %c0_152] : memref<1x17x8x32xbf16, #tpu.memory_space<vmem>>, vector<1x1x7x32xbf16>
      %164 = vector.shape_cast %163 : vector<1x1x7x32xbf16> to vector<7x32xbf16>
      %c1_153 = arith.constant 1 : index
      %c0_154 = arith.constant 0 : index
      %c0_155 = arith.constant 0 : index
      %165 = vector.load %arg3[%c1_153, %c0_154, %c0_155] : memref<9x32x64xbf16, #tpu.memory_space<vmem>>, vector<1x32x64xbf16>
      %166 = vector.shape_cast %165 : vector<1x32x64xbf16> to vector<32x64xbf16>
      %cst_156 = arith.constant dense<0.000000e+00> : vector<7x64xf32>
      %167 = tpu.matmul %164, %166, %cst_156 {dimension_numbers = #tpu.dot_dimension_numbers<[1], [0], [0], [1], [0, 0, 1, 1], [], []>} : vector<7x32xbf16>, vector<32x64xbf16>, vector<7x64xf32> -> vector<7x64xf32>
      %168 = arith.addf %160, %167 : vector<7x64xf32>
      %c0_i32_157 = arith.constant 0 : i32
      %169 = arith.addi %151, %c0_i32_157 : i32
      %c0_158 = arith.constant 0 : index
      %170 = arith.index_cast %169 : i32 to index
      %c1_159 = arith.constant 1 : index
      %c0_160 = arith.constant 0 : index
      %171 = vector.load %arg1[%c0_158, %170, %c1_159, %c0_160] : memref<1x17x9x32xbf16, #tpu.memory_space<vmem>>, vector<1x1x7x32xbf16>
      %172 = vector.shape_cast %171 : vector<1x1x7x32xbf16> to vector<7x32xbf16>
      %c2_161 = arith.constant 2 : index
      %c0_162 = arith.constant 0 : index
      %c0_163 = arith.constant 0 : index
      %173 = vector.load %arg3[%c2_161, %c0_162, %c0_163] : memref<9x32x64xbf16, #tpu.memory_space<vmem>>, vector<1x32x64xbf16>
      %174 = vector.shape_cast %173 : vector<1x32x64xbf16> to vector<32x64xbf16>
      %cst_164 = arith.constant dense<0.000000e+00> : vector<7x64xf32>
      %175 = tpu.matmul %172, %174, %cst_164 {dimension_numbers = #tpu.dot_dimension_numbers<[1], [0], [0], [1], [0, 0, 1, 1], [], []>} : vector<7x32xbf16>, vector<32x64xbf16>, vector<7x64xf32> -> vector<7x64xf32>
      %176 = arith.addf %168, %175 : vector<7x64xf32>
      %c1_i32_165 = arith.constant 1 : i32
      %177 = arith.addi %151, %c1_i32_165 : i32
      %c0_166 = arith.constant 0 : index
      %178 = arith.index_cast %177 : i32 to index
      %c0_167 = arith.constant 0 : index
      %c0_168 = arith.constant 0 : index
      %179 = vector.load %arg1[%c0_166, %178, %c0_167, %c0_168] : memref<1x17x9x32xbf16, #tpu.memory_space<vmem>>, vector<1x1x7x32xbf16>
      %180 = vector.shape_cast %179 : vector<1x1x7x32xbf16> to vector<7x32xbf16>
      %c3_169 = arith.constant 3 : index
      %c0_170 = arith.constant 0 : index
      %c0_171 = arith.constant 0 : index
      %181 = vector.load %arg3[%c3_169, %c0_170, %c0_171] : memref<9x32x64xbf16, #tpu.memory_space<vmem>>, vector<1x32x64xbf16>
      %182 = vector.shape_cast %181 : vector<1x32x64xbf16> to vector<32x64xbf16>
      %cst_172 = arith.constant dense<0.000000e+00> : vector<7x64xf32>
      %183 = tpu.matmul %180, %182, %cst_172 {dimension_numbers = #tpu.dot_dimension_numbers<[1], [0], [0], [1], [0, 0, 1, 1], [], []>} : vector<7x32xbf16>, vector<32x64xbf16>, vector<7x64xf32> -> vector<7x64xf32>
      %184 = arith.addf %176, %183 : vector<7x64xf32>
      %c1_i32_173 = arith.constant 1 : i32
      %185 = arith.addi %151, %c1_i32_173 : i32
      %c0_174 = arith.constant 0 : index
      %186 = arith.index_cast %185 : i32 to index
      %c0_175 = arith.constant 0 : index
      %c0_176 = arith.constant 0 : index
      %187 = vector.load %arg2[%c0_174, %186, %c0_175, %c0_176] : memref<1x17x8x32xbf16, #tpu.memory_space<vmem>>, vector<1x1x7x32xbf16>
      %188 = vector.shape_cast %187 : vector<1x1x7x32xbf16> to vector<7x32xbf16>
      %c4_177 = arith.constant 4 : index
      %c0_178 = arith.constant 0 : index
      %c0_179 = arith.constant 0 : index
      %189 = vector.load %arg3[%c4_177, %c0_178, %c0_179] : memref<9x32x64xbf16, #tpu.memory_space<vmem>>, vector<1x32x64xbf16>
      %190 = vector.shape_cast %189 : vector<1x32x64xbf16> to vector<32x64xbf16>
      %cst_180 = arith.constant dense<0.000000e+00> : vector<7x64xf32>
      %191 = tpu.matmul %188, %190, %cst_180 {dimension_numbers = #tpu.dot_dimension_numbers<[1], [0], [0], [1], [0, 0, 1, 1], [], []>} : vector<7x32xbf16>, vector<32x64xbf16>, vector<7x64xf32> -> vector<7x64xf32>
      %192 = arith.addf %184, %191 : vector<7x64xf32>
      %c1_i32_181 = arith.constant 1 : i32
      %193 = arith.addi %151, %c1_i32_181 : i32
      %c0_182 = arith.constant 0 : index
      %194 = arith.index_cast %193 : i32 to index
      %c1_183 = arith.constant 1 : index
      %c0_184 = arith.constant 0 : index
      %195 = vector.load %arg1[%c0_182, %194, %c1_183, %c0_184] : memref<1x17x9x32xbf16, #tpu.memory_space<vmem>>, vector<1x1x7x32xbf16>
      %196 = vector.shape_cast %195 : vector<1x1x7x32xbf16> to vector<7x32xbf16>
      %c5_185 = arith.constant 5 : index
      %c0_186 = arith.constant 0 : index
      %c0_187 = arith.constant 0 : index
      %197 = vector.load %arg3[%c5_185, %c0_186, %c0_187] : memref<9x32x64xbf16, #tpu.memory_space<vmem>>, vector<1x32x64xbf16>
      %198 = vector.shape_cast %197 : vector<1x32x64xbf16> to vector<32x64xbf16>
      %cst_188 = arith.constant dense<0.000000e+00> : vector<7x64xf32>
      %199 = tpu.matmul %196, %198, %cst_188 {dimension_numbers = #tpu.dot_dimension_numbers<[1], [0], [0], [1], [0, 0, 1, 1], [], []>} : vector<7x32xbf16>, vector<32x64xbf16>, vector<7x64xf32> -> vector<7x64xf32>
      %200 = arith.addf %192, %199 : vector<7x64xf32>
      %c2_i32_189 = arith.constant 2 : i32
      %201 = arith.addi %151, %c2_i32_189 : i32
      %c0_190 = arith.constant 0 : index
      %202 = arith.index_cast %201 : i32 to index
      %c0_191 = arith.constant 0 : index
      %c0_192 = arith.constant 0 : index
      %203 = vector.load %arg1[%c0_190, %202, %c0_191, %c0_192] : memref<1x17x9x32xbf16, #tpu.memory_space<vmem>>, vector<1x1x7x32xbf16>
      %204 = vector.shape_cast %203 : vector<1x1x7x32xbf16> to vector<7x32xbf16>
      %c6_193 = arith.constant 6 : index
      %c0_194 = arith.constant 0 : index
      %c0_195 = arith.constant 0 : index
      %205 = vector.load %arg3[%c6_193, %c0_194, %c0_195] : memref<9x32x64xbf16, #tpu.memory_space<vmem>>, vector<1x32x64xbf16>
      %206 = vector.shape_cast %205 : vector<1x32x64xbf16> to vector<32x64xbf16>
      %cst_196 = arith.constant dense<0.000000e+00> : vector<7x64xf32>
      %207 = tpu.matmul %204, %206, %cst_196 {dimension_numbers = #tpu.dot_dimension_numbers<[1], [0], [0], [1], [0, 0, 1, 1], [], []>} : vector<7x32xbf16>, vector<32x64xbf16>, vector<7x64xf32> -> vector<7x64xf32>
      %208 = arith.addf %200, %207 : vector<7x64xf32>
      %c2_i32_197 = arith.constant 2 : i32
      %209 = arith.addi %151, %c2_i32_197 : i32
      %c0_198 = arith.constant 0 : index
      %210 = arith.index_cast %209 : i32 to index
      %c0_199 = arith.constant 0 : index
      %c0_200 = arith.constant 0 : index
      %211 = vector.load %arg2[%c0_198, %210, %c0_199, %c0_200] : memref<1x17x8x32xbf16, #tpu.memory_space<vmem>>, vector<1x1x7x32xbf16>
      %212 = vector.shape_cast %211 : vector<1x1x7x32xbf16> to vector<7x32xbf16>
      %c7_201 = arith.constant 7 : index
      %c0_202 = arith.constant 0 : index
      %c0_203 = arith.constant 0 : index
      %213 = vector.load %arg3[%c7_201, %c0_202, %c0_203] : memref<9x32x64xbf16, #tpu.memory_space<vmem>>, vector<1x32x64xbf16>
      %214 = vector.shape_cast %213 : vector<1x32x64xbf16> to vector<32x64xbf16>
      %cst_204 = arith.constant dense<0.000000e+00> : vector<7x64xf32>
      %215 = tpu.matmul %212, %214, %cst_204 {dimension_numbers = #tpu.dot_dimension_numbers<[1], [0], [0], [1], [0, 0, 1, 1], [], []>} : vector<7x32xbf16>, vector<32x64xbf16>, vector<7x64xf32> -> vector<7x64xf32>
      %216 = arith.addf %208, %215 : vector<7x64xf32>
      %c2_i32_205 = arith.constant 2 : i32
      %217 = arith.addi %151, %c2_i32_205 : i32
      %c0_206 = arith.constant 0 : index
      %218 = arith.index_cast %217 : i32 to index
      %c1_207 = arith.constant 1 : index
      %c0_208 = arith.constant 0 : index
      %219 = vector.load %arg1[%c0_206, %218, %c1_207, %c0_208] : memref<1x17x9x32xbf16, #tpu.memory_space<vmem>>, vector<1x1x7x32xbf16>
      %220 = vector.shape_cast %219 : vector<1x1x7x32xbf16> to vector<7x32xbf16>
      %c8_209 = arith.constant 8 : index
      %c0_210 = arith.constant 0 : index
      %c0_211 = arith.constant 0 : index
      %221 = vector.load %arg3[%c8_209, %c0_210, %c0_211] : memref<9x32x64xbf16, #tpu.memory_space<vmem>>, vector<1x32x64xbf16>
      %222 = vector.shape_cast %221 : vector<1x32x64xbf16> to vector<32x64xbf16>
      %cst_212 = arith.constant dense<0.000000e+00> : vector<7x64xf32>
      %223 = tpu.matmul %220, %222, %cst_212 {dimension_numbers = #tpu.dot_dimension_numbers<[1], [0], [0], [1], [0, 0, 1, 1], [], []>} : vector<7x32xbf16>, vector<32x64xbf16>, vector<7x64xf32> -> vector<7x64xf32>
      %224 = arith.addf %216, %223 : vector<7x64xf32>
      %c2_i32_213 = arith.constant 2 : i32
      %225 = arith.muli %c2_i32_213, %arg6 : i32
      %c1_i32_214 = arith.constant 1 : i32
      %226 = arith.addi %225, %c1_i32_214 : i32
      %cst_215 = arith.constant 0.000000e+00 : f32
      %227 = vector.broadcast %cst_215 : f32 to vector<7x64xf32>
      %c0_i32_216 = arith.constant 0 : i32
      %228 = arith.addi %226, %c0_i32_216 : i32
      %c0_217 = arith.constant 0 : index
      %229 = arith.index_cast %228 : i32 to index
      %c0_218 = arith.constant 0 : index
      %c0_219 = arith.constant 0 : index
      %230 = vector.load %arg2[%c0_217, %229, %c0_218, %c0_219] : memref<1x17x8x32xbf16, #tpu.memory_space<vmem>>, vector<1x1x7x32xbf16>
      %231 = vector.shape_cast %230 : vector<1x1x7x32xbf16> to vector<7x32xbf16>
      %c0_220 = arith.constant 0 : index
      %c0_221 = arith.constant 0 : index
      %c0_222 = arith.constant 0 : index
      %232 = vector.load %arg3[%c0_220, %c0_221, %c0_222] : memref<9x32x64xbf16, #tpu.memory_space<vmem>>, vector<1x32x64xbf16>
      %233 = vector.shape_cast %232 : vector<1x32x64xbf16> to vector<32x64xbf16>
      %cst_223 = arith.constant dense<0.000000e+00> : vector<7x64xf32>
      %234 = tpu.matmul %231, %233, %cst_223 {dimension_numbers = #tpu.dot_dimension_numbers<[1], [0], [0], [1], [0, 0, 1, 1], [], []>} : vector<7x32xbf16>, vector<32x64xbf16>, vector<7x64xf32> -> vector<7x64xf32>
      %235 = arith.addf %227, %234 : vector<7x64xf32>
      %c0_i32_224 = arith.constant 0 : i32
      %236 = arith.addi %226, %c0_i32_224 : i32
      %c0_225 = arith.constant 0 : index
      %237 = arith.index_cast %236 : i32 to index
      %c1_226 = arith.constant 1 : index
      %c0_227 = arith.constant 0 : index
      %238 = vector.load %arg1[%c0_225, %237, %c1_226, %c0_227] : memref<1x17x9x32xbf16, #tpu.memory_space<vmem>>, vector<1x1x7x32xbf16>
      %239 = vector.shape_cast %238 : vector<1x1x7x32xbf16> to vector<7x32xbf16>
      %c1_228 = arith.constant 1 : index
      %c0_229 = arith.constant 0 : index
      %c0_230 = arith.constant 0 : index
      %240 = vector.load %arg3[%c1_228, %c0_229, %c0_230] : memref<9x32x64xbf16, #tpu.memory_space<vmem>>, vector<1x32x64xbf16>
      %241 = vector.shape_cast %240 : vector<1x32x64xbf16> to vector<32x64xbf16>
      %cst_231 = arith.constant dense<0.000000e+00> : vector<7x64xf32>
      %242 = tpu.matmul %239, %241, %cst_231 {dimension_numbers = #tpu.dot_dimension_numbers<[1], [0], [0], [1], [0, 0, 1, 1], [], []>} : vector<7x32xbf16>, vector<32x64xbf16>, vector<7x64xf32> -> vector<7x64xf32>
      %243 = arith.addf %235, %242 : vector<7x64xf32>
      %c0_i32_232 = arith.constant 0 : i32
      %244 = arith.addi %226, %c0_i32_232 : i32
      %c0_233 = arith.constant 0 : index
      %245 = arith.index_cast %244 : i32 to index
      %c1_234 = arith.constant 1 : index
      %c0_235 = arith.constant 0 : index
      %246 = vector.load %arg2[%c0_233, %245, %c1_234, %c0_235] : memref<1x17x8x32xbf16, #tpu.memory_space<vmem>>, vector<1x1x7x32xbf16>
      %247 = vector.shape_cast %246 : vector<1x1x7x32xbf16> to vector<7x32xbf16>
      %c2_236 = arith.constant 2 : index
      %c0_237 = arith.constant 0 : index
      %c0_238 = arith.constant 0 : index
      %248 = vector.load %arg3[%c2_236, %c0_237, %c0_238] : memref<9x32x64xbf16, #tpu.memory_space<vmem>>, vector<1x32x64xbf16>
      %249 = vector.shape_cast %248 : vector<1x32x64xbf16> to vector<32x64xbf16>
      %cst_239 = arith.constant dense<0.000000e+00> : vector<7x64xf32>
      %250 = tpu.matmul %247, %249, %cst_239 {dimension_numbers = #tpu.dot_dimension_numbers<[1], [0], [0], [1], [0, 0, 1, 1], [], []>} : vector<7x32xbf16>, vector<32x64xbf16>, vector<7x64xf32> -> vector<7x64xf32>
      %251 = arith.addf %243, %250 : vector<7x64xf32>
      %c1_i32_240 = arith.constant 1 : i32
      %252 = arith.addi %226, %c1_i32_240 : i32
      %c0_241 = arith.constant 0 : index
      %253 = arith.index_cast %252 : i32 to index
      %c0_242 = arith.constant 0 : index
      %c0_243 = arith.constant 0 : index
      %254 = vector.load %arg2[%c0_241, %253, %c0_242, %c0_243] : memref<1x17x8x32xbf16, #tpu.memory_space<vmem>>, vector<1x1x7x32xbf16>
      %255 = vector.shape_cast %254 : vector<1x1x7x32xbf16> to vector<7x32xbf16>
      %c3_244 = arith.constant 3 : index
      %c0_245 = arith.constant 0 : index
      %c0_246 = arith.constant 0 : index
      %256 = vector.load %arg3[%c3_244, %c0_245, %c0_246] : memref<9x32x64xbf16, #tpu.memory_space<vmem>>, vector<1x32x64xbf16>
      %257 = vector.shape_cast %256 : vector<1x32x64xbf16> to vector<32x64xbf16>
      %cst_247 = arith.constant dense<0.000000e+00> : vector<7x64xf32>
      %258 = tpu.matmul %255, %257, %cst_247 {dimension_numbers = #tpu.dot_dimension_numbers<[1], [0], [0], [1], [0, 0, 1, 1], [], []>} : vector<7x32xbf16>, vector<32x64xbf16>, vector<7x64xf32> -> vector<7x64xf32>
      %259 = arith.addf %251, %258 : vector<7x64xf32>
      %c1_i32_248 = arith.constant 1 : i32
      %260 = arith.addi %226, %c1_i32_248 : i32
      %c0_249 = arith.constant 0 : index
      %261 = arith.index_cast %260 : i32 to index
      %c1_250 = arith.constant 1 : index
      %c0_251 = arith.constant 0 : index
      %262 = vector.load %arg1[%c0_249, %261, %c1_250, %c0_251] : memref<1x17x9x32xbf16, #tpu.memory_space<vmem>>, vector<1x1x7x32xbf16>
      %263 = vector.shape_cast %262 : vector<1x1x7x32xbf16> to vector<7x32xbf16>
      %c4_252 = arith.constant 4 : index
      %c0_253 = arith.constant 0 : index
      %c0_254 = arith.constant 0 : index
      %264 = vector.load %arg3[%c4_252, %c0_253, %c0_254] : memref<9x32x64xbf16, #tpu.memory_space<vmem>>, vector<1x32x64xbf16>
      %265 = vector.shape_cast %264 : vector<1x32x64xbf16> to vector<32x64xbf16>
      %cst_255 = arith.constant dense<0.000000e+00> : vector<7x64xf32>
      %266 = tpu.matmul %263, %265, %cst_255 {dimension_numbers = #tpu.dot_dimension_numbers<[1], [0], [0], [1], [0, 0, 1, 1], [], []>} : vector<7x32xbf16>, vector<32x64xbf16>, vector<7x64xf32> -> vector<7x64xf32>
      %267 = arith.addf %259, %266 : vector<7x64xf32>
      %c1_i32_256 = arith.constant 1 : i32
      %268 = arith.addi %226, %c1_i32_256 : i32
      %c0_257 = arith.constant 0 : index
      %269 = arith.index_cast %268 : i32 to index
      %c1_258 = arith.constant 1 : index
      %c0_259 = arith.constant 0 : index
      %270 = vector.load %arg2[%c0_257, %269, %c1_258, %c0_259] : memref<1x17x8x32xbf16, #tpu.memory_space<vmem>>, vector<1x1x7x32xbf16>
      %271 = vector.shape_cast %270 : vector<1x1x7x32xbf16> to vector<7x32xbf16>
      %c5_260 = arith.constant 5 : index
      %c0_261 = arith.constant 0 : index
      %c0_262 = arith.constant 0 : index
      %272 = vector.load %arg3[%c5_260, %c0_261, %c0_262] : memref<9x32x64xbf16, #tpu.memory_space<vmem>>, vector<1x32x64xbf16>
      %273 = vector.shape_cast %272 : vector<1x32x64xbf16> to vector<32x64xbf16>
      %cst_263 = arith.constant dense<0.000000e+00> : vector<7x64xf32>
      %274 = tpu.matmul %271, %273, %cst_263 {dimension_numbers = #tpu.dot_dimension_numbers<[1], [0], [0], [1], [0, 0, 1, 1], [], []>} : vector<7x32xbf16>, vector<32x64xbf16>, vector<7x64xf32> -> vector<7x64xf32>
      %275 = arith.addf %267, %274 : vector<7x64xf32>
      %c2_i32_264 = arith.constant 2 : i32
      %276 = arith.addi %226, %c2_i32_264 : i32
      %c0_265 = arith.constant 0 : index
      %277 = arith.index_cast %276 : i32 to index
      %c0_266 = arith.constant 0 : index
      %c0_267 = arith.constant 0 : index
      %278 = vector.load %arg2[%c0_265, %277, %c0_266, %c0_267] : memref<1x17x8x32xbf16, #tpu.memory_space<vmem>>, vector<1x1x7x32xbf16>
      %279 = vector.shape_cast %278 : vector<1x1x7x32xbf16> to vector<7x32xbf16>
      %c6_268 = arith.constant 6 : index
      %c0_269 = arith.constant 0 : index
      %c0_270 = arith.constant 0 : index
      %280 = vector.load %arg3[%c6_268, %c0_269, %c0_270] : memref<9x32x64xbf16, #tpu.memory_space<vmem>>, vector<1x32x64xbf16>
      %281 = vector.shape_cast %280 : vector<1x32x64xbf16> to vector<32x64xbf16>
      %cst_271 = arith.constant dense<0.000000e+00> : vector<7x64xf32>
      %282 = tpu.matmul %279, %281, %cst_271 {dimension_numbers = #tpu.dot_dimension_numbers<[1], [0], [0], [1], [0, 0, 1, 1], [], []>} : vector<7x32xbf16>, vector<32x64xbf16>, vector<7x64xf32> -> vector<7x64xf32>
      %283 = arith.addf %275, %282 : vector<7x64xf32>
      %c2_i32_272 = arith.constant 2 : i32
      %284 = arith.addi %226, %c2_i32_272 : i32
      %c0_273 = arith.constant 0 : index
      %285 = arith.index_cast %284 : i32 to index
      %c1_274 = arith.constant 1 : index
      %c0_275 = arith.constant 0 : index
      %286 = vector.load %arg1[%c0_273, %285, %c1_274, %c0_275] : memref<1x17x9x32xbf16, #tpu.memory_space<vmem>>, vector<1x1x7x32xbf16>
      %287 = vector.shape_cast %286 : vector<1x1x7x32xbf16> to vector<7x32xbf16>
      %c7_276 = arith.constant 7 : index
      %c0_277 = arith.constant 0 : index
      %c0_278 = arith.constant 0 : index
      %288 = vector.load %arg3[%c7_276, %c0_277, %c0_278] : memref<9x32x64xbf16, #tpu.memory_space<vmem>>, vector<1x32x64xbf16>
      %289 = vector.shape_cast %288 : vector<1x32x64xbf16> to vector<32x64xbf16>
      %cst_279 = arith.constant dense<0.000000e+00> : vector<7x64xf32>
      %290 = tpu.matmul %287, %289, %cst_279 {dimension_numbers = #tpu.dot_dimension_numbers<[1], [0], [0], [1], [0, 0, 1, 1], [], []>} : vector<7x32xbf16>, vector<32x64xbf16>, vector<7x64xf32> -> vector<7x64xf32>
      %291 = arith.addf %283, %290 : vector<7x64xf32>
      %c2_i32_280 = arith.constant 2 : i32
      %292 = arith.addi %226, %c2_i32_280 : i32
      %c0_281 = arith.constant 0 : index
      %293 = arith.index_cast %292 : i32 to index
      %c1_282 = arith.constant 1 : index
      %c0_283 = arith.constant 0 : index
      %294 = vector.load %arg2[%c0_281, %293, %c1_282, %c0_283] : memref<1x17x8x32xbf16, #tpu.memory_space<vmem>>, vector<1x1x7x32xbf16>
      %295 = vector.shape_cast %294 : vector<1x1x7x32xbf16> to vector<7x32xbf16>
      %c8_284 = arith.constant 8 : index
      %c0_285 = arith.constant 0 : index
      %c0_286 = arith.constant 0 : index
      %296 = vector.load %arg3[%c8_284, %c0_285, %c0_286] : memref<9x32x64xbf16, #tpu.memory_space<vmem>>, vector<1x32x64xbf16>
      %297 = vector.shape_cast %296 : vector<1x32x64xbf16> to vector<32x64xbf16>
      %cst_287 = arith.constant dense<0.000000e+00> : vector<7x64xf32>
      %298 = tpu.matmul %295, %297, %cst_287 {dimension_numbers = #tpu.dot_dimension_numbers<[1], [0], [0], [1], [0, 0, 1, 1], [], []>} : vector<7x32xbf16>, vector<32x64xbf16>, vector<7x64xf32> -> vector<7x64xf32>
      %299 = arith.addf %291, %298 : vector<7x64xf32>
      %300 = arith.maximumf %224, %299 : vector<7x64xf32>
      %301 = arith.maximumf %149, %300 : vector<7x64xf32>
      %c0_288 = arith.constant 0 : index
      %c0_289 = arith.constant 0 : index
      %302 = vector.load %arg4[%c0_288, %c0_289] : memref<1x64xf32, #tpu.memory_space<vmem>>, vector<1x64xf32>
      %303 = vector.broadcast %302 : vector<1x64xf32> to vector<7x64xf32>
      %304 = arith.addf %301, %303 : vector<7x64xf32>
      %cst_290 = arith.constant 0.000000e+00 : f32
      %305 = vector.broadcast %cst_290 : f32 to vector<7x64xf32>
      %306 = arith.maximumf %304, %305 : vector<7x64xf32>
      %307 = arith.truncf %306 : vector<7x64xf32> to vector<7x64xbf16>
      %c0_291 = arith.constant 0 : index
      %308 = arith.index_cast %arg6 : i32 to index
      %c0_292 = arith.constant 0 : index
      %c0_293 = arith.constant 0 : index
      %309 = vector.load %arg5[%c0_291, %308, %c0_292, %c0_293] : memref<1x7x7x64xbf16, #tpu.memory_space<vmem>>, vector<1x1x7x64xbf16>
      %310 = vector.shape_cast %309 : vector<1x1x7x64xbf16> to vector<7x64xbf16>
      %311 = vector.shape_cast %307 : vector<7x64xbf16> to vector<1x1x7x64xbf16>
      tpu.vector_store %arg5[%c0_291, %308, %c0_292, %c0_293], %311 {strides = array<i32>} : memref<1x7x7x64xbf16, #tpu.memory_space<vmem>>, vector<1x1x7x64xbf16>,
    }
    %c7_i32_0 = arith.constant 7 : i32
    return
  }
  func.func @transform_0(%arg0: i32) -> (i32, i32, i32, i32) {
    %c0_i32 = arith.constant 0 : i32
    %c0_i32_0 = arith.constant 0 : i32
    %c0_i32_1 = arith.constant 0 : i32
    %c0_i32_2 = arith.constant 0 : i32
    return %arg0, %c0_i32, %c0_i32_0, %c0_i32_1 : i32, i32, i32, i32
  }
  func.func @transform_1(%arg0: i32) -> (i32, i32, i32, i32) {
    %c0_i32 = arith.constant 0 : i32
    %c0_i32_0 = arith.constant 0 : i32
    %c0_i32_1 = arith.constant 0 : i32
    %c0_i32_2 = arith.constant 0 : i32
    return %arg0, %c0_i32, %c0_i32_0, %c0_i32_1 : i32, i32, i32, i32
  }
  func.func @transform_2(%arg0: i32) -> (i32, i32, i32) {
    %c0_i32 = arith.constant 0 : i32
    %c0_i32_0 = arith.constant 0 : i32
    %c0_i32_1 = arith.constant 0 : i32
    %c0_i32_2 = arith.constant 0 : i32
    return %c0_i32, %c0_i32_0, %c0_i32_1 : i32, i32, i32
  }
  func.func @transform_3(%arg0: i32) -> (i32, i32) {
    %c0_i32 = arith.constant 0 : i32
    %c0_i32_0 = arith.constant 0 : i32
    %c0_i32_1 = arith.constant 0 : i32
    return %c0_i32, %c0_i32_0 : i32, i32
  }
  func.func @transform_4(%arg0: i32) -> (i32, i32, i32, i32) {
    %c0_i32 = arith.constant 0 : i32
    %c0_i32_0 = arith.constant 0 : i32
    %c0_i32_1 = arith.constant 0 : i32
    %c0_i32_2 = arith.constant 0 : i32
    return %arg0, %c0_i32, %c0_i32_0, %c0_i32_1 : i32, i32, i32, i32
  }
}

module attributes {stable_mosaic.version = 11 : i64} {
  func.func @_mlp_kernel(%arg0: i32, %arg1: memref<2x3136xbf16, #tpu.memory_space<vmem>>, %arg2: memref<3136x128xbf16, #tpu.memory_space<vmem>>, %arg3: memref<1x128xf32, #tpu.memory_space<vmem>>, %arg4: memref<128x128xbf16, #tpu.memory_space<vmem>>, %arg5: memref<1x128xf32, #tpu.memory_space<vmem>>, %arg6: memref<2x128xf32, #tpu.memory_space<vmem>>) attributes {dimension_semantics = [#tpu.dimension_semantics<parallel>], iteration_bounds = array<i64: 1>, scalar_prefetch = 0 : i64, scratch_operands = 0 : i64, tpu.core_type = #tpu.core_type<tc>, window_params = [{transform_indices = @transform_0, window_bounds = array<i64: 2, 3136>}, {pipeline_mode = #tpu.pipeline_mode<synchronous>, transform_indices = @transform_1, window_bounds = array<i64: 3136, 128>}, {pipeline_mode = #tpu.pipeline_mode<synchronous>, transform_indices = @transform_2, window_bounds = array<i64: 1, 128>}, {pipeline_mode = #tpu.pipeline_mode<synchronous>, transform_indices = @transform_3, window_bounds = array<i64: 128, 128>}, {pipeline_mode = #tpu.pipeline_mode<synchronous>, transform_indices = @transform_4, window_bounds = array<i64: 1, 128>}, {transform_indices = @transform_5, window_bounds = array<i64: 2, 128>}]} {
    %c0 = arith.constant 0 : index
    %c0_0 = arith.constant 0 : index
    %0 = vector.load %arg1[%c0, %c0_0] : memref<2x3136xbf16, #tpu.memory_space<vmem>>, vector<2x3136xbf16>
    %c0_1 = arith.constant 0 : index
    %c0_2 = arith.constant 0 : index
    %1 = vector.load %arg2[%c0_1, %c0_2] : memref<3136x128xbf16, #tpu.memory_space<vmem>>, vector<3136x128xbf16>
    %cst = arith.constant dense<0.000000e+00> : vector<2x128xf32>
    %2 = tpu.matmul %0, %1, %cst {dimension_numbers = #tpu.dot_dimension_numbers<[1], [0], [0], [1], [0, 0, 1, 1], [], []>} : vector<2x3136xbf16>, vector<3136x128xbf16>, vector<2x128xf32> -> vector<2x128xf32>
    %c0_3 = arith.constant 0 : index
    %c0_4 = arith.constant 0 : index
    %3 = vector.load %arg3[%c0_3, %c0_4] : memref<1x128xf32, #tpu.memory_space<vmem>>, vector<1x128xf32>
    %4 = vector.broadcast %3 : vector<1x128xf32> to vector<2x128xf32>
    %5 = arith.addf %2, %4 : vector<2x128xf32>
    %cst_5 = arith.constant 0.000000e+00 : f32
    %6 = vector.broadcast %cst_5 : f32 to vector<2x128xf32>
    %7 = arith.maximumf %5, %6 : vector<2x128xf32>
    %8 = arith.truncf %7 : vector<2x128xf32> to vector<2x128xbf16>
    %c0_6 = arith.constant 0 : index
    %c0_7 = arith.constant 0 : index
    %9 = vector.load %arg4[%c0_6, %c0_7] : memref<128x128xbf16, #tpu.memory_space<vmem>>, vector<128x128xbf16>
    %cst_8 = arith.constant dense<0.000000e+00> : vector<2x128xf32>
    %10 = tpu.matmul %8, %9, %cst_8 {dimension_numbers = #tpu.dot_dimension_numbers<[1], [0], [0], [1], [0, 0, 1, 1], [], []>} : vector<2x128xbf16>, vector<128x128xbf16>, vector<2x128xf32> -> vector<2x128xf32>
    %c0_9 = arith.constant 0 : index
    %c0_10 = arith.constant 0 : index
    %11 = vector.load %arg5[%c0_9, %c0_10] : memref<1x128xf32, #tpu.memory_space<vmem>>, vector<1x128xf32>
    %12 = vector.broadcast %11 : vector<1x128xf32> to vector<2x128xf32>
    %13 = arith.addf %10, %12 : vector<2x128xf32>
    %c0_11 = arith.constant 0 : index
    %c0_12 = arith.constant 0 : index
    %14 = vector.load %arg6[%c0_11, %c0_12] : memref<2x128xf32, #tpu.memory_space<vmem>>, vector<2x128xf32>
    tpu.vector_store %arg6[%c0_11, %c0_12], %13 {strides = array<i32>} : memref<2x128xf32, #tpu.memory_space<vmem>>, vector<2x128xf32>,
    return
  }
  func.func @transform_0(%arg0: i32) -> (i32, i32) {
    %c0_i32 = arith.constant 0 : i32
    %c0_i32_0 = arith.constant 0 : i32
    return %arg0, %c0_i32 : i32, i32
  }
  func.func @transform_1(%arg0: i32) -> (i32, i32) {
    %c0_i32 = arith.constant 0 : i32
    %c0_i32_0 = arith.constant 0 : i32
    %c0_i32_1 = arith.constant 0 : i32
    return %c0_i32, %c0_i32_0 : i32, i32
  }
  func.func @transform_2(%arg0: i32) -> (i32, i32) {
    %c0_i32 = arith.constant 0 : i32
    %c0_i32_0 = arith.constant 0 : i32
    %c0_i32_1 = arith.constant 0 : i32
    return %c0_i32, %c0_i32_0 : i32, i32
  }
  func.func @transform_3(%arg0: i32) -> (i32, i32) {
    %c0_i32 = arith.constant 0 : i32
    %c0_i32_0 = arith.constant 0 : i32
    %c0_i32_1 = arith.constant 0 : i32
    return %c0_i32, %c0_i32_0 : i32, i32
  }
  func.func @transform_4(%arg0: i32) -> (i32, i32) {
    %c0_i32 = arith.constant 0 : i32
    %c0_i32_0 = arith.constant 0 : i32
    %c0_i32_1 = arith.constant 0 : i32
    return %c0_i32, %c0_i32_0 : i32, i32
  }
  func.func @transform_5(%arg0: i32) -> (i32, i32) {
    %c0_i32 = arith.constant 0 : i32
    %c0_i32_0 = arith.constant 0 : i32
    return %arg0, %c0_i32 : i32, i32
  }
}

</mosaic_0001>

<llo_original>
// kernel: cnn_forward.3
$region0: #{cnn_forward.3}
  #allocation0 [shape = 'u32[]', space=smem, size = 0x4, offset = 0x4, fixed_abs, tag = 'smem constant byte address 0x4 - core index']
  #allocation1 [shape = 'u32[144,128]{1,0:T(1,128)}', space=vmem, size = 0x12000, scoped, tag = 'internal scratch']
  %s0 = inlined_call_operand.vmem [shape: f32[2,32,16,1], index: 0, kind: input, shape index: {}]
  %s1 = inlined_call_operand.vmem [shape: f32[2,32,16,1], index: 1, kind: input, shape index: {}]
  %s2 = inlined_call_operand.vmem [shape: f32[9,1,32], index: 2, kind: input, shape index: {}]
  %s3 = inlined_call_operand.vmem [shape: f32[1,32], index: 3, kind: input, shape index: {}]
  %s4 = inlined_call_operand.vmem [shape: bf16[2,15,15,32], index: 4, kind: output, shape index: {}]
  %s5 = sld [smem:[#allocation0]]
  $region56: #{cnn_forward.3} parent=0
    _
  %s7 = ssub.s32 1, %s5
  %s8 = scalar_select 0, %s7, %s5
  loop: start=0, step=1, limit=4
  $region2: #{cnn_forward.3} parent=0 // loop_pre_header
    _
  $region3: #{cnn_forward.3} parent=0 // loop_header
    %s10 = sphi 0, %s14
    %p11 = scmp.ge.s32.totalorder %s10, 4
    %s20 = sphi 0, %s22
    %s23 = sphi 0, %s20
    %s24 = sphi 0, %s23
    %s40 = sphi 0, %s24
    %s46 = sphi 0, %s48
    %s49 = sphi 0, %s46
    %s50 = sphi 0, %s49
    %s66 = sphi 0, %s50
    %s70 = sphi 0, %s70
    %s72 = sphi 0, %s70
    %s73 = sphi 0, %s72
    %s87 = sphi 0, %s73
    %s91 = sphi 0, %s91
    %s93 = sphi 0, %s91
    %s94 = sphi 0, %s93
    %s108 = sphi 0, %s94
    %s114 = sphi 0, %s116
    %s117 = sphi 0, %s114
    %s118 = sphi 0, %s117
    %s134 = sphi 0, %s118
  $region4: #{cnn_forward.3} parent=0 // loop_header_branch
    %13 = sbr.rel (%p11) target = $region8
  $region5: #{cnn_forward.3} parent=0 // loop_body
    %s15 = ssub.s32 %s10, 1
    %s16 = ssub.s32 %s10, 2
    %s17 = sadd.s32 %s10, 1
    %s18 = ssub.s32 %s10, %s17
    %p19 = scmp.eq.s32.totalorder %s18, 0
    %s21 = sadd.s32 %s20, 1
    %s22 = scalar_select %p19, %s20, %s21
    %p25 = pneg %p19
    %p26 = scmp.eq.s32.totalorder %s10, 1
    %p27 = por %p25, %p26
    %p28 = scmp.ne.s32.totalorder %s20, %s23
    %p29 = scmp.eq.s32.totalorder %s10, 0
    %p30 = por %p28, %p29
    %p31 = scmp.ne.s32.totalorder %s20, %s23
    %p32 = scmp.eq.s32.totalorder %s15, 1
    %p33 = por %p31, %p32
    %p34 = scmp.ne.s32.totalorder %s23, %s24
    %p35 = scmp.eq.s32.totalorder %s15, 0
    %p36 = por %p34, %p35
    %p37 = scmp.ne.s32.totalorder %s23, %s24
    %p38 = scmp.eq.s32.totalorder %s16, 1
    %p39 = por %p37, %p38
    %p41 = scmp.ne.s32.totalorder %s24, %s40
    %p42 = scmp.eq.s32.totalorder %s16, 0
    %p43 = por %p41, %p42
    %s44 = ssub.s32 %s10, %s17
    %p45 = scmp.eq.s32.totalorder %s44, 0
    %s47 = sadd.s32 %s46, 1
    %s48 = scalar_select %p45, %s46, %s47
    %p51 = pneg %p45
    %p52 = scmp.eq.s32.totalorder %s10, 1
    %p53 = por %p51, %p52
    %p54 = scmp.ne.s32.totalorder %s46, %s49
    %p55 = scmp.eq.s32.totalorder %s10, 0
    %p56 = por %p54, %p55
    %p57 = scmp.ne.s32.totalorder %s46, %s49
    %p58 = scmp.eq.s32.totalorder %s15, 1
    %p59 = por %p57, %p58
    %p60 = scmp.ne.s32.totalorder %s49, %s50
    %p61 = scmp.eq.s32.totalorder %s15, 0
    %p62 = por %p60, %p61
    %p63 = scmp.ne.s32.totalorder %s49, %s50
    %p64 = scmp.eq.s32.totalorder %s16, 1
    %p65 = por %p63, %p64
    %p67 = scmp.ne.s32.totalorder %s50, %s66
    %p68 = scmp.eq.s32.totalorder %s16, 0
    %p69 = por %p67, %p68
    %s71 = sadd.s32 %s70, 1
    %p74 = scmp.eq.s32.totalorder %s10, 1
    %p75 = scmp.ne.s32.totalorder %s70, %s72
    %p76 = scmp.eq.s32.totalorder %s10, 0
    %p77 = por %p75, %p76
    %p78 = scmp.ne.s32.totalorder %s70, %s72
    %p79 = scmp.eq.s32.totalorder %s15, 1
    %p80 = por %p78, %p79
    %p81 = scmp.ne.s32.totalorder %s72, %s73
    %p82 = scmp.eq.s32.totalorder %s15, 0
    %p83 = por %p81, %p82
    %p84 = scmp.ne.s32.totalorder %s72, %s73
    %p85 = scmp.eq.s32.totalorder %s16, 1
    %p86 = por %p84, %p85
    %p88 = scmp.ne.s32.totalorder %s73, %s87
    %p89 = scmp.eq.s32.totalorder %s16, 0
    %p90 = por %p88, %p89
    %s92 = sadd.s32 %s91, 1
    %p95 = scmp.eq.s32.totalorder %s10, 1
    %p96 = scmp.ne.s32.totalorder %s91, %s93
    %p97 = scmp.eq.s32.totalorder %s10, 0
    %p98 = por %p96, %p97
    %p99 = scmp.ne.s32.totalorder %s91, %s93
    %p100 = scmp.eq.s32.totalorder %s15, 1
    %p101 = por %p99, %p100
    %p102 = scmp.ne.s32.totalorder %s93, %s94
    %p103 = scmp.eq.s32.totalorder %s15, 0
    %p104 = por %p102, %p103
    %p105 = scmp.ne.s32.totalorder %s93, %s94
    %p106 = scmp.eq.s32.totalorder %s16, 1
    %p107 = por %p105, %p106
    %p109 = scmp.ne.s32.totalorder %s94, %s108
    %p110 = scmp.eq.s32.totalorder %s16, 0
    %p111 = por %p109, %p110
    %s112 = ssub.s32 %s10, %s17
    %p113 = scmp.eq.s32.totalorder %s112, 0
    %s115 = sadd.s32 %s114, 1
    %s116 = scalar_select %p113, %s114, %s115
    %p119 = pneg %p113
    %p120 = scmp.eq.s32.totalorder %s10, 1
    %p121 = por %p119, %p120
    %p122 = scmp.ne.s32.totalorder %s114, %s117
    %p123 = scmp.eq.s32.totalorder %s10, 0
    %p124 = por %p122, %p123
    %p125 = scmp.ne.s32.totalorder %s114, %s117
    %p126 = scmp.eq.s32.totalorder %s15, 1
    %p127 = por %p125, %p126
    %p128 = scmp.ne.s32.totalorder %s117, %s118
    %p129 = scmp.eq.s32.totalorder %s15, 0
    %p130 = por %p128, %p129
    %p131 = scmp.ne.s32.totalorder %s117, %s118
    %p132 = scmp.eq.s32.totalorder %s16, 1
    %p133 = por %p131, %p132
    %p135 = scmp.ne.s32.totalorder %s118, %s134
    %p136 = scmp.eq.s32.totalorder %s16, 0
    %p137 = por %p135, %p136
    %p138 = scmp.le.s32.totalorder 1, %s10
    %p139 = scmp.lt.s32.totalorder %s10, 3
    %p140 = pnand %p138, %p139
    %p141 = pneg %p140
    // Predicated region
    $region9: #{cnn_forward.3} parent=5 // pred_check
      _
    $region10: #{cnn_forward.3} parent=5 // pred_check_branch
      %143 = sbr.rel (%p140) target = $region12
    $region11: #{cnn_forward.3} parent=5 // pred_region
      %s144 = ssub.s32 %s10, 1
      // Predicated region
      $region13: #{cnn_forward.3} parent=11 // pred_check
        %p145 = pneg %p83
      $region14: #{cnn_forward.3} parent=11 // pred_check_branch
        %147 = sbr.rel (%p145) target = $region16
      $region15: #{cnn_forward.3} parent=11 // pred_region
        _
      $region16: #{cnn_forward.3} parent=11 // pred_fallthru
        _
      // Predicated region
      $region17: #{cnn_forward.3} parent=11 // pred_check
        %p148 = pneg %p104
      $region18: #{cnn_forward.3} parent=11 // pred_check_branch
        %150 = sbr.rel (%p148) target = $region20
      $region19: #{cnn_forward.3} parent=11 // pred_region
        _
      $region20: #{cnn_forward.3} parent=11 // pred_fallthru
        _
    $region12: #{cnn_forward.3} parent=5 // pred_fallthru
      _
    %p151 = scmp.lt.s32.totalorder %s10, 2
    // Predicated region
    $region21: #{cnn_forward.3} parent=5 // pred_check
      %p152 = pneg %p151
    $region22: #{cnn_forward.3} parent=5 // pred_check_branch
      %154 = sbr.rel (%p152) target = $region24
    $region23: #{cnn_forward.3} parent=5 // pred_region
      // Predicated region
      $region25: #{cnn_forward.3} parent=23 // pred_check
        %p155 = pneg %p30
      $region26: #{cnn_forward.3} parent=23 // pred_check_branch
        %157 = sbr.rel (%p155) target = $region28
      $region27: #{cnn_forward.3} parent=23 // pred_region
        %p158 = scmp.lt.s32.totalorder %s10, 1
        %s159 = scalar_select %p158, %s10, 1
        %s160 = smul.addr %s159, 64
        %s161 = smul.addr %s160, 8
        %s162 = scalar_lea.vmem %s0, %s161
      $region28: #{cnn_forward.3} parent=23 // pred_fallthru
        _
      // Predicated region
      $region29: #{cnn_forward.3} parent=23 // pred_check
        %p163 = pneg %p56
      $region30: #{cnn_forward.3} parent=23 // pred_check_branch
        %165 = sbr.rel (%p163) target = $region32
      $region31: #{cnn_forward.3} parent=23 // pred_region
        %p166 = scmp.lt.s32.totalorder %s10, 1
        %s167 = scalar_select %p166, %s10, 1
        %s168 = smul.addr %s167, 64
        %s169 = smul.addr %s168, 8
        %s170 = scalar_lea.vmem %s1, %s169
      $region32: #{cnn_forward.3} parent=23 // pred_fallthru
        _
    $region24: #{cnn_forward.3} parent=5 // pred_fallthru
      _
    %p171 = scmp.le.s32.totalorder 1, %s10
    %p172 = scmp.lt.s32.totalorder %s10, 3
    %p173 = pnand %p171, %p172
    %p174 = pneg %p173
    // Predicated region
    $region33: #{cnn_forward.3} parent=5 // pred_check
      _
    $region34: #{cnn_forward.3} parent=5 // pred_check_branch
      %176 = sbr.rel (%p173) target = $region36
    $region35: #{cnn_forward.3} parent=5 // pred_region
      %s177 = ssub.s32 %s10, 1
      %p178 = scmp.lt.s32.totalorder %s15, 1
      %s179 = scalar_select %p178, %s15, 1
      %s180 = smul.addr %s179, 64
      %s181 = smul.addr %s180, 8
      %s182 = scalar_lea.vmem %s0, %s181
      %p183 = pneg %p36
      %p184 = pneg %p33
      %p185 = scmp.lt.s32.totalorder %s15, 1
      %s186 = scalar_select %p185, %s15, 1
      %s187 = smul.addr %s186, 64
      %s188 = smul.addr %s187, 8
      %s189 = scalar_lea.vmem %s1, %s188
      %p190 = pneg %p62
      %p191 = pneg %p59
      %p192 = pneg %p83
      %p193 = pneg %p80
      %p194 = pneg %p104
      %p195 = pneg %p101
      %p196 = pneg %p130
      %p197 = pneg %p127
      %p198 = scmp.lt.s32.totalorder %s15, 1
      %s199 = scalar_select %p198, %s15, 1
      %s200 = smul.addr %s199, 30
      %s201 = smul.addr %s200, 4
      %s202 = scalar_lea.vmem %s4, %s201
      %p203 = scmp.lt.s32.totalorder %s15, 1
      %s204 = scalar_select %p203, %s15, 1
      %s205 = smul.addr %s204, 64
      %s206 = smul.addr %s205, 8
      %s207 = scalar_lea.vmem %s0, %s206
      %p208 = scmp.lt.s32.totalorder %s15, 1
      %s209 = scalar_select %p208, %s15, 1
      %s210 = smul.addr %s209, 64
      %s211 = smul.addr %s210, 8
      %s212 = scalar_lea.vmem %s1, %s211
      %p213 = scmp.lt.s32.totalorder %s15, 1
      %s214 = scalar_select %p213, %s15, 1
      %s215 = smul.addr %s214, 30
      %s216 = smul.addr %s215, 4
      %s217 = scalar_lea.vmem %s4, %s216
      loop: start=0, step=1, limit=15
      $region37: #{cnn_forward.3} parent=35 // loop_pre_header
        _
      $region38: #{cnn_forward.3} parent=35 // loop_header
        %s219 = sphi 0, %s223
        %p220 = scmp.ge.s32.totalorder %s219, 15
      $region39: #{cnn_forward.3} parent=35 // loop_header_branch
        %222 = sbr.rel (%p220) target = $region43
      $region40: #{cnn_forward.3} parent=35 // loop_body
        %s224 = smul.u32 %s219, 2
        %s225 = smul.u32 %s224, 16
        %s226 = scalar_lea.vmem %s207, %s225
        %v227 = vld [vmem:[%s226] sm:$0xff]
        %v228 = vld [vmem:[%s226 + $0x8] sm:$0x7f]
        %v229 = vld [vmem:[%s2] sm:$0x1]
        %231 = vset.pattern.permute.xlu0 0
        %232 = vperm.xlu0 %231, %v227
        %v233 = vpop.permute.xlu0 %232
        %236 = vset.pattern.permute.xlu0 0
        %237 = vperm.xlu0 %236, %v228
        %v238 = vpop.permute.xlu0 %237
        %v241 = vlaneseq
        %v242 = vshrl.u32 %v241, 7
        %v243 = vsub.s32 0, %v242
        %v244 = vrot.slane %v229, %v243
        %v246 = vmul.f32 %v233, %v244
        %v247 = vmul.f32 %v238, %v244
        %v248 = vadd.f32 %v246, 0.0
        %v249 = vadd.f32 %v247, 0.0
        %s250 = scalar_lea.vmem %s212, %s225
        %v251 = vld [vmem:[%s250] sm:$0xff]
        %v252 = vld [vmem:[%s250 + $0x8] sm:$0x7f]
        %s253 = scalar_lea.vmem %s2, 1
        %v254 = vld [vmem:[%s253] sm:$0x1]
        %256 = vset.pattern.permute.xlu0 0
        %257 = vperm.xlu0 %256, %v251
        %v258 = vpop.permute.xlu0 %257
        %261 = vset.pattern.permute.xlu0 0
        %262 = vperm.xlu0 %261, %v252
        %v263 = vpop.permute.xlu0 %262
        %v266 = vlaneseq
        %v267 = vshrl.u32 %v266, 7
        %v268 = vsub.s32 0, %v267
        %v269 = vrot.slane %v254, %v268
        %v271 = vmul.f32 %v258, %v269
        %v272 = vmul.f32 %v263, %v269
        %v273 = vadd.f32 %v248, %v271
        %v274 = vadd.f32 %v249, %v272
        %v275 = vld [vmem:[%s226 + $0x1] sm:$0xff]
        %v276 = vld [vmem:[%s226 + $0x9] sm:$0x7f]
        %s277 = scalar_lea.vmem %s2, 2
        %v278 = vld [vmem:[%s277] sm:$0x1]
        %280 = vset.pattern.permute.xlu0 0
        %281 = vperm.xlu0 %280, %v275
        %v282 = vpop.permute.xlu0 %281
        %285 = vset.pattern.permute.xlu0 0
        %286 = vperm.xlu0 %285, %v276
        %v287 = vpop.permute.xlu0 %286
        %v290 = vlaneseq
        %v291 = vshrl.u32 %v290, 7
        %v292 = vsub.s32 0, %v291
        %v293 = vrot.slane %v278, %v292
        %v295 = vmul.f32 %v282, %v293
        %v296 = vmul.f32 %v287, %v293
        %v297 = vadd.f32 %v273, %v295
        %v298 = vadd.f32 %v274, %v296
        %s299 = sadd.s32 %s224, 1
        %s300 = smul.u32 %s299, 16
        %s301 = scalar_lea.vmem %s207, %s300
        %v302 = vld [vmem:[%s301] sm:$0xff]
        %v303 = vld [vmem:[%s301 + $0x8] sm:$0x7f]
        %s304 = scalar_lea.vmem %s2, 3
        %v305 = vld [vmem:[%s304] sm:$0x1]
        %307 = vset.pattern.permute.xlu0 0
        %308 = vperm.xlu0 %307, %v302
        %v309 = vpop.permute.xlu0 %308
        %312 = vset.pattern.permute.xlu0 0
        %313 = vperm.xlu0 %312, %v303
        %v314 = vpop.permute.xlu0 %313
        %v317 = vlaneseq
        %v318 = vshrl.u32 %v317, 7
        %v319 = vsub.s32 0, %v318
        %v320 = vrot.slane %v305, %v319
        %v322 = vmul.f32 %v309, %v320
        %v323 = vmul.f32 %v314, %v320
        %v324 = vadd.f32 %v297, %v322
        %v325 = vadd.f32 %v298, %v323
        %s326 = scalar_lea.vmem %s212, %s300
        %v327 = vld [vmem:[%s326] sm:$0xff]
        %v328 = vld [vmem:[%s326 + $0x8] sm:$0x7f]
        %s329 = scalar_lea.vmem %s2, 4
        %v330 = vld [vmem:[%s329] sm:$0x1]
        %332 = vset.pattern.permute.xlu0 0
        %333 = vperm.xlu0 %332, %v327
        %v334 = vpop.permute.xlu0 %333
        %337 = vset.pattern.permute.xlu0 0
        %338 = vperm.xlu0 %337, %v328
        %v339 = vpop.permute.xlu0 %338
        %v342 = vlaneseq
        %v343 = vshrl.u32 %v342, 7
        %v344 = vsub.s32 0, %v343
        %v345 = vrot.slane %v330, %v344
        %v347 = vmul.f32 %v334, %v345
        %v348 = vmul.f32 %v339, %v345
        %v349 = vadd.f32 %v324, %v347
        %v350 = vadd.f32 %v325, %v348
        %v351 = vld [vmem:[%s301 + $0x1] sm:$0xff]
        %v352 = vld [vmem:[%s301 + $0x9] sm:$0x7f]
        %s353 = scalar_lea.vmem %s2, 5
        %v354 = vld [vmem:[%s353] sm:$0x1]
        %356 = vset.pattern.permute.xlu0 0
        %357 = vperm.xlu0 %356, %v351
        %v358 = vpop.permute.xlu0 %357
        %361 = vset.pattern.permute.xlu0 0
        %362 = vperm.xlu0 %361, %v352
        %v363 = vpop.permute.xlu0 %362
        %v366 = vlaneseq
        %v367 = vshrl.u32 %v366, 7
        %v368 = vsub.s32 0, %v367
        %v369 = vrot.slane %v354, %v368
        %v371 = vmul.f32 %v358, %v369
        %v372 = vmul.f32 %v363, %v369
        %v373 = vadd.f32 %v349, %v371
        %v374 = vadd.f32 %v350, %v372
        %s375 = sadd.s32 %s224, 2
        %s376 = smul.u32 %s375, 16
        %s377 = scalar_lea.vmem %s207, %s376
        %v378 = vld [vmem:[%s377] sm:$0xff]
        %v379 = vld [vmem:[%s377 + $0x8] sm:$0x7f]
        %s380 = scalar_lea.vmem %s2, 6
        %v381 = vld [vmem:[%s380] sm:$0x1]
        %383 = vset.pattern.permute.xlu0 0
        %384 = vperm.xlu0 %383, %v378
        %v385 = vpop.permute.xlu0 %384
        %388 = vset.pattern.permute.xlu0 0
        %389 = vperm.xlu0 %388, %v379
        %v390 = vpop.permute.xlu0 %389
        %v393 = vlaneseq
        %v394 = vshrl.u32 %v393, 7
        %v395 = vsub.s32 0, %v394
        %v396 = vrot.slane %v381, %v395
        %v398 = vmul.f32 %v385, %v396
        %v399 = vmul.f32 %v390, %v396
        %v400 = vadd.f32 %v373, %v398
        %v401 = vadd.f32 %v374, %v399
        %s402 = scalar_lea.vmem %s212, %s376
        %v403 = vld [vmem:[%s402] sm:$0xff]
        %v404 = vld [vmem:[%s402 + $0x8] sm:$0x7f]
        %s405 = scalar_lea.vmem %s2, 7
        %v406 = vld [vmem:[%s405] sm:$0x1]
        %408 = vset.pattern.permute.xlu0 0
        %409 = vperm.xlu0 %408, %v403
        %v410 = vpop.permute.xlu0 %409
        %413 = vset.pattern.permute.xlu0 0
        %414 = vperm.xlu0 %413, %v404
        %v415 = vpop.permute.xlu0 %414
        %v418 = vlaneseq
        %v419 = vshrl.u32 %v418, 7
        %v420 = vsub.s32 0, %v419
        %v421 = vrot.slane %v406, %v420
        %v423 = vmul.f32 %v410, %v421
        %v424 = vmul.f32 %v415, %v421
        %v425 = vadd.f32 %v400, %v423
        %v426 = vadd.f32 %v401, %v424
        %v427 = vld [vmem:[%s377 + $0x1] sm:$0xff]
        %v428 = vld [vmem:[%s377 + $0x9] sm:$0x7f]
        %s429 = scalar_lea.vmem %s2, 8
        %v430 = vld [vmem:[%s429] sm:$0x1]
        %432 = vset.pattern.permute.xlu0 0
        %433 = vperm.xlu0 %432, %v427
        %v434 = vpop.permute.xlu0 %433
        %437 = vset.pattern.permute.xlu0 0
        %438 = vperm.xlu0 %437, %v428
        %v439 = vpop.permute.xlu0 %438
        %v442 = vlaneseq
        %v443 = vshrl.u32 %v442, 7
        %v444 = vsub.s32 0, %v443
        %v445 = vrot.slane %v430, %v444
        %v447 = vmul.f32 %v434, %v445
        %v448 = vmul.f32 %v439, %v445
        %v449 = vadd.f32 %v425, %v447
        %v450 = vadd.f32 %v426, %v448
        %v451 = vmul.f32 %v258, %v244
        %v452 = vmul.f32 %v263, %v244
        %v453 = vadd.f32 %v451, 0.0
        %v454 = vadd.f32 %v452, 0.0
        %v455 = vmul.f32 %v282, %v269
        %v456 = vmul.f32 %v287, %v269
        %v457 = vadd.f32 %v453, %v455
        %v458 = vadd.f32 %v454, %v456
        %v459 = vld [vmem:[%s250 + $0x1] sm:$0xff]
        %v460 = vld [vmem:[%s250 + $0x9] sm:$0x7f]
        %462 = vset.pattern.permute.xlu0 0
        %463 = vperm.xlu0 %462, %v459
        %v464 = vpop.permute.xlu0 %463
        %467 = vset.pattern.permute.xlu0 0
        %468 = vperm.xlu0 %467, %v460
        %v469 = vpop.permute.xlu0 %468
        %v471 = vmul.f32 %v464, %v293
        %v472 = vmul.f32 %v469, %v293
        %v473 = vadd.f32 %v457, %v471
        %v474 = vadd.f32 %v458, %v472
        %v475 = vmul.f32 %v334, %v320
        %v476 = vmul.f32 %v339, %v320
        %v477 = vadd.f32 %v473, %v475
        %v478 = vadd.f32 %v474, %v476
        %v479 = vmul.f32 %v358, %v345
        %v480 = vmul.f32 %v363, %v345
        %v481 = vadd.f32 %v477, %v479
        %v482 = vadd.f32 %v478, %v480
        %v483 = vld [vmem:[%s326 + $0x1] sm:$0xff]
        %v484 = vld [vmem:[%s326 + $0x9] sm:$0x7f]
        %486 = vset.pattern.permute.xlu0 0
        %487 = vperm.xlu0 %486, %v483
        %v488 = vpop.permute.xlu0 %487
        %491 = vset.pattern.permute.xlu0 0
        %492 = vperm.xlu0 %491, %v484
        %v493 = vpop.permute.xlu0 %492
        %v495 = vmul.f32 %v488, %v369
        %v496 = vmul.f32 %v493, %v369
        %v497 = vadd.f32 %v481, %v495
        %v498 = vadd.f32 %v482, %v496
        %v499 = vmul.f32 %v410, %v396
        %v500 = vmul.f32 %v415, %v396
        %v501 = vadd.f32 %v497, %v499
        %v502 = vadd.f32 %v498, %v500
        %v503 = vmul.f32 %v434, %v421
        %v504 = vmul.f32 %v439, %v421
        %v505 = vadd.f32 %v501, %v503
        %v506 = vadd.f32 %v502, %v504
        %v507 = vld [vmem:[%s402 + $0x1] sm:$0xff]
        %v508 = vld [vmem:[%s402 + $0x9] sm:$0x7f]
        %510 = vset.pattern.permute.xlu0 0
        %511 = vperm.xlu0 %510, %v507
        %v512 = vpop.permute.xlu0 %511
        %515 = vset.pattern.permute.xlu0 0
        %516 = vperm.xlu0 %515, %v508
        %v517 = vpop.permute.xlu0 %516
        %v519 = vmul.f32 %v512, %v445
        %v520 = vmul.f32 %v517, %v445
        %v521 = vadd.f32 %v505, %v519
        %v522 = vadd.f32 %v506, %v520
        %v523 = vmax.f32 %v449, %v521
        %v524 = vmax.f32 %v450, %v522
        %v525 = vmul.f32 %v309, %v244
        %v526 = vmul.f32 %v314, %v244
        %v527 = vadd.f32 %v525, 0.0
        %v528 = vadd.f32 %v526, 0.0
        %v529 = vmul.f32 %v334, %v269
        %v530 = vmul.f32 %v339, %v269
        %v531 = vadd.f32 %v527, %v529
        %v532 = vadd.f32 %v528, %v530
        %v533 = vmul.f32 %v358, %v293
        %v534 = vmul.f32 %v363, %v293
        %v535 = vadd.f32 %v531, %v533
        %v536 = vadd.f32 %v532, %v534
        %v537 = vmul.f32 %v385, %v320
        %v538 = vmul.f32 %v390, %v320
        %v539 = vadd.f32 %v535, %v537
        %v540 = vadd.f32 %v536, %v538
        %v541 = vmul.f32 %v410, %v345
        %v542 = vmul.f32 %v415, %v345
        %v543 = vadd.f32 %v539, %v541
        %v544 = vadd.f32 %v540, %v542
        %v545 = vmul.f32 %v434, %v369
        %v546 = vmul.f32 %v439, %v369
        %v547 = vadd.f32 %v543, %v545
        %v548 = vadd.f32 %v544, %v546
        %s549 = sadd.s32 %s224, 3
        %s550 = smul.u32 %s549, 16
        %s551 = scalar_lea.vmem %s207, %s550
        %v552 = vld [vmem:[%s551] sm:$0xff]
        %v553 = vld [vmem:[%s551 + $0x8] sm:$0x7f]
        %555 = vset.pattern.permute.xlu0 0
        %556 = vperm.xlu0 %555, %v552
        %v557 = vpop.permute.xlu0 %556
        %560 = vset.pattern.permute.xlu0 0
        %561 = vperm.xlu0 %560, %v553
        %v562 = vpop.permute.xlu0 %561
        %v564 = vmul.f32 %v557, %v396
        %v565 = vmul.f32 %v562, %v396
        %v566 = vadd.f32 %v547, %v564
        %v567 = vadd.f32 %v548, %v565
        %s568 = scalar_lea.vmem %s212, %s550
        %v569 = vld [vmem:[%s568] sm:$0xff]
        %v570 = vld [vmem:[%s568 + $0x8] sm:$0x7f]
        %572 = vset.pattern.permute.xlu0 0
        %573 = vperm.xlu0 %572, %v569
        %v574 = vpop.permute.xlu0 %573
        %577 = vset.pattern.permute.xlu0 0
        %578 = vperm.xlu0 %577, %v570
        %v579 = vpop.permute.xlu0 %578
        %v581 = vmul.f32 %v574, %v421
        %v582 = vmul.f32 %v579, %v421
        %v583 = vadd.f32 %v566, %v581
        %v584 = vadd.f32 %v567, %v582
        %v585 = vld [vmem:[%s551 + $0x1] sm:$0xff]
        %v586 = vld [vmem:[%s551 + $0x9] sm:$0x7f]
        %588 = vset.pattern.permute.xlu0 0
        %589 = vperm.xlu0 %588, %v585
        %v590 = vpop.permute.xlu0 %589
        %593 = vset.pattern.permute.xlu0 0
        %594 = vperm.xlu0 %593, %v586
        %v595 = vpop.permute.xlu0 %594
        %v597 = vmul.f32 %v590, %v445
        %v598 = vmul.f32 %v595, %v445
        %v599 = vadd.f32 %v583, %v597
        %v600 = vadd.f32 %v584, %v598
        %v601 = vmul.f32 %v334, %v244
        %v602 = vmul.f32 %v339, %v244
        %v603 = vadd.f32 %v601, 0.0
        %v604 = vadd.f32 %v602, 0.0
        %v605 = vmul.f32 %v358, %v269
        %v606 = vmul.f32 %v363, %v269
        %v607 = vadd.f32 %v603, %v605
        %v608 = vadd.f32 %v604, %v606
        %v609 = vmul.f32 %v488, %v293
        %v610 = vmul.f32 %v493, %v293
        %v611 = vadd.f32 %v607, %v609
        %v612 = vadd.f32 %v608, %v610
        %v613 = vmul.f32 %v410, %v320
        %v614 = vmul.f32 %v415, %v320
        %v615 = vadd.f32 %v611, %v613
        %v616 = vadd.f32 %v612, %v614
        %v617 = vmul.f32 %v434, %v345
        %v618 = vmul.f32 %v439, %v345
        %v619 = vadd.f32 %v615, %v617
        %v620 = vadd.f32 %v616, %v618
        %v621 = vmul.f32 %v512, %v369
        %v622 = vmul.f32 %v517, %v369
        %v623 = vadd.f32 %v619, %v621
        %v624 = vadd.f32 %v620, %v622
        %v625 = vmul.f32 %v574, %v396
        %v626 = vmul.f32 %v579, %v396
        %v627 = vadd.f32 %v623, %v625
        %v628 = vadd.f32 %v624, %v626
        %v629 = vmul.f32 %v590, %v421
        %v630 = vmul.f32 %v595, %v421
        %v631 = vadd.f32 %v627, %v629
        %v632 = vadd.f32 %v628, %v630
        %v633 = vld [vmem:[%s568 + $0x1] sm:$0xff]
        %v634 = vld [vmem:[%s568 + $0x9] sm:$0x7f]
        %636 = vset.pattern.permute.xlu0 0
        %637 = vperm.xlu0 %636, %v633
        %v638 = vpop.permute.xlu0 %637
        %641 = vset.pattern.permute.xlu0 0
        %642 = vperm.xlu0 %641, %v634
        %v643 = vpop.permute.xlu0 %642
        %v645 = vmul.f32 %v638, %v445
        %v646 = vmul.f32 %v643, %v445
        %v647 = vadd.f32 %v631, %v645
        %v648 = vadd.f32 %v632, %v646
        %v649 = vmax.f32 %v599, %v647
        %v650 = vmax.f32 %v600, %v648
        %v651 = vmax.f32 %v523, %v649
        %v652 = vmax.f32 %v524, %v650
        %v653 = vld [vmem:[%s3] sm:$0x1]
        %v655 = vlaneseq
        %v656 = vshrl.u32 %v655, 7
        %v657 = vsub.s32 0, %v656
        %v658 = vrot.slane %v653, %v657
        %v660 = vadd.f32 %v651, %v658
        %v661 = vadd.f32 %v652, %v658
        %v662 = vmax.f32 %v660, 0.0
        %v663 = vmax.f32 %v661, 0.0
        %v664 = vpack.c.bf16 %v663, %v662
        %v666 = vunpack.c.l.b16 %v664
        %v667 = vunpack.c.h.b16 %v664
        %v668 = vpack.c.b16 %v666, %v666
        %v669 = vpack.c.b16 %v667, %v667
        %s672 = smul.addr %s224, 4
        %s673 = scalar_lea.vmem %s217, %s672
        %vm674 = vcmask 257024
        %675 = vst.msk [vmem:[%s673] sm:$0xf] %vm674, %v668
        %vm676 = vcmask 257024
        %vm677 = vsmask.f32 3328
        %vm678 = vmand %vm676, %vm677
        %v679 = vld [vmem:[%s673 + $0x4] sm:$0xf]
        %v680 = vsel %vm678, %v669, %v679
        %681 = vst [vmem:[%s673 + $0x4] sm:$0xf] %v680
      $region41: #{cnn_forward.3} parent=35 // loop_footer
        %s223 = sadd.s32 1, %s219
      $region42: #{cnn_forward.3} parent=35 // loop_footer_branch
        %218 = sbr.rel target = $region38
      $region43: #{cnn_forward.3} parent=35 // loop_exit
        _
      %p682 = scmp.lt.s32.totalorder %s15, 1
      %s683 = scalar_select %p682, %s15, 1
      %s684 = smul.addr %s683, 30
      %s685 = smul.addr %s684, 4
      %s686 = scalar_lea.vmem %s4, %s685
      // Predicated region
      $region44: #{cnn_forward.3} parent=35 // pred_check
        %p687 = pneg %p127
      $region45: #{cnn_forward.3} parent=35 // pred_check_branch
        %689 = sbr.rel (%p687) target = $region47
      $region46: #{cnn_forward.3} parent=35 // pred_region
        _
      $region47: #{cnn_forward.3} parent=35 // pred_fallthru
        _
    $region36: #{cnn_forward.3} parent=5 // pred_fallthru
      _
    %p690 = scmp.le.s32.totalorder 2, %s10
    // Predicated region
    $region48: #{cnn_forward.3} parent=5 // pred_check
      %p691 = pneg %p690
    $region49: #{cnn_forward.3} parent=5 // pred_check_branch
      %693 = sbr.rel (%p691) target = $region51
    $region50: #{cnn_forward.3} parent=5 // pred_region
      %s694 = ssub.s32 %s10, 2
      // Predicated region
      $region52: #{cnn_forward.3} parent=50 // pred_check
        %p695 = pneg %p133
      $region53: #{cnn_forward.3} parent=50 // pred_check_branch
        %697 = sbr.rel (%p695) target = $region55
      $region54: #{cnn_forward.3} parent=50 // pred_region
        %p698 = scmp.lt.s32.totalorder %s16, 1
        %s699 = scalar_select %p698, %s16, 1
        %s700 = smul.addr %s699, 30
        %s701 = smul.addr %s700, 4
        %s702 = scalar_lea.vmem %s4, %s701
      $region55: #{cnn_forward.3} parent=50 // pred_fallthru
        _
    $region51: #{cnn_forward.3} parent=5 // pred_fallthru
      _
  $region6: #{cnn_forward.3} parent=0 // loop_footer
    %s14 = sadd.s32 1, %s10
  $region7: #{cnn_forward.3} parent=0 // loop_footer_branch
    %9 = sbr.rel target = $region3
  $region8: #{cnn_forward.3} parent=0 // loop_exit
    _

// kernel: cnn_forward.4
$region0: #{cnn_forward.4}
  #allocation0 [shape = 'u32[]', space=smem, size = 0x4, offset = 0x4, fixed_abs, tag = 'smem constant byte address 0x4 - core index']
  #allocation1 [shape = 'u32[144,128]{1,0:T(1,128)}', space=vmem, size = 0x12000, scoped, tag = 'internal scratch']
  %s0 = inlined_call_operand.vmem [shape: bf16[2,17,9,32], index: 0, kind: input, shape index: {}]
  %s1 = inlined_call_operand.vmem [shape: bf16[2,17,8,32], index: 1, kind: input, shape index: {}]
  %s2 = inlined_call_operand.vmem [shape: bf16[9,32,64], index: 2, kind: input, shape index: {}]
  %s3 = inlined_call_operand.vmem [shape: f32[1,64], index: 3, kind: input, shape index: {}]
  %s4 = inlined_call_operand.vmem [shape: bf16[2,7,7,64], index: 4, kind: output, shape index: {}]
  %s5 = sld [smem:[#allocation0]]
  $region56: #{cnn_forward.4} parent=0
    _
  %s7 = ssub.s32 1, %s5
  %s8 = scalar_select 0, %s7, %s5
  loop: start=0, step=1, limit=4
  $region2: #{cnn_forward.4} parent=0 // loop_pre_header
    _
  $region3: #{cnn_forward.4} parent=0 // loop_header
    %s10 = sphi 0, %s14
    %p11 = scmp.ge.s32.totalorder %s10, 4
    %s20 = sphi 0, %s22
    %s23 = sphi 0, %s20
    %s24 = sphi 0, %s23
    %s40 = sphi 0, %s24
    %s46 = sphi 0, %s48
    %s49 = sphi 0, %s46
    %s50 = sphi 0, %s49
    %s66 = sphi 0, %s50
    %s70 = sphi 0, %s70
    %s72 = sphi 0, %s70
    %s73 = sphi 0, %s72
    %s87 = sphi 0, %s73
    %s91 = sphi 0, %s91
    %s93 = sphi 0, %s91
    %s94 = sphi 0, %s93
    %s108 = sphi 0, %s94
    %s114 = sphi 0, %s116
    %s117 = sphi 0, %s114
    %s118 = sphi 0, %s117
    %s134 = sphi 0, %s118
  $region4: #{cnn_forward.4} parent=0 // loop_header_branch
    %13 = sbr.rel (%p11) target = $region8
  $region5: #{cnn_forward.4} parent=0 // loop_body
    %s15 = ssub.s32 %s10, 1
    %s16 = ssub.s32 %s10, 2
    %s17 = sadd.s32 %s10, 1
    %s18 = ssub.s32 %s10, %s17
    %p19 = scmp.eq.s32.totalorder %s18, 0
    %s21 = sadd.s32 %s20, 1
    %s22 = scalar_select %p19, %s20, %s21
    %p25 = pneg %p19
    %p26 = scmp.eq.s32.totalorder %s10, 1
    %p27 = por %p25, %p26
    %p28 = scmp.ne.s32.totalorder %s20, %s23
    %p29 = scmp.eq.s32.totalorder %s10, 0
    %p30 = por %p28, %p29
    %p31 = scmp.ne.s32.totalorder %s20, %s23
    %p32 = scmp.eq.s32.totalorder %s15, 1
    %p33 = por %p31, %p32
    %p34 = scmp.ne.s32.totalorder %s23, %s24
    %p35 = scmp.eq.s32.totalorder %s15, 0
    %p36 = por %p34, %p35
    %p37 = scmp.ne.s32.totalorder %s23, %s24
    %p38 = scmp.eq.s32.totalorder %s16, 1
    %p39 = por %p37, %p38
    %p41 = scmp.ne.s32.totalorder %s24, %s40
    %p42 = scmp.eq.s32.totalorder %s16, 0
    %p43 = por %p41, %p42
    %s44 = ssub.s32 %s10, %s17
    %p45 = scmp.eq.s32.totalorder %s44, 0
    %s47 = sadd.s32 %s46, 1
    %s48 = scalar_select %p45, %s46, %s47
    %p51 = pneg %p45
    %p52 = scmp.eq.s32.totalorder %s10, 1
    %p53 = por %p51, %p52
    %p54 = scmp.ne.s32.totalorder %s46, %s49
    %p55 = scmp.eq.s32.totalorder %s10, 0
    %p56 = por %p54, %p55
    %p57 = scmp.ne.s32.totalorder %s46, %s49
    %p58 = scmp.eq.s32.totalorder %s15, 1
    %p59 = por %p57, %p58
    %p60 = scmp.ne.s32.totalorder %s49, %s50
    %p61 = scmp.eq.s32.totalorder %s15, 0
    %p62 = por %p60, %p61
    %p63 = scmp.ne.s32.totalorder %s49, %s50
    %p64 = scmp.eq.s32.totalorder %s16, 1
    %p65 = por %p63, %p64
    %p67 = scmp.ne.s32.totalorder %s50, %s66
    %p68 = scmp.eq.s32.totalorder %s16, 0
    %p69 = por %p67, %p68
    %s71 = sadd.s32 %s70, 1
    %p74 = scmp.eq.s32.totalorder %s10, 1
    %p75 = scmp.ne.s32.totalorder %s70, %s72
    %p76 = scmp.eq.s32.totalorder %s10, 0
    %p77 = por %p75, %p76
    %p78 = scmp.ne.s32.totalorder %s70, %s72
    %p79 = scmp.eq.s32.totalorder %s15, 1
    %p80 = por %p78, %p79
    %p81 = scmp.ne.s32.totalorder %s72, %s73
    %p82 = scmp.eq.s32.totalorder %s15, 0
    %p83 = por %p81, %p82
    %p84 = scmp.ne.s32.totalorder %s72, %s73
    %p85 = scmp.eq.s32.totalorder %s16, 1
    %p86 = por %p84, %p85
    %p88 = scmp.ne.s32.totalorder %s73, %s87
    %p89 = scmp.eq.s32.totalorder %s16, 0
    %p90 = por %p88, %p89
    %s92 = sadd.s32 %s91, 1
    %p95 = scmp.eq.s32.totalorder %s10, 1
    %p96 = scmp.ne.s32.totalorder %s91, %s93
    %p97 = scmp.eq.s32.totalorder %s10, 0
    %p98 = por %p96, %p97
    %p99 = scmp.ne.s32.totalorder %s91, %s93
    %p100 = scmp.eq.s32.totalorder %s15, 1
    %p101 = por %p99, %p100
    %p102 = scmp.ne.s32.totalorder %s93, %s94
    %p103 = scmp.eq.s32.totalorder %s15, 0
    %p104 = por %p102, %p103
    %p105 = scmp.ne.s32.totalorder %s93, %s94
    %p106 = scmp.eq.s32.totalorder %s16, 1
    %p107 = por %p105, %p106
    %p109 = scmp.ne.s32.totalorder %s94, %s108
    %p110 = scmp.eq.s32.totalorder %s16, 0
    %p111 = por %p109, %p110
    %s112 = ssub.s32 %s10, %s17
    %p113 = scmp.eq.s32.totalorder %s112, 0
    %s115 = sadd.s32 %s114, 1
    %s116 = scalar_select %p113, %s114, %s115
    %p119 = pneg %p113
    %p120 = scmp.eq.s32.totalorder %s10, 1
    %p121 = por %p119, %p120
    %p122 = scmp.ne.s32.totalorder %s114, %s117
    %p123 = scmp.eq.s32.totalorder %s10, 0
    %p124 = por %p122, %p123
    %p125 = scmp.ne.s32.totalorder %s114, %s117
    %p126 = scmp.eq.s32.totalorder %s15, 1
    %p127 = por %p125, %p126
    %p128 = scmp.ne.s32.totalorder %s117, %s118
    %p129 = scmp.eq.s32.totalorder %s15, 0
    %p130 = por %p128, %p129
    %p131 = scmp.ne.s32.totalorder %s117, %s118
    %p132 = scmp.eq.s32.totalorder %s16, 1
    %p133 = por %p131, %p132
    %p135 = scmp.ne.s32.totalorder %s118, %s134
    %p136 = scmp.eq.s32.totalorder %s16, 0
    %p137 = por %p135, %p136
    %p138 = scmp.le.s32.totalorder 1, %s10
    %p139 = scmp.lt.s32.totalorder %s10, 3
    %p140 = pnand %p138, %p139
    %p141 = pneg %p140
    // Predicated region
    $region9: #{cnn_forward.4} parent=5 // pred_check
      _
    $region10: #{cnn_forward.4} parent=5 // pred_check_branch
      %143 = sbr.rel (%p140) target = $region12
    $region11: #{cnn_forward.4} parent=5 // pred_region
      %s144 = ssub.s32 %s10, 1
      // Predicated region
      $region13: #{cnn_forward.4} parent=11 // pred_check
        %p145 = pneg %p83
      $region14: #{cnn_forward.4} parent=11 // pred_check_branch
        %147 = sbr.rel (%p145) target = $region16
      $region15: #{cnn_forward.4} parent=11 // pred_region
        _
      $region16: #{cnn_forward.4} parent=11 // pred_fallthru
        _
      // Predicated region
      $region17: #{cnn_forward.4} parent=11 // pred_check
        %p148 = pneg %p104
      $region18: #{cnn_forward.4} parent=11 // pred_check_branch
        %150 = sbr.rel (%p148) target = $region20
      $region19: #{cnn_forward.4} parent=11 // pred_region
        _
      $region20: #{cnn_forward.4} parent=11 // pred_fallthru
        _
    $region12: #{cnn_forward.4} parent=5 // pred_fallthru
      _
    %p151 = scmp.lt.s32.totalorder %s10, 2
    // Predicated region
    $region21: #{cnn_forward.4} parent=5 // pred_check
      %p152 = pneg %p151
    $region22: #{cnn_forward.4} parent=5 // pred_check_branch
      %154 = sbr.rel (%p152) target = $region24
    $region23: #{cnn_forward.4} parent=5 // pred_region
      // Predicated region
      $region25: #{cnn_forward.4} parent=23 // pred_check
        %p155 = pneg %p30
      $region26: #{cnn_forward.4} parent=23 // pred_check_branch
        %157 = sbr.rel (%p155) target = $region28
      $region27: #{cnn_forward.4} parent=23 // pred_region
        %p158 = scmp.lt.s32.totalorder %s10, 1
        %s159 = scalar_select %p158, %s10, 1
        %s160 = smul.addr %s159, 34
        %s161 = smul.addr %s160, 4
        %s162 = scalar_lea.vmem %s0, %s161
      $region28: #{cnn_forward.4} parent=23 // pred_fallthru
        _
      // Predicated region
      $region29: #{cnn_forward.4} parent=23 // pred_check
        %p163 = pneg %p56
      $region30: #{cnn_forward.4} parent=23 // pred_check_branch
        %165 = sbr.rel (%p163) target = $region32
      $region31: #{cnn_forward.4} parent=23 // pred_region
        %p166 = scmp.lt.s32.totalorder %s10, 1
        %s167 = scalar_select %p166, %s10, 1
        %s168 = smul.addr %s167, 17
        %s169 = smul.addr %s168, 4
        %s170 = scalar_lea.vmem %s1, %s169
      $region32: #{cnn_forward.4} parent=23 // pred_fallthru
        _
    $region24: #{cnn_forward.4} parent=5 // pred_fallthru
      _
    %p171 = scmp.le.s32.totalorder 1, %s10
    %p172 = scmp.lt.s32.totalorder %s10, 3
    %p173 = pnand %p171, %p172
    %p174 = pneg %p173
    // Predicated region
    $region33: #{cnn_forward.4} parent=5 // pred_check
      _
    $region34: #{cnn_forward.4} parent=5 // pred_check_branch
      %176 = sbr.rel (%p173) target = $region36
    $region35: #{cnn_forward.4} parent=5 // pred_region
      %s177 = ssub.s32 %s10, 1
      %p178 = scmp.lt.s32.totalorder %s15, 1
      %s179 = scalar_select %p178, %s15, 1
      %s180 = smul.addr %s179, 34
      %s181 = smul.addr %s180, 4
      %s182 = scalar_lea.vmem %s0, %s181
      %p183 = pneg %p36
      %p184 = pneg %p33
      %p185 = scmp.lt.s32.totalorder %s15, 1
      %s186 = scalar_select %p185, %s15, 1
      %s187 = smul.addr %s186, 17
      %s188 = smul.addr %s187, 4
      %s189 = scalar_lea.vmem %s1, %s188
      %p190 = pneg %p62
      %p191 = pneg %p59
      %p192 = pneg %p83
      %p193 = pneg %p80
      %p194 = pneg %p104
      %p195 = pneg %p101
      %p196 = pneg %p130
      %p197 = pneg %p127
      %p198 = scmp.lt.s32.totalorder %s15, 1
      %s199 = scalar_select %p198, %s15, 1
      %s200 = smul.addr %s199, 7
      %s201 = smul.addr %s200, 4
      %s202 = scalar_lea.vmem %s4, %s201
      %p203 = scmp.lt.s32.totalorder %s15, 1
      %s204 = scalar_select %p203, %s15, 1
      %s205 = smul.addr %s204, 34
      %s206 = smul.addr %s205, 4
      %s207 = scalar_lea.vmem %s0, %s206
      %p208 = scmp.lt.s32.totalorder %s15, 1
      %s209 = scalar_select %p208, %s15, 1
      %s210 = smul.addr %s209, 17
      %s211 = smul.addr %s210, 4
      %s212 = scalar_lea.vmem %s1, %s211
      %p213 = scmp.lt.s32.totalorder %s15, 1
      %s214 = scalar_select %p213, %s15, 1
      %s215 = smul.addr %s214, 7
      %s216 = smul.addr %s215, 4
      %s217 = scalar_lea.vmem %s4, %s216
      loop: start=0, step=1, limit=7
      $region37: #{cnn_forward.4} parent=35 // loop_pre_header
        _
      $region38: #{cnn_forward.4} parent=35 // loop_header
        %s220 = sphi 0, %s224
        %p221 = scmp.ge.s32.totalorder %s220, 7
      $region39: #{cnn_forward.4} parent=35 // loop_header_branch
        %223 = sbr.rel (%p221) target = $region43
      $region40: #{cnn_forward.4} parent=35 // loop_body
        %s225 = smul.u32 %s220, 2
        %s226 = smul.u32 %s225, 2
        %s227 = smul.addr %s226, 4
        %s228 = scalar_lea.vmem %s207, %s227
        %v229 = vld [vmem:[%s228] sm:$0xf]
        %v230 = vld [vmem:[%s2] sm:$0xf]
        %v231 = vld [vmem:[%s2 + $0x4] sm:$0xf]
        %v232 = vld [vmem:[%s2 + $0x8] sm:$0xf]
        %v233 = vld [vmem:[%s2 + $0xc] sm:$0xf]
        %s234 = smul.addr %s225, 4
        %s235 = scalar_lea.vmem %s212, %s234
        %v236 = vld [vmem:[%s235] sm:$0xf]
        %s237 = scalar_lea.vmem %s2, 16
        %v238 = vld [vmem:[%s237] sm:$0xf]
        %v239 = vld [vmem:[%s237 + $0x4] sm:$0xf]
        %v240 = vld [vmem:[%s237 + $0x8] sm:$0xf]
        %v241 = vld [vmem:[%s237 + $0xc] sm:$0xf]
        %v246 = vunpack.c.l.b16 %v238
        %v247 = vunpack.c.l.b16 %v239
        %v248 = vunpack.c.l.b16 %v240
        %v249 = vunpack.c.l.b16 %v241
        %v250 = vpack.c.b16 %v247, %v246
        %v251 = vpack.c.b16 %v249, %v248
        %vm254 = vcmask 261120
        %v256 = vsel %vm254, %v236, 0
        %258 = vmatprep.subr.bf16.mxu0 0
        %259 = vmatpush1.bf16.msra.mxu0 %v250
        %260 = vmatprep.subr.bf16.mxu0 0
        %261 = vmatpush1.bf16.msra.mxu0 %v251
        %262 = vmatprep.subr.bf16.mxu0 0
        %263 = vmatpush1.bf16.msra.mxu0 0
        %264 = vmatprep.subr.bf16.mxu0 0
        %265 = vmatpush1.bf16.msra.mxu0 0
        %266 = vmatprep.subr.bf16.mxu0 0
        %267 = vmatpush1.bf16.msra.mxu0 0
        %268 = vmatprep.subr.bf16.mxu0 0
        %269 = vmatpush1.bf16.msra.mxu0 0
        %270 = vmatprep.subr.bf16.mxu0 0
        %271 = vmatpush1.bf16.msra.mxu0 0
        %272 = vmatprep.subr.bf16.mxu0 0
        %273 = vmatpush1.bf16.msra.mxu0 0
        %274 = vmatprep.subr.bf16.mxu0 0
        %275 = vmatpush1.bf16.msra.mxu0 0
        %276 = vmatprep.subr.bf16.mxu0 0
        %277 = vmatpush1.bf16.msra.mxu0 0
        %278 = vmatprep.subr.bf16.mxu0 0
        %279 = vmatpush1.bf16.msra.mxu0 0
        %280 = vmatprep.subr.bf16.mxu0 0
        %281 = vmatpush1.bf16.msra.mxu0 0
        %282 = vmatprep.subr.bf16.mxu0 0
        %283 = vmatpush1.bf16.msra.mxu0 0
        %284 = vmatprep.subr.bf16.mxu0 0
        %285 = vmatpush1.bf16.msra.mxu0 0
        %286 = vmatprep.subr.bf16.mxu0 0
        %287 = vmatpush1.bf16.msra.mxu0 0
        %288 = vmatprep.subr.bf16.mxu0 0
        %289 = vmatpush1.bf16.msra.mxu0 0
        %290 = vmatprep.mubr.bf16.mxu0 0
        %291 = vmatmul.mubr.bf16.gmra.mrb[0].mxu0 %v256
        %v292 = vpop.f32.mrb[0].mxu0
        %v293 = vadd.f32 0.0, %v292
        %v294 = vpop.f32.mrb[0].mxu0
        %v295 = vpop.f32.mrb[0].mxu0
        %v296 = vpop.f32.mrb[0].mxu0
        %297 = vdwg.mxu0
        %v302 = vunpack.c.l.b16 %v230
        %v303 = vunpack.c.l.b16 %v231
        %v304 = vunpack.c.l.b16 %v232
        %v305 = vunpack.c.l.b16 %v233
        %v306 = vpack.c.b16 %v303, %v302
        %v307 = vpack.c.b16 %v305, %v304
        %v311 = vsel %vm254, %v229, 0
        %313 = vmatprep.subr.bf16.mxu0 0
        %314 = vmatpush1.bf16.msra.mxu0 %v306
        %315 = vmatprep.subr.bf16.mxu0 0
        %316 = vmatpush1.bf16.msra.mxu0 %v307
        %317 = vmatprep.subr.bf16.mxu0 0
        %318 = vmatpush1.bf16.msra.mxu0 0
        %319 = vmatprep.subr.bf16.mxu0 0
        %320 = vmatpush1.bf16.msra.mxu0 0
        %321 = vmatprep.subr.bf16.mxu0 0
        %322 = vmatpush1.bf16.msra.mxu0 0
        %323 = vmatprep.subr.bf16.mxu0 0
        %324 = vmatpush1.bf16.msra.mxu0 0
        %325 = vmatprep.subr.bf16.mxu0 0
        %326 = vmatpush1.bf16.msra.mxu0 0
        %327 = vmatprep.subr.bf16.mxu0 0
        %328 = vmatpush1.bf16.msra.mxu0 0
        %329 = vmatprep.subr.bf16.mxu0 0
        %330 = vmatpush1.bf16.msra.mxu0 0
        %331 = vmatprep.subr.bf16.mxu0 0
        %332 = vmatpush1.bf16.msra.mxu0 0
        %333 = vmatprep.subr.bf16.mxu0 0
        %334 = vmatpush1.bf16.msra.mxu0 0
        %335 = vmatprep.subr.bf16.mxu0 0
        %336 = vmatpush1.bf16.msra.mxu0 0
        %337 = vmatprep.subr.bf16.mxu0 0
        %338 = vmatpush1.bf16.msra.mxu0 0
        %339 = vmatprep.subr.bf16.mxu0 0
        %340 = vmatpush1.bf16.msra.mxu0 0
        %341 = vmatprep.subr.bf16.mxu0 0
        %342 = vmatpush1.bf16.msra.mxu0 0
        %343 = vmatprep.subr.bf16.mxu0 0
        %344 = vmatpush1.bf16.msra.mxu0 0
        %345 = vmatprep.mubr.bf16.mxu0 0
        %346 = vmatmul.mubr.bf16.gmra.mrb[0].mxu0 %v311
        %v347 = vpop.f32.mrb[0].mxu0
        %v348 = vadd.f32 %v293, %v347
        %v349 = vpop.f32.mrb[0].mxu0
        %v350 = vpop.f32.mrb[0].mxu0
        %v351 = vpop.f32.mrb[0].mxu0
        %352 = vdwg.mxu0
        %s353 = scalar_lea.vmem %s2, 32
        %v354 = vld [vmem:[%s353] sm:$0xf]
        %v355 = vld [vmem:[%s353 + $0x4] sm:$0xf]
        %v356 = vld [vmem:[%s353 + $0x8] sm:$0xf]
        %v357 = vld [vmem:[%s353 + $0xc] sm:$0xf]
        %v359 = vunpack.c.l.b16 %v229
        %v360 = vpack.c.b16 %v359, %v359
        %v362 = vshrl.u32 %v360, 16
        %v364 = vshll.u32 %v360, 16
        %v366 = vrot.slane %v364, 1
        %v367 = vor.u32 %v362, %v366
        %v372 = vunpack.c.l.b16 %v354
        %v373 = vunpack.c.l.b16 %v355
        %v374 = vunpack.c.l.b16 %v356
        %v375 = vunpack.c.l.b16 %v357
        %v376 = vpack.c.b16 %v373, %v372
        %v377 = vpack.c.b16 %v375, %v374
        %v381 = vsel %vm254, %v367, 0
        %383 = vmatprep.subr.bf16.mxu0 0
        %384 = vmatpush1.bf16.msra.mxu0 %v376
        %385 = vmatprep.subr.bf16.mxu0 0
        %386 = vmatpush1.bf16.msra.mxu0 %v377
        %387 = vmatprep.subr.bf16.mxu0 0
        %388 = vmatpush1.bf16.msra.mxu0 0
        %389 = vmatprep.subr.bf16.mxu0 0
        %390 = vmatpush1.bf16.msra.mxu0 0
        %391 = vmatprep.subr.bf16.mxu0 0
        %392 = vmatpush1.bf16.msra.mxu0 0
        %393 = vmatprep.subr.bf16.mxu0 0
        %394 = vmatpush1.bf16.msra.mxu0 0
        %395 = vmatprep.subr.bf16.mxu0 0
        %396 = vmatpush1.bf16.msra.mxu0 0
        %397 = vmatprep.subr.bf16.mxu0 0
        %398 = vmatpush1.bf16.msra.mxu0 0
        %399 = vmatprep.subr.bf16.mxu0 0
        %400 = vmatpush1.bf16.msra.mxu0 0
        %401 = vmatprep.subr.bf16.mxu0 0
        %402 = vmatpush1.bf16.msra.mxu0 0
        %403 = vmatprep.subr.bf16.mxu0 0
        %404 = vmatpush1.bf16.msra.mxu0 0
        %405 = vmatprep.subr.bf16.mxu0 0
        %406 = vmatpush1.bf16.msra.mxu0 0
        %407 = vmatprep.subr.bf16.mxu0 0
        %408 = vmatpush1.bf16.msra.mxu0 0
        %409 = vmatprep.subr.bf16.mxu0 0
        %410 = vmatpush1.bf16.msra.mxu0 0
        %411 = vmatprep.subr.bf16.mxu0 0
        %412 = vmatpush1.bf16.msra.mxu0 0
        %413 = vmatprep.subr.bf16.mxu0 0
        %414 = vmatpush1.bf16.msra.mxu0 0
        %415 = vmatprep.mubr.bf16.mxu0 0
        %416 = vmatmul.mubr.bf16.gmra.mrb[0].mxu0 %v381
        %v417 = vpop.f32.mrb[0].mxu0
        %v418 = vadd.f32 0.0, %v417
        %v419 = vpop.f32.mrb[0].mxu0
        %v420 = vpop.f32.mrb[0].mxu0
        %v421 = vpop.f32.mrb[0].mxu0
        %422 = vdwg.mxu0
        %v423 = vadd.f32 %v348, %v418
        %s424 = sadd.s32 %s225, 1
        %s425 = smul.u32 %s424, 2
        %s426 = smul.addr %s425, 4
        %s427 = scalar_lea.vmem %s207, %s426
        %v428 = vld [vmem:[%s427] sm:$0xf]
        %s429 = scalar_lea.vmem %s2, 48
        %v430 = vld [vmem:[%s429] sm:$0xf]
        %v431 = vld [vmem:[%s429 + $0x4] sm:$0xf]
        %v432 = vld [vmem:[%s429 + $0x8] sm:$0xf]
        %v433 = vld [vmem:[%s429 + $0xc] sm:$0xf]
        %v438 = vunpack.c.l.b16 %v430
        %v439 = vunpack.c.l.b16 %v431
        %v440 = vunpack.c.l.b16 %v432
        %v441 = vunpack.c.l.b16 %v433
        %v442 = vpack.c.b16 %v439, %v438
        %v443 = vpack.c.b16 %v441, %v440
        %v447 = vsel %vm254, %v428, 0
        %449 = vmatprep.subr.bf16.mxu0 0
        %450 = vmatpush1.bf16.msra.mxu0 %v442
        %451 = vmatprep.subr.bf16.mxu0 0
        %452 = vmatpush1.bf16.msra.mxu0 %v443
        %453 = vmatprep.subr.bf16.mxu0 0
        %454 = vmatpush1.bf16.msra.mxu0 0
        %455 = vmatprep.subr.bf16.mxu0 0
        %456 = vmatpush1.bf16.msra.mxu0 0
        %457 = vmatprep.subr.bf16.mxu0 0
        %458 = vmatpush1.bf16.msra.mxu0 0
        %459 = vmatprep.subr.bf16.mxu0 0
        %460 = vmatpush1.bf16.msra.mxu0 0
        %461 = vmatprep.subr.bf16.mxu0 0
        %462 = vmatpush1.bf16.msra.mxu0 0
        %463 = vmatprep.subr.bf16.mxu0 0
        %464 = vmatpush1.bf16.msra.mxu0 0
        %465 = vmatprep.subr.bf16.mxu0 0
        %466 = vmatpush1.bf16.msra.mxu0 0
        %467 = vmatprep.subr.bf16.mxu0 0
        %468 = vmatpush1.bf16.msra.mxu0 0
        %469 = vmatprep.subr.bf16.mxu0 0
        %470 = vmatpush1.bf16.msra.mxu0 0
        %471 = vmatprep.subr.bf16.mxu0 0
        %472 = vmatpush1.bf16.msra.mxu0 0
        %473 = vmatprep.subr.bf16.mxu0 0
        %474 = vmatpush1.bf16.msra.mxu0 0
        %475 = vmatprep.subr.bf16.mxu0 0
        %476 = vmatpush1.bf16.msra.mxu0 0
        %477 = vmatprep.subr.bf16.mxu0 0
        %478 = vmatpush1.bf16.msra.mxu0 0
        %479 = vmatprep.subr.bf16.mxu0 0
        %480 = vmatpush1.bf16.msra.mxu0 0
        %481 = vmatprep.mubr.bf16.mxu0 0
        %482 = vmatmul.mubr.bf16.gmra.mrb[0].mxu0 %v447
        %v483 = vpop.f32.mrb[0].mxu0
        %v484 = vadd.f32 0.0, %v483
        %v485 = vpop.f32.mrb[0].mxu0
        %v486 = vpop.f32.mrb[0].mxu0
        %v487 = vpop.f32.mrb[0].mxu0
        %488 = vdwg.mxu0
        %v489 = vadd.f32 %v423, %v484
        %s490 = smul.addr %s424, 4
        %s491 = scalar_lea.vmem %s212, %s490
        %v492 = vld [vmem:[%s491] sm:$0xf]
        %s493 = scalar_lea.vmem %s2, 64
        %v494 = vld [vmem:[%s493] sm:$0xf]
        %v495 = vld [vmem:[%s493 + $0x4] sm:$0xf]
        %v496 = vld [vmem:[%s493 + $0x8] sm:$0xf]
        %v497 = vld [vmem:[%s493 + $0xc] sm:$0xf]
        %v502 = vunpack.c.l.b16 %v494
        %v503 = vunpack.c.l.b16 %v495
        %v504 = vunpack.c.l.b16 %v496
        %v505 = vunpack.c.l.b16 %v497
        %v506 = vpack.c.b16 %v503, %v502
        %v507 = vpack.c.b16 %v505, %v504
        %v511 = vsel %vm254, %v492, 0
        %513 = vmatprep.subr.bf16.mxu0 0
        %514 = vmatpush1.bf16.msra.mxu0 %v506
        %515 = vmatprep.subr.bf16.mxu0 0
        %516 = vmatpush1.bf16.msra.mxu0 %v507
        %517 = vmatprep.subr.bf16.mxu0 0
        %518 = vmatpush1.bf16.msra.mxu0 0
        %519 = vmatprep.subr.bf16.mxu0 0
        %520 = vmatpush1.bf16.msra.mxu0 0
        %521 = vmatprep.subr.bf16.mxu0 0
        %522 = vmatpush1.bf16.msra.mxu0 0
        %523 = vmatprep.subr.bf16.mxu0 0
        %524 = vmatpush1.bf16.msra.mxu0 0
        %525 = vmatprep.subr.bf16.mxu0 0
        %526 = vmatpush1.bf16.msra.mxu0 0
        %527 = vmatprep.subr.bf16.mxu0 0
        %528 = vmatpush1.bf16.msra.mxu0 0
        %529 = vmatprep.subr.bf16.mxu0 0
        %530 = vmatpush1.bf16.msra.mxu0 0
        %531 = vmatprep.subr.bf16.mxu0 0
        %532 = vmatpush1.bf16.msra.mxu0 0
        %533 = vmatprep.subr.bf16.mxu0 0
        %534 = vmatpush1.bf16.msra.mxu0 0
        %535 = vmatprep.subr.bf16.mxu0 0
        %536 = vmatpush1.bf16.msra.mxu0 0
        %537 = vmatprep.subr.bf16.mxu0 0
        %538 = vmatpush1.bf16.msra.mxu0 0
        %539 = vmatprep.subr.bf16.mxu0 0
        %540 = vmatpush1.bf16.msra.mxu0 0
        %541 = vmatprep.subr.bf16.mxu0 0
        %542 = vmatpush1.bf16.msra.mxu0 0
        %543 = vmatprep.subr.bf16.mxu0 0
        %544 = vmatpush1.bf16.msra.mxu0 0
        %545 = vmatprep.mubr.bf16.mxu0 0
        %546 = vmatmul.mubr.bf16.gmra.mrb[0].mxu0 %v511
        %v547 = vpop.f32.mrb[0].mxu0
        %v548 = vadd.f32 0.0, %v547
        %v549 = vpop.f32.mrb[0].mxu0
        %v550 = vpop.f32.mrb[0].mxu0
        %v551 = vpop.f32.mrb[0].mxu0
        %552 = vdwg.mxu0
        %v553 = vadd.f32 %v489, %v548
        %s554 = scalar_lea.vmem %s2, 80
        %v555 = vld [vmem:[%s554] sm:$0xf]
        %v556 = vld [vmem:[%s554 + $0x4] sm:$0xf]
        %v557 = vld [vmem:[%s554 + $0x8] sm:$0xf]
        %v558 = vld [vmem:[%s554 + $0xc] sm:$0xf]
        %v560 = vunpack.c.l.b16 %v428
        %v561 = vpack.c.b16 %v560, %v560
        %v563 = vshrl.u32 %v561, 16
        %v565 = vshll.u32 %v561, 16
        %v567 = vrot.slane %v565, 1
        %v568 = vor.u32 %v563, %v567
        %v573 = vunpack.c.l.b16 %v555
        %v574 = vunpack.c.l.b16 %v556
        %v575 = vunpack.c.l.b16 %v557
        %v576 = vunpack.c.l.b16 %v558
        %v577 = vpack.c.b16 %v574, %v573
        %v578 = vpack.c.b16 %v576, %v575
        %v582 = vsel %vm254, %v568, 0
        %584 = vmatprep.subr.bf16.mxu0 0
        %585 = vmatpush1.bf16.msra.mxu0 %v577
        %586 = vmatprep.subr.bf16.mxu0 0
        %587 = vmatpush1.bf16.msra.mxu0 %v578
        %588 = vmatprep.subr.bf16.mxu0 0
        %589 = vmatpush1.bf16.msra.mxu0 0
        %590 = vmatprep.subr.bf16.mxu0 0
        %591 = vmatpush1.bf16.msra.mxu0 0
        %592 = vmatprep.subr.bf16.mxu0 0
        %593 = vmatpush1.bf16.msra.mxu0 0
        %594 = vmatprep.subr.bf16.mxu0 0
        %595 = vmatpush1.bf16.msra.mxu0 0
        %596 = vmatprep.subr.bf16.mxu0 0
        %597 = vmatpush1.bf16.msra.mxu0 0
        %598 = vmatprep.subr.bf16.mxu0 0
        %599 = vmatpush1.bf16.msra.mxu0 0
        %600 = vmatprep.subr.bf16.mxu0 0
        %601 = vmatpush1.bf16.msra.mxu0 0
        %602 = vmatprep.subr.bf16.mxu0 0
        %603 = vmatpush1.bf16.msra.mxu0 0
        %604 = vmatprep.subr.bf16.mxu0 0
        %605 = vmatpush1.bf16.msra.mxu0 0
        %606 = vmatprep.subr.bf16.mxu0 0
        %607 = vmatpush1.bf16.msra.mxu0 0
        %608 = vmatprep.subr.bf16.mxu0 0
        %609 = vmatpush1.bf16.msra.mxu0 0
        %610 = vmatprep.subr.bf16.mxu0 0
        %611 = vmatpush1.bf16.msra.mxu0 0
        %612 = vmatprep.subr.bf16.mxu0 0
        %613 = vmatpush1.bf16.msra.mxu0 0
        %614 = vmatprep.subr.bf16.mxu0 0
        %615 = vmatpush1.bf16.msra.mxu0 0
        %616 = vmatprep.mubr.bf16.mxu0 0
        %617 = vmatmul.mubr.bf16.gmra.mrb[0].mxu0 %v582
        %v618 = vpop.f32.mrb[0].mxu0
        %v619 = vadd.f32 0.0, %v618
        %v620 = vpop.f32.mrb[0].mxu0
        %v621 = vpop.f32.mrb[0].mxu0
        %v622 = vpop.f32.mrb[0].mxu0
        %623 = vdwg.mxu0
        %v624 = vadd.f32 %v553, %v619
        %s625 = sadd.s32 %s225, 2
        %s626 = smul.u32 %s625, 2
        %s627 = smul.addr %s626, 4
        %s628 = scalar_lea.vmem %s207, %s627
        %v629 = vld [vmem:[%s628] sm:$0xf]
        %s630 = scalar_lea.vmem %s2, 96
        %v631 = vld [vmem:[%s630] sm:$0xf]
        %v632 = vld [vmem:[%s630 + $0x4] sm:$0xf]
        %v633 = vld [vmem:[%s630 + $0x8] sm:$0xf]
        %v634 = vld [vmem:[%s630 + $0xc] sm:$0xf]
        %v639 = vunpack.c.l.b16 %v631
        %v640 = vunpack.c.l.b16 %v632
        %v641 = vunpack.c.l.b16 %v633
        %v642 = vunpack.c.l.b16 %v634
        %v643 = vpack.c.b16 %v640, %v639
        %v644 = vpack.c.b16 %v642, %v641
        %v648 = vsel %vm254, %v629, 0
        %650 = vmatprep.subr.bf16.mxu0 0
        %651 = vmatpush1.bf16.msra.mxu0 %v643
        %652 = vmatprep.subr.bf16.mxu0 0
        %653 = vmatpush1.bf16.msra.mxu0 %v644
        %654 = vmatprep.subr.bf16.mxu0 0
        %655 = vmatpush1.bf16.msra.mxu0 0
        %656 = vmatprep.subr.bf16.mxu0 0
        %657 = vmatpush1.bf16.msra.mxu0 0
        %658 = vmatprep.subr.bf16.mxu0 0
        %659 = vmatpush1.bf16.msra.mxu0 0
        %660 = vmatprep.subr.bf16.mxu0 0
        %661 = vmatpush1.bf16.msra.mxu0 0
        %662 = vmatprep.subr.bf16.mxu0 0
        %663 = vmatpush1.bf16.msra.mxu0 0
        %664 = vmatprep.subr.bf16.mxu0 0
        %665 = vmatpush1.bf16.msra.mxu0 0
        %666 = vmatprep.subr.bf16.mxu0 0
        %667 = vmatpush1.bf16.msra.mxu0 0
        %668 = vmatprep.subr.bf16.mxu0 0
        %669 = vmatpush1.bf16.msra.mxu0 0
        %670 = vmatprep.subr.bf16.mxu0 0
        %671 = vmatpush1.bf16.msra.mxu0 0
        %672 = vmatprep.subr.bf16.mxu0 0
        %673 = vmatpush1.bf16.msra.mxu0 0
        %674 = vmatprep.subr.bf16.mxu0 0
        %675 = vmatpush1.bf16.msra.mxu0 0
        %676 = vmatprep.subr.bf16.mxu0 0
        %677 = vmatpush1.bf16.msra.mxu0 0
        %678 = vmatprep.subr.bf16.mxu0 0
        %679 = vmatpush1.bf16.msra.mxu0 0
        %680 = vmatprep.subr.bf16.mxu0 0
        %681 = vmatpush1.bf16.msra.mxu0 0
        %682 = vmatprep.mubr.bf16.mxu0 0
        %683 = vmatmul.mubr.bf16.gmra.mrb[0].mxu0 %v648
        %v684 = vpop.f32.mrb[0].mxu0
        %v685 = vadd.f32 0.0, %v684
        %v686 = vpop.f32.mrb[0].mxu0
        %v687 = vpop.f32.mrb[0].mxu0
        %v688 = vpop.f32.mrb[0].mxu0
        %689 = vdwg.mxu0
        %v690 = vadd.f32 %v624, %v685
        %s691 = smul.addr %s625, 4
        %s692 = scalar_lea.vmem %s212, %s691
        %v693 = vld [vmem:[%s692] sm:$0xf]
        %s694 = scalar_lea.vmem %s2, 112
        %v695 = vld [vmem:[%s694] sm:$0xf]
        %v696 = vld [vmem:[%s694 + $0x4] sm:$0xf]
        %v697 = vld [vmem:[%s694 + $0x8] sm:$0xf]
        %v698 = vld [vmem:[%s694 + $0xc] sm:$0xf]
        %v703 = vunpack.c.l.b16 %v695
        %v704 = vunpack.c.l.b16 %v696
        %v705 = vunpack.c.l.b16 %v697
        %v706 = vunpack.c.l.b16 %v698
        %v707 = vpack.c.b16 %v704, %v703
        %v708 = vpack.c.b16 %v706, %v705
        %v712 = vsel %vm254, %v693, 0
        %714 = vmatprep.subr.bf16.mxu0 0
        %715 = vmatpush1.bf16.msra.mxu0 %v707
        %716 = vmatprep.subr.bf16.mxu0 0
        %717 = vmatpush1.bf16.msra.mxu0 %v708
        %718 = vmatprep.subr.bf16.mxu0 0
        %719 = vmatpush1.bf16.msra.mxu0 0
        %720 = vmatprep.subr.bf16.mxu0 0
        %721 = vmatpush1.bf16.msra.mxu0 0
        %722 = vmatprep.subr.bf16.mxu0 0
        %723 = vmatpush1.bf16.msra.mxu0 0
        %724 = vmatprep.subr.bf16.mxu0 0
        %725 = vmatpush1.bf16.msra.mxu0 0
        %726 = vmatprep.subr.bf16.mxu0 0
        %727 = vmatpush1.bf16.msra.mxu0 0
        %728 = vmatprep.subr.bf16.mxu0 0
        %729 = vmatpush1.bf16.msra.mxu0 0
        %730 = vmatprep.subr.bf16.mxu0 0
        %731 = vmatpush1.bf16.msra.mxu0 0
        %732 = vmatprep.subr.bf16.mxu0 0
        %733 = vmatpush1.bf16.msra.mxu0 0
        %734 = vmatprep.subr.bf16.mxu0 0
        %735 = vmatpush1.bf16.msra.mxu0 0
        %736 = vmatprep.subr.bf16.mxu0 0
        %737 = vmatpush1.bf16.msra.mxu0 0
        %738 = vmatprep.subr.bf16.mxu0 0
        %739 = vmatpush1.bf16.msra.mxu0 0
        %740 = vmatprep.subr.bf16.mxu0 0
        %741 = vmatpush1.bf16.msra.mxu0 0
        %742 = vmatprep.subr.bf16.mxu0 0
        %743 = vmatpush1.bf16.msra.mxu0 0
        %744 = vmatprep.subr.bf16.mxu0 0
        %745 = vmatpush1.bf16.msra.mxu0 0
        %746 = vmatprep.mubr.bf16.mxu0 0
        %747 = vmatmul.mubr.bf16.gmra.mrb[0].mxu0 %v712
        %v748 = vpop.f32.mrb[0].mxu0
        %v749 = vadd.f32 0.0, %v748
        %v750 = vpop.f32.mrb[0].mxu0
        %v751 = vpop.f32.mrb[0].mxu0
        %v752 = vpop.f32.mrb[0].mxu0
        %753 = vdwg.mxu0
        %v754 = vadd.f32 %v690, %v749
        %s755 = scalar_lea.vmem %s2, 128
        %v756 = vld [vmem:[%s755] sm:$0xf]
        %v757 = vld [vmem:[%s755 + $0x4] sm:$0xf]
        %v758 = vld [vmem:[%s755 + $0x8] sm:$0xf]
        %v759 = vld [vmem:[%s755 + $0xc] sm:$0xf]
        %v761 = vunpack.c.l.b16 %v629
        %v762 = vpack.c.b16 %v761, %v761
        %v764 = vshrl.u32 %v762, 16
        %v766 = vshll.u32 %v762, 16
        %v768 = vrot.slane %v766, 1
        %v769 = vor.u32 %v764, %v768
        %v774 = vunpack.c.l.b16 %v756
        %v775 = vunpack.c.l.b16 %v757
        %v776 = vunpack.c.l.b16 %v758
        %v777 = vunpack.c.l.b16 %v759
        %v778 = vpack.c.b16 %v775, %v774
        %v779 = vpack.c.b16 %v777, %v776
        %v783 = vsel %vm254, %v769, 0
        %785 = vmatprep.subr.bf16.mxu0 0
        %786 = vmatpush1.bf16.msra.mxu0 %v778
        %787 = vmatprep.subr.bf16.mxu0 0
        %788 = vmatpush1.bf16.msra.mxu0 %v779
        %789 = vmatprep.subr.bf16.mxu0 0
        %790 = vmatpush1.bf16.msra.mxu0 0
        %791 = vmatprep.subr.bf16.mxu0 0
        %792 = vmatpush1.bf16.msra.mxu0 0
        %793 = vmatprep.subr.bf16.mxu0 0
        %794 = vmatpush1.bf16.msra.mxu0 0
        %795 = vmatprep.subr.bf16.mxu0 0
        %796 = vmatpush1.bf16.msra.mxu0 0
        %797 = vmatprep.subr.bf16.mxu0 0
        %798 = vmatpush1.bf16.msra.mxu0 0
        %799 = vmatprep.subr.bf16.mxu0 0
        %800 = vmatpush1.bf16.msra.mxu0 0
        %801 = vmatprep.subr.bf16.mxu0 0
        %802 = vmatpush1.bf16.msra.mxu0 0
        %803 = vmatprep.subr.bf16.mxu0 0
        %804 = vmatpush1.bf16.msra.mxu0 0
        %805 = vmatprep.subr.bf16.mxu0 0
        %806 = vmatpush1.bf16.msra.mxu0 0
        %807 = vmatprep.subr.bf16.mxu0 0
        %808 = vmatpush1.bf16.msra.mxu0 0
        %809 = vmatprep.subr.bf16.mxu0 0
        %810 = vmatpush1.bf16.msra.mxu0 0
        %811 = vmatprep.subr.bf16.mxu0 0
        %812 = vmatpush1.bf16.msra.mxu0 0
        %813 = vmatprep.subr.bf16.mxu0 0
        %814 = vmatpush1.bf16.msra.mxu0 0
        %815 = vmatprep.subr.bf16.mxu0 0
        %816 = vmatpush1.bf16.msra.mxu0 0
        %817 = vmatprep.mubr.bf16.mxu0 0
        %818 = vmatmul.mubr.bf16.gmra.mrb[0].mxu0 %v783
        %v819 = vpop.f32.mrb[0].mxu0
        %v820 = vadd.f32 0.0, %v819
        %v821 = vpop.f32.mrb[0].mxu0
        %v822 = vpop.f32.mrb[0].mxu0
        %v823 = vpop.f32.mrb[0].mxu0
        %824 = vdwg.mxu0
        %v825 = vadd.f32 %v754, %v820
        %826 = vmatprep.subr.bf16.mxu0 0
        %827 = vmatpush1.bf16.msra.mxu0 %v250
        %828 = vmatprep.subr.bf16.mxu0 0
        %829 = vmatpush1.bf16.msra.mxu0 %v251
        %830 = vmatprep.subr.bf16.mxu0 0
        %831 = vmatpush1.bf16.msra.mxu0 0
        %832 = vmatprep.subr.bf16.mxu0 0
        %833 = vmatpush1.bf16.msra.mxu0 0
        %834 = vmatprep.subr.bf16.mxu0 0
        %835 = vmatpush1.bf16.msra.mxu0 0
        %836 = vmatprep.subr.bf16.mxu0 0
        %837 = vmatpush1.bf16.msra.mxu0 0
        %838 = vmatprep.subr.bf16.mxu0 0
        %839 = vmatpush1.bf16.msra.mxu0 0
        %840 = vmatprep.subr.bf16.mxu0 0
        %841 = vmatpush1.bf16.msra.mxu0 0
        %842 = vmatprep.subr.bf16.mxu0 0
        %843 = vmatpush1.bf16.msra.mxu0 0
        %844 = vmatprep.subr.bf16.mxu0 0
        %845 = vmatpush1.bf16.msra.mxu0 0
        %846 = vmatprep.subr.bf16.mxu0 0
        %847 = vmatpush1.bf16.msra.mxu0 0
        %848 = vmatprep.subr.bf16.mxu0 0
        %849 = vmatpush1.bf16.msra.mxu0 0
        %850 = vmatprep.subr.bf16.mxu0 0
        %851 = vmatpush1.bf16.msra.mxu0 0
        %852 = vmatprep.subr.bf16.mxu0 0
        %853 = vmatpush1.bf16.msra.mxu0 0
        %854 = vmatprep.subr.bf16.mxu0 0
        %855 = vmatpush1.bf16.msra.mxu0 0
        %856 = vmatprep.subr.bf16.mxu0 0
        %857 = vmatpush1.bf16.msra.mxu0 0
        %858 = vmatprep.mubr.bf16.mxu0 0
        %859 = vmatmul.mubr.bf16.gmra.mrb[0].mxu0 %v381
        %v860 = vpop.f32.mrb[0].mxu0
        %v861 = vadd.f32 0.0, %v860
        %v862 = vpop.f32.mrb[0].mxu0
        %v863 = vpop.f32.mrb[0].mxu0
        %v864 = vpop.f32.mrb[0].mxu0
        %865 = vdwg.mxu0
        %866 = vmatprep.subr.bf16.mxu0 0
        %867 = vmatpush1.bf16.msra.mxu0 %v306
        %868 = vmatprep.subr.bf16.mxu0 0
        %869 = vmatpush1.bf16.msra.mxu0 %v307
        %870 = vmatprep.subr.bf16.mxu0 0
        %871 = vmatpush1.bf16.msra.mxu0 0
        %872 = vmatprep.subr.bf16.mxu0 0
        %873 = vmatpush1.bf16.msra.mxu0 0
        %874 = vmatprep.subr.bf16.mxu0 0
        %875 = vmatpush1.bf16.msra.mxu0 0
        %876 = vmatprep.subr.bf16.mxu0 0
        %877 = vmatpush1.bf16.msra.mxu0 0
        %878 = vmatprep.subr.bf16.mxu0 0
        %879 = vmatpush1.bf16.msra.mxu0 0
        %880 = vmatprep.subr.bf16.mxu0 0
        %881 = vmatpush1.bf16.msra.mxu0 0
        %882 = vmatprep.subr.bf16.mxu0 0
        %883 = vmatpush1.bf16.msra.mxu0 0
        %884 = vmatprep.subr.bf16.mxu0 0
        %885 = vmatpush1.bf16.msra.mxu0 0
        %886 = vmatprep.subr.bf16.mxu0 0
        %887 = vmatpush1.bf16.msra.mxu0 0
        %888 = vmatprep.subr.bf16.mxu0 0
        %889 = vmatpush1.bf16.msra.mxu0 0
        %890 = vmatprep.subr.bf16.mxu0 0
        %891 = vmatpush1.bf16.msra.mxu0 0
        %892 = vmatprep.subr.bf16.mxu0 0
        %893 = vmatpush1.bf16.msra.mxu0 0
        %894 = vmatprep.subr.bf16.mxu0 0
        %895 = vmatpush1.bf16.msra.mxu0 0
        %896 = vmatprep.subr.bf16.mxu0 0
        %897 = vmatpush1.bf16.msra.mxu0 0
        %898 = vmatprep.mubr.bf16.mxu0 0
        %899 = vmatmul.mubr.bf16.gmra.mrb[0].mxu0 %v256
        %v900 = vpop.f32.mrb[0].mxu0
        %v901 = vadd.f32 %v861, %v900
        %v902 = vpop.f32.mrb[0].mxu0
        %v903 = vpop.f32.mrb[0].mxu0
        %v904 = vpop.f32.mrb[0].mxu0
        %905 = vdwg.mxu0
        %v907 = vunpack.c.l.b16 %v236
        %v908 = vpack.c.b16 %v907, %v907
        %v910 = vshrl.u32 %v908, 16
        %v912 = vshll.u32 %v908, 16
        %v914 = vrot.slane %v912, 1
        %v915 = vor.u32 %v910, %v914
        %v917 = vsel %vm254, %v915, 0
        %919 = vmatprep.subr.bf16.mxu0 0
        %920 = vmatpush1.bf16.msra.mxu0 %v376
        %921 = vmatprep.subr.bf16.mxu0 0
        %922 = vmatpush1.bf16.msra.mxu0 %v377
        %923 = vmatprep.subr.bf16.mxu0 0
        %924 = vmatpush1.bf16.msra.mxu0 0
        %925 = vmatprep.subr.bf16.mxu0 0
        %926 = vmatpush1.bf16.msra.mxu0 0
        %927 = vmatprep.subr.bf16.mxu0 0
        %928 = vmatpush1.bf16.msra.mxu0 0
        %929 = vmatprep.subr.bf16.mxu0 0
        %930 = vmatpush1.bf16.msra.mxu0 0
        %931 = vmatprep.subr.bf16.mxu0 0
        %932 = vmatpush1.bf16.msra.mxu0 0
        %933 = vmatprep.subr.bf16.mxu0 0
        %934 = vmatpush1.bf16.msra.mxu0 0
        %935 = vmatprep.subr.bf16.mxu0 0
        %936 = vmatpush1.bf16.msra.mxu0 0
        %937 = vmatprep.subr.bf16.mxu0 0
        %938 = vmatpush1.bf16.msra.mxu0 0
        %939 = vmatprep.subr.bf16.mxu0 0
        %940 = vmatpush1.bf16.msra.mxu0 0
        %941 = vmatprep.subr.bf16.mxu0 0
        %942 = vmatpush1.bf16.msra.mxu0 0
        %943 = vmatprep.subr.bf16.mxu0 0
        %944 = vmatpush1.bf16.msra.mxu0 0
        %945 = vmatprep.subr.bf16.mxu0 0
        %946 = vmatpush1.bf16.msra.mxu0 0
        %947 = vmatprep.subr.bf16.mxu0 0
        %948 = vmatpush1.bf16.msra.mxu0 0
        %949 = vmatprep.subr.bf16.mxu0 0
        %950 = vmatpush1.bf16.msra.mxu0 0
        %951 = vmatprep.mubr.bf16.mxu0 0
        %952 = vmatmul.mubr.bf16.gmra.mrb[0].mxu0 %v917
        %v953 = vpop.f32.mrb[0].mxu0
        %v954 = vadd.f32 0.0, %v953
        %v955 = vpop.f32.mrb[0].mxu0
        %v956 = vpop.f32.mrb[0].mxu0
        %v957 = vpop.f32.mrb[0].mxu0
        %958 = vdwg.mxu0
        %v959 = vadd.f32 %v901, %v954
        %960 = vmatprep.subr.bf16.mxu0 0
        %961 = vmatpush1.bf16.msra.mxu0 %v442
        %962 = vmatprep.subr.bf16.mxu0 0
        %963 = vmatpush1.bf16.msra.mxu0 %v443
        %964 = vmatprep.subr.bf16.mxu0 0
        %965 = vmatpush1.bf16.msra.mxu0 0
        %966 = vmatprep.subr.bf16.mxu0 0
        %967 = vmatpush1.bf16.msra.mxu0 0
        %968 = vmatprep.subr.bf16.mxu0 0
        %969 = vmatpush1.bf16.msra.mxu0 0
        %970 = vmatprep.subr.bf16.mxu0 0
        %971 = vmatpush1.bf16.msra.mxu0 0
        %972 = vmatprep.subr.bf16.mxu0 0
        %973 = vmatpush1.bf16.msra.mxu0 0
        %974 = vmatprep.subr.bf16.mxu0 0
        %975 = vmatpush1.bf16.msra.mxu0 0
        %976 = vmatprep.subr.bf16.mxu0 0
        %977 = vmatpush1.bf16.msra.mxu0 0
        %978 = vmatprep.subr.bf16.mxu0 0
        %979 = vmatpush1.bf16.msra.mxu0 0
        %980 = vmatprep.subr.bf16.mxu0 0
        %981 = vmatpush1.bf16.msra.mxu0 0
        %982 = vmatprep.subr.bf16.mxu0 0
        %983 = vmatpush1.bf16.msra.mxu0 0
        %984 = vmatprep.subr.bf16.mxu0 0
        %985 = vmatpush1.bf16.msra.mxu0 0
        %986 = vmatprep.subr.bf16.mxu0 0
        %987 = vmatpush1.bf16.msra.mxu0 0
        %988 = vmatprep.subr.bf16.mxu0 0
        %989 = vmatpush1.bf16.msra.mxu0 0
        %990 = vmatprep.subr.bf16.mxu0 0
        %991 = vmatpush1.bf16.msra.mxu0 0
        %992 = vmatprep.mubr.bf16.mxu0 0
        %993 = vmatmul.mubr.bf16.gmra.mrb[0].mxu0 %v511
        %v994 = vpop.f32.mrb[0].mxu0
        %v995 = vadd.f32 0.0, %v994
        %v996 = vpop.f32.mrb[0].mxu0
        %v997 = vpop.f32.mrb[0].mxu0
        %v998 = vpop.f32.mrb[0].mxu0
        %999 = vdwg.mxu0
        %v1000 = vadd.f32 %v959, %v995
        %1001 = vmatprep.subr.bf16.mxu0 0
        %1002 = vmatpush1.bf16.msra.mxu0 %v506
        %1003 = vmatprep.subr.bf16.mxu0 0
        %1004 = vmatpush1.bf16.msra.mxu0 %v507
        %1005 = vmatprep.subr.bf16.mxu0 0
        %1006 = vmatpush1.bf16.msra.mxu0 0
        %1007 = vmatprep.subr.bf16.mxu0 0
        %1008 = vmatpush1.bf16.msra.mxu0 0
        %1009 = vmatprep.subr.bf16.mxu0 0
        %1010 = vmatpush1.bf16.msra.mxu0 0
        %1011 = vmatprep.subr.bf16.mxu0 0
        %1012 = vmatpush1.bf16.msra.mxu0 0
        %1013 = vmatprep.subr.bf16.mxu0 0
        %1014 = vmatpush1.bf16.msra.mxu0 0
        %1015 = vmatprep.subr.bf16.mxu0 0
        %1016 = vmatpush1.bf16.msra.mxu0 0
        %1017 = vmatprep.subr.bf16.mxu0 0
        %1018 = vmatpush1.bf16.msra.mxu0 0
        %1019 = vmatprep.subr.bf16.mxu0 0
        %1020 = vmatpush1.bf16.msra.mxu0 0
        %1021 = vmatprep.subr.bf16.mxu0 0
        %1022 = vmatpush1.bf16.msra.mxu0 0
        %1023 = vmatprep.subr.bf16.mxu0 0
        %1024 = vmatpush1.bf16.msra.mxu0 0
        %1025 = vmatprep.subr.bf16.mxu0 0
        %1026 = vmatpush1.bf16.msra.mxu0 0
        %1027 = vmatprep.subr.bf16.mxu0 0
        %1028 = vmatpush1.bf16.msra.mxu0 0
        %1029 = vmatprep.subr.bf16.mxu0 0
        %1030 = vmatpush1.bf16.msra.mxu0 0
        %1031 = vmatprep.subr.bf16.mxu0 0
        %1032 = vmatpush1.bf16.msra.mxu0 0
        %1033 = vmatprep.mubr.bf16.mxu0 0
        %1034 = vmatmul.mubr.bf16.gmra.mrb[0].mxu0 %v582
        %v1035 = vpop.f32.mrb[0].mxu0
        %v1036 = vadd.f32 0.0, %v1035
        %v1037 = vpop.f32.mrb[0].mxu0
        %v1038 = vpop.f32.mrb[0].mxu0
        %v1039 = vpop.f32.mrb[0].mxu0
        %1040 = vdwg.mxu0
        %v1041 = vadd.f32 %v1000, %v1036
        %v1043 = vunpack.c.l.b16 %v492
        %v1044 = vpack.c.b16 %v1043, %v1043
        %v1046 = vshrl.u32 %v1044, 16
        %v1048 = vshll.u32 %v1044, 16
        %v1050 = vrot.slane %v1048, 1
        %v1051 = vor.u32 %v1046, %v1050
        %v1053 = vsel %vm254, %v1051, 0
        %1055 = vmatprep.subr.bf16.mxu0 0
        %1056 = vmatpush1.bf16.msra.mxu0 %v577
        %1057 = vmatprep.subr.bf16.mxu0 0
        %1058 = vmatpush1.bf16.msra.mxu0 %v578
        %1059 = vmatprep.subr.bf16.mxu0 0
        %1060 = vmatpush1.bf16.msra.mxu0 0
        %1061 = vmatprep.subr.bf16.mxu0 0
        %1062 = vmatpush1.bf16.msra.mxu0 0
        %1063 = vmatprep.subr.bf16.mxu0 0
        %1064 = vmatpush1.bf16.msra.mxu0 0
        %1065 = vmatprep.subr.bf16.mxu0 0
        %1066 = vmatpush1.bf16.msra.mxu0 0
        %1067 = vmatprep.subr.bf16.mxu0 0
        %1068 = vmatpush1.bf16.msra.mxu0 0
        %1069 = vmatprep.subr.bf16.mxu0 0
        %1070 = vmatpush1.bf16.msra.mxu0 0
        %1071 = vmatprep.subr.bf16.mxu0 0
        %1072 = vmatpush1.bf16.msra.mxu0 0
        %1073 = vmatprep.subr.bf16.mxu0 0
        %1074 = vmatpush1.bf16.msra.mxu0 0
        %1075 = vmatprep.subr.bf16.mxu0 0
        %1076 = vmatpush1.bf16.msra.mxu0 0
        %1077 = vmatprep.subr.bf16.mxu0 0
        %1078 = vmatpush1.bf16.msra.mxu0 0
        %1079 = vmatprep.subr.bf16.mxu0 0
        %1080 = vmatpush1.bf16.msra.mxu0 0
        %1081 = vmatprep.subr.bf16.mxu0 0
        %1082 = vmatpush1.bf16.msra.mxu0 0
        %1083 = vmatprep.subr.bf16.mxu0 0
        %1084 = vmatpush1.bf16.msra.mxu0 0
        %1085 = vmatprep.subr.bf16.mxu0 0
        %1086 = vmatpush1.bf16.msra.mxu0 0
        %1087 = vmatprep.mubr.bf16.mxu0 0
        %1088 = vmatmul.mubr.bf16.gmra.mrb[0].mxu0 %v1053
        %v1089 = vpop.f32.mrb[0].mxu0
        %v1090 = vadd.f32 0.0, %v1089
        %v1091 = vpop.f32.mrb[0].mxu0
        %v1092 = vpop.f32.mrb[0].mxu0
        %v1093 = vpop.f32.mrb[0].mxu0
        %1094 = vdwg.mxu0
        %v1095 = vadd.f32 %v1041, %v1090
        %1096 = vmatprep.subr.bf16.mxu0 0
        %1097 = vmatpush1.bf16.msra.mxu0 %v643
        %1098 = vmatprep.subr.bf16.mxu0 0
        %1099 = vmatpush1.bf16.msra.mxu0 %v644
        %1100 = vmatprep.subr.bf16.mxu0 0
        %1101 = vmatpush1.bf16.msra.mxu0 0
        %1102 = vmatprep.subr.bf16.mxu0 0
        %1103 = vmatpush1.bf16.msra.mxu0 0
        %1104 = vmatprep.subr.bf16.mxu0 0
        %1105 = vmatpush1.bf16.msra.mxu0 0
        %1106 = vmatprep.subr.bf16.mxu0 0
        %1107 = vmatpush1.bf16.msra.mxu0 0
        %1108 = vmatprep.subr.bf16.mxu0 0
        %1109 = vmatpush1.bf16.msra.mxu0 0
        %1110 = vmatprep.subr.bf16.mxu0 0
        %1111 = vmatpush1.bf16.msra.mxu0 0
        %1112 = vmatprep.subr.bf16.mxu0 0
        %1113 = vmatpush1.bf16.msra.mxu0 0
        %1114 = vmatprep.subr.bf16.mxu0 0
        %1115 = vmatpush1.bf16.msra.mxu0 0
        %1116 = vmatprep.subr.bf16.mxu0 0
        %1117 = vmatpush1.bf16.msra.mxu0 0
        %1118 = vmatprep.subr.bf16.mxu0 0
        %1119 = vmatpush1.bf16.msra.mxu0 0
        %1120 = vmatprep.subr.bf16.mxu0 0
        %1121 = vmatpush1.bf16.msra.mxu0 0
        %1122 = vmatprep.subr.bf16.mxu0 0
        %1123 = vmatpush1.bf16.msra.mxu0 0
        %1124 = vmatprep.subr.bf16.mxu0 0
        %1125 = vmatpush1.bf16.msra.mxu0 0
        %1126 = vmatprep.subr.bf16.mxu0 0
        %1127 = vmatpush1.bf16.msra.mxu0 0
        %1128 = vmatprep.mubr.bf16.mxu0 0
        %1129 = vmatmul.mubr.bf16.gmra.mrb[0].mxu0 %v712
        %v1130 = vpop.f32.mrb[0].mxu0
        %v1131 = vadd.f32 0.0, %v1130
        %v1132 = vpop.f32.mrb[0].mxu0
        %v1133 = vpop.f32.mrb[0].mxu0
        %v1134 = vpop.f32.mrb[0].mxu0
        %1135 = vdwg.mxu0
        %v1136 = vadd.f32 %v1095, %v1131
        %1137 = vmatprep.subr.bf16.mxu0 0
        %1138 = vmatpush1.bf16.msra.mxu0 %v707
        %1139 = vmatprep.subr.bf16.mxu0 0
        %1140 = vmatpush1.bf16.msra.mxu0 %v708
        %1141 = vmatprep.subr.bf16.mxu0 0
        %1142 = vmatpush1.bf16.msra.mxu0 0
        %1143 = vmatprep.subr.bf16.mxu0 0
        %1144 = vmatpush1.bf16.msra.mxu0 0
        %1145 = vmatprep.subr.bf16.mxu0 0
        %1146 = vmatpush1.bf16.msra.mxu0 0
        %1147 = vmatprep.subr.bf16.mxu0 0
        %1148 = vmatpush1.bf16.msra.mxu0 0
        %1149 = vmatprep.subr.bf16.mxu0 0
        %1150 = vmatpush1.bf16.msra.mxu0 0
        %1151 = vmatprep.subr.bf16.mxu0 0
        %1152 = vmatpush1.bf16.msra.mxu0 0
        %1153 = vmatprep.subr.bf16.mxu0 0
        %1154 = vmatpush1.bf16.msra.mxu0 0
        %1155 = vmatprep.subr.bf16.mxu0 0
        %1156 = vmatpush1.bf16.msra.mxu0 0
        %1157 = vmatprep.subr.bf16.mxu0 0
        %1158 = vmatpush1.bf16.msra.mxu0 0
        %1159 = vmatprep.subr.bf16.mxu0 0
        %1160 = vmatpush1.bf16.msra.mxu0 0
        %1161 = vmatprep.subr.bf16.mxu0 0
        %1162 = vmatpush1.bf16.msra.mxu0 0
        %1163 = vmatprep.subr.bf16.mxu0 0
        %1164 = vmatpush1.bf16.msra.mxu0 0
        %1165 = vmatprep.subr.bf16.mxu0 0
        %1166 = vmatpush1.bf16.msra.mxu0 0
        %1167 = vmatprep.subr.bf16.mxu0 0
        %1168 = vmatpush1.bf16.msra.mxu0 0
        %1169 = vmatprep.mubr.bf16.mxu0 0
        %1170 = vmatmul.mubr.bf16.gmra.mrb[0].mxu0 %v783
        %v1171 = vpop.f32.mrb[0].mxu0
        %v1172 = vadd.f32 0.0, %v1171
        %v1173 = vpop.f32.mrb[0].mxu0
        %v1174 = vpop.f32.mrb[0].mxu0
        %v1175 = vpop.f32.mrb[0].mxu0
        %1176 = vdwg.mxu0
        %v1177 = vadd.f32 %v1136, %v1172
        %v1179 = vunpack.c.l.b16 %v693
        %v1180 = vpack.c.b16 %v1179, %v1179
        %v1182 = vshrl.u32 %v1180, 16
        %v1184 = vshll.u32 %v1180, 16
        %v1186 = vrot.slane %v1184, 1
        %v1187 = vor.u32 %v1182, %v1186
        %v1189 = vsel %vm254, %v1187, 0
        %1191 = vmatprep.subr.bf16.mxu0 0
        %1192 = vmatpush1.bf16.msra.mxu0 %v778
        %1193 = vmatprep.subr.bf16.mxu0 0
        %1194 = vmatpush1.bf16.msra.mxu0 %v779
        %1195 = vmatprep.subr.bf16.mxu0 0
        %1196 = vmatpush1.bf16.msra.mxu0 0
        %1197 = vmatprep.subr.bf16.mxu0 0
        %1198 = vmatpush1.bf16.msra.mxu0 0
        %1199 = vmatprep.subr.bf16.mxu0 0
        %1200 = vmatpush1.bf16.msra.mxu0 0
        %1201 = vmatprep.subr.bf16.mxu0 0
        %1202 = vmatpush1.bf16.msra.mxu0 0
        %1203 = vmatprep.subr.bf16.mxu0 0
        %1204 = vmatpush1.bf16.msra.mxu0 0
        %1205 = vmatprep.subr.bf16.mxu0 0
        %1206 = vmatpush1.bf16.msra.mxu0 0
        %1207 = vmatprep.subr.bf16.mxu0 0
        %1208 = vmatpush1.bf16.msra.mxu0 0
        %1209 = vmatprep.subr.bf16.mxu0 0
        %1210 = vmatpush1.bf16.msra.mxu0 0
        %1211 = vmatprep.subr.bf16.mxu0 0
        %1212 = vmatpush1.bf16.msra.mxu0 0
        %1213 = vmatprep.subr.bf16.mxu0 0
        %1214 = vmatpush1.bf16.msra.mxu0 0
        %1215 = vmatprep.subr.bf16.mxu0 0
        %1216 = vmatpush1.bf16.msra.mxu0 0
        %1217 = vmatprep.subr.bf16.mxu0 0
        %1218 = vmatpush1.bf16.msra.mxu0 0
        %1219 = vmatprep.subr.bf16.mxu0 0
        %1220 = vmatpush1.bf16.msra.mxu0 0
        %1221 = vmatprep.subr.bf16.mxu0 0
        %1222 = vmatpush1.bf16.msra.mxu0 0
        %1223 = vmatprep.mubr.bf16.mxu0 0
        %1224 = vmatmul.mubr.bf16.gmra.mrb[0].mxu0 %v1189
        %v1225 = vpop.f32.mrb[0].mxu0
        %v1226 = vadd.f32 0.0, %v1225
        %v1227 = vpop.f32.mrb[0].mxu0
        %v1228 = vpop.f32.mrb[0].mxu0
        %v1229 = vpop.f32.mrb[0].mxu0
        %1230 = vdwg.mxu0
        %v1231 = vadd.f32 %v1177, %v1226
        %v1232 = vmax.f32 %v825, %v1231
        %1233 = vmatprep.subr.bf16.mxu0 0
        %1234 = vmatpush1.bf16.msra.mxu0 %v250
        %1235 = vmatprep.subr.bf16.mxu0 0
        %1236 = vmatpush1.bf16.msra.mxu0 %v251
        %1237 = vmatprep.subr.bf16.mxu0 0
        %1238 = vmatpush1.bf16.msra.mxu0 0
        %1239 = vmatprep.subr.bf16.mxu0 0
        %1240 = vmatpush1.bf16.msra.mxu0 0
        %1241 = vmatprep.subr.bf16.mxu0 0
        %1242 = vmatpush1.bf16.msra.mxu0 0
        %1243 = vmatprep.subr.bf16.mxu0 0
        %1244 = vmatpush1.bf16.msra.mxu0 0
        %1245 = vmatprep.subr.bf16.mxu0 0
        %1246 = vmatpush1.bf16.msra.mxu0 0
        %1247 = vmatprep.subr.bf16.mxu0 0
        %1248 = vmatpush1.bf16.msra.mxu0 0
        %1249 = vmatprep.subr.bf16.mxu0 0
        %1250 = vmatpush1.bf16.msra.mxu0 0
        %1251 = vmatprep.subr.bf16.mxu0 0
        %1252 = vmatpush1.bf16.msra.mxu0 0
        %1253 = vmatprep.subr.bf16.mxu0 0
        %1254 = vmatpush1.bf16.msra.mxu0 0
        %1255 = vmatprep.subr.bf16.mxu0 0
        %1256 = vmatpush1.bf16.msra.mxu0 0
        %1257 = vmatprep.subr.bf16.mxu0 0
        %1258 = vmatpush1.bf16.msra.mxu0 0
        %1259 = vmatprep.subr.bf16.mxu0 0
        %1260 = vmatpush1.bf16.msra.mxu0 0
        %1261 = vmatprep.subr.bf16.mxu0 0
        %1262 = vmatpush1.bf16.msra.mxu0 0
        %1263 = vmatprep.subr.bf16.mxu0 0
        %1264 = vmatpush1.bf16.msra.mxu0 0
        %1265 = vmatprep.mubr.bf16.mxu0 0
        %1266 = vmatmul.mubr.bf16.gmra.mrb[0].mxu0 %v511
        %v1267 = vpop.f32.mrb[0].mxu0
        %v1268 = vadd.f32 0.0, %v1267
        %v1269 = vpop.f32.mrb[0].mxu0
        %v1270 = vpop.f32.mrb[0].mxu0
        %v1271 = vpop.f32.mrb[0].mxu0
        %1272 = vdwg.mxu0
        %1273 = vmatprep.subr.bf16.mxu0 0
        %1274 = vmatpush1.bf16.msra.mxu0 %v306
        %1275 = vmatprep.subr.bf16.mxu0 0
        %1276 = vmatpush1.bf16.msra.mxu0 %v307
        %1277 = vmatprep.subr.bf16.mxu0 0
        %1278 = vmatpush1.bf16.msra.mxu0 0
        %1279 = vmatprep.subr.bf16.mxu0 0
        %1280 = vmatpush1.bf16.msra.mxu0 0
        %1281 = vmatprep.subr.bf16.mxu0 0
        %1282 = vmatpush1.bf16.msra.mxu0 0
        %1283 = vmatprep.subr.bf16.mxu0 0
        %1284 = vmatpush1.bf16.msra.mxu0 0
        %1285 = vmatprep.subr.bf16.mxu0 0
        %1286 = vmatpush1.bf16.msra.mxu0 0
        %1287 = vmatprep.subr.bf16.mxu0 0
        %1288 = vmatpush1.bf16.msra.mxu0 0
        %1289 = vmatprep.subr.bf16.mxu0 0
        %1290 = vmatpush1.bf16.msra.mxu0 0
        %1291 = vmatprep.subr.bf16.mxu0 0
        %1292 = vmatpush1.bf16.msra.mxu0 0
        %1293 = vmatprep.subr.bf16.mxu0 0
        %1294 = vmatpush1.bf16.msra.mxu0 0
        %1295 = vmatprep.subr.bf16.mxu0 0
        %1296 = vmatpush1.bf16.msra.mxu0 0
        %1297 = vmatprep.subr.bf16.mxu0 0
        %1298 = vmatpush1.bf16.msra.mxu0 0
        %1299 = vmatprep.subr.bf16.mxu0 0
        %1300 = vmatpush1.bf16.msra.mxu0 0
        %1301 = vmatprep.subr.bf16.mxu0 0
        %1302 = vmatpush1.bf16.msra.mxu0 0
        %1303 = vmatprep.subr.bf16.mxu0 0
        %1304 = vmatpush1.bf16.msra.mxu0 0
        %1305 = vmatprep.mubr.bf16.mxu0 0
        %1306 = vmatmul.mubr.bf16.gmra.mrb[0].mxu0 %v447
        %v1307 = vpop.f32.mrb[0].mxu0
        %v1308 = vadd.f32 %v1268, %v1307
        %v1309 = vpop.f32.mrb[0].mxu0
        %v1310 = vpop.f32.mrb[0].mxu0
        %v1311 = vpop.f32.mrb[0].mxu0
        %1312 = vdwg.mxu0
        %1313 = vmatprep.subr.bf16.mxu0 0
        %1314 = vmatpush1.bf16.msra.mxu0 %v376
        %1315 = vmatprep.subr.bf16.mxu0 0
        %1316 = vmatpush1.bf16.msra.mxu0 %v377
        %1317 = vmatprep.subr.bf16.mxu0 0
        %1318 = vmatpush1.bf16.msra.mxu0 0
        %1319 = vmatprep.subr.bf16.mxu0 0
        %1320 = vmatpush1.bf16.msra.mxu0 0
        %1321 = vmatprep.subr.bf16.mxu0 0
        %1322 = vmatpush1.bf16.msra.mxu0 0
        %1323 = vmatprep.subr.bf16.mxu0 0
        %1324 = vmatpush1.bf16.msra.mxu0 0
        %1325 = vmatprep.subr.bf16.mxu0 0
        %1326 = vmatpush1.bf16.msra.mxu0 0
        %1327 = vmatprep.subr.bf16.mxu0 0
        %1328 = vmatpush1.bf16.msra.mxu0 0
        %1329 = vmatprep.subr.bf16.mxu0 0
        %1330 = vmatpush1.bf16.msra.mxu0 0
        %1331 = vmatprep.subr.bf16.mxu0 0
        %1332 = vmatpush1.bf16.msra.mxu0 0
        %1333 = vmatprep.subr.bf16.mxu0 0
        %1334 = vmatpush1.bf16.msra.mxu0 0
        %1335 = vmatprep.subr.bf16.mxu0 0
        %1336 = vmatpush1.bf16.msra.mxu0 0
        %1337 = vmatprep.subr.bf16.mxu0 0
        %1338 = vmatpush1.bf16.msra.mxu0 0
        %1339 = vmatprep.subr.bf16.mxu0 0
        %1340 = vmatpush1.bf16.msra.mxu0 0
        %1341 = vmatprep.subr.bf16.mxu0 0
        %1342 = vmatpush1.bf16.msra.mxu0 0
        %1343 = vmatprep.subr.bf16.mxu0 0
        %1344 = vmatpush1.bf16.msra.mxu0 0
        %1345 = vmatprep.mubr.bf16.mxu0 0
        %1346 = vmatmul.mubr.bf16.gmra.mrb[0].mxu0 %v582
        %v1347 = vpop.f32.mrb[0].mxu0
        %v1348 = vadd.f32 0.0, %v1347
        %v1349 = vpop.f32.mrb[0].mxu0
        %v1350 = vpop.f32.mrb[0].mxu0
        %v1351 = vpop.f32.mrb[0].mxu0
        %1352 = vdwg.mxu0
        %v1353 = vadd.f32 %v1308, %v1348
        %1354 = vmatprep.subr.bf16.mxu0 0
        %1355 = vmatpush1.bf16.msra.mxu0 %v442
        %1356 = vmatprep.subr.bf16.mxu0 0
        %1357 = vmatpush1.bf16.msra.mxu0 %v443
        %1358 = vmatprep.subr.bf16.mxu0 0
        %1359 = vmatpush1.bf16.msra.mxu0 0
        %1360 = vmatprep.subr.bf16.mxu0 0
        %1361 = vmatpush1.bf16.msra.mxu0 0
        %1362 = vmatprep.subr.bf16.mxu0 0
        %1363 = vmatpush1.bf16.msra.mxu0 0
        %1364 = vmatprep.subr.bf16.mxu0 0
        %1365 = vmatpush1.bf16.msra.mxu0 0
        %1366 = vmatprep.subr.bf16.mxu0 0
        %1367 = vmatpush1.bf16.msra.mxu0 0
        %1368 = vmatprep.subr.bf16.mxu0 0
        %1369 = vmatpush1.bf16.msra.mxu0 0
        %1370 = vmatprep.subr.bf16.mxu0 0
        %1371 = vmatpush1.bf16.msra.mxu0 0
        %1372 = vmatprep.subr.bf16.mxu0 0
        %1373 = vmatpush1.bf16.msra.mxu0 0
        %1374 = vmatprep.subr.bf16.mxu0 0
        %1375 = vmatpush1.bf16.msra.mxu0 0
        %1376 = vmatprep.subr.bf16.mxu0 0
        %1377 = vmatpush1.bf16.msra.mxu0 0
        %1378 = vmatprep.subr.bf16.mxu0 0
        %1379 = vmatpush1.bf16.msra.mxu0 0
        %1380 = vmatprep.subr.bf16.mxu0 0
        %1381 = vmatpush1.bf16.msra.mxu0 0
        %1382 = vmatprep.subr.bf16.mxu0 0
        %1383 = vmatpush1.bf16.msra.mxu0 0
        %1384 = vmatprep.subr.bf16.mxu0 0
        %1385 = vmatpush1.bf16.msra.mxu0 0
        %1386 = vmatprep.mubr.bf16.mxu0 0
        %1387 = vmatmul.mubr.bf16.gmra.mrb[0].mxu0 %v648
        %v1388 = vpop.f32.mrb[0].mxu0
        %v1389 = vadd.f32 0.0, %v1388
        %v1390 = vpop.f32.mrb[0].mxu0
        %v1391 = vpop.f32.mrb[0].mxu0
        %v1392 = vpop.f32.mrb[0].mxu0
        %1393 = vdwg.mxu0
        %v1394 = vadd.f32 %v1353, %v1389
        %1395 = vmatprep.subr.bf16.mxu0 0
        %1396 = vmatpush1.bf16.msra.mxu0 %v506
        %1397 = vmatprep.subr.bf16.mxu0 0
        %1398 = vmatpush1.bf16.msra.mxu0 %v507
        %1399 = vmatprep.subr.bf16.mxu0 0
        %1400 = vmatpush1.bf16.msra.mxu0 0
        %1401 = vmatprep.subr.bf16.mxu0 0
        %1402 = vmatpush1.bf16.msra.mxu0 0
        %1403 = vmatprep.subr.bf16.mxu0 0
        %1404 = vmatpush1.bf16.msra.mxu0 0
        %1405 = vmatprep.subr.bf16.mxu0 0
        %1406 = vmatpush1.bf16.msra.mxu0 0
        %1407 = vmatprep.subr.bf16.mxu0 0
        %1408 = vmatpush1.bf16.msra.mxu0 0
        %1409 = vmatprep.subr.bf16.mxu0 0
        %1410 = vmatpush1.bf16.msra.mxu0 0
        %1411 = vmatprep.subr.bf16.mxu0 0
        %1412 = vmatpush1.bf16.msra.mxu0 0
        %1413 = vmatprep.subr.bf16.mxu0 0
        %1414 = vmatpush1.bf16.msra.mxu0 0
        %1415 = vmatprep.subr.bf16.mxu0 0
        %1416 = vmatpush1.bf16.msra.mxu0 0
        %1417 = vmatprep.subr.bf16.mxu0 0
        %1418 = vmatpush1.bf16.msra.mxu0 0
        %1419 = vmatprep.subr.bf16.mxu0 0
        %1420 = vmatpush1.bf16.msra.mxu0 0
        %1421 = vmatprep.subr.bf16.mxu0 0
        %1422 = vmatpush1.bf16.msra.mxu0 0
        %1423 = vmatprep.subr.bf16.mxu0 0
        %1424 = vmatpush1.bf16.msra.mxu0 0
        %1425 = vmatprep.subr.bf16.mxu0 0
        %1426 = vmatpush1.bf16.msra.mxu0 0
        %1427 = vmatprep.mubr.bf16.mxu0 0
        %1428 = vmatmul.mubr.bf16.gmra.mrb[0].mxu0 %v712
        %v1429 = vpop.f32.mrb[0].mxu0
        %v1430 = vadd.f32 0.0, %v1429
        %v1431 = vpop.f32.mrb[0].mxu0
        %v1432 = vpop.f32.mrb[0].mxu0
        %v1433 = vpop.f32.mrb[0].mxu0
        %1434 = vdwg.mxu0
        %v1435 = vadd.f32 %v1394, %v1430
        %1436 = vmatprep.subr.bf16.mxu0 0
        %1437 = vmatpush1.bf16.msra.mxu0 %v577
        %1438 = vmatprep.subr.bf16.mxu0 0
        %1439 = vmatpush1.bf16.msra.mxu0 %v578
        %1440 = vmatprep.subr.bf16.mxu0 0
        %1441 = vmatpush1.bf16.msra.mxu0 0
        %1442 = vmatprep.subr.bf16.mxu0 0
        %1443 = vmatpush1.bf16.msra.mxu0 0
        %1444 = vmatprep.subr.bf16.mxu0 0
        %1445 = vmatpush1.bf16.msra.mxu0 0
        %1446 = vmatprep.subr.bf16.mxu0 0
        %1447 = vmatpush1.bf16.msra.mxu0 0
        %1448 = vmatprep.subr.bf16.mxu0 0
        %1449 = vmatpush1.bf16.msra.mxu0 0
        %1450 = vmatprep.subr.bf16.mxu0 0
        %1451 = vmatpush1.bf16.msra.mxu0 0
        %1452 = vmatprep.subr.bf16.mxu0 0
        %1453 = vmatpush1.bf16.msra.mxu0 0
        %1454 = vmatprep.subr.bf16.mxu0 0
        %1455 = vmatpush1.bf16.msra.mxu0 0
        %1456 = vmatprep.subr.bf16.mxu0 0
        %1457 = vmatpush1.bf16.msra.mxu0 0
        %1458 = vmatprep.subr.bf16.mxu0 0
        %1459 = vmatpush1.bf16.msra.mxu0 0
        %1460 = vmatprep.subr.bf16.mxu0 0
        %1461 = vmatpush1.bf16.msra.mxu0 0
        %1462 = vmatprep.subr.bf16.mxu0 0
        %1463 = vmatpush1.bf16.msra.mxu0 0
        %1464 = vmatprep.subr.bf16.mxu0 0
        %1465 = vmatpush1.bf16.msra.mxu0 0
        %1466 = vmatprep.subr.bf16.mxu0 0
        %1467 = vmatpush1.bf16.msra.mxu0 0
        %1468 = vmatprep.mubr.bf16.mxu0 0
        %1469 = vmatmul.mubr.bf16.gmra.mrb[0].mxu0 %v783
        %v1470 = vpop.f32.mrb[0].mxu0
        %v1471 = vadd.f32 0.0, %v1470
        %v1472 = vpop.f32.mrb[0].mxu0
        %v1473 = vpop.f32.mrb[0].mxu0
        %v1474 = vpop.f32.mrb[0].mxu0
        %1475 = vdwg.mxu0
        %v1476 = vadd.f32 %v1435, %v1471
        %s1477 = sadd.s32 %s225, 3
        %s1478 = smul.u32 %s1477, 2
        %s1479 = smul.addr %s1478, 4
        %s1480 = scalar_lea.vmem %s207, %s1479
        %v1481 = vld [vmem:[%s1480] sm:$0xf]
        %v1483 = vsel %vm254, %v1481, 0
        %1485 = vmatprep.subr.bf16.mxu0 0
        %1486 = vmatpush1.bf16.msra.mxu0 %v643
        %1487 = vmatprep.subr.bf16.mxu0 0
        %1488 = vmatpush1.bf16.msra.mxu0 %v644
        %1489 = vmatprep.subr.bf16.mxu0 0
        %1490 = vmatpush1.bf16.msra.mxu0 0
        %1491 = vmatprep.subr.bf16.mxu0 0
        %1492 = vmatpush1.bf16.msra.mxu0 0
        %1493 = vmatprep.subr.bf16.mxu0 0
        %1494 = vmatpush1.bf16.msra.mxu0 0
        %1495 = vmatprep.subr.bf16.mxu0 0
        %1496 = vmatpush1.bf16.msra.mxu0 0
        %1497 = vmatprep.subr.bf16.mxu0 0
        %1498 = vmatpush1.bf16.msra.mxu0 0
        %1499 = vmatprep.subr.bf16.mxu0 0
        %1500 = vmatpush1.bf16.msra.mxu0 0
        %1501 = vmatprep.subr.bf16.mxu0 0
        %1502 = vmatpush1.bf16.msra.mxu0 0
        %1503 = vmatprep.subr.bf16.mxu0 0
        %1504 = vmatpush1.bf16.msra.mxu0 0
        %1505 = vmatprep.subr.bf16.mxu0 0
        %1506 = vmatpush1.bf16.msra.mxu0 0
        %1507 = vmatprep.subr.bf16.mxu0 0
        %1508 = vmatpush1.bf16.msra.mxu0 0
        %1509 = vmatprep.subr.bf16.mxu0 0
        %1510 = vmatpush1.bf16.msra.mxu0 0
        %1511 = vmatprep.subr.bf16.mxu0 0
        %1512 = vmatpush1.bf16.msra.mxu0 0
        %1513 = vmatprep.subr.bf16.mxu0 0
        %1514 = vmatpush1.bf16.msra.mxu0 0
        %1515 = vmatprep.subr.bf16.mxu0 0
        %1516 = vmatpush1.bf16.msra.mxu0 0
        %1517 = vmatprep.mubr.bf16.mxu0 0
        %1518 = vmatmul.mubr.bf16.gmra.mrb[0].mxu0 %v1483
        %v1519 = vpop.f32.mrb[0].mxu0
        %v1520 = vadd.f32 0.0, %v1519
        %v1521 = vpop.f32.mrb[0].mxu0
        %v1522 = vpop.f32.mrb[0].mxu0
        %v1523 = vpop.f32.mrb[0].mxu0
        %1524 = vdwg.mxu0
        %v1525 = vadd.f32 %v1476, %v1520
        %s1526 = smul.addr %s1477, 4
        %s1527 = scalar_lea.vmem %s212, %s1526
        %v1528 = vld [vmem:[%s1527] sm:$0xf]
        %v1530 = vsel %vm254, %v1528, 0
        %1532 = vmatprep.subr.bf16.mxu0 0
        %1533 = vmatpush1.bf16.msra.mxu0 %v707
        %1534 = vmatprep.subr.bf16.mxu0 0
        %1535 = vmatpush1.bf16.msra.mxu0 %v708
        %1536 = vmatprep.subr.bf16.mxu0 0
        %1537 = vmatpush1.bf16.msra.mxu0 0
        %1538 = vmatprep.subr.bf16.mxu0 0
        %1539 = vmatpush1.bf16.msra.mxu0 0
        %1540 = vmatprep.subr.bf16.mxu0 0
        %1541 = vmatpush1.bf16.msra.mxu0 0
        %1542 = vmatprep.subr.bf16.mxu0 0
        %1543 = vmatpush1.bf16.msra.mxu0 0
        %1544 = vmatprep.subr.bf16.mxu0 0
        %1545 = vmatpush1.bf16.msra.mxu0 0
        %1546 = vmatprep.subr.bf16.mxu0 0
        %1547 = vmatpush1.bf16.msra.mxu0 0
        %1548 = vmatprep.subr.bf16.mxu0 0
        %1549 = vmatpush1.bf16.msra.mxu0 0
        %1550 = vmatprep.subr.bf16.mxu0 0
        %1551 = vmatpush1.bf16.msra.mxu0 0
        %1552 = vmatprep.subr.bf16.mxu0 0
        %1553 = vmatpush1.bf16.msra.mxu0 0
        %1554 = vmatprep.subr.bf16.mxu0 0
        %1555 = vmatpush1.bf16.msra.mxu0 0
        %1556 = vmatprep.subr.bf16.mxu0 0
        %1557 = vmatpush1.bf16.msra.mxu0 0
        %1558 = vmatprep.subr.bf16.mxu0 0
        %1559 = vmatpush1.bf16.msra.mxu0 0
        %1560 = vmatprep.subr.bf16.mxu0 0
        %1561 = vmatpush1.bf16.msra.mxu0 0
        %1562 = vmatprep.subr.bf16.mxu0 0
        %1563 = vmatpush1.bf16.msra.mxu0 0
        %1564 = vmatprep.mubr.bf16.mxu0 0
        %1565 = vmatmul.mubr.bf16.gmra.mrb[0].mxu0 %v1530
        %v1566 = vpop.f32.mrb[0].mxu0
        %v1567 = vadd.f32 0.0, %v1566
        %v1568 = vpop.f32.mrb[0].mxu0
        %v1569 = vpop.f32.mrb[0].mxu0
        %v1570 = vpop.f32.mrb[0].mxu0
        %1571 = vdwg.mxu0
        %v1572 = vadd.f32 %v1525, %v1567
        %v1574 = vunpack.c.l.b16 %v1481
        %v1575 = vpack.c.b16 %v1574, %v1574
        %v1577 = vshrl.u32 %v1575, 16
        %v1579 = vshll.u32 %v1575, 16
        %v1581 = vrot.slane %v1579, 1
        %v1582 = vor.u32 %v1577, %v1581
        %v1584 = vsel %vm254, %v1582, 0
        %1586 = vmatprep.subr.bf16.mxu0 0
        %1587 = vmatpush1.bf16.msra.mxu0 %v778
        %1588 = vmatprep.subr.bf16.mxu0 0
        %1589 = vmatpush1.bf16.msra.mxu0 %v779
        %1590 = vmatprep.subr.bf16.mxu0 0
        %1591 = vmatpush1.bf16.msra.mxu0 0
        %1592 = vmatprep.subr.bf16.mxu0 0
        %1593 = vmatpush1.bf16.msra.mxu0 0
        %1594 = vmatprep.subr.bf16.mxu0 0
        %1595 = vmatpush1.bf16.msra.mxu0 0
        %1596 = vmatprep.subr.bf16.mxu0 0
        %1597 = vmatpush1.bf16.msra.mxu0 0
        %1598 = vmatprep.subr.bf16.mxu0 0
        %1599 = vmatpush1.bf16.msra.mxu0 0
        %1600 = vmatprep.subr.bf16.mxu0 0
        %1601 = vmatpush1.bf16.msra.mxu0 0
        %1602 = vmatprep.subr.bf16.mxu0 0
        %1603 = vmatpush1.bf16.msra.mxu0 0
        %1604 = vmatprep.subr.bf16.mxu0 0
        %1605 = vmatpush1.bf16.msra.mxu0 0
        %1606 = vmatprep.subr.bf16.mxu0 0
        %1607 = vmatpush1.bf16.msra.mxu0 0
        %1608 = vmatprep.subr.bf16.mxu0 0
        %1609 = vmatpush1.bf16.msra.mxu0 0
        %1610 = vmatprep.subr.bf16.mxu0 0
        %1611 = vmatpush1.bf16.msra.mxu0 0
        %1612 = vmatprep.subr.bf16.mxu0 0
        %1613 = vmatpush1.bf16.msra.mxu0 0
        %1614 = vmatprep.subr.bf16.mxu0 0
        %1615 = vmatpush1.bf16.msra.mxu0 0
        %1616 = vmatprep.subr.bf16.mxu0 0
        %1617 = vmatpush1.bf16.msra.mxu0 0
        %1618 = vmatprep.mubr.bf16.mxu0 0
        %1619 = vmatmul.mubr.bf16.gmra.mrb[0].mxu0 %v1584
        %v1620 = vpop.f32.mrb[0].mxu0
        %v1621 = vadd.f32 0.0, %v1620
        %v1622 = vpop.f32.mrb[0].mxu0
        %v1623 = vpop.f32.mrb[0].mxu0
        %v1624 = vpop.f32.mrb[0].mxu0
        %1625 = vdwg.mxu0
        %v1626 = vadd.f32 %v1572, %v1621
        %1627 = vmatprep.subr.bf16.mxu0 0
        %1628 = vmatpush1.bf16.msra.mxu0 %v250
        %1629 = vmatprep.subr.bf16.mxu0 0
        %1630 = vmatpush1.bf16.msra.mxu0 %v251
        %1631 = vmatprep.subr.bf16.mxu0 0
        %1632 = vmatpush1.bf16.msra.mxu0 0
        %1633 = vmatprep.subr.bf16.mxu0 0
        %1634 = vmatpush1.bf16.msra.mxu0 0
        %1635 = vmatprep.subr.bf16.mxu0 0
        %1636 = vmatpush1.bf16.msra.mxu0 0
        %1637 = vmatprep.subr.bf16.mxu0 0
        %1638 = vmatpush1.bf16.msra.mxu0 0
        %1639 = vmatprep.subr.bf16.mxu0 0
        %1640 = vmatpush1.bf16.msra.mxu0 0
        %1641 = vmatprep.subr.bf16.mxu0 0
        %1642 = vmatpush1.bf16.msra.mxu0 0
        %1643 = vmatprep.subr.bf16.mxu0 0
        %1644 = vmatpush1.bf16.msra.mxu0 0
        %1645 = vmatprep.subr.bf16.mxu0 0
        %1646 = vmatpush1.bf16.msra.mxu0 0
        %1647 = vmatprep.subr.bf16.mxu0 0
        %1648 = vmatpush1.bf16.msra.mxu0 0
        %1649 = vmatprep.subr.bf16.mxu0 0
        %1650 = vmatpush1.bf16.msra.mxu0 0
        %1651 = vmatprep.subr.bf16.mxu0 0
        %1652 = vmatpush1.bf16.msra.mxu0 0
        %1653 = vmatprep.subr.bf16.mxu0 0
        %1654 = vmatpush1.bf16.msra.mxu0 0
        %1655 = vmatprep.subr.bf16.mxu0 0
        %1656 = vmatpush1.bf16.msra.mxu0 0
        %1657 = vmatprep.subr.bf16.mxu0 0
        %1658 = vmatpush1.bf16.msra.mxu0 0
        %1659 = vmatprep.mubr.bf16.mxu0 0
        %1660 = vmatmul.mubr.bf16.gmra.mrb[0].mxu0 %v582
        %v1661 = vpop.f32.mrb[0].mxu0
        %v1662 = vadd.f32 0.0, %v1661
        %v1663 = vpop.f32.mrb[0].mxu0
        %v1664 = vpop.f32.mrb[0].mxu0
        %v1665 = vpop.f32.mrb[0].mxu0
        %1666 = vdwg.mxu0
        %1667 = vmatprep.subr.bf16.mxu0 0
        %1668 = vmatpush1.bf16.msra.mxu0 %v306
        %1669 = vmatprep.subr.bf16.mxu0 0
        %1670 = vmatpush1.bf16.msra.mxu0 %v307
        %1671 = vmatprep.subr.bf16.mxu0 0
        %1672 = vmatpush1.bf16.msra.mxu0 0
        %1673 = vmatprep.subr.bf16.mxu0 0
        %1674 = vmatpush1.bf16.msra.mxu0 0
        %1675 = vmatprep.subr.bf16.mxu0 0
        %1676 = vmatpush1.bf16.msra.mxu0 0
        %1677 = vmatprep.subr.bf16.mxu0 0
        %1678 = vmatpush1.bf16.msra.mxu0 0
        %1679 = vmatprep.subr.bf16.mxu0 0
        %1680 = vmatpush1.bf16.msra.mxu0 0
        %1681 = vmatprep.subr.bf16.mxu0 0
        %1682 = vmatpush1.bf16.msra.mxu0 0
        %1683 = vmatprep.subr.bf16.mxu0 0
        %1684 = vmatpush1.bf16.msra.mxu0 0
        %1685 = vmatprep.subr.bf16.mxu0 0
        %1686 = vmatpush1.bf16.msra.mxu0 0
        %1687 = vmatprep.subr.bf16.mxu0 0
        %1688 = vmatpush1.bf16.msra.mxu0 0
        %1689 = vmatprep.subr.bf16.mxu0 0
        %1690 = vmatpush1.bf16.msra.mxu0 0
        %1691 = vmatprep.subr.bf16.mxu0 0
        %1692 = vmatpush1.bf16.msra.mxu0 0
        %1693 = vmatprep.subr.bf16.mxu0 0
        %1694 = vmatpush1.bf16.msra.mxu0 0
        %1695 = vmatprep.subr.bf16.mxu0 0
        %1696 = vmatpush1.bf16.msra.mxu0 0
        %1697 = vmatprep.subr.bf16.mxu0 0
        %1698 = vmatpush1.bf16.msra.mxu0 0
        %1699 = vmatprep.mubr.bf16.mxu0 0
        %1700 = vmatmul.mubr.bf16.gmra.mrb[0].mxu0 %v511
        %v1701 = vpop.f32.mrb[0].mxu0
        %v1702 = vadd.f32 %v1662, %v1701
        %v1703 = vpop.f32.mrb[0].mxu0
        %v1704 = vpop.f32.mrb[0].mxu0
        %v1705 = vpop.f32.mrb[0].mxu0
        %1706 = vdwg.mxu0
        %1707 = vmatprep.subr.bf16.mxu0 0
        %1708 = vmatpush1.bf16.msra.mxu0 %v376
        %1709 = vmatprep.subr.bf16.mxu0 0
        %1710 = vmatpush1.bf16.msra.mxu0 %v377
        %1711 = vmatprep.subr.bf16.mxu0 0
        %1712 = vmatpush1.bf16.msra.mxu0 0
        %1713 = vmatprep.subr.bf16.mxu0 0
        %1714 = vmatpush1.bf16.msra.mxu0 0
        %1715 = vmatprep.subr.bf16.mxu0 0
        %1716 = vmatpush1.bf16.msra.mxu0 0
        %1717 = vmatprep.subr.bf16.mxu0 0
        %1718 = vmatpush1.bf16.msra.mxu0 0
        %1719 = vmatprep.subr.bf16.mxu0 0
        %1720 = vmatpush1.bf16.msra.mxu0 0
        %1721 = vmatprep.subr.bf16.mxu0 0
        %1722 = vmatpush1.bf16.msra.mxu0 0
        %1723 = vmatprep.subr.bf16.mxu0 0
        %1724 = vmatpush1.bf16.msra.mxu0 0
        %1725 = vmatprep.subr.bf16.mxu0 0
        %1726 = vmatpush1.bf16.msra.mxu0 0
        %1727 = vmatprep.subr.bf16.mxu0 0
        %1728 = vmatpush1.bf16.msra.mxu0 0
        %1729 = vmatprep.subr.bf16.mxu0 0
        %1730 = vmatpush1.bf16.msra.mxu0 0
        %1731 = vmatprep.subr.bf16.mxu0 0
        %1732 = vmatpush1.bf16.msra.mxu0 0
        %1733 = vmatprep.subr.bf16.mxu0 0
        %1734 = vmatpush1.bf16.msra.mxu0 0
        %1735 = vmatprep.subr.bf16.mxu0 0
        %1736 = vmatpush1.bf16.msra.mxu0 0
        %1737 = vmatprep.subr.bf16.mxu0 0
        %1738 = vmatpush1.bf16.msra.mxu0 0
        %1739 = vmatprep.mubr.bf16.mxu0 0
        %1740 = vmatmul.mubr.bf16.gmra.mrb[0].mxu0 %v1053
        %v1741 = vpop.f32.mrb[0].mxu0
        %v1742 = vadd.f32 0.0, %v1741
        %v1743 = vpop.f32.mrb[0].mxu0
        %v1744 = vpop.f32.mrb[0].mxu0
        %v1745 = vpop.f32.mrb[0].mxu0
        %1746 = vdwg.mxu0
        %v1747 = vadd.f32 %v1702, %v1742
        %1748 = vmatprep.subr.bf16.mxu0 0
        %1749 = vmatpush1.bf16.msra.mxu0 %v442
        %1750 = vmatprep.subr.bf16.mxu0 0
        %1751 = vmatpush1.bf16.msra.mxu0 %v443
        %1752 = vmatprep.subr.bf16.mxu0 0
        %1753 = vmatpush1.bf16.msra.mxu0 0
        %1754 = vmatprep.subr.bf16.mxu0 0
        %1755 = vmatpush1.bf16.msra.mxu0 0
        %1756 = vmatprep.subr.bf16.mxu0 0
        %1757 = vmatpush1.bf16.msra.mxu0 0
        %1758 = vmatprep.subr.bf16.mxu0 0
        %1759 = vmatpush1.bf16.msra.mxu0 0
        %1760 = vmatprep.subr.bf16.mxu0 0
        %1761 = vmatpush1.bf16.msra.mxu0 0
        %1762 = vmatprep.subr.bf16.mxu0 0
        %1763 = vmatpush1.bf16.msra.mxu0 0
        %1764 = vmatprep.subr.bf16.mxu0 0
        %1765 = vmatpush1.bf16.msra.mxu0 0
        %1766 = vmatprep.subr.bf16.mxu0 0
        %1767 = vmatpush1.bf16.msra.mxu0 0
        %1768 = vmatprep.subr.bf16.mxu0 0
        %1769 = vmatpush1.bf16.msra.mxu0 0
        %1770 = vmatprep.subr.bf16.mxu0 0
        %1771 = vmatpush1.bf16.msra.mxu0 0
        %1772 = vmatprep.subr.bf16.mxu0 0
        %1773 = vmatpush1.bf16.msra.mxu0 0
        %1774 = vmatprep.subr.bf16.mxu0 0
        %1775 = vmatpush1.bf16.msra.mxu0 0
        %1776 = vmatprep.subr.bf16.mxu0 0
        %1777 = vmatpush1.bf16.msra.mxu0 0
        %1778 = vmatprep.subr.bf16.mxu0 0
        %1779 = vmatpush1.bf16.msra.mxu0 0
        %1780 = vmatprep.mubr.bf16.mxu0 0
        %1781 = vmatmul.mubr.bf16.gmra.mrb[0].mxu0 %v712
        %v1782 = vpop.f32.mrb[0].mxu0
        %v1783 = vadd.f32 0.0, %v1782
        %v1784 = vpop.f32.mrb[0].mxu0
        %v1785 = vpop.f32.mrb[0].mxu0
        %v1786 = vpop.f32.mrb[0].mxu0
        %1787 = vdwg.mxu0
        %v1788 = vadd.f32 %v1747, %v1783
        %1789 = vmatprep.subr.bf16.mxu0 0
        %1790 = vmatpush1.bf16.msra.mxu0 %v506
        %1791 = vmatprep.subr.bf16.mxu0 0
        %1792 = vmatpush1.bf16.msra.mxu0 %v507
        %1793 = vmatprep.subr.bf16.mxu0 0
        %1794 = vmatpush1.bf16.msra.mxu0 0
        %1795 = vmatprep.subr.bf16.mxu0 0
        %1796 = vmatpush1.bf16.msra.mxu0 0
        %1797 = vmatprep.subr.bf16.mxu0 0
        %1798 = vmatpush1.bf16.msra.mxu0 0
        %1799 = vmatprep.subr.bf16.mxu0 0
        %1800 = vmatpush1.bf16.msra.mxu0 0
        %1801 = vmatprep.subr.bf16.mxu0 0
        %1802 = vmatpush1.bf16.msra.mxu0 0
        %1803 = vmatprep.subr.bf16.mxu0 0
        %1804 = vmatpush1.bf16.msra.mxu0 0
        %1805 = vmatprep.subr.bf16.mxu0 0
        %1806 = vmatpush1.bf16.msra.mxu0 0
        %1807 = vmatprep.subr.bf16.mxu0 0
        %1808 = vmatpush1.bf16.msra.mxu0 0
        %1809 = vmatprep.subr.bf16.mxu0 0
        %1810 = vmatpush1.bf16.msra.mxu0 0
        %1811 = vmatprep.subr.bf16.mxu0 0
        %1812 = vmatpush1.bf16.msra.mxu0 0
        %1813 = vmatprep.subr.bf16.mxu0 0
        %1814 = vmatpush1.bf16.msra.mxu0 0
        %1815 = vmatprep.subr.bf16.mxu0 0
        %1816 = vmatpush1.bf16.msra.mxu0 0
        %1817 = vmatprep.subr.bf16.mxu0 0
        %1818 = vmatpush1.bf16.msra.mxu0 0
        %1819 = vmatprep.subr.bf16.mxu0 0
        %1820 = vmatpush1.bf16.msra.mxu0 0
        %1821 = vmatprep.mubr.bf16.mxu0 0
        %1822 = vmatmul.mubr.bf16.gmra.mrb[0].mxu0 %v783
        %v1823 = vpop.f32.mrb[0].mxu0
        %v1824 = vadd.f32 0.0, %v1823
        %v1825 = vpop.f32.mrb[0].mxu0
        %v1826 = vpop.f32.mrb[0].mxu0
        %v1827 = vpop.f32.mrb[0].mxu0
        %1828 = vdwg.mxu0
        %v1829 = vadd.f32 %v1788, %v1824
        %1830 = vmatprep.subr.bf16.mxu0 0
        %1831 = vmatpush1.bf16.msra.mxu0 %v577
        %1832 = vmatprep.subr.bf16.mxu0 0
        %1833 = vmatpush1.bf16.msra.mxu0 %v578
        %1834 = vmatprep.subr.bf16.mxu0 0
        %1835 = vmatpush1.bf16.msra.mxu0 0
        %1836 = vmatprep.subr.bf16.mxu0 0
        %1837 = vmatpush1.bf16.msra.mxu0 0
        %1838 = vmatprep.subr.bf16.mxu0 0
        %1839 = vmatpush1.bf16.msra.mxu0 0
        %1840 = vmatprep.subr.bf16.mxu0 0
        %1841 = vmatpush1.bf16.msra.mxu0 0
        %1842 = vmatprep.subr.bf16.mxu0 0
        %1843 = vmatpush1.bf16.msra.mxu0 0
        %1844 = vmatprep.subr.bf16.mxu0 0
        %1845 = vmatpush1.bf16.msra.mxu0 0
        %1846 = vmatprep.subr.bf16.mxu0 0
        %1847 = vmatpush1.bf16.msra.mxu0 0
        %1848 = vmatprep.subr.bf16.mxu0 0
        %1849 = vmatpush1.bf16.msra.mxu0 0
        %1850 = vmatprep.subr.bf16.mxu0 0
        %1851 = vmatpush1.bf16.msra.mxu0 0
        %1852 = vmatprep.subr.bf16.mxu0 0
        %1853 = vmatpush1.bf16.msra.mxu0 0
        %1854 = vmatprep.subr.bf16.mxu0 0
        %1855 = vmatpush1.bf16.msra.mxu0 0
        %1856 = vmatprep.subr.bf16.mxu0 0
        %1857 = vmatpush1.bf16.msra.mxu0 0
        %1858 = vmatprep.subr.bf16.mxu0 0
        %1859 = vmatpush1.bf16.msra.mxu0 0
        %1860 = vmatprep.subr.bf16.mxu0 0
        %1861 = vmatpush1.bf16.msra.mxu0 0
        %1862 = vmatprep.mubr.bf16.mxu0 0
        %1863 = vmatmul.mubr.bf16.gmra.mrb[0].mxu0 %v1189
        %v1864 = vpop.f32.mrb[0].mxu0
        %v1865 = vadd.f32 0.0, %v1864
        %v1866 = vpop.f32.mrb[0].mxu0
        %v1867 = vpop.f32.mrb[0].mxu0
        %v1868 = vpop.f32.mrb[0].mxu0
        %1869 = vdwg.mxu0
        %v1870 = vadd.f32 %v1829, %v1865
        %1871 = vmatprep.subr.bf16.mxu0 0
        %1872 = vmatpush1.bf16.msra.mxu0 %v643
        %1873 = vmatprep.subr.bf16.mxu0 0
        %1874 = vmatpush1.bf16.msra.mxu0 %v644
        %1875 = vmatprep.subr.bf16.mxu0 0
        %1876 = vmatpush1.bf16.msra.mxu0 0
        %1877 = vmatprep.subr.bf16.mxu0 0
        %1878 = vmatpush1.bf16.msra.mxu0 0
        %1879 = vmatprep.subr.bf16.mxu0 0
        %1880 = vmatpush1.bf16.msra.mxu0 0
        %1881 = vmatprep.subr.bf16.mxu0 0
        %1882 = vmatpush1.bf16.msra.mxu0 0
        %1883 = vmatprep.subr.bf16.mxu0 0
        %1884 = vmatpush1.bf16.msra.mxu0 0
        %1885 = vmatprep.subr.bf16.mxu0 0
        %1886 = vmatpush1.bf16.msra.mxu0 0
        %1887 = vmatprep.subr.bf16.mxu0 0
        %1888 = vmatpush1.bf16.msra.mxu0 0
        %1889 = vmatprep.subr.bf16.mxu0 0
        %1890 = vmatpush1.bf16.msra.mxu0 0
        %1891 = vmatprep.subr.bf16.mxu0 0
        %1892 = vmatpush1.bf16.msra.mxu0 0
        %1893 = vmatprep.subr.bf16.mxu0 0
        %1894 = vmatpush1.bf16.msra.mxu0 0
        %1895 = vmatprep.subr.bf16.mxu0 0
        %1896 = vmatpush1.bf16.msra.mxu0 0
        %1897 = vmatprep.subr.bf16.mxu0 0
        %1898 = vmatpush1.bf16.msra.mxu0 0
        %1899 = vmatprep.subr.bf16.mxu0 0
        %1900 = vmatpush1.bf16.msra.mxu0 0
        %1901 = vmatprep.subr.bf16.mxu0 0
        %1902 = vmatpush1.bf16.msra.mxu0 0
        %1903 = vmatprep.mubr.bf16.mxu0 0
        %1904 = vmatmul.mubr.bf16.gmra.mrb[0].mxu0 %v1530
        %v1905 = vpop.f32.mrb[0].mxu0
        %v1906 = vadd.f32 0.0, %v1905
        %v1907 = vpop.f32.mrb[0].mxu0
        %v1908 = vpop.f32.mrb[0].mxu0
        %v1909 = vpop.f32.mrb[0].mxu0
        %1910 = vdwg.mxu0
        %v1911 = vadd.f32 %v1870, %v1906
        %1912 = vmatprep.subr.bf16.mxu0 0
        %1913 = vmatpush1.bf16.msra.mxu0 %v707
        %1914 = vmatprep.subr.bf16.mxu0 0
        %1915 = vmatpush1.bf16.msra.mxu0 %v708
        %1916 = vmatprep.subr.bf16.mxu0 0
        %1917 = vmatpush1.bf16.msra.mxu0 0
        %1918 = vmatprep.subr.bf16.mxu0 0
        %1919 = vmatpush1.bf16.msra.mxu0 0
        %1920 = vmatprep.subr.bf16.mxu0 0
        %1921 = vmatpush1.bf16.msra.mxu0 0
        %1922 = vmatprep.subr.bf16.mxu0 0
        %1923 = vmatpush1.bf16.msra.mxu0 0
        %1924 = vmatprep.subr.bf16.mxu0 0
        %1925 = vmatpush1.bf16.msra.mxu0 0
        %1926 = vmatprep.subr.bf16.mxu0 0
        %1927 = vmatpush1.bf16.msra.mxu0 0
        %1928 = vmatprep.subr.bf16.mxu0 0
        %1929 = vmatpush1.bf16.msra.mxu0 0
        %1930 = vmatprep.subr.bf16.mxu0 0
        %1931 = vmatpush1.bf16.msra.mxu0 0
        %1932 = vmatprep.subr.bf16.mxu0 0
        %1933 = vmatpush1.bf16.msra.mxu0 0
        %1934 = vmatprep.subr.bf16.mxu0 0
        %1935 = vmatpush1.bf16.msra.mxu0 0
        %1936 = vmatprep.subr.bf16.mxu0 0
        %1937 = vmatpush1.bf16.msra.mxu0 0
        %1938 = vmatprep.subr.bf16.mxu0 0
        %1939 = vmatpush1.bf16.msra.mxu0 0
        %1940 = vmatprep.subr.bf16.mxu0 0
        %1941 = vmatpush1.bf16.msra.mxu0 0
        %1942 = vmatprep.subr.bf16.mxu0 0
        %1943 = vmatpush1.bf16.msra.mxu0 0
        %1944 = vmatprep.mubr.bf16.mxu0 0
        %1945 = vmatmul.mubr.bf16.gmra.mrb[0].mxu0 %v1584
        %v1946 = vpop.f32.mrb[0].mxu0
        %v1947 = vadd.f32 0.0, %v1946
        %v1948 = vpop.f32.mrb[0].mxu0
        %v1949 = vpop.f32.mrb[0].mxu0
        %v1950 = vpop.f32.mrb[0].mxu0
        %1951 = vdwg.mxu0
        %v1952 = vadd.f32 %v1911, %v1947
        %v1954 = vunpack.c.l.b16 %v1528
        %v1955 = vpack.c.b16 %v1954, %v1954
        %v1957 = vshrl.u32 %v1955, 16
        %v1959 = vshll.u32 %v1955, 16
        %v1961 = vrot.slane %v1959, 1
        %v1962 = vor.u32 %v1957, %v1961
        %v1964 = vsel %vm254, %v1962, 0
        %1966 = vmatprep.subr.bf16.mxu0 0
        %1967 = vmatpush1.bf16.msra.mxu0 %v778
        %1968 = vmatprep.subr.bf16.mxu0 0
        %1969 = vmatpush1.bf16.msra.mxu0 %v779
        %1970 = vmatprep.subr.bf16.mxu0 0
        %1971 = vmatpush1.bf16.msra.mxu0 0
        %1972 = vmatprep.subr.bf16.mxu0 0
        %1973 = vmatpush1.bf16.msra.mxu0 0
        %1974 = vmatprep.subr.bf16.mxu0 0
        %1975 = vmatpush1.bf16.msra.mxu0 0
        %1976 = vmatprep.subr.bf16.mxu0 0
        %1977 = vmatpush1.bf16.msra.mxu0 0
        %1978 = vmatprep.subr.bf16.mxu0 0
        %1979 = vmatpush1.bf16.msra.mxu0 0
        %1980 = vmatprep.subr.bf16.mxu0 0
        %1981 = vmatpush1.bf16.msra.mxu0 0
        %1982 = vmatprep.subr.bf16.mxu0 0
        %1983 = vmatpush1.bf16.msra.mxu0 0
        %1984 = vmatprep.subr.bf16.mxu0 0
        %1985 = vmatpush1.bf16.msra.mxu0 0
        %1986 = vmatprep.subr.bf16.mxu0 0
        %1987 = vmatpush1.bf16.msra.mxu0 0
        %1988 = vmatprep.subr.bf16.mxu0 0
        %1989 = vmatpush1.bf16.msra.mxu0 0
        %1990 = vmatprep.subr.bf16.mxu0 0
        %1991 = vmatpush1.bf16.msra.mxu0 0
        %1992 = vmatprep.subr.bf16.mxu0 0
        %1993 = vmatpush1.bf16.msra.mxu0 0
        %1994 = vmatprep.subr.bf16.mxu0 0
        %1995 = vmatpush1.bf16.msra.mxu0 0
        %1996 = vmatprep.subr.bf16.mxu0 0
        %1997 = vmatpush1.bf16.msra.mxu0 0
        %1998 = vmatprep.mubr.bf16.mxu0 0
        %1999 = vmatmul.mubr.bf16.gmra.mrb[0].mxu0 %v1964
        %v2000 = vpop.f32.mrb[0].mxu0
        %v2001 = vadd.f32 0.0, %v2000
        %v2002 = vpop.f32.mrb[0].mxu0
        %v2003 = vpop.f32.mrb[0].mxu0
        %v2004 = vpop.f32.mrb[0].mxu0
        %2005 = vdwg.mxu0
        %v2006 = vadd.f32 %v1952, %v2001
        %v2007 = vmax.f32 %v1626, %v2006
        %v2008 = vmax.f32 %v1232, %v2007
        %v2009 = vld [vmem:[%s3] sm:$0x1]
        %v2011 = vlaneseq
        %v2012 = vshrl.u32 %v2011, 7
        %v2013 = vsub.s32 0, %v2012
        %v2014 = vrot.slane %v2009, %v2013
        %v2016 = vadd.f32 %v2008, %v2014
        %v2017 = vmax.f32 %v2016, 0.0
        %v2018 = vpack.c.bf16 %v2017, %v2017
        %s2019 = smul.addr %s220, 4
        %s2020 = scalar_lea.vmem %s217, %s2019
        %vm2021 = vcmask 519168
        %vm2022 = vsmask.f32 3328
        %vm2023 = vmand %vm2021, %vm2022
        %v2024 = vld [vmem:[%s2020] sm:$0xf]
        %v2025 = vsel %vm2023, %v2018, %v2024
        %2026 = vst [vmem:[%s2020] sm:$0xf] %v2025
      $region41: #{cnn_forward.4} parent=35 // loop_footer
        %s224 = sadd.s32 1, %s220
      $region42: #{cnn_forward.4} parent=35 // loop_footer_branch
        %219 = sbr.rel target = $region38
      $region43: #{cnn_forward.4} parent=35 // loop_exit
        _
      %p2027 = scmp.lt.s32.totalorder %s15, 1
      %s2028 = scalar_select %p2027, %s15, 1
      %s2029 = smul.addr %s2028, 7
      %s2030 = smul.addr %s2029, 4
      %s2031 = scalar_lea.vmem %s4, %s2030
      // Predicated region
      $region44: #{cnn_forward.4} parent=35 // pred_check
        %p2032 = pneg %p127
      $region45: #{cnn_forward.4} parent=35 // pred_check_branch
        %2034 = sbr.rel (%p2032) target = $region47
      $region46: #{cnn_forward.4} parent=35 // pred_region
        _
      $region47: #{cnn_forward.4} parent=35 // pred_fallthru
        _
    $region36: #{cnn_forward.4} parent=5 // pred_fallthru
      _
    %p2035 = scmp.le.s32.totalorder 2, %s10
    // Predicated region
    $region48: #{cnn_forward.4} parent=5 // pred_check
      %p2036 = pneg %p2035
    $region49: #{cnn_forward.4} parent=5 // pred_check_branch
      %2038 = sbr.rel (%p2036) target = $region51
    $region50: #{cnn_forward.4} parent=5 // pred_region
      %s2039 = ssub.s32 %s10, 2
      // Predicated region
      $region52: #{cnn_forward.4} parent=50 // pred_check
        %p2040 = pneg %p133
      $region53: #{cnn_forward.4} parent=50 // pred_check_branch
        %2042 = sbr.rel (%p2040) target = $region55
      $region54: #{cnn_forward.4} parent=50 // pred_region
        %p2043 = scmp.lt.s32.totalorder %s16, 1
        %s2044 = scalar_select %p2043, %s16, 1
        %s2045 = smul.addr %s2044, 7
        %s2046 = smul.addr %s2045, 4
        %s2047 = scalar_lea.vmem %s4, %s2046
      $region55: #{cnn_forward.4} parent=50 // pred_fallthru
        _
    $region51: #{cnn_forward.4} parent=5 // pred_fallthru
      _
  $region6: #{cnn_forward.4} parent=0 // loop_footer
    %s14 = sadd.s32 1, %s10
  $region7: #{cnn_forward.4} parent=0 // loop_footer_branch
    %9 = sbr.rel target = $region3
  $region8: #{cnn_forward.4} parent=0 // loop_exit
    _

// kernel: cnn_forward.5
$region0: #{cnn_forward.5}
  #allocation0 [shape = 'u32[]', space=smem, size = 0x4, offset = 0x4, fixed_abs, tag = 'smem constant byte address 0x4 - core index']
  #allocation1 [shape = 'u32[144,128]{1,0:T(1,128)}', space=vmem, size = 0x12000, scoped, tag = 'internal scratch']
  %s0 = inlined_call_operand.vmem [shape: bf16[2,3136], index: 0, kind: input, shape index: {}]
  %s1 = inlined_call_operand.vmem [shape: bf16[3136,128], index: 1, kind: input, shape index: {}]
  %s2 = inlined_call_operand.vmem [shape: f32[1,128], index: 2, kind: input, shape index: {}]
  %s3 = inlined_call_operand.vmem [shape: bf16[128,128], index: 3, kind: input, shape index: {}]
  %s4 = inlined_call_operand.vmem [shape: f32[1,128], index: 4, kind: input, shape index: {}]
  %s5 = inlined_call_operand.hbm [shape: f32[2,128], index: 5, kind: output, shape index: {}]
  %s6 = sld [smem:[#allocation0]]
  $region30: #{cnn_forward.5} parent=0
    _
  %s8 = ssub.s32 1, %s6
  %s9 = scalar_select 0, %s8, %s6
  $region1: #{cnn_forward.5} parent=0
    #allocation2 [shape = 'u8[1024]{0}', space=vmem, size = 0x400, scoped, tag = 'output window, operand 0, single buffered']
    #allocation3 [shape = 's32[1]{0}', space=sflag, size = 0x4, scoped, tag = 'scoped memory for cnn_forward.5']
    %10 = vsyncpa [#allocation3], 0
    // Predicated region
    $region2: #{cnn_forward.5} parent=1 // pred_check
      _
    $region3: #{cnn_forward.5} parent=1 // pred_check_branch
      %12 = sbr.rel (0) target = $region5
    $region4: #{cnn_forward.5} parent=1 // pred_region
      _
    $region5: #{cnn_forward.5} parent=1 // pred_fallthru
      _
    // Predicated region
    $region6: #{cnn_forward.5} parent=1 // pred_check
      _
    $region7: #{cnn_forward.5} parent=1 // pred_check_branch
      %14 = sbr.rel (0) target = $region9
    $region8: #{cnn_forward.5} parent=1 // pred_region
      _
    $region9: #{cnn_forward.5} parent=1 // pred_fallthru
      _
    // Predicated region
    $region10: #{cnn_forward.5} parent=1 // pred_check
      _
    $region11: #{cnn_forward.5} parent=1 // pred_check_branch
      %16 = sbr.rel (0) target = $region13
    $region12: #{cnn_forward.5} parent=1 // pred_region
      _
    $region13: #{cnn_forward.5} parent=1 // pred_fallthru
      _
    // Predicated region
    $region14: #{cnn_forward.5} parent=1 // pred_check
      _
    $region15: #{cnn_forward.5} parent=1 // pred_check_branch
      %18 = sbr.rel (0) target = $region17
    $region16: #{cnn_forward.5} parent=1 // pred_region
      _
    $region17: #{cnn_forward.5} parent=1 // pred_fallthru
      _
    // Predicated region
    $region18: #{cnn_forward.5} parent=1 // pred_check
      _
    $region19: #{cnn_forward.5} parent=1 // pred_check_branch
      %20 = sbr.rel (0) target = $region21
    $region20: #{cnn_forward.5} parent=1 // pred_region
      _
    $region21: #{cnn_forward.5} parent=1 // pred_fallthru
      _
    %v22 = vld [vmem:[%s0] sm:$0xff]
    %v23 = vld [vmem:[%s0 + $0x8] sm:$0xff]
    %v24 = vld [vmem:[%s0 + $0x10] sm:$0xff]
    %v25 = vld [vmem:[%s0 + $0x18] sm:$0x1]
    %v26 = vld [vmem:[%s1] sm:$0xf]
    %v27 = vld [vmem:[%s1 + $0x4] sm:$0xf]
    %v28 = vld [vmem:[%s1 + $0x8] sm:$0xf]
    %v29 = vld [vmem:[%s1 + $0xc] sm:$0xf]
    %v30 = vld [vmem:[%s1 + $0x10] sm:$0xf]
    %v31 = vld [vmem:[%s1 + $0x14] sm:$0xf]
    %v32 = vld [vmem:[%s1 + $0x18] sm:$0xf]
    %v33 = vld [vmem:[%s1 + $0x1c] sm:$0xf]
    %v34 = vld [vmem:[%s1 + $0x20] sm:$0xf]
    %v35 = vld [vmem:[%s1 + $0x24] sm:$0xf]
    %v36 = vld [vmem:[%s1 + $0x28] sm:$0xf]
    %v37 = vld [vmem:[%s1 + $0x2c] sm:$0xf]
    %v38 = vld [vmem:[%s1 + $0x30] sm:$0xf]
    %v39 = vld [vmem:[%s1 + $0x34] sm:$0xf]
    %v40 = vld [vmem:[%s1 + $0x38] sm:$0xf]
    %v41 = vld [vmem:[%s1 + $0x3c] sm:$0xf]
    %v42 = vld [vmem:[%s1 + $0x40] sm:$0xf]
    %v43 = vld [vmem:[%s1 + $0x44] sm:$0xf]
    %v44 = vld [vmem:[%s1 + $0x48] sm:$0xf]
    %v45 = vld [vmem:[%s1 + $0x4c] sm:$0xf]
    %v46 = vld [vmem:[%s1 + $0x50] sm:$0xf]
    %v47 = vld [vmem:[%s1 + $0x54] sm:$0xf]
    %v48 = vld [vmem:[%s1 + $0x58] sm:$0xf]
    %v49 = vld [vmem:[%s1 + $0x5c] sm:$0xf]
    %v50 = vld [vmem:[%s1 + $0x60] sm:$0xf]
    %v51 = vld [vmem:[%s1 + $0x64] sm:$0xf]
    %v52 = vld [vmem:[%s1 + $0x68] sm:$0xf]
    %v53 = vld [vmem:[%s1 + $0x6c] sm:$0xf]
    %v54 = vld [vmem:[%s1 + $0x70] sm:$0xf]
    %v55 = vld [vmem:[%s1 + $0x74] sm:$0xf]
    %v56 = vld [vmem:[%s1 + $0x78] sm:$0xf]
    %v57 = vld [vmem:[%s1 + $0x7c] sm:$0xf]
    %v58 = vld [vmem:[%s1 + $0x80] sm:$0xf]
    %v59 = vld [vmem:[%s1 + $0x84] sm:$0xf]
    %v60 = vld [vmem:[%s1 + $0x88] sm:$0xf]
    %v61 = vld [vmem:[%s1 + $0x8c] sm:$0xf]
    %v62 = vld [vmem:[%s1 + $0x90] sm:$0xf]
    %v63 = vld [vmem:[%s1 + $0x94] sm:$0xf]
    %v64 = vld [vmem:[%s1 + $0x98] sm:$0xf]
    %v65 = vld [vmem:[%s1 + $0x9c] sm:$0xf]
    %v66 = vld [vmem:[%s1 + $0xa0] sm:$0xf]
    %v67 = vld [vmem:[%s1 + $0xa4] sm:$0xf]
    %v68 = vld [vmem:[%s1 + $0xa8] sm:$0xf]
    %v69 = vld [vmem:[%s1 + $0xac] sm:$0xf]
    %v70 = vld [vmem:[%s1 + $0xb0] sm:$0xf]
    %v71 = vld [vmem:[%s1 + $0xb4] sm:$0xf]
    %v72 = vld [vmem:[%s1 + $0xb8] sm:$0xf]
    %v73 = vld [vmem:[%s1 + $0xbc] sm:$0xf]
    %v74 = vld [vmem:[%s1 + $0xc0] sm:$0xf]
    %v75 = vld [vmem:[%s1 + $0xc4] sm:$0xf]
    %v76 = vld [vmem:[%s1 + $0xc8] sm:$0xf]
    %v77 = vld [vmem:[%s1 + $0xcc] sm:$0xf]
    %v78 = vld [vmem:[%s1 + $0xd0] sm:$0xf]
    %v79 = vld [vmem:[%s1 + $0xd4] sm:$0xf]
    %v80 = vld [vmem:[%s1 + $0xd8] sm:$0xf]
    %v81 = vld [vmem:[%s1 + $0xdc] sm:$0xf]
    %v82 = vld [vmem:[%s1 + $0xe0] sm:$0xf]
    %v83 = vld [vmem:[%s1 + $0xe4] sm:$0xf]
    %v84 = vld [vmem:[%s1 + $0xe8] sm:$0xf]
    %v85 = vld [vmem:[%s1 + $0xec] sm:$0xf]
    %v86 = vld [vmem:[%s1 + $0xf0] sm:$0xf]
    %v87 = vld [vmem:[%s1 + $0xf4] sm:$0xf]
    %v88 = vld [vmem:[%s1 + $0xf8] sm:$0xf]
    %v89 = vld [vmem:[%s1 + $0xfc] sm:$0xf]
    %v90 = vld [vmem:[%s1 + $0x100] sm:$0xf]
    %v91 = vld [vmem:[%s1 + $0x104] sm:$0xf]
    %v92 = vld [vmem:[%s1 + $0x108] sm:$0xf]
    %v93 = vld [vmem:[%s1 + $0x10c] sm:$0xf]
    %v94 = vld [vmem:[%s1 + $0x110] sm:$0xf]
    %v95 = vld [vmem:[%s1 + $0x114] sm:$0xf]
    %v96 = vld [vmem:[%s1 + $0x118] sm:$0xf]
    %v97 = vld [vmem:[%s1 + $0x11c] sm:$0xf]
    %v98 = vld [vmem:[%s1 + $0x120] sm:$0xf]
    %v99 = vld [vmem:[%s1 + $0x124] sm:$0xf]
    %v100 = vld [vmem:[%s1 + $0x128] sm:$0xf]
    %v101 = vld [vmem:[%s1 + $0x12c] sm:$0xf]
    %v102 = vld [vmem:[%s1 + $0x130] sm:$0xf]
    %v103 = vld [vmem:[%s1 + $0x134] sm:$0xf]
    %v104 = vld [vmem:[%s1 + $0x138] sm:$0xf]
    %v105 = vld [vmem:[%s1 + $0x13c] sm:$0xf]
    %v106 = vld [vmem:[%s1 + $0x140] sm:$0xf]
    %v107 = vld [vmem:[%s1 + $0x144] sm:$0xf]
    %v108 = vld [vmem:[%s1 + $0x148] sm:$0xf]
    %v109 = vld [vmem:[%s1 + $0x14c] sm:$0xf]
    %v110 = vld [vmem:[%s1 + $0x150] sm:$0xf]
    %v111 = vld [vmem:[%s1 + $0x154] sm:$0xf]
    %v112 = vld [vmem:[%s1 + $0x158] sm:$0xf]
    %v113 = vld [vmem:[%s1 + $0x15c] sm:$0xf]
    %v114 = vld [vmem:[%s1 + $0x160] sm:$0xf]
    %v115 = vld [vmem:[%s1 + $0x164] sm:$0xf]
    %v116 = vld [vmem:[%s1 + $0x168] sm:$0xf]
    %v117 = vld [vmem:[%s1 + $0x16c] sm:$0xf]
    %v118 = vld [vmem:[%s1 + $0x170] sm:$0xf]
    %v119 = vld [vmem:[%s1 + $0x174] sm:$0xf]
    %v120 = vld [vmem:[%s1 + $0x178] sm:$0xf]
    %v121 = vld [vmem:[%s1 + $0x17c] sm:$0xf]
    %v122 = vld [vmem:[%s1 + $0x180] sm:$0xf]
    %v123 = vld [vmem:[%s1 + $0x184] sm:$0xf]
    %v124 = vld [vmem:[%s1 + $0x188] sm:$0xf]
    %v125 = vld [vmem:[%s1 + $0x18c] sm:$0xf]
    %v126 = vld [vmem:[%s1 + $0x190] sm:$0xf]
    %v127 = vld [vmem:[%s1 + $0x194] sm:$0xf]
    %v128 = vld [vmem:[%s1 + $0x198] sm:$0xf]
    %v129 = vld [vmem:[%s1 + $0x19c] sm:$0xf]
    %v130 = vld [vmem:[%s1 + $0x1a0] sm:$0xf]
    %v131 = vld [vmem:[%s1 + $0x1a4] sm:$0xf]
    %v132 = vld [vmem:[%s1 + $0x1a8] sm:$0xf]
    %v133 = vld [vmem:[%s1 + $0x1ac] sm:$0xf]
    %v134 = vld [vmem:[%s1 + $0x1b0] sm:$0xf]
    %v135 = vld [vmem:[%s1 + $0x1b4] sm:$0xf]
    %v136 = vld [vmem:[%s1 + $0x1b8] sm:$0xf]
    %v137 = vld [vmem:[%s1 + $0x1bc] sm:$0xf]
    %v138 = vld [vmem:[%s1 + $0x1c0] sm:$0xf]
    %v139 = vld [vmem:[%s1 + $0x1c4] sm:$0xf]
    %v140 = vld [vmem:[%s1 + $0x1c8] sm:$0xf]
    %v141 = vld [vmem:[%s1 + $0x1cc] sm:$0xf]
    %v142 = vld [vmem:[%s1 + $0x1d0] sm:$0xf]
    %v143 = vld [vmem:[%s1 + $0x1d4] sm:$0xf]
    %v144 = vld [vmem:[%s1 + $0x1d8] sm:$0xf]
    %v145 = vld [vmem:[%s1 + $0x1dc] sm:$0xf]
    %v146 = vld [vmem:[%s1 + $0x1e0] sm:$0xf]
    %v147 = vld [vmem:[%s1 + $0x1e4] sm:$0xf]
    %v148 = vld [vmem:[%s1 + $0x1e8] sm:$0xf]
    %v149 = vld [vmem:[%s1 + $0x1ec] sm:$0xf]
    %v150 = vld [vmem:[%s1 + $0x1f0] sm:$0xf]
    %v151 = vld [vmem:[%s1 + $0x1f4] sm:$0xf]
    %v152 = vld [vmem:[%s1 + $0x1f8] sm:$0xf]
    %v153 = vld [vmem:[%s1 + $0x1fc] sm:$0xf]
    %v154 = vld [vmem:[%s1 + $0x200] sm:$0xf]
    %v155 = vld [vmem:[%s1 + $0x204] sm:$0xf]
    %v156 = vld [vmem:[%s1 + $0x208] sm:$0xf]
    %v157 = vld [vmem:[%s1 + $0x20c] sm:$0xf]
    %v158 = vld [vmem:[%s1 + $0x210] sm:$0xf]
    %v159 = vld [vmem:[%s1 + $0x214] sm:$0xf]
    %v160 = vld [vmem:[%s1 + $0x218] sm:$0xf]
    %v161 = vld [vmem:[%s1 + $0x21c] sm:$0xf]
    %v162 = vld [vmem:[%s1 + $0x220] sm:$0xf]
    %v163 = vld [vmem:[%s1 + $0x224] sm:$0xf]
    %v164 = vld [vmem:[%s1 + $0x228] sm:$0xf]
    %v165 = vld [vmem:[%s1 + $0x22c] sm:$0xf]
    %v166 = vld [vmem:[%s1 + $0x230] sm:$0xf]
    %v167 = vld [vmem:[%s1 + $0x234] sm:$0xf]
    %v168 = vld [vmem:[%s1 + $0x238] sm:$0xf]
    %v169 = vld [vmem:[%s1 + $0x23c] sm:$0xf]
    %v170 = vld [vmem:[%s1 + $0x240] sm:$0xf]
    %v171 = vld [vmem:[%s1 + $0x244] sm:$0xf]
    %v172 = vld [vmem:[%s1 + $0x248] sm:$0xf]
    %v173 = vld [vmem:[%s1 + $0x24c] sm:$0xf]
    %v174 = vld [vmem:[%s1 + $0x250] sm:$0xf]
    %v175 = vld [vmem:[%s1 + $0x254] sm:$0xf]
    %v176 = vld [vmem:[%s1 + $0x258] sm:$0xf]
    %v177 = vld [vmem:[%s1 + $0x25c] sm:$0xf]
    %v178 = vld [vmem:[%s1 + $0x260] sm:$0xf]
    %v179 = vld [vmem:[%s1 + $0x264] sm:$0xf]
    %v180 = vld [vmem:[%s1 + $0x268] sm:$0xf]
    %v181 = vld [vmem:[%s1 + $0x26c] sm:$0xf]
    %v182 = vld [vmem:[%s1 + $0x270] sm:$0xf]
    %v183 = vld [vmem:[%s1 + $0x274] sm:$0xf]
    %v184 = vld [vmem:[%s1 + $0x278] sm:$0xf]
    %v185 = vld [vmem:[%s1 + $0x27c] sm:$0xf]
    %v186 = vld [vmem:[%s1 + $0x280] sm:$0xf]
    %v187 = vld [vmem:[%s1 + $0x284] sm:$0xf]
    %v188 = vld [vmem:[%s1 + $0x288] sm:$0xf]
    %v189 = vld [vmem:[%s1 + $0x28c] sm:$0xf]
    %v190 = vld [vmem:[%s1 + $0x290] sm:$0xf]
    %v191 = vld [vmem:[%s1 + $0x294] sm:$0xf]
    %v192 = vld [vmem:[%s1 + $0x298] sm:$0xf]
    %v193 = vld [vmem:[%s1 + $0x29c] sm:$0xf]
    %v194 = vld [vmem:[%s1 + $0x2a0] sm:$0xf]
    %v195 = vld [vmem:[%s1 + $0x2a4] sm:$0xf]
    %v196 = vld [vmem:[%s1 + $0x2a8] sm:$0xf]
    %v197 = vld [vmem:[%s1 + $0x2ac] sm:$0xf]
    %v198 = vld [vmem:[%s1 + $0x2b0] sm:$0xf]
    %v199 = vld [vmem:[%s1 + $0x2b4] sm:$0xf]
    %v200 = vld [vmem:[%s1 + $0x2b8] sm:$0xf]
    %v201 = vld [vmem:[%s1 + $0x2bc] sm:$0xf]
    %v202 = vld [vmem:[%s1 + $0x2c0] sm:$0xf]
    %v203 = vld [vmem:[%s1 + $0x2c4] sm:$0xf]
    %v204 = vld [vmem:[%s1 + $0x2c8] sm:$0xf]
    %v205 = vld [vmem:[%s1 + $0x2cc] sm:$0xf]
    %v206 = vld [vmem:[%s1 + $0x2d0] sm:$0xf]
    %v207 = vld [vmem:[%s1 + $0x2d4] sm:$0xf]
    %v208 = vld [vmem:[%s1 + $0x2d8] sm:$0xf]
    %v209 = vld [vmem:[%s1 + $0x2dc] sm:$0xf]
    %v210 = vld [vmem:[%s1 + $0x2e0] sm:$0xf]
    %v211 = vld [vmem:[%s1 + $0x2e4] sm:$0xf]
    %v212 = vld [vmem:[%s1 + $0x2e8] sm:$0xf]
    %v213 = vld [vmem:[%s1 + $0x2ec] sm:$0xf]
    %v214 = vld [vmem:[%s1 + $0x2f0] sm:$0xf]
    %v215 = vld [vmem:[%s1 + $0x2f4] sm:$0xf]
    %v216 = vld [vmem:[%s1 + $0x2f8] sm:$0xf]
    %v217 = vld [vmem:[%s1 + $0x2fc] sm:$0xf]
    %v218 = vld [vmem:[%s1 + $0x300] sm:$0xf]
    %v219 = vld [vmem:[%s1 + $0x304] sm:$0xf]
    %v220 = vld [vmem:[%s1 + $0x308] sm:$0xf]
    %v221 = vld [vmem:[%s1 + $0x30c] sm:$0xf]
    %v222 = vld [vmem:[%s1 + $0x310] sm:$0xf]
    %v223 = vld [vmem:[%s1 + $0x314] sm:$0xf]
    %v224 = vld [vmem:[%s1 + $0x318] sm:$0xf]
    %v225 = vld [vmem:[%s1 + $0x31c] sm:$0xf]
    %v226 = vld [vmem:[%s1 + $0x320] sm:$0xf]
    %v227 = vld [vmem:[%s1 + $0x324] sm:$0xf]
    %v228 = vld [vmem:[%s1 + $0x328] sm:$0xf]
    %v229 = vld [vmem:[%s1 + $0x32c] sm:$0xf]
    %v230 = vld [vmem:[%s1 + $0x330] sm:$0xf]
    %v231 = vld [vmem:[%s1 + $0x334] sm:$0xf]
    %v232 = vld [vmem:[%s1 + $0x338] sm:$0xf]
    %v233 = vld [vmem:[%s1 + $0x33c] sm:$0xf]
    %v234 = vld [vmem:[%s1 + $0x340] sm:$0xf]
    %v235 = vld [vmem:[%s1 + $0x344] sm:$0xf]
    %v236 = vld [vmem:[%s1 + $0x348] sm:$0xf]
    %v237 = vld [vmem:[%s1 + $0x34c] sm:$0xf]
    %v238 = vld [vmem:[%s1 + $0x350] sm:$0xf]
    %v239 = vld [vmem:[%s1 + $0x354] sm:$0xf]
    %v240 = vld [vmem:[%s1 + $0x358] sm:$0xf]
    %v241 = vld [vmem:[%s1 + $0x35c] sm:$0xf]
    %v242 = vld [vmem:[%s1 + $0x360] sm:$0xf]
    %v243 = vld [vmem:[%s1 + $0x364] sm:$0xf]
    %v244 = vld [vmem:[%s1 + $0x368] sm:$0xf]
    %v245 = vld [vmem:[%s1 + $0x36c] sm:$0xf]
    %v246 = vld [vmem:[%s1 + $0x370] sm:$0xf]
    %v247 = vld [vmem:[%s1 + $0x374] sm:$0xf]
    %v248 = vld [vmem:[%s1 + $0x378] sm:$0xf]
    %v249 = vld [vmem:[%s1 + $0x37c] sm:$0xf]
    %v250 = vld [vmem:[%s1 + $0x380] sm:$0xf]
    %v251 = vld [vmem:[%s1 + $0x384] sm:$0xf]
    %v252 = vld [vmem:[%s1 + $0x388] sm:$0xf]
    %v253 = vld [vmem:[%s1 + $0x38c] sm:$0xf]
    %v254 = vld [vmem:[%s1 + $0x390] sm:$0xf]
    %v255 = vld [vmem:[%s1 + $0x394] sm:$0xf]
    %v256 = vld [vmem:[%s1 + $0x398] sm:$0xf]
    %v257 = vld [vmem:[%s1 + $0x39c] sm:$0xf]
    %v258 = vld [vmem:[%s1 + $0x3a0] sm:$0xf]
    %v259 = vld [vmem:[%s1 + $0x3a4] sm:$0xf]
    %v260 = vld [vmem:[%s1 + $0x3a8] sm:$0xf]
    %v261 = vld [vmem:[%s1 + $0x3ac] sm:$0xf]
    %v262 = vld [vmem:[%s1 + $0x3b0] sm:$0xf]
    %v263 = vld [vmem:[%s1 + $0x3b4] sm:$0xf]
    %v264 = vld [vmem:[%s1 + $0x3b8] sm:$0xf]
    %v265 = vld [vmem:[%s1 + $0x3bc] sm:$0xf]
    %v266 = vld [vmem:[%s1 + $0x3c0] sm:$0xf]
    %v267 = vld [vmem:[%s1 + $0x3c4] sm:$0xf]
    %v268 = vld [vmem:[%s1 + $0x3c8] sm:$0xf]
    %v269 = vld [vmem:[%s1 + $0x3cc] sm:$0xf]
    %v270 = vld [vmem:[%s1 + $0x3d0] sm:$0xf]
    %v271 = vld [vmem:[%s1 + $0x3d4] sm:$0xf]
    %v272 = vld [vmem:[%s1 + $0x3d8] sm:$0xf]
    %v273 = vld [vmem:[%s1 + $0x3dc] sm:$0xf]
    %v274 = vld [vmem:[%s1 + $0x3e0] sm:$0xf]
    %v275 = vld [vmem:[%s1 + $0x3e4] sm:$0xf]
    %v276 = vld [vmem:[%s1 + $0x3e8] sm:$0xf]
    %v277 = vld [vmem:[%s1 + $0x3ec] sm:$0xf]
    %v278 = vld [vmem:[%s1 + $0x3f0] sm:$0xf]
    %v279 = vld [vmem:[%s1 + $0x3f4] sm:$0xf]
    %v280 = vld [vmem:[%s1 + $0x3f8] sm:$0xf]
    %v281 = vld [vmem:[%s1 + $0x3fc] sm:$0xf]
    %v282 = vld [vmem:[%s1 + $0x400] sm:$0xf]
    %v283 = vld [vmem:[%s1 + $0x404] sm:$0xf]
    %v284 = vld [vmem:[%s1 + $0x408] sm:$0xf]
    %v285 = vld [vmem:[%s1 + $0x40c] sm:$0xf]
    %v286 = vld [vmem:[%s1 + $0x410] sm:$0xf]
    %v287 = vld [vmem:[%s1 + $0x414] sm:$0xf]
    %v288 = vld [vmem:[%s1 + $0x418] sm:$0xf]
    %v289 = vld [vmem:[%s1 + $0x41c] sm:$0xf]
    %v290 = vld [vmem:[%s1 + $0x420] sm:$0xf]
    %v291 = vld [vmem:[%s1 + $0x424] sm:$0xf]
    %v292 = vld [vmem:[%s1 + $0x428] sm:$0xf]
    %v293 = vld [vmem:[%s1 + $0x42c] sm:$0xf]
    %v294 = vld [vmem:[%s1 + $0x430] sm:$0xf]
    %v295 = vld [vmem:[%s1 + $0x434] sm:$0xf]
    %v296 = vld [vmem:[%s1 + $0x438] sm:$0xf]
    %v297 = vld [vmem:[%s1 + $0x43c] sm:$0xf]
    %v298 = vld [vmem:[%s1 + $0x440] sm:$0xf]
    %v299 = vld [vmem:[%s1 + $0x444] sm:$0xf]
    %v300 = vld [vmem:[%s1 + $0x448] sm:$0xf]
    %v301 = vld [vmem:[%s1 + $0x44c] sm:$0xf]
    %v302 = vld [vmem:[%s1 + $0x450] sm:$0xf]
    %v303 = vld [vmem:[%s1 + $0x454] sm:$0xf]
    %v304 = vld [vmem:[%s1 + $0x458] sm:$0xf]
    %v305 = vld [vmem:[%s1 + $0x45c] sm:$0xf]
    %v306 = vld [vmem:[%s1 + $0x460] sm:$0xf]
    %v307 = vld [vmem:[%s1 + $0x464] sm:$0xf]
    %v308 = vld [vmem:[%s1 + $0x468] sm:$0xf]
    %v309 = vld [vmem:[%s1 + $0x46c] sm:$0xf]
    %v310 = vld [vmem:[%s1 + $0x470] sm:$0xf]
    %v311 = vld [vmem:[%s1 + $0x474] sm:$0xf]
    %v312 = vld [vmem:[%s1 + $0x478] sm:$0xf]
    %v313 = vld [vmem:[%s1 + $0x47c] sm:$0xf]
    %v314 = vld [vmem:[%s1 + $0x480] sm:$0xf]
    %v315 = vld [vmem:[%s1 + $0x484] sm:$0xf]
    %v316 = vld [vmem:[%s1 + $0x488] sm:$0xf]
    %v317 = vld [vmem:[%s1 + $0x48c] sm:$0xf]
    %v318 = vld [vmem:[%s1 + $0x490] sm:$0xf]
    %v319 = vld [vmem:[%s1 + $0x494] sm:$0xf]
    %v320 = vld [vmem:[%s1 + $0x498] sm:$0xf]
    %v321 = vld [vmem:[%s1 + $0x49c] sm:$0xf]
    %v322 = vld [vmem:[%s1 + $0x4a0] sm:$0xf]
    %v323 = vld [vmem:[%s1 + $0x4a4] sm:$0xf]
    %v324 = vld [vmem:[%s1 + $0x4a8] sm:$0xf]
    %v325 = vld [vmem:[%s1 + $0x4ac] sm:$0xf]
    %v326 = vld [vmem:[%s1 + $0x4b0] sm:$0xf]
    %v327 = vld [vmem:[%s1 + $0x4b4] sm:$0xf]
    %v328 = vld [vmem:[%s1 + $0x4b8] sm:$0xf]
    %v329 = vld [vmem:[%s1 + $0x4bc] sm:$0xf]
    %v330 = vld [vmem:[%s1 + $0x4c0] sm:$0xf]
    %v331 = vld [vmem:[%s1 + $0x4c4] sm:$0xf]
    %v332 = vld [vmem:[%s1 + $0x4c8] sm:$0xf]
    %v333 = vld [vmem:[%s1 + $0x4cc] sm:$0xf]
    %v334 = vld [vmem:[%s1 + $0x4d0] sm:$0xf]
    %v335 = vld [vmem:[%s1 + $0x4d4] sm:$0xf]
    %v336 = vld [vmem:[%s1 + $0x4d8] sm:$0xf]
    %v337 = vld [vmem:[%s1 + $0x4dc] sm:$0xf]
    %v338 = vld [vmem:[%s1 + $0x4e0] sm:$0xf]
    %v339 = vld [vmem:[%s1 + $0x4e4] sm:$0xf]
    %v340 = vld [vmem:[%s1 + $0x4e8] sm:$0xf]
    %v341 = vld [vmem:[%s1 + $0x4ec] sm:$0xf]
    %v342 = vld [vmem:[%s1 + $0x4f0] sm:$0xf]
    %v343 = vld [vmem:[%s1 + $0x4f4] sm:$0xf]
    %v344 = vld [vmem:[%s1 + $0x4f8] sm:$0xf]
    %v345 = vld [vmem:[%s1 + $0x4fc] sm:$0xf]
    %v346 = vld [vmem:[%s1 + $0x500] sm:$0xf]
    %v347 = vld [vmem:[%s1 + $0x504] sm:$0xf]
    %v348 = vld [vmem:[%s1 + $0x508] sm:$0xf]
    %v349 = vld [vmem:[%s1 + $0x50c] sm:$0xf]
    %v350 = vld [vmem:[%s1 + $0x510] sm:$0xf]
    %v351 = vld [vmem:[%s1 + $0x514] sm:$0xf]
    %v352 = vld [vmem:[%s1 + $0x518] sm:$0xf]
    %v353 = vld [vmem:[%s1 + $0x51c] sm:$0xf]
    %v354 = vld [vmem:[%s1 + $0x520] sm:$0xf]
    %v355 = vld [vmem:[%s1 + $0x524] sm:$0xf]
    %v356 = vld [vmem:[%s1 + $0x528] sm:$0xf]
    %v357 = vld [vmem:[%s1 + $0x52c] sm:$0xf]
    %v358 = vld [vmem:[%s1 + $0x530] sm:$0xf]
    %v359 = vld [vmem:[%s1 + $0x534] sm:$0xf]
    %v360 = vld [vmem:[%s1 + $0x538] sm:$0xf]
    %v361 = vld [vmem:[%s1 + $0x53c] sm:$0xf]
    %v362 = vld [vmem:[%s1 + $0x540] sm:$0xf]
    %v363 = vld [vmem:[%s1 + $0x544] sm:$0xf]
    %v364 = vld [vmem:[%s1 + $0x548] sm:$0xf]
    %v365 = vld [vmem:[%s1 + $0x54c] sm:$0xf]
    %v366 = vld [vmem:[%s1 + $0x550] sm:$0xf]
    %v367 = vld [vmem:[%s1 + $0x554] sm:$0xf]
    %v368 = vld [vmem:[%s1 + $0x558] sm:$0xf]
    %v369 = vld [vmem:[%s1 + $0x55c] sm:$0xf]
    %v370 = vld [vmem:[%s1 + $0x560] sm:$0xf]
    %v371 = vld [vmem:[%s1 + $0x564] sm:$0xf]
    %v372 = vld [vmem:[%s1 + $0x568] sm:$0xf]
    %v373 = vld [vmem:[%s1 + $0x56c] sm:$0xf]
    %v374 = vld [vmem:[%s1 + $0x570] sm:$0xf]
    %v375 = vld [vmem:[%s1 + $0x574] sm:$0xf]
    %v376 = vld [vmem:[%s1 + $0x578] sm:$0xf]
    %v377 = vld [vmem:[%s1 + $0x57c] sm:$0xf]
    %v378 = vld [vmem:[%s1 + $0x580] sm:$0xf]
    %v379 = vld [vmem:[%s1 + $0x584] sm:$0xf]
    %v380 = vld [vmem:[%s1 + $0x588] sm:$0xf]
    %v381 = vld [vmem:[%s1 + $0x58c] sm:$0xf]
    %v382 = vld [vmem:[%s1 + $0x590] sm:$0xf]
    %v383 = vld [vmem:[%s1 + $0x594] sm:$0xf]
    %v384 = vld [vmem:[%s1 + $0x598] sm:$0xf]
    %v385 = vld [vmem:[%s1 + $0x59c] sm:$0xf]
    %v386 = vld [vmem:[%s1 + $0x5a0] sm:$0xf]
    %v387 = vld [vmem:[%s1 + $0x5a4] sm:$0xf]
    %v388 = vld [vmem:[%s1 + $0x5a8] sm:$0xf]
    %v389 = vld [vmem:[%s1 + $0x5ac] sm:$0xf]
    %v390 = vld [vmem:[%s1 + $0x5b0] sm:$0xf]
    %v391 = vld [vmem:[%s1 + $0x5b4] sm:$0xf]
    %v392 = vld [vmem:[%s1 + $0x5b8] sm:$0xf]
    %v393 = vld [vmem:[%s1 + $0x5bc] sm:$0xf]
    %v394 = vld [vmem:[%s1 + $0x5c0] sm:$0xf]
    %v395 = vld [vmem:[%s1 + $0x5c4] sm:$0xf]
    %v396 = vld [vmem:[%s1 + $0x5c8] sm:$0xf]
    %v397 = vld [vmem:[%s1 + $0x5cc] sm:$0xf]
    %v398 = vld [vmem:[%s1 + $0x5d0] sm:$0xf]
    %v399 = vld [vmem:[%s1 + $0x5d4] sm:$0xf]
    %v400 = vld [vmem:[%s1 + $0x5d8] sm:$0xf]
    %v401 = vld [vmem:[%s1 + $0x5dc] sm:$0xf]
    %v402 = vld [vmem:[%s1 + $0x5e0] sm:$0xf]
    %v403 = vld [vmem:[%s1 + $0x5e4] sm:$0xf]
    %v404 = vld [vmem:[%s1 + $0x5e8] sm:$0xf]
    %v405 = vld [vmem:[%s1 + $0x5ec] sm:$0xf]
    %v406 = vld [vmem:[%s1 + $0x5f0] sm:$0xf]
    %v407 = vld [vmem:[%s1 + $0x5f4] sm:$0xf]
    %v408 = vld [vmem:[%s1 + $0x5f8] sm:$0xf]
    %v409 = vld [vmem:[%s1 + $0x5fc] sm:$0xf]
    %v410 = vld [vmem:[%s1 + $0x600] sm:$0xf]
    %v411 = vld [vmem:[%s1 + $0x604] sm:$0xf]
    %v412 = vld [vmem:[%s1 + $0x608] sm:$0xf]
    %v413 = vld [vmem:[%s1 + $0x60c] sm:$0xf]
    %v414 = vld [vmem:[%s1 + $0x610] sm:$0xf]
    %v415 = vld [vmem:[%s1 + $0x614] sm:$0xf]
    %v416 = vld [vmem:[%s1 + $0x618] sm:$0xf]
    %v417 = vld [vmem:[%s1 + $0x61c] sm:$0xf]
    %v418 = vld [vmem:[%s2] sm:$0x1]
    %v420 = vlaneseq
    %v421 = vshrl.u32 %v420, 7
    %v422 = vsub.s32 0, %v421
    %v423 = vrot.slane %v418, %v422
    %v429 = vcombine.high %v22, %v22
    %v431 = vunpack.c.l.s4 1966171168
    %v432 = vunpack.c.0.s8 %v431
    %v433 = vlaneseq
    %v434 = vshrl.u32 %v433, 7
    %v435 = vsub.s32 %v432, %v434
    %v436 = vrot.slane %v22, %v435
    %v438 = vunpack.c.l.s4 1966171168
    %v439 = vunpack.c.0.s8 %v438
    %v440 = vlaneseq
    %v441 = vshrl.u32 %v440, 7
    %v442 = vsub.s32 %v439, %v441
    %v443 = vrot.slane %v429, %v442
    %v444 = vcombine.high %v436, %v436
    %v445 = vcombine.high %v443, %v443
    %v447 = vunpack.c.l.s4 1966171168
    %v448 = vunpack.c.0.s8 %v447
    %v449 = vlaneseq
    %v450 = vshrl.u32 %v449, 7
    %v451 = vsub.s32 %v448, %v450
    %v452 = vrot.slane %v436, %v451
    %v454 = vunpack.c.l.s4 1966171168
    %v455 = vunpack.c.0.s8 %v454
    %v456 = vlaneseq
    %v457 = vshrl.u32 %v456, 7
    %v458 = vsub.s32 %v455, %v457
    %v459 = vrot.slane %v443, %v458
    %v461 = vunpack.c.l.s4 1966171168
    %v462 = vunpack.c.0.s8 %v461
    %v463 = vlaneseq
    %v464 = vshrl.u32 %v463, 7
    %v465 = vsub.s32 %v462, %v464
    %v466 = vrot.slane %v444, %v465
    %v468 = vunpack.c.l.s4 1966171168
    %v469 = vunpack.c.0.s8 %v468
    %v470 = vlaneseq
    %v471 = vshrl.u32 %v470, 7
    %v472 = vsub.s32 %v469, %v471
    %v473 = vrot.slane %v445, %v472
    %v474 = vcombine.high %v452, %v452
    %v475 = vcombine.high %v459, %v459
    %v476 = vcombine.high %v466, %v466
    %v477 = vcombine.high %v473, %v473
    %v478 = vcombine.high %v23, %v23
    %v480 = vunpack.c.l.s4 1966171168
    %v481 = vunpack.c.0.s8 %v480
    %v482 = vlaneseq
    %v483 = vshrl.u32 %v482, 7
    %v484 = vsub.s32 %v481, %v483
    %v485 = vrot.slane %v23, %v484
    %v487 = vunpack.c.l.s4 1966171168
    %v488 = vunpack.c.0.s8 %v487
    %v489 = vlaneseq
    %v490 = vshrl.u32 %v489, 7
    %v491 = vsub.s32 %v488, %v490
    %v492 = vrot.slane %v478, %v491
    %v493 = vcombine.high %v485, %v485
    %v494 = vcombine.high %v492, %v492
    %v496 = vunpack.c.l.s4 1966171168
    %v497 = vunpack.c.0.s8 %v496
    %v498 = vlaneseq
    %v499 = vshrl.u32 %v498, 7
    %v500 = vsub.s32 %v497, %v499
    %v501 = vrot.slane %v485, %v500
    %v503 = vunpack.c.l.s4 1966171168
    %v504 = vunpack.c.0.s8 %v503
    %v505 = vlaneseq
    %v506 = vshrl.u32 %v505, 7
    %v507 = vsub.s32 %v504, %v506
    %v508 = vrot.slane %v492, %v507
    %v510 = vunpack.c.l.s4 1966171168
    %v511 = vunpack.c.0.s8 %v510
    %v512 = vlaneseq
    %v513 = vshrl.u32 %v512, 7
    %v514 = vsub.s32 %v511, %v513
    %v515 = vrot.slane %v493, %v514
    %v517 = vunpack.c.l.s4 1966171168
    %v518 = vunpack.c.0.s8 %v517
    %v519 = vlaneseq
    %v520 = vshrl.u32 %v519, 7
    %v521 = vsub.s32 %v518, %v520
    %v522 = vrot.slane %v494, %v521
    %v523 = vcombine.high %v501, %v501
    %v524 = vcombine.high %v508, %v508
    %v525 = vcombine.high %v515, %v515
    %v526 = vcombine.high %v522, %v522
    %v527 = vcombine.high %v24, %v24
    %v529 = vunpack.c.l.s4 1966171168
    %v530 = vunpack.c.0.s8 %v529
    %v531 = vlaneseq
    %v532 = vshrl.u32 %v531, 7
    %v533 = vsub.s32 %v530, %v532
    %v534 = vrot.slane %v24, %v533
    %v536 = vunpack.c.l.s4 1966171168
    %v537 = vunpack.c.0.s8 %v536
    %v538 = vlaneseq
    %v539 = vshrl.u32 %v538, 7
    %v540 = vsub.s32 %v537, %v539
    %v541 = vrot.slane %v527, %v540
    %v542 = vcombine.high %v534, %v534
    %v543 = vcombine.high %v541, %v541
    %v545 = vunpack.c.l.s4 1966171168
    %v546 = vunpack.c.0.s8 %v545
    %v547 = vlaneseq
    %v548 = vshrl.u32 %v547, 7
    %v549 = vsub.s32 %v546, %v548
    %v550 = vrot.slane %v534, %v549
    %v552 = vunpack.c.l.s4 1966171168
    %v553 = vunpack.c.0.s8 %v552
    %v554 = vlaneseq
    %v555 = vshrl.u32 %v554, 7
    %v556 = vsub.s32 %v553, %v555
    %v557 = vrot.slane %v541, %v556
    %v559 = vunpack.c.l.s4 1966171168
    %v560 = vunpack.c.0.s8 %v559
    %v561 = vlaneseq
    %v562 = vshrl.u32 %v561, 7
    %v563 = vsub.s32 %v560, %v562
    %v564 = vrot.slane %v542, %v563
    %v566 = vunpack.c.l.s4 1966171168
    %v567 = vunpack.c.0.s8 %v566
    %v568 = vlaneseq
    %v569 = vshrl.u32 %v568, 7
    %v570 = vsub.s32 %v567, %v569
    %v571 = vrot.slane %v543, %v570
    %v572 = vcombine.high %v550, %v550
    %v573 = vcombine.high %v557, %v557
    %v574 = vcombine.high %v564, %v564
    %v575 = vcombine.high %v571, %v571
    %v577 = vunpack.c.l.s4 1966171168
    %v578 = vunpack.c.0.s8 %v577
    %v579 = vlaneseq
    %v580 = vshrl.u32 %v579, 7
    %v581 = vsub.s32 %v578, %v580
    %v582 = vrot.slane %v25, %v581
    %v584 = vunpack.c.l.s4 1966171168
    %v585 = vunpack.c.0.s8 %v584
    %v586 = vlaneseq
    %v587 = vshrl.u32 %v586, 7
    %v588 = vsub.s32 %v585, %v587
    %v589 = vrot.slane %v582, %v588
    %v1006 = vunpack.c.l.b16 %v26
    %v1007 = vunpack.c.l.b16 %v27
    %v1008 = vunpack.c.l.b16 %v28
    %v1009 = vunpack.c.l.b16 %v29
    %v1010 = vunpack.c.l.b16 %v30
    %v1011 = vunpack.c.l.b16 %v31
    %v1012 = vunpack.c.l.b16 %v32
    %v1013 = vunpack.c.l.b16 %v33
    %v1014 = vunpack.c.l.b16 %v34
    %v1015 = vunpack.c.l.b16 %v35
    %v1016 = vunpack.c.l.b16 %v36
    %v1017 = vunpack.c.l.b16 %v37
    %v1018 = vunpack.c.l.b16 %v38
    %v1019 = vunpack.c.l.b16 %v39
    %v1020 = vunpack.c.l.b16 %v40
    %v1021 = vunpack.c.l.b16 %v41
    %v1022 = vunpack.c.l.b16 %v42
    %v1023 = vunpack.c.l.b16 %v43
    %v1024 = vunpack.c.l.b16 %v44
    %v1025 = vunpack.c.l.b16 %v45
    %v1026 = vunpack.c.l.b16 %v46
    %v1027 = vunpack.c.l.b16 %v47
    %v1028 = vunpack.c.l.b16 %v48
    %v1029 = vunpack.c.l.b16 %v49
    %v1030 = vunpack.c.l.b16 %v50
    %v1031 = vunpack.c.l.b16 %v51
    %v1032 = vunpack.c.l.b16 %v52
    %v1033 = vunpack.c.l.b16 %v53
    %v1034 = vunpack.c.l.b16 %v54
    %v1035 = vunpack.c.l.b16 %v55
    %v1036 = vunpack.c.l.b16 %v56
    %v1037 = vunpack.c.l.b16 %v57
    %v1038 = vunpack.c.l.b16 %v58
    %v1039 = vunpack.c.l.b16 %v59
    %v1040 = vunpack.c.l.b16 %v60
    %v1041 = vunpack.c.l.b16 %v61
    %v1042 = vunpack.c.l.b16 %v62
    %v1043 = vunpack.c.l.b16 %v63
    %v1044 = vunpack.c.l.b16 %v64
    %v1045 = vunpack.c.l.b16 %v65
    %v1046 = vunpack.c.l.b16 %v66
    %v1047 = vunpack.c.l.b16 %v67
    %v1048 = vunpack.c.l.b16 %v68
    %v1049 = vunpack.c.l.b16 %v69
    %v1050 = vunpack.c.l.b16 %v70
    %v1051 = vunpack.c.l.b16 %v71
    %v1052 = vunpack.c.l.b16 %v72
    %v1053 = vunpack.c.l.b16 %v73
    %v1054 = vunpack.c.l.b16 %v74
    %v1055 = vunpack.c.l.b16 %v75
    %v1056 = vunpack.c.l.b16 %v76
    %v1057 = vunpack.c.l.b16 %v77
    %v1058 = vunpack.c.l.b16 %v78
    %v1059 = vunpack.c.l.b16 %v79
    %v1060 = vunpack.c.l.b16 %v80
    %v1061 = vunpack.c.l.b16 %v81
    %v1062 = vunpack.c.l.b16 %v82
    %v1063 = vunpack.c.l.b16 %v83
    %v1064 = vunpack.c.l.b16 %v84
    %v1065 = vunpack.c.l.b16 %v85
    %v1066 = vunpack.c.l.b16 %v86
    %v1067 = vunpack.c.l.b16 %v87
    %v1068 = vunpack.c.l.b16 %v88
    %v1069 = vunpack.c.l.b16 %v89
    %v1070 = vunpack.c.l.b16 %v90
    %v1071 = vunpack.c.l.b16 %v91
    %v1072 = vunpack.c.l.b16 %v92
    %v1073 = vunpack.c.l.b16 %v93
    %v1074 = vunpack.c.l.b16 %v94
    %v1075 = vunpack.c.l.b16 %v95
    %v1076 = vunpack.c.l.b16 %v96
    %v1077 = vunpack.c.l.b16 %v97
    %v1078 = vunpack.c.l.b16 %v98
    %v1079 = vunpack.c.l.b16 %v99
    %v1080 = vunpack.c.l.b16 %v100
    %v1081 = vunpack.c.l.b16 %v101
    %v1082 = vunpack.c.l.b16 %v102
    %v1083 = vunpack.c.l.b16 %v103
    %v1084 = vunpack.c.l.b16 %v104
    %v1085 = vunpack.c.l.b16 %v105
    %v1086 = vunpack.c.l.b16 %v106
    %v1087 = vunpack.c.l.b16 %v107
    %v1088 = vunpack.c.l.b16 %v108
    %v1089 = vunpack.c.l.b16 %v109
    %v1090 = vunpack.c.l.b16 %v110
    %v1091 = vunpack.c.l.b16 %v111
    %v1092 = vunpack.c.l.b16 %v112
    %v1093 = vunpack.c.l.b16 %v113
    %v1094 = vunpack.c.l.b16 %v114
    %v1095 = vunpack.c.l.b16 %v115
    %v1096 = vunpack.c.l.b16 %v116
    %v1097 = vunpack.c.l.b16 %v117
    %v1098 = vunpack.c.l.b16 %v118
    %v1099 = vunpack.c.l.b16 %v119
    %v1100 = vunpack.c.l.b16 %v120
    %v1101 = vunpack.c.l.b16 %v121
    %v1102 = vunpack.c.l.b16 %v122
    %v1103 = vunpack.c.l.b16 %v123
    %v1104 = vunpack.c.l.b16 %v124
    %v1105 = vunpack.c.l.b16 %v125
    %v1106 = vunpack.c.l.b16 %v126
    %v1107 = vunpack.c.l.b16 %v127
    %v1108 = vunpack.c.l.b16 %v128
    %v1109 = vunpack.c.l.b16 %v129
    %v1110 = vunpack.c.l.b16 %v130
    %v1111 = vunpack.c.l.b16 %v131
    %v1112 = vunpack.c.l.b16 %v132
    %v1113 = vunpack.c.l.b16 %v133
    %v1114 = vunpack.c.l.b16 %v134
    %v1115 = vunpack.c.l.b16 %v135
    %v1116 = vunpack.c.l.b16 %v136
    %v1117 = vunpack.c.l.b16 %v137
    %v1118 = vunpack.c.l.b16 %v138
    %v1119 = vunpack.c.l.b16 %v139
    %v1120 = vunpack.c.l.b16 %v140
    %v1121 = vunpack.c.l.b16 %v141
    %v1122 = vunpack.c.l.b16 %v142
    %v1123 = vunpack.c.l.b16 %v143
    %v1124 = vunpack.c.l.b16 %v144
    %v1125 = vunpack.c.l.b16 %v145
    %v1126 = vunpack.c.l.b16 %v146
    %v1127 = vunpack.c.l.b16 %v147
    %v1128 = vunpack.c.l.b16 %v148
    %v1129 = vunpack.c.l.b16 %v149
    %v1130 = vunpack.c.l.b16 %v150
    %v1131 = vunpack.c.l.b16 %v151
    %v1132 = vunpack.c.l.b16 %v152
    %v1133 = vunpack.c.l.b16 %v153
    %v1134 = vunpack.c.l.b16 %v154
    %v1135 = vunpack.c.l.b16 %v155
    %v1136 = vunpack.c.l.b16 %v156
    %v1137 = vunpack.c.l.b16 %v157
    %v1138 = vunpack.c.l.b16 %v158
    %v1139 = vunpack.c.l.b16 %v159
    %v1140 = vunpack.c.l.b16 %v160
    %v1141 = vunpack.c.l.b16 %v161
    %v1142 = vunpack.c.l.b16 %v162
    %v1143 = vunpack.c.l.b16 %v163
    %v1144 = vunpack.c.l.b16 %v164
    %v1145 = vunpack.c.l.b16 %v165
    %v1146 = vunpack.c.l.b16 %v166
    %v1147 = vunpack.c.l.b16 %v167
    %v1148 = vunpack.c.l.b16 %v168
    %v1149 = vunpack.c.l.b16 %v169
    %v1150 = vunpack.c.l.b16 %v170
    %v1151 = vunpack.c.l.b16 %v171
    %v1152 = vunpack.c.l.b16 %v172
    %v1153 = vunpack.c.l.b16 %v173
    %v1154 = vunpack.c.l.b16 %v174
    %v1155 = vunpack.c.l.b16 %v175
    %v1156 = vunpack.c.l.b16 %v176
    %v1157 = vunpack.c.l.b16 %v177
    %v1158 = vunpack.c.l.b16 %v178
    %v1159 = vunpack.c.l.b16 %v179
    %v1160 = vunpack.c.l.b16 %v180
    %v1161 = vunpack.c.l.b16 %v181
    %v1162 = vunpack.c.l.b16 %v182
    %v1163 = vunpack.c.l.b16 %v183
    %v1164 = vunpack.c.l.b16 %v184
    %v1165 = vunpack.c.l.b16 %v185
    %v1166 = vunpack.c.l.b16 %v186
    %v1167 = vunpack.c.l.b16 %v187
    %v1168 = vunpack.c.l.b16 %v188
    %v1169 = vunpack.c.l.b16 %v189
    %v1170 = vunpack.c.l.b16 %v190
    %v1171 = vunpack.c.l.b16 %v191
    %v1172 = vunpack.c.l.b16 %v192
    %v1173 = vunpack.c.l.b16 %v193
    %v1174 = vunpack.c.l.b16 %v194
    %v1175 = vunpack.c.l.b16 %v195
    %v1176 = vunpack.c.l.b16 %v196
    %v1177 = vunpack.c.l.b16 %v197
    %v1178 = vunpack.c.l.b16 %v198
    %v1179 = vunpack.c.l.b16 %v199
    %v1180 = vunpack.c.l.b16 %v200
    %v1181 = vunpack.c.l.b16 %v201
    %v1182 = vunpack.c.l.b16 %v202
    %v1183 = vunpack.c.l.b16 %v203
    %v1184 = vunpack.c.l.b16 %v204
    %v1185 = vunpack.c.l.b16 %v205
    %v1186 = vunpack.c.l.b16 %v206
    %v1187 = vunpack.c.l.b16 %v207
    %v1188 = vunpack.c.l.b16 %v208
    %v1189 = vunpack.c.l.b16 %v209
    %v1190 = vunpack.c.l.b16 %v210
    %v1191 = vunpack.c.l.b16 %v211
    %v1192 = vunpack.c.l.b16 %v212
    %v1193 = vunpack.c.l.b16 %v213
    %v1194 = vunpack.c.l.b16 %v214
    %v1195 = vunpack.c.l.b16 %v215
    %v1196 = vunpack.c.l.b16 %v216
    %v1197 = vunpack.c.l.b16 %v217
    %v1198 = vunpack.c.l.b16 %v218
    %v1199 = vunpack.c.l.b16 %v219
    %v1200 = vunpack.c.l.b16 %v220
    %v1201 = vunpack.c.l.b16 %v221
    %v1202 = vunpack.c.l.b16 %v222
    %v1203 = vunpack.c.l.b16 %v223
    %v1204 = vunpack.c.l.b16 %v224
    %v1205 = vunpack.c.l.b16 %v225
    %v1206 = vunpack.c.l.b16 %v226
    %v1207 = vunpack.c.l.b16 %v227
    %v1208 = vunpack.c.l.b16 %v228
    %v1209 = vunpack.c.l.b16 %v229
    %v1210 = vunpack.c.l.b16 %v230
    %v1211 = vunpack.c.l.b16 %v231
    %v1212 = vunpack.c.l.b16 %v232
    %v1213 = vunpack.c.l.b16 %v233
    %v1214 = vunpack.c.l.b16 %v234
    %v1215 = vunpack.c.l.b16 %v235
    %v1216 = vunpack.c.l.b16 %v236
    %v1217 = vunpack.c.l.b16 %v237
    %v1218 = vunpack.c.l.b16 %v238
    %v1219 = vunpack.c.l.b16 %v239
    %v1220 = vunpack.c.l.b16 %v240
    %v1221 = vunpack.c.l.b16 %v241
    %v1222 = vunpack.c.l.b16 %v242
    %v1223 = vunpack.c.l.b16 %v243
    %v1224 = vunpack.c.l.b16 %v244
    %v1225 = vunpack.c.l.b16 %v245
    %v1226 = vunpack.c.l.b16 %v246
    %v1227 = vunpack.c.l.b16 %v247
    %v1228 = vunpack.c.l.b16 %v248
    %v1229 = vunpack.c.l.b16 %v249
    %v1230 = vunpack.c.l.b16 %v250
    %v1231 = vunpack.c.l.b16 %v251
    %v1232 = vunpack.c.l.b16 %v252
    %v1233 = vunpack.c.l.b16 %v253
    %v1234 = vunpack.c.l.b16 %v254
    %v1235 = vunpack.c.l.b16 %v255
    %v1236 = vunpack.c.l.b16 %v256
    %v1237 = vunpack.c.l.b16 %v257
    %v1238 = vunpack.c.l.b16 %v258
    %v1239 = vunpack.c.l.b16 %v259
    %v1240 = vunpack.c.l.b16 %v260
    %v1241 = vunpack.c.l.b16 %v261
    %v1242 = vunpack.c.l.b16 %v262
    %v1243 = vunpack.c.l.b16 %v263
    %v1244 = vunpack.c.l.b16 %v264
    %v1245 = vunpack.c.l.b16 %v265
    %v1246 = vunpack.c.l.b16 %v266
    %v1247 = vunpack.c.l.b16 %v267
    %v1248 = vunpack.c.l.b16 %v268
    %v1249 = vunpack.c.l.b16 %v269
    %v1250 = vunpack.c.l.b16 %v270
    %v1251 = vunpack.c.l.b16 %v271
    %v1252 = vunpack.c.l.b16 %v272
    %v1253 = vunpack.c.l.b16 %v273
    %v1254 = vunpack.c.l.b16 %v274
    %v1255 = vunpack.c.l.b16 %v275
    %v1256 = vunpack.c.l.b16 %v276
    %v1257 = vunpack.c.l.b16 %v277
    %v1258 = vunpack.c.l.b16 %v278
    %v1259 = vunpack.c.l.b16 %v279
    %v1260 = vunpack.c.l.b16 %v280
    %v1261 = vunpack.c.l.b16 %v281
    %v1262 = vunpack.c.l.b16 %v282
    %v1263 = vunpack.c.l.b16 %v283
    %v1264 = vunpack.c.l.b16 %v284
    %v1265 = vunpack.c.l.b16 %v285
    %v1266 = vunpack.c.l.b16 %v286
    %v1267 = vunpack.c.l.b16 %v287
    %v1268 = vunpack.c.l.b16 %v288
    %v1269 = vunpack.c.l.b16 %v289
    %v1270 = vunpack.c.l.b16 %v290
    %v1271 = vunpack.c.l.b16 %v291
    %v1272 = vunpack.c.l.b16 %v292
    %v1273 = vunpack.c.l.b16 %v293
    %v1274 = vunpack.c.l.b16 %v294
    %v1275 = vunpack.c.l.b16 %v295
    %v1276 = vunpack.c.l.b16 %v296
    %v1277 = vunpack.c.l.b16 %v297
    %v1278 = vunpack.c.l.b16 %v298
    %v1279 = vunpack.c.l.b16 %v299
    %v1280 = vunpack.c.l.b16 %v300
    %v1281 = vunpack.c.l.b16 %v301
    %v1282 = vunpack.c.l.b16 %v302
    %v1283 = vunpack.c.l.b16 %v303
    %v1284 = vunpack.c.l.b16 %v304
    %v1285 = vunpack.c.l.b16 %v305
    %v1286 = vunpack.c.l.b16 %v306
    %v1287 = vunpack.c.l.b16 %v307
    %v1288 = vunpack.c.l.b16 %v308
    %v1289 = vunpack.c.l.b16 %v309
    %v1290 = vunpack.c.l.b16 %v310
    %v1291 = vunpack.c.l.b16 %v311
    %v1292 = vunpack.c.l.b16 %v312
    %v1293 = vunpack.c.l.b16 %v313
    %v1294 = vunpack.c.l.b16 %v314
    %v1295 = vunpack.c.l.b16 %v315
    %v1296 = vunpack.c.l.b16 %v316
    %v1297 = vunpack.c.l.b16 %v317
    %v1298 = vunpack.c.l.b16 %v318
    %v1299 = vunpack.c.l.b16 %v319
    %v1300 = vunpack.c.l.b16 %v320
    %v1301 = vunpack.c.l.b16 %v321
    %v1302 = vunpack.c.l.b16 %v322
    %v1303 = vunpack.c.l.b16 %v323
    %v1304 = vunpack.c.l.b16 %v324
    %v1305 = vunpack.c.l.b16 %v325
    %v1306 = vunpack.c.l.b16 %v326
    %v1307 = vunpack.c.l.b16 %v327
    %v1308 = vunpack.c.l.b16 %v328
    %v1309 = vunpack.c.l.b16 %v329
    %v1310 = vunpack.c.l.b16 %v330
    %v1311 = vunpack.c.l.b16 %v331
    %v1312 = vunpack.c.l.b16 %v332
    %v1313 = vunpack.c.l.b16 %v333
    %v1314 = vunpack.c.l.b16 %v334
    %v1315 = vunpack.c.l.b16 %v335
    %v1316 = vunpack.c.l.b16 %v336
    %v1317 = vunpack.c.l.b16 %v337
    %v1318 = vunpack.c.l.b16 %v338
    %v1319 = vunpack.c.l.b16 %v339
    %v1320 = vunpack.c.l.b16 %v340
    %v1321 = vunpack.c.l.b16 %v341
    %v1322 = vunpack.c.l.b16 %v342
    %v1323 = vunpack.c.l.b16 %v343
    %v1324 = vunpack.c.l.b16 %v344
    %v1325 = vunpack.c.l.b16 %v345
    %v1326 = vunpack.c.l.b16 %v346
    %v1327 = vunpack.c.l.b16 %v347
    %v1328 = vunpack.c.l.b16 %v348
    %v1329 = vunpack.c.l.b16 %v349
    %v1330 = vunpack.c.l.b16 %v350
    %v1331 = vunpack.c.l.b16 %v351
    %v1332 = vunpack.c.l.b16 %v352
    %v1333 = vunpack.c.l.b16 %v353
    %v1334 = vunpack.c.l.b16 %v354
    %v1335 = vunpack.c.l.b16 %v355
    %v1336 = vunpack.c.l.b16 %v356
    %v1337 = vunpack.c.l.b16 %v357
    %v1338 = vunpack.c.l.b16 %v358
    %v1339 = vunpack.c.l.b16 %v359
    %v1340 = vunpack.c.l.b16 %v360
    %v1341 = vunpack.c.l.b16 %v361
    %v1342 = vunpack.c.l.b16 %v362
    %v1343 = vunpack.c.l.b16 %v363
    %v1344 = vunpack.c.l.b16 %v364
    %v1345 = vunpack.c.l.b16 %v365
    %v1346 = vunpack.c.l.b16 %v366
    %v1347 = vunpack.c.l.b16 %v367
    %v1348 = vunpack.c.l.b16 %v368
    %v1349 = vunpack.c.l.b16 %v369
    %v1350 = vunpack.c.l.b16 %v370
    %v1351 = vunpack.c.l.b16 %v371
    %v1352 = vunpack.c.l.b16 %v372
    %v1353 = vunpack.c.l.b16 %v373
    %v1354 = vunpack.c.l.b16 %v374
    %v1355 = vunpack.c.l.b16 %v375
    %v1356 = vunpack.c.l.b16 %v376
    %v1357 = vunpack.c.l.b16 %v377
    %v1358 = vunpack.c.l.b16 %v378
    %v1359 = vunpack.c.l.b16 %v379
    %v1360 = vunpack.c.l.b16 %v380
    %v1361 = vunpack.c.l.b16 %v381
    %v1362 = vunpack.c.l.b16 %v382
    %v1363 = vunpack.c.l.b16 %v383
    %v1364 = vunpack.c.l.b16 %v384
    %v1365 = vunpack.c.l.b16 %v385
    %v1366 = vunpack.c.l.b16 %v386
    %v1367 = vunpack.c.l.b16 %v387
    %v1368 = vunpack.c.l.b16 %v388
    %v1369 = vunpack.c.l.b16 %v389
    %v1370 = vunpack.c.l.b16 %v390
    %v1371 = vunpack.c.l.b16 %v391
    %v1372 = vunpack.c.l.b16 %v392
    %v1373 = vunpack.c.l.b16 %v393
    %v1374 = vunpack.c.l.b16 %v394
    %v1375 = vunpack.c.l.b16 %v395
    %v1376 = vunpack.c.l.b16 %v396
    %v1377 = vunpack.c.l.b16 %v397
    %v1378 = vunpack.c.l.b16 %v398
    %v1379 = vunpack.c.l.b16 %v399
    %v1380 = vunpack.c.l.b16 %v400
    %v1381 = vunpack.c.l.b16 %v401
    %v1382 = vunpack.c.l.b16 %v402
    %v1383 = vunpack.c.l.b16 %v403
    %v1384 = vunpack.c.l.b16 %v404
    %v1385 = vunpack.c.l.b16 %v405
    %v1386 = vunpack.c.l.b16 %v406
    %v1387 = vunpack.c.l.b16 %v407
    %v1388 = vunpack.c.l.b16 %v408
    %v1389 = vunpack.c.l.b16 %v409
    %v1390 = vunpack.c.l.b16 %v410
    %v1391 = vunpack.c.l.b16 %v411
    %v1392 = vunpack.c.l.b16 %v412
    %v1393 = vunpack.c.l.b16 %v413
    %v1394 = vunpack.c.l.b16 %v414
    %v1395 = vunpack.c.l.b16 %v415
    %v1396 = vunpack.c.l.b16 %v416
    %v1397 = vunpack.c.l.b16 %v417
    %v1398 = vpack.c.b16 %v1007, %v1006
    %v1399 = vpack.c.b16 %v1009, %v1008
    %v1400 = vpack.c.b16 %v1011, %v1010
    %v1401 = vpack.c.b16 %v1013, %v1012
    %v1402 = vpack.c.b16 %v1015, %v1014
    %v1403 = vpack.c.b16 %v1017, %v1016
    %v1404 = vpack.c.b16 %v1019, %v1018
    %v1405 = vpack.c.b16 %v1021, %v1020
    %v1406 = vpack.c.b16 %v1023, %v1022
    %v1407 = vpack.c.b16 %v1025, %v1024
    %v1408 = vpack.c.b16 %v1027, %v1026
    %v1409 = vpack.c.b16 %v1029, %v1028
    %v1410 = vpack.c.b16 %v1031, %v1030
    %v1411 = vpack.c.b16 %v1033, %v1032
    %v1412 = vpack.c.b16 %v1035, %v1034
    %v1413 = vpack.c.b16 %v1037, %v1036
    %v1414 = vpack.c.b16 %v1039, %v1038
    %v1415 = vpack.c.b16 %v1041, %v1040
    %v1416 = vpack.c.b16 %v1043, %v1042
    %v1417 = vpack.c.b16 %v1045, %v1044
    %v1418 = vpack.c.b16 %v1047, %v1046
    %v1419 = vpack.c.b16 %v1049, %v1048
    %v1420 = vpack.c.b16 %v1051, %v1050
    %v1421 = vpack.c.b16 %v1053, %v1052
    %v1422 = vpack.c.b16 %v1055, %v1054
    %v1423 = vpack.c.b16 %v1057, %v1056
    %v1424 = vpack.c.b16 %v1059, %v1058
    %v1425 = vpack.c.b16 %v1061, %v1060
    %v1426 = vpack.c.b16 %v1063, %v1062
    %v1427 = vpack.c.b16 %v1065, %v1064
    %v1428 = vpack.c.b16 %v1067, %v1066
    %v1429 = vpack.c.b16 %v1069, %v1068
    %v1430 = vpack.c.b16 %v1071, %v1070
    %v1431 = vpack.c.b16 %v1073, %v1072
    %v1432 = vpack.c.b16 %v1075, %v1074
    %v1433 = vpack.c.b16 %v1077, %v1076
    %v1434 = vpack.c.b16 %v1079, %v1078
    %v1435 = vpack.c.b16 %v1081, %v1080
    %v1436 = vpack.c.b16 %v1083, %v1082
    %v1437 = vpack.c.b16 %v1085, %v1084
    %v1438 = vpack.c.b16 %v1087, %v1086
    %v1439 = vpack.c.b16 %v1089, %v1088
    %v1440 = vpack.c.b16 %v1091, %v1090
    %v1441 = vpack.c.b16 %v1093, %v1092
    %v1442 = vpack.c.b16 %v1095, %v1094
    %v1443 = vpack.c.b16 %v1097, %v1096
    %v1444 = vpack.c.b16 %v1099, %v1098
    %v1445 = vpack.c.b16 %v1101, %v1100
    %v1446 = vpack.c.b16 %v1103, %v1102
    %v1447 = vpack.c.b16 %v1105, %v1104
    %v1448 = vpack.c.b16 %v1107, %v1106
    %v1449 = vpack.c.b16 %v1109, %v1108
    %v1450 = vpack.c.b16 %v1111, %v1110
    %v1451 = vpack.c.b16 %v1113, %v1112
    %v1452 = vpack.c.b16 %v1115, %v1114
    %v1453 = vpack.c.b16 %v1117, %v1116
    %v1454 = vpack.c.b16 %v1119, %v1118
    %v1455 = vpack.c.b16 %v1121, %v1120
    %v1456 = vpack.c.b16 %v1123, %v1122
    %v1457 = vpack.c.b16 %v1125, %v1124
    %v1458 = vpack.c.b16 %v1127, %v1126
    %v1459 = vpack.c.b16 %v1129, %v1128
    %v1460 = vpack.c.b16 %v1131, %v1130
    %v1461 = vpack.c.b16 %v1133, %v1132
    %v1462 = vpack.c.b16 %v1135, %v1134
    %v1463 = vpack.c.b16 %v1137, %v1136
    %v1464 = vpack.c.b16 %v1139, %v1138
    %v1465 = vpack.c.b16 %v1141, %v1140
    %v1466 = vpack.c.b16 %v1143, %v1142
    %v1467 = vpack.c.b16 %v1145, %v1144
    %v1468 = vpack.c.b16 %v1147, %v1146
    %v1469 = vpack.c.b16 %v1149, %v1148
    %v1470 = vpack.c.b16 %v1151, %v1150
    %v1471 = vpack.c.b16 %v1153, %v1152
    %v1472 = vpack.c.b16 %v1155, %v1154
    %v1473 = vpack.c.b16 %v1157, %v1156
    %v1474 = vpack.c.b16 %v1159, %v1158
    %v1475 = vpack.c.b16 %v1161, %v1160
    %v1476 = vpack.c.b16 %v1163, %v1162
    %v1477 = vpack.c.b16 %v1165, %v1164
    %v1478 = vpack.c.b16 %v1167, %v1166
    %v1479 = vpack.c.b16 %v1169, %v1168
    %v1480 = vpack.c.b16 %v1171, %v1170
    %v1481 = vpack.c.b16 %v1173, %v1172
    %v1482 = vpack.c.b16 %v1175, %v1174
    %v1483 = vpack.c.b16 %v1177, %v1176
    %v1484 = vpack.c.b16 %v1179, %v1178
    %v1485 = vpack.c.b16 %v1181, %v1180
    %v1486 = vpack.c.b16 %v1183, %v1182
    %v1487 = vpack.c.b16 %v1185, %v1184
    %v1488 = vpack.c.b16 %v1187, %v1186
    %v1489 = vpack.c.b16 %v1189, %v1188
    %v1490 = vpack.c.b16 %v1191, %v1190
    %v1491 = vpack.c.b16 %v1193, %v1192
    %v1492 = vpack.c.b16 %v1195, %v1194
    %v1493 = vpack.c.b16 %v1197, %v1196
    %v1494 = vpack.c.b16 %v1199, %v1198
    %v1495 = vpack.c.b16 %v1201, %v1200
    %v1496 = vpack.c.b16 %v1203, %v1202
    %v1497 = vpack.c.b16 %v1205, %v1204
    %v1498 = vpack.c.b16 %v1207, %v1206
    %v1499 = vpack.c.b16 %v1209, %v1208
    %v1500 = vpack.c.b16 %v1211, %v1210
    %v1501 = vpack.c.b16 %v1213, %v1212
    %v1502 = vpack.c.b16 %v1215, %v1214
    %v1503 = vpack.c.b16 %v1217, %v1216
    %v1504 = vpack.c.b16 %v1219, %v1218
    %v1505 = vpack.c.b16 %v1221, %v1220
    %v1506 = vpack.c.b16 %v1223, %v1222
    %v1507 = vpack.c.b16 %v1225, %v1224
    %v1508 = vpack.c.b16 %v1227, %v1226
    %v1509 = vpack.c.b16 %v1229, %v1228
    %v1510 = vpack.c.b16 %v1231, %v1230
    %v1511 = vpack.c.b16 %v1233, %v1232
    %v1512 = vpack.c.b16 %v1235, %v1234
    %v1513 = vpack.c.b16 %v1237, %v1236
    %v1514 = vpack.c.b16 %v1239, %v1238
    %v1515 = vpack.c.b16 %v1241, %v1240
    %v1516 = vpack.c.b16 %v1243, %v1242
    %v1517 = vpack.c.b16 %v1245, %v1244
    %v1518 = vpack.c.b16 %v1247, %v1246
    %v1519 = vpack.c.b16 %v1249, %v1248
    %v1520 = vpack.c.b16 %v1251, %v1250
    %v1521 = vpack.c.b16 %v1253, %v1252
    %v1522 = vpack.c.b16 %v1255, %v1254
    %v1523 = vpack.c.b16 %v1257, %v1256
    %v1524 = vpack.c.b16 %v1259, %v1258
    %v1525 = vpack.c.b16 %v1261, %v1260
    %v1526 = vpack.c.b16 %v1263, %v1262
    %v1527 = vpack.c.b16 %v1265, %v1264
    %v1528 = vpack.c.b16 %v1267, %v1266
    %v1529 = vpack.c.b16 %v1269, %v1268
    %v1530 = vpack.c.b16 %v1271, %v1270
    %v1531 = vpack.c.b16 %v1273, %v1272
    %v1532 = vpack.c.b16 %v1275, %v1274
    %v1533 = vpack.c.b16 %v1277, %v1276
    %v1534 = vpack.c.b16 %v1279, %v1278
    %v1535 = vpack.c.b16 %v1281, %v1280
    %v1536 = vpack.c.b16 %v1283, %v1282
    %v1537 = vpack.c.b16 %v1285, %v1284
    %v1538 = vpack.c.b16 %v1287, %v1286
    %v1539 = vpack.c.b16 %v1289, %v1288
    %v1540 = vpack.c.b16 %v1291, %v1290
    %v1541 = vpack.c.b16 %v1293, %v1292
    %v1542 = vpack.c.b16 %v1295, %v1294
    %v1543 = vpack.c.b16 %v1297, %v1296
    %v1544 = vpack.c.b16 %v1299, %v1298
    %v1545 = vpack.c.b16 %v1301, %v1300
    %v1546 = vpack.c.b16 %v1303, %v1302
    %v1547 = vpack.c.b16 %v1305, %v1304
    %v1548 = vpack.c.b16 %v1307, %v1306
    %v1549 = vpack.c.b16 %v1309, %v1308
    %v1550 = vpack.c.b16 %v1311, %v1310
    %v1551 = vpack.c.b16 %v1313, %v1312
    %v1552 = vpack.c.b16 %v1315, %v1314
    %v1553 = vpack.c.b16 %v1317, %v1316
    %v1554 = vpack.c.b16 %v1319, %v1318
    %v1555 = vpack.c.b16 %v1321, %v1320
    %v1556 = vpack.c.b16 %v1323, %v1322
    %v1557 = vpack.c.b16 %v1325, %v1324
    %v1558 = vpack.c.b16 %v1327, %v1326
    %v1559 = vpack.c.b16 %v1329, %v1328
    %v1560 = vpack.c.b16 %v1331, %v1330
    %v1561 = vpack.c.b16 %v1333, %v1332
    %v1562 = vpack.c.b16 %v1335, %v1334
    %v1563 = vpack.c.b16 %v1337, %v1336
    %v1564 = vpack.c.b16 %v1339, %v1338
    %v1565 = vpack.c.b16 %v1341, %v1340
    %v1566 = vpack.c.b16 %v1343, %v1342
    %v1567 = vpack.c.b16 %v1345, %v1344
    %v1568 = vpack.c.b16 %v1347, %v1346
    %v1569 = vpack.c.b16 %v1349, %v1348
    %v1570 = vpack.c.b16 %v1351, %v1350
    %v1571 = vpack.c.b16 %v1353, %v1352
    %v1572 = vpack.c.b16 %v1355, %v1354
    %v1573 = vpack.c.b16 %v1357, %v1356
    %v1574 = vpack.c.b16 %v1359, %v1358
    %v1575 = vpack.c.b16 %v1361, %v1360
    %v1576 = vpack.c.b16 %v1363, %v1362
    %v1577 = vpack.c.b16 %v1365, %v1364
    %v1578 = vpack.c.b16 %v1367, %v1366
    %v1579 = vpack.c.b16 %v1369, %v1368
    %v1580 = vpack.c.b16 %v1371, %v1370
    %v1581 = vpack.c.b16 %v1373, %v1372
    %v1582 = vpack.c.b16 %v1375, %v1374
    %v1583 = vpack.c.b16 %v1377, %v1376
    %v1584 = vpack.c.b16 %v1379, %v1378
    %v1585 = vpack.c.b16 %v1381, %v1380
    %v1586 = vpack.c.b16 %v1383, %v1382
    %v1587 = vpack.c.b16 %v1385, %v1384
    %v1588 = vpack.c.b16 %v1387, %v1386
    %v1589 = vpack.c.b16 %v1389, %v1388
    %v1590 = vpack.c.b16 %v1391, %v1390
    %v1591 = vpack.c.b16 %v1393, %v1392
    %v1592 = vpack.c.b16 %v1395, %v1394
    %v1593 = vpack.c.b16 %v1397, %v1396
    %vm1790 = vcmask 523264
    %v1792 = vsel %vm1790, %v589, 0
    %1794 = vmatprep.subr.bf16.mxu0 0
    %1795 = vmatpush1.bf16.msra.mxu0 %v1398
    %1796 = vmatprep.subr.bf16.mxu0 0
    %1797 = vmatpush1.bf16.msra.mxu0 %v1399
    %1798 = vmatprep.subr.bf16.mxu0 0
    %1799 = vmatpush1.bf16.msra.mxu0 %v1400
    %1800 = vmatprep.subr.bf16.mxu0 0
    %1801 = vmatpush1.bf16.msra.mxu0 %v1401
    %1802 = vmatprep.subr.bf16.mxu0 0
    %1803 = vmatpush1.bf16.msra.mxu0 %v1402
    %1804 = vmatprep.subr.bf16.mxu0 0
    %1805 = vmatpush1.bf16.msra.mxu0 %v1403
    %1806 = vmatprep.subr.bf16.mxu0 0
    %1807 = vmatpush1.bf16.msra.mxu0 %v1404
    %1808 = vmatprep.subr.bf16.mxu0 0
    %1809 = vmatpush1.bf16.msra.mxu0 %v1405
    %1810 = vmatprep.subr.bf16.mxu0 0
    %1811 = vmatpush1.bf16.msra.mxu0 %v1406
    %1812 = vmatprep.subr.bf16.mxu0 0
    %1813 = vmatpush1.bf16.msra.mxu0 %v1407
    %1814 = vmatprep.subr.bf16.mxu0 0
    %1815 = vmatpush1.bf16.msra.mxu0 %v1408
    %1816 = vmatprep.subr.bf16.mxu0 0
    %1817 = vmatpush1.bf16.msra.mxu0 %v1409
    %1818 = vmatprep.subr.bf16.mxu0 0
    %1819 = vmatpush1.bf16.msra.mxu0 %v1410
    %1820 = vmatprep.subr.bf16.mxu0 0
    %1821 = vmatpush1.bf16.msra.mxu0 %v1411
    %1822 = vmatprep.subr.bf16.mxu0 0
    %1823 = vmatpush1.bf16.msra.mxu0 %v1412
    %1824 = vmatprep.subr.bf16.mxu0 0
    %1825 = vmatpush1.bf16.msra.mxu0 %v1413
    %1826 = vmatprep.mubr.bf16.mxu0 %v466
    %1827 = vmatmul.mubr.bf16.gmra.mrb[0].mxu0 %v452
    %v1828 = vpop.f32.mrb[0].mxu0
    %v1829 = vadd.f32 %v423, %v1828
    %v1830 = vpop.f32.mrb[0].mxu0
    %v1831 = vpop.f32.mrb[0].mxu0
    %v1832 = vpop.f32.mrb[0].mxu0
    %1833 = vdwg.mxu0
    %1834 = vmatprep.subr.bf16.mxu0 0
    %1835 = vmatpush1.bf16.msra.mxu0 %v1414
    %1836 = vmatprep.subr.bf16.mxu0 0
    %1837 = vmatpush1.bf16.msra.mxu0 %v1415
    %1838 = vmatprep.subr.bf16.mxu0 0
    %1839 = vmatpush1.bf16.msra.mxu0 %v1416
    %1840 = vmatprep.subr.bf16.mxu0 0
    %1841 = vmatpush1.bf16.msra.mxu0 %v1417
    %1842 = vmatprep.subr.bf16.mxu0 0
    %1843 = vmatpush1.bf16.msra.mxu0 %v1418
    %1844 = vmatprep.subr.bf16.mxu0 0
    %1845 = vmatpush1.bf16.msra.mxu0 %v1419
    %1846 = vmatprep.subr.bf16.mxu0 0
    %1847 = vmatpush1.bf16.msra.mxu0 %v1420
    %1848 = vmatprep.subr.bf16.mxu0 0
    %1849 = vmatpush1.bf16.msra.mxu0 %v1421
    %1850 = vmatprep.subr.bf16.mxu0 0
    %1851 = vmatpush1.bf16.msra.mxu0 %v1422
    %1852 = vmatprep.subr.bf16.mxu0 0
    %1853 = vmatpush1.bf16.msra.mxu0 %v1423
    %1854 = vmatprep.subr.bf16.mxu0 0
    %1855 = vmatpush1.bf16.msra.mxu0 %v1424
    %1856 = vmatprep.subr.bf16.mxu0 0
    %1857 = vmatpush1.bf16.msra.mxu0 %v1425
    %1858 = vmatprep.subr.bf16.mxu0 0
    %1859 = vmatpush1.bf16.msra.mxu0 %v1426
    %1860 = vmatprep.subr.bf16.mxu0 0
    %1861 = vmatpush1.bf16.msra.mxu0 %v1427
    %1862 = vmatprep.subr.bf16.mxu0 0
    %1863 = vmatpush1.bf16.msra.mxu0 %v1428
    %1864 = vmatprep.subr.bf16.mxu0 0
    %1865 = vmatpush1.bf16.msra.mxu0 %v1429
    %1866 = vmatprep.mubr.bf16.mxu0 %v476
    %1867 = vmatmul.mubr.bf16.gmra.mrb[0].mxu0 %v474
    %v1868 = vpop.f32.mrb[0].mxu0
    %v1869 = vadd.f32 %v1829, %v1868
    %v1870 = vpop.f32.mrb[0].mxu0
    %v1871 = vpop.f32.mrb[0].mxu0
    %v1872 = vpop.f32.mrb[0].mxu0
    %1873 = vdwg.mxu0
    %1874 = vmatprep.subr.bf16.mxu0 0
    %1875 = vmatpush1.bf16.msra.mxu0 %v1430
    %1876 = vmatprep.subr.bf16.mxu0 0
    %1877 = vmatpush1.bf16.msra.mxu0 %v1431
    %1878 = vmatprep.subr.bf16.mxu0 0
    %1879 = vmatpush1.bf16.msra.mxu0 %v1432
    %1880 = vmatprep.subr.bf16.mxu0 0
    %1881 = vmatpush1.bf16.msra.mxu0 %v1433
    %1882 = vmatprep.subr.bf16.mxu0 0
    %1883 = vmatpush1.bf16.msra.mxu0 %v1434
    %1884 = vmatprep.subr.bf16.mxu0 0
    %1885 = vmatpush1.bf16.msra.mxu0 %v1435
    %1886 = vmatprep.subr.bf16.mxu0 0
    %1887 = vmatpush1.bf16.msra.mxu0 %v1436
    %1888 = vmatprep.subr.bf16.mxu0 0
    %1889 = vmatpush1.bf16.msra.mxu0 %v1437
    %1890 = vmatprep.subr.bf16.mxu0 0
    %1891 = vmatpush1.bf16.msra.mxu0 %v1438
    %1892 = vmatprep.subr.bf16.mxu0 0
    %1893 = vmatpush1.bf16.msra.mxu0 %v1439
    %1894 = vmatprep.subr.bf16.mxu0 0
    %1895 = vmatpush1.bf16.msra.mxu0 %v1440
    %1896 = vmatprep.subr.bf16.mxu0 0
    %1897 = vmatpush1.bf16.msra.mxu0 %v1441
    %1898 = vmatprep.subr.bf16.mxu0 0
    %1899 = vmatpush1.bf16.msra.mxu0 %v1442
    %1900 = vmatprep.subr.bf16.mxu0 0
    %1901 = vmatpush1.bf16.msra.mxu0 %v1443
    %1902 = vmatprep.subr.bf16.mxu0 0
    %1903 = vmatpush1.bf16.msra.mxu0 %v1444
    %1904 = vmatprep.subr.bf16.mxu0 0
    %1905 = vmatpush1.bf16.msra.mxu0 %v1445
    %1906 = vmatprep.mubr.bf16.mxu0 %v473
    %1907 = vmatmul.mubr.bf16.gmra.mrb[0].mxu0 %v459
    %v1908 = vpop.f32.mrb[0].mxu0
    %v1909 = vadd.f32 %v1869, %v1908
    %v1910 = vpop.f32.mrb[0].mxu0
    %v1911 = vpop.f32.mrb[0].mxu0
    %v1912 = vpop.f32.mrb[0].mxu0
    %1913 = vdwg.mxu0
    %1914 = vmatprep.subr.bf16.mxu0 0
    %1915 = vmatpush1.bf16.msra.mxu0 %v1446
    %1916 = vmatprep.subr.bf16.mxu0 0
    %1917 = vmatpush1.bf16.msra.mxu0 %v1447
    %1918 = vmatprep.subr.bf16.mxu0 0
    %1919 = vmatpush1.bf16.msra.mxu0 %v1448
    %1920 = vmatprep.subr.bf16.mxu0 0
    %1921 = vmatpush1.bf16.msra.mxu0 %v1449
    %1922 = vmatprep.subr.bf16.mxu0 0
    %1923 = vmatpush1.bf16.msra.mxu0 %v1450
    %1924 = vmatprep.subr.bf16.mxu0 0
    %1925 = vmatpush1.bf16.msra.mxu0 %v1451
    %1926 = vmatprep.subr.bf16.mxu0 0
    %1927 = vmatpush1.bf16.msra.mxu0 %v1452
    %1928 = vmatprep.subr.bf16.mxu0 0
    %1929 = vmatpush1.bf16.msra.mxu0 %v1453
    %1930 = vmatprep.subr.bf16.mxu0 0
    %1931 = vmatpush1.bf16.msra.mxu0 %v1454
    %1932 = vmatprep.subr.bf16.mxu0 0
    %1933 = vmatpush1.bf16.msra.mxu0 %v1455
    %1934 = vmatprep.subr.bf16.mxu0 0
    %1935 = vmatpush1.bf16.msra.mxu0 %v1456
    %1936 = vmatprep.subr.bf16.mxu0 0
    %1937 = vmatpush1.bf16.msra.mxu0 %v1457
    %1938 = vmatprep.subr.bf16.mxu0 0
    %1939 = vmatpush1.bf16.msra.mxu0 %v1458
    %1940 = vmatprep.subr.bf16.mxu0 0
    %1941 = vmatpush1.bf16.msra.mxu0 %v1459
    %1942 = vmatprep.subr.bf16.mxu0 0
    %1943 = vmatpush1.bf16.msra.mxu0 %v1460
    %1944 = vmatprep.subr.bf16.mxu0 0
    %1945 = vmatpush1.bf16.msra.mxu0 %v1461
    %1946 = vmatprep.mubr.bf16.mxu0 %v477
    %1947 = vmatmul.mubr.bf16.gmra.mrb[0].mxu0 %v475
    %v1948 = vpop.f32.mrb[0].mxu0
    %v1949 = vadd.f32 %v1909, %v1948
    %v1950 = vpop.f32.mrb[0].mxu0
    %v1951 = vpop.f32.mrb[0].mxu0
    %v1952 = vpop.f32.mrb[0].mxu0
    %1953 = vdwg.mxu0
    %1954 = vmatprep.subr.bf16.mxu0 0
    %1955 = vmatpush1.bf16.msra.mxu0 %v1462
    %1956 = vmatprep.subr.bf16.mxu0 0
    %1957 = vmatpush1.bf16.msra.mxu0 %v1463
    %1958 = vmatprep.subr.bf16.mxu0 0
    %1959 = vmatpush1.bf16.msra.mxu0 %v1464
    %1960 = vmatprep.subr.bf16.mxu0 0
    %1961 = vmatpush1.bf16.msra.mxu0 %v1465
    %1962 = vmatprep.subr.bf16.mxu0 0
    %1963 = vmatpush1.bf16.msra.mxu0 %v1466
    %1964 = vmatprep.subr.bf16.mxu0 0
    %1965 = vmatpush1.bf16.msra.mxu0 %v1467
    %1966 = vmatprep.subr.bf16.mxu0 0
    %1967 = vmatpush1.bf16.msra.mxu0 %v1468
    %1968 = vmatprep.subr.bf16.mxu0 0
    %1969 = vmatpush1.bf16.msra.mxu0 %v1469
    %1970 = vmatprep.subr.bf16.mxu0 0
    %1971 = vmatpush1.bf16.msra.mxu0 %v1470
    %1972 = vmatprep.subr.bf16.mxu0 0
    %1973 = vmatpush1.bf16.msra.mxu0 %v1471
    %1974 = vmatprep.subr.bf16.mxu0 0
    %1975 = vmatpush1.bf16.msra.mxu0 %v1472
    %1976 = vmatprep.subr.bf16.mxu0 0
    %1977 = vmatpush1.bf16.msra.mxu0 %v1473
    %1978 = vmatprep.subr.bf16.mxu0 0
    %1979 = vmatpush1.bf16.msra.mxu0 %v1474
    %1980 = vmatprep.subr.bf16.mxu0 0
    %1981 = vmatpush1.bf16.msra.mxu0 %v1475
    %1982 = vmatprep.subr.bf16.mxu0 0
    %1983 = vmatpush1.bf16.msra.mxu0 %v1476
    %1984 = vmatprep.subr.bf16.mxu0 0
    %1985 = vmatpush1.bf16.msra.mxu0 %v1477
    %1986 = vmatprep.mubr.bf16.mxu0 %v515
    %1987 = vmatmul.mubr.bf16.gmra.mrb[0].mxu0 %v501
    %v1988 = vpop.f32.mrb[0].mxu0
    %v1989 = vadd.f32 %v1949, %v1988
    %v1990 = vpop.f32.mrb[0].mxu0
    %v1991 = vpop.f32.mrb[0].mxu0
    %v1992 = vpop.f32.mrb[0].mxu0
    %1993 = vdwg.mxu0
    %1994 = vmatprep.subr.bf16.mxu0 0
    %1995 = vmatpush1.bf16.msra.mxu0 %v1478
    %1996 = vmatprep.subr.bf16.mxu0 0
    %1997 = vmatpush1.bf16.msra.mxu0 %v1479
    %1998 = vmatprep.subr.bf16.mxu0 0
    %1999 = vmatpush1.bf16.msra.mxu0 %v1480
    %2000 = vmatprep.subr.bf16.mxu0 0
    %2001 = vmatpush1.bf16.msra.mxu0 %v1481
    %2002 = vmatprep.subr.bf16.mxu0 0
    %2003 = vmatpush1.bf16.msra.mxu0 %v1482
    %2004 = vmatprep.subr.bf16.mxu0 0
    %2005 = vmatpush1.bf16.msra.mxu0 %v1483
    %2006 = vmatprep.subr.bf16.mxu0 0
    %2007 = vmatpush1.bf16.msra.mxu0 %v1484
    %2008 = vmatprep.subr.bf16.mxu0 0
    %2009 = vmatpush1.bf16.msra.mxu0 %v1485
    %2010 = vmatprep.subr.bf16.mxu0 0
    %2011 = vmatpush1.bf16.msra.mxu0 %v1486
    %2012 = vmatprep.subr.bf16.mxu0 0
    %2013 = vmatpush1.bf16.msra.mxu0 %v1487
    %2014 = vmatprep.subr.bf16.mxu0 0
    %2015 = vmatpush1.bf16.msra.mxu0 %v1488
    %2016 = vmatprep.subr.bf16.mxu0 0
    %2017 = vmatpush1.bf16.msra.mxu0 %v1489
    %2018 = vmatprep.subr.bf16.mxu0 0
    %2019 = vmatpush1.bf16.msra.mxu0 %v1490
    %2020 = vmatprep.subr.bf16.mxu0 0
    %2021 = vmatpush1.bf16.msra.mxu0 %v1491
    %2022 = vmatprep.subr.bf16.mxu0 0
    %2023 = vmatpush1.bf16.msra.mxu0 %v1492
    %2024 = vmatprep.subr.bf16.mxu0 0
    %2025 = vmatpush1.bf16.msra.mxu0 %v1493
    %2026 = vmatprep.mubr.bf16.mxu0 %v525
    %2027 = vmatmul.mubr.bf16.gmra.mrb[0].mxu0 %v523
    %v2028 = vpop.f32.mrb[0].mxu0
    %v2029 = vadd.f32 %v1989, %v2028
    %v2030 = vpop.f32.mrb[0].mxu0
    %v2031 = vpop.f32.mrb[0].mxu0
    %v2032 = vpop.f32.mrb[0].mxu0
    %2033 = vdwg.mxu0
    %2034 = vmatprep.subr.bf16.mxu0 0
    %2035 = vmatpush1.bf16.msra.mxu0 %v1494
    %2036 = vmatprep.subr.bf16.mxu0 0
    %2037 = vmatpush1.bf16.msra.mxu0 %v1495
    %2038 = vmatprep.subr.bf16.mxu0 0
    %2039 = vmatpush1.bf16.msra.mxu0 %v1496
    %2040 = vmatprep.subr.bf16.mxu0 0
    %2041 = vmatpush1.bf16.msra.mxu0 %v1497
    %2042 = vmatprep.subr.bf16.mxu0 0
    %2043 = vmatpush1.bf16.msra.mxu0 %v1498
    %2044 = vmatprep.subr.bf16.mxu0 0
    %2045 = vmatpush1.bf16.msra.mxu0 %v1499
    %2046 = vmatprep.subr.bf16.mxu0 0
    %2047 = vmatpush1.bf16.msra.mxu0 %v1500
    %2048 = vmatprep.subr.bf16.mxu0 0
    %2049 = vmatpush1.bf16.msra.mxu0 %v1501
    %2050 = vmatprep.subr.bf16.mxu0 0
    %2051 = vmatpush1.bf16.msra.mxu0 %v1502
    %2052 = vmatprep.subr.bf16.mxu0 0
    %2053 = vmatpush1.bf16.msra.mxu0 %v1503
    %2054 = vmatprep.subr.bf16.mxu0 0
    %2055 = vmatpush1.bf16.msra.mxu0 %v1504
    %2056 = vmatprep.subr.bf16.mxu0 0
    %2057 = vmatpush1.bf16.msra.mxu0 %v1505
    %2058 = vmatprep.subr.bf16.mxu0 0
    %2059 = vmatpush1.bf16.msra.mxu0 %v1506
    %2060 = vmatprep.subr.bf16.mxu0 0
    %2061 = vmatpush1.bf16.msra.mxu0 %v1507
    %2062 = vmatprep.subr.bf16.mxu0 0
    %2063 = vmatpush1.bf16.msra.mxu0 %v1508
    %2064 = vmatprep.subr.bf16.mxu0 0
    %2065 = vmatpush1.bf16.msra.mxu0 %v1509
    %2066 = vmatprep.mubr.bf16.mxu0 %v522
    %2067 = vmatmul.mubr.bf16.gmra.mrb[0].mxu0 %v508
    %v2068 = vpop.f32.mrb[0].mxu0
    %v2069 = vadd.f32 %v2029, %v2068
    %v2070 = vpop.f32.mrb[0].mxu0
    %v2071 = vpop.f32.mrb[0].mxu0
    %v2072 = vpop.f32.mrb[0].mxu0
    %2073 = vdwg.mxu0
    %2074 = vmatprep.subr.bf16.mxu0 0
    %2075 = vmatpush1.bf16.msra.mxu0 %v1510
    %2076 = vmatprep.subr.bf16.mxu0 0
    %2077 = vmatpush1.bf16.msra.mxu0 %v1511
    %2078 = vmatprep.subr.bf16.mxu0 0
    %2079 = vmatpush1.bf16.msra.mxu0 %v1512
    %2080 = vmatprep.subr.bf16.mxu0 0
    %2081 = vmatpush1.bf16.msra.mxu0 %v1513
    %2082 = vmatprep.subr.bf16.mxu0 0
    %2083 = vmatpush1.bf16.msra.mxu0 %v1514
    %2084 = vmatprep.subr.bf16.mxu0 0
    %2085 = vmatpush1.bf16.msra.mxu0 %v1515
    %2086 = vmatprep.subr.bf16.mxu0 0
    %2087 = vmatpush1.bf16.msra.mxu0 %v1516
    %2088 = vmatprep.subr.bf16.mxu0 0
    %2089 = vmatpush1.bf16.msra.mxu0 %v1517
    %2090 = vmatprep.subr.bf16.mxu0 0
    %2091 = vmatpush1.bf16.msra.mxu0 %v1518
    %2092 = vmatprep.subr.bf16.mxu0 0
    %2093 = vmatpush1.bf16.msra.mxu0 %v1519
    %2094 = vmatprep.subr.bf16.mxu0 0
    %2095 = vmatpush1.bf16.msra.mxu0 %v1520
    %2096 = vmatprep.subr.bf16.mxu0 0
    %2097 = vmatpush1.bf16.msra.mxu0 %v1521
    %2098 = vmatprep.subr.bf16.mxu0 0
    %2099 = vmatpush1.bf16.msra.mxu0 %v1522
    %2100 = vmatprep.subr.bf16.mxu0 0
    %2101 = vmatpush1.bf16.msra.mxu0 %v1523
    %2102 = vmatprep.subr.bf16.mxu0 0
    %2103 = vmatpush1.bf16.msra.mxu0 %v1524
    %2104 = vmatprep.subr.bf16.mxu0 0
    %2105 = vmatpush1.bf16.msra.mxu0 %v1525
    %2106 = vmatprep.mubr.bf16.mxu0 %v526
    %2107 = vmatmul.mubr.bf16.gmra.mrb[0].mxu0 %v524
    %v2108 = vpop.f32.mrb[0].mxu0
    %v2109 = vadd.f32 %v2069, %v2108
    %v2110 = vpop.f32.mrb[0].mxu0
    %v2111 = vpop.f32.mrb[0].mxu0
    %v2112 = vpop.f32.mrb[0].mxu0
    %2113 = vdwg.mxu0
    %2114 = vmatprep.subr.bf16.mxu0 0
    %2115 = vmatpush1.bf16.msra.mxu0 %v1526
    %2116 = vmatprep.subr.bf16.mxu0 0
    %2117 = vmatpush1.bf16.msra.mxu0 %v1527
    %2118 = vmatprep.subr.bf16.mxu0 0
    %2119 = vmatpush1.bf16.msra.mxu0 %v1528
    %2120 = vmatprep.subr.bf16.mxu0 0
    %2121 = vmatpush1.bf16.msra.mxu0 %v1529
    %2122 = vmatprep.subr.bf16.mxu0 0
    %2123 = vmatpush1.bf16.msra.mxu0 %v1530
    %2124 = vmatprep.subr.bf16.mxu0 0
    %2125 = vmatpush1.bf16.msra.mxu0 %v1531
    %2126 = vmatprep.subr.bf16.mxu0 0
    %2127 = vmatpush1.bf16.msra.mxu0 %v1532
    %2128 = vmatprep.subr.bf16.mxu0 0
    %2129 = vmatpush1.bf16.msra.mxu0 %v1533
    %2130 = vmatprep.subr.bf16.mxu0 0
    %2131 = vmatpush1.bf16.msra.mxu0 %v1534
    %2132 = vmatprep.subr.bf16.mxu0 0
    %2133 = vmatpush1.bf16.msra.mxu0 %v1535
    %2134 = vmatprep.subr.bf16.mxu0 0
    %2135 = vmatpush1.bf16.msra.mxu0 %v1536
    %2136 = vmatprep.subr.bf16.mxu0 0
    %2137 = vmatpush1.bf16.msra.mxu0 %v1537
    %2138 = vmatprep.subr.bf16.mxu0 0
    %2139 = vmatpush1.bf16.msra.mxu0 %v1538
    %2140 = vmatprep.subr.bf16.mxu0 0
    %2141 = vmatpush1.bf16.msra.mxu0 %v1539
    %2142 = vmatprep.subr.bf16.mxu0 0
    %2143 = vmatpush1.bf16.msra.mxu0 %v1540
    %2144 = vmatprep.subr.bf16.mxu0 0
    %2145 = vmatpush1.bf16.msra.mxu0 %v1541
    %2146 = vmatprep.mubr.bf16.mxu0 %v564
    %2147 = vmatmul.mubr.bf16.gmra.mrb[0].mxu0 %v550
    %v2148 = vpop.f32.mrb[0].mxu0
    %v2149 = vadd.f32 %v2109, %v2148
    %v2150 = vpop.f32.mrb[0].mxu0
    %v2151 = vpop.f32.mrb[0].mxu0
    %v2152 = vpop.f32.mrb[0].mxu0
    %2153 = vdwg.mxu0
    %2154 = vmatprep.subr.bf16.mxu0 0
    %2155 = vmatpush1.bf16.msra.mxu0 %v1542
    %2156 = vmatprep.subr.bf16.mxu0 0
    %2157 = vmatpush1.bf16.msra.mxu0 %v1543
    %2158 = vmatprep.subr.bf16.mxu0 0
    %2159 = vmatpush1.bf16.msra.mxu0 %v1544
    %2160 = vmatprep.subr.bf16.mxu0 0
    %2161 = vmatpush1.bf16.msra.mxu0 %v1545
    %2162 = vmatprep.subr.bf16.mxu0 0
    %2163 = vmatpush1.bf16.msra.mxu0 %v1546
    %2164 = vmatprep.subr.bf16.mxu0 0
    %2165 = vmatpush1.bf16.msra.mxu0 %v1547
    %2166 = vmatprep.subr.bf16.mxu0 0
    %2167 = vmatpush1.bf16.msra.mxu0 %v1548
    %2168 = vmatprep.subr.bf16.mxu0 0
    %2169 = vmatpush1.bf16.msra.mxu0 %v1549
    %2170 = vmatprep.subr.bf16.mxu0 0
    %2171 = vmatpush1.bf16.msra.mxu0 %v1550
    %2172 = vmatprep.subr.bf16.mxu0 0
    %2173 = vmatpush1.bf16.msra.mxu0 %v1551
    %2174 = vmatprep.subr.bf16.mxu0 0
    %2175 = vmatpush1.bf16.msra.mxu0 %v1552
    %2176 = vmatprep.subr.bf16.mxu0 0
    %2177 = vmatpush1.bf16.msra.mxu0 %v1553
    %2178 = vmatprep.subr.bf16.mxu0 0
    %2179 = vmatpush1.bf16.msra.mxu0 %v1554
    %2180 = vmatprep.subr.bf16.mxu0 0
    %2181 = vmatpush1.bf16.msra.mxu0 %v1555
    %2182 = vmatprep.subr.bf16.mxu0 0
    %2183 = vmatpush1.bf16.msra.mxu0 %v1556
    %2184 = vmatprep.subr.bf16.mxu0 0
    %2185 = vmatpush1.bf16.msra.mxu0 %v1557
    %2186 = vmatprep.mubr.bf16.mxu0 %v574
    %2187 = vmatmul.mubr.bf16.gmra.mrb[0].mxu0 %v572
    %v2188 = vpop.f32.mrb[0].mxu0
    %v2189 = vadd.f32 %v2149, %v2188
    %v2190 = vpop.f32.mrb[0].mxu0
    %v2191 = vpop.f32.mrb[0].mxu0
    %v2192 = vpop.f32.mrb[0].mxu0
    %2193 = vdwg.mxu0
    %2194 = vmatprep.subr.bf16.mxu0 0
    %2195 = vmatpush1.bf16.msra.mxu0 %v1558
    %2196 = vmatprep.subr.bf16.mxu0 0
    %2197 = vmatpush1.bf16.msra.mxu0 %v1559
    %2198 = vmatprep.subr.bf16.mxu0 0
    %2199 = vmatpush1.bf16.msra.mxu0 %v1560
    %2200 = vmatprep.subr.bf16.mxu0 0
    %2201 = vmatpush1.bf16.msra.mxu0 %v1561
    %2202 = vmatprep.subr.bf16.mxu0 0
    %2203 = vmatpush1.bf16.msra.mxu0 %v1562
    %2204 = vmatprep.subr.bf16.mxu0 0
    %2205 = vmatpush1.bf16.msra.mxu0 %v1563
    %2206 = vmatprep.subr.bf16.mxu0 0
    %2207 = vmatpush1.bf16.msra.mxu0 %v1564
    %2208 = vmatprep.subr.bf16.mxu0 0
    %2209 = vmatpush1.bf16.msra.mxu0 %v1565
    %2210 = vmatprep.subr.bf16.mxu0 0
    %2211 = vmatpush1.bf16.msra.mxu0 %v1566
    %2212 = vmatprep.subr.bf16.mxu0 0
    %2213 = vmatpush1.bf16.msra.mxu0 %v1567
    %2214 = vmatprep.subr.bf16.mxu0 0
    %2215 = vmatpush1.bf16.msra.mxu0 %v1568
    %2216 = vmatprep.subr.bf16.mxu0 0
    %2217 = vmatpush1.bf16.msra.mxu0 %v1569
    %2218 = vmatprep.subr.bf16.mxu0 0
    %2219 = vmatpush1.bf16.msra.mxu0 %v1570
    %2220 = vmatprep.subr.bf16.mxu0 0
    %2221 = vmatpush1.bf16.msra.mxu0 %v1571
    %2222 = vmatprep.subr.bf16.mxu0 0
    %2223 = vmatpush1.bf16.msra.mxu0 %v1572
    %2224 = vmatprep.subr.bf16.mxu0 0
    %2225 = vmatpush1.bf16.msra.mxu0 %v1573
    %2226 = vmatprep.mubr.bf16.mxu0 %v571
    %2227 = vmatmul.mubr.bf16.gmra.mrb[0].mxu0 %v557
    %v2228 = vpop.f32.mrb[0].mxu0
    %v2229 = vadd.f32 %v2189, %v2228
    %v2230 = vpop.f32.mrb[0].mxu0
    %v2231 = vpop.f32.mrb[0].mxu0
    %v2232 = vpop.f32.mrb[0].mxu0
    %2233 = vdwg.mxu0
    %2234 = vmatprep.subr.bf16.mxu0 0
    %2235 = vmatpush1.bf16.msra.mxu0 %v1574
    %2236 = vmatprep.subr.bf16.mxu0 0
    %2237 = vmatpush1.bf16.msra.mxu0 %v1575
    %2238 = vmatprep.subr.bf16.mxu0 0
    %2239 = vmatpush1.bf16.msra.mxu0 %v1576
    %2240 = vmatprep.subr.bf16.mxu0 0
    %2241 = vmatpush1.bf16.msra.mxu0 %v1577
    %2242 = vmatprep.subr.bf16.mxu0 0
    %2243 = vmatpush1.bf16.msra.mxu0 %v1578
    %2244 = vmatprep.subr.bf16.mxu0 0
    %2245 = vmatpush1.bf16.msra.mxu0 %v1579
    %2246 = vmatprep.subr.bf16.mxu0 0
    %2247 = vmatpush1.bf16.msra.mxu0 %v1580
    %2248 = vmatprep.subr.bf16.mxu0 0
    %2249 = vmatpush1.bf16.msra.mxu0 %v1581
    %2250 = vmatprep.subr.bf16.mxu0 0
    %2251 = vmatpush1.bf16.msra.mxu0 %v1582
    %2252 = vmatprep.subr.bf16.mxu0 0
    %2253 = vmatpush1.bf16.msra.mxu0 %v1583
    %2254 = vmatprep.subr.bf16.mxu0 0
    %2255 = vmatpush1.bf16.msra.mxu0 %v1584
    %2256 = vmatprep.subr.bf16.mxu0 0
    %2257 = vmatpush1.bf16.msra.mxu0 %v1585
    %2258 = vmatprep.subr.bf16.mxu0 0
    %2259 = vmatpush1.bf16.msra.mxu0 %v1586
    %2260 = vmatprep.subr.bf16.mxu0 0
    %2261 = vmatpush1.bf16.msra.mxu0 %v1587
    %2262 = vmatprep.subr.bf16.mxu0 0
    %2263 = vmatpush1.bf16.msra.mxu0 %v1588
    %2264 = vmatprep.subr.bf16.mxu0 0
    %2265 = vmatpush1.bf16.msra.mxu0 %v1589
    %2266 = vmatprep.mubr.bf16.mxu0 %v575
    %2267 = vmatmul.mubr.bf16.gmra.mrb[0].mxu0 %v573
    %v2268 = vpop.f32.mrb[0].mxu0
    %v2269 = vadd.f32 %v2229, %v2268
    %v2270 = vpop.f32.mrb[0].mxu0
    %v2271 = vpop.f32.mrb[0].mxu0
    %v2272 = vpop.f32.mrb[0].mxu0
    %2273 = vdwg.mxu0
    %2274 = vmatprep.subr.bf16.mxu0 0
    %2275 = vmatpush1.bf16.msra.mxu0 %v1590
    %2276 = vmatprep.subr.bf16.mxu0 0
    %2277 = vmatpush1.bf16.msra.mxu0 %v1591
    %2278 = vmatprep.subr.bf16.mxu0 0
    %2279 = vmatpush1.bf16.msra.mxu0 %v1592
    %2280 = vmatprep.subr.bf16.mxu0 0
    %2281 = vmatpush1.bf16.msra.mxu0 %v1593
    %2282 = vmatprep.subr.bf16.mxu0 0
    %2283 = vmatpush1.bf16.msra.mxu0 0
    %2284 = vmatprep.subr.bf16.mxu0 0
    %2285 = vmatpush1.bf16.msra.mxu0 0
    %2286 = vmatprep.subr.bf16.mxu0 0
    %2287 = vmatpush1.bf16.msra.mxu0 0
    %2288 = vmatprep.subr.bf16.mxu0 0
    %2289 = vmatpush1.bf16.msra.mxu0 0
    %2290 = vmatprep.subr.bf16.mxu0 0
    %2291 = vmatpush1.bf16.msra.mxu0 0
    %2292 = vmatprep.subr.bf16.mxu0 0
    %2293 = vmatpush1.bf16.msra.mxu0 0
    %2294 = vmatprep.subr.bf16.mxu0 0
    %2295 = vmatpush1.bf16.msra.mxu0 0
    %2296 = vmatprep.subr.bf16.mxu0 0
    %2297 = vmatpush1.bf16.msra.mxu0 0
    %2298 = vmatprep.subr.bf16.mxu0 0
    %2299 = vmatpush1.bf16.msra.mxu0 0
    %2300 = vmatprep.subr.bf16.mxu0 0
    %2301 = vmatpush1.bf16.msra.mxu0 0
    %2302 = vmatprep.subr.bf16.mxu0 0
    %2303 = vmatpush1.bf16.msra.mxu0 0
    %2304 = vmatprep.subr.bf16.mxu0 0
    %2305 = vmatpush1.bf16.msra.mxu0 0
    %2306 = vmatprep.mubr.bf16.mxu0 0
    %2307 = vmatmul.mubr.bf16.gmra.mrb[0].mxu0 %v1792
    %v2308 = vpop.f32.mrb[0].mxu0
    %v2309 = vadd.f32 %v2269, %v2308
    %v2310 = vpop.f32.mrb[0].mxu0
    %v2311 = vpop.f32.mrb[0].mxu0
    %v2312 = vpop.f32.mrb[0].mxu0
    %2313 = vdwg.mxu0
    %v2314 = vmax.f32 %v2309, 0.0
    %v2315 = vpack.c.bf16 %v2314, %v2314
    %v2316 = vld [vmem:[%s3] sm:$0xf]
    %v2317 = vld [vmem:[%s3 + $0x4] sm:$0xf]
    %v2318 = vld [vmem:[%s3 + $0x8] sm:$0xf]
    %v2319 = vld [vmem:[%s3 + $0xc] sm:$0xf]
    %v2320 = vld [vmem:[%s3 + $0x10] sm:$0xf]
    %v2321 = vld [vmem:[%s3 + $0x14] sm:$0xf]
    %v2322 = vld [vmem:[%s3 + $0x18] sm:$0xf]
    %v2323 = vld [vmem:[%s3 + $0x1c] sm:$0xf]
    %v2324 = vld [vmem:[%s3 + $0x20] sm:$0xf]
    %v2325 = vld [vmem:[%s3 + $0x24] sm:$0xf]
    %v2326 = vld [vmem:[%s3 + $0x28] sm:$0xf]
    %v2327 = vld [vmem:[%s3 + $0x2c] sm:$0xf]
    %v2328 = vld [vmem:[%s3 + $0x30] sm:$0xf]
    %v2329 = vld [vmem:[%s3 + $0x34] sm:$0xf]
    %v2330 = vld [vmem:[%s3 + $0x38] sm:$0xf]
    %v2331 = vld [vmem:[%s3 + $0x3c] sm:$0xf]
    %v2332 = vld [vmem:[%s4] sm:$0x1]
    %v2334 = vlaneseq
    %v2335 = vshrl.u32 %v2334, 7
    %v2336 = vsub.s32 0, %v2335
    %v2337 = vrot.slane %v2332, %v2336
    %v2355 = vunpack.c.l.b16 %v2316
    %v2356 = vunpack.c.l.b16 %v2317
    %v2357 = vunpack.c.l.b16 %v2318
    %v2358 = vunpack.c.l.b16 %v2319
    %v2359 = vunpack.c.l.b16 %v2320
    %v2360 = vunpack.c.l.b16 %v2321
    %v2361 = vunpack.c.l.b16 %v2322
    %v2362 = vunpack.c.l.b16 %v2323
    %v2363 = vunpack.c.l.b16 %v2324
    %v2364 = vunpack.c.l.b16 %v2325
    %v2365 = vunpack.c.l.b16 %v2326
    %v2366 = vunpack.c.l.b16 %v2327
    %v2367 = vunpack.c.l.b16 %v2328
    %v2368 = vunpack.c.l.b16 %v2329
    %v2369 = vunpack.c.l.b16 %v2330
    %v2370 = vunpack.c.l.b16 %v2331
    %v2371 = vpack.c.b16 %v2356, %v2355
    %v2372 = vpack.c.b16 %v2358, %v2357
    %v2373 = vpack.c.b16 %v2360, %v2359
    %v2374 = vpack.c.b16 %v2362, %v2361
    %v2375 = vpack.c.b16 %v2364, %v2363
    %v2376 = vpack.c.b16 %v2366, %v2365
    %v2377 = vpack.c.b16 %v2368, %v2367
    %v2378 = vpack.c.b16 %v2370, %v2369
    %2387 = vmatprep.subr.bf16.mxu0 0
    %2388 = vmatpush1.bf16.msra.mxu0 %v2371
    %2389 = vmatprep.subr.bf16.mxu0 0
    %2390 = vmatpush1.bf16.msra.mxu0 %v2372
    %2391 = vmatprep.subr.bf16.mxu0 0
    %2392 = vmatpush1.bf16.msra.mxu0 %v2373
    %2393 = vmatprep.subr.bf16.mxu0 0
    %2394 = vmatpush1.bf16.msra.mxu0 %v2374
    %2395 = vmatprep.subr.bf16.mxu0 0
    %2396 = vmatpush1.bf16.msra.mxu0 %v2375
    %2397 = vmatprep.subr.bf16.mxu0 0
    %2398 = vmatpush1.bf16.msra.mxu0 %v2376
    %2399 = vmatprep.subr.bf16.mxu0 0
    %2400 = vmatpush1.bf16.msra.mxu0 %v2377
    %2401 = vmatprep.subr.bf16.mxu0 0
    %2402 = vmatpush1.bf16.msra.mxu0 %v2378
    %2403 = vmatprep.subr.bf16.mxu0 0
    %2404 = vmatpush1.bf16.msra.mxu0 0
    %2405 = vmatprep.subr.bf16.mxu0 0
    %2406 = vmatpush1.bf16.msra.mxu0 0
    %2407 = vmatprep.subr.bf16.mxu0 0
    %2408 = vmatpush1.bf16.msra.mxu0 0
    %2409 = vmatprep.subr.bf16.mxu0 0
    %2410 = vmatpush1.bf16.msra.mxu0 0
    %2411 = vmatprep.subr.bf16.mxu0 0
    %2412 = vmatpush1.bf16.msra.mxu0 0
    %2413 = vmatprep.subr.bf16.mxu0 0
    %2414 = vmatpush1.bf16.msra.mxu0 0
    %2415 = vmatprep.subr.bf16.mxu0 0
    %2416 = vmatpush1.bf16.msra.mxu0 0
    %2417 = vmatprep.subr.bf16.mxu0 0
    %2418 = vmatpush1.bf16.msra.mxu0 0
    %2419 = vmatprep.mubr.bf16.mxu0 0
    %2420 = vmatmul.mubr.bf16.gmra.mrb[0].mxu0 %v2315
    %v2421 = vpop.f32.mrb[0].mxu0
    %v2422 = vadd.f32 %v2337, %v2421
    %v2423 = vpop.f32.mrb[0].mxu0
    %v2424 = vpop.f32.mrb[0].mxu0
    %v2425 = vpop.f32.mrb[0].mxu0
    %2426 = vdwg.mxu0
    %2427 = vst [vmem:[#allocation2] sm:$0x3] %v2422
    // Predicated region
    $region22: #{cnn_forward.5} parent=1 // pred_check
      _
    $region23: #{cnn_forward.5} parent=1 // pred_check_branch
      %2429 = sbr.rel (0) target = $region25
    $region24: #{cnn_forward.5} parent=1 // pred_region
      %s2431 = ssub.s32 32, 32
      %2432 = vsyncadd [#allocation3], %s2431
      %s2434 = sshll.u32 [#allocation2], 4
      %s2435 = int_to_ptr.vmem [resolvable:$true] %s2434
      %2437 = dma.vmem_to_hbm [thread:$0]  %s2435, 32, %s5, [#allocation3]
    $region25: #{cnn_forward.5} parent=1 // pred_fallthru
      _
    // Predicated region
    $region26: #{cnn_forward.5} parent=1 // pred_check
      _
    $region27: #{cnn_forward.5} parent=1 // pred_check_branch
      %2439 = sbr.rel (0) target = $region29
    $region28: #{cnn_forward.5} parent=1 // pred_region
      %2440 = dma.done [#allocation3], 32
    $region29: #{cnn_forward.5} parent=1 // pred_fallthru
      _
    %2441 = vsyncpa [#allocation3], 1

</llo_original>
